<compile_context>
chip_gen: v6e
topology: v6e:2x2x1
jax: 0.10.0
libtpu: 0.0.40
codegen_flags: <defaults>
</compile_context>

<pallas_src>
import numpy as np
import jax
import jax.numpy as jnp
from jax import lax
from jax.experimental import pallas as pl
from jax.experimental.pallas import tpu as pltpu

# Model dims (defaults of SFM_Model) and small test shapes.
D_FEAT = 6
HIDDEN = 64
FREQ = 10
OUT_DIM = 1
BATCH = 16
SEQ = 8

GATE_COLS = 4 * HIDDEN + FREQ * HIDDEN   # [i | ste | c | o | fre (H-replicated)]


def _hardsigmoid(v):
    # torch.nn.Hardsigmoid: relu6(x + 3) / 6
    return jnp.clip(v / 6.0 + 0.5, 0.0, 1.0)


def sfm_kernel(x_ref, wx_ref, uh_ref, b_ref, ba_ref, ua_ref,
               cos_ref, sin_ref, wh_ref, bh_ref,
               out_ref, zx_scr, h_scr, sre_scr, sim_scr):
    T = cos_ref.shape[0]
    N = h_scr.shape[0]
    H = h_scr.shape[1]
    FH = sre_scr.shape[1]
    F = FH // H

    # ---- Prologue: hoisted x projection, one big matmul over all T*N rows. ----
    zx_scr[...] = (jnp.dot(x_ref[...], wx_ref[...],
                           preferred_element_type=jnp.float32)
                   + b_ref[...])                                # (T*N, 4H+F*H)

    # Zero the recurrent state once (single kernel invocation, no grid).
    h_scr[...] = jnp.zeros_like(h_scr)
    sre_scr[...] = jnp.zeros_like(sre_scr)
    sim_scr[...] = jnp.zeros_like(sim_scr)

    def step(t, carry):
        h = h_scr[...]                                          # (N, H)
        row = pl.multiple_of(t * N, N)
        zx = zx_scr[pl.ds(row, N), :]                           # (N, 4H+F*H)

        # One MXU matmul per step on the recurrent path.
        z = zx + jnp.dot(h, uh_ref[...], preferred_element_type=jnp.float32)

        i_g = _hardsigmoid(z[:, 0:H])
        ste = _hardsigmoid(z[:, H:2 * H])
        c_t = jnp.tanh(z[:, 2 * H:3 * H])
        o_g = _hardsigmoid(z[:, 3 * H:4 * H])
        fre = _hardsigmoid(z[:, 4 * H:])                        # (N, F*H)

        c_term = i_g * c_t                                      # (N, H)

        # Lane-dense (N, F*H) frequency update.
        ste_t = jnp.concatenate([ste] * F, axis=-1)             # (N, F*H)
        c_t_t = jnp.concatenate([c_term] * F, axis=-1)          # (N, F*H)
        f_gate = ste_t * fre

        cos_row = cos_ref[pl.ds(t, 1), :]                       # (1, F*H)
        sin_row = sin_ref[pl.ds(t, 1), :]                       # (1, F*H)
        s_re = f_gate * sre_scr[...] + c_t_t * cos_row
        s_im = f_gate * sim_scr[...] + c_t_t * sin_row
        sre_scr[...] = s_re
        sim_scr[...] = s_im

        # A_a[n,h] = sum_f (S_re^2 + S_im^2)[n,f,h] * U_a[f]
        amp = (s_re * s_re + s_im * s_im) * ua_ref[...]         # (N, F*H)
        parts = [amp[:, f * H:(f + 1) * H] for f in range(F)]
        while len(parts) > 1:
            nxt = [parts[i] + parts[i + 1] for i in range(0, len(parts) - 1, 2)]
            if len(parts) % 2:
                nxt.append(parts[-1])
            parts = nxt

        a = jnp.tanh(parts[0] + ba_ref[...])
        h_scr[...] = o_g * a
        return carry

    lax.fori_loop(0, T, step, 0, unroll=True)

    # ---- Fused output head: p = h@W_p + b_p ; out = p@W_fc^T + b_fc  ==>  h@W_head + b_head
    h_fin = h_scr[...]
    out_ref[...] = (jnp.dot(h_fin, wh_ref[...],
                            preferred_element_type=jnp.float32)
                    + bh_ref[...])                              # (N, 1)


def make_params(key):
    """Raw parameters, matching the PyTorch module layout/init."""
    ks = jax.random.split(key, 16)
    glorot = jax.nn.initializers.glorot_uniform()
    ortho = jax.nn.initializers.orthogonal()
    return dict(
        W_i=glorot(ks[0], (D_FEAT, HIDDEN), jnp.float32),
        W_ste=glorot(ks[1], (D_FEAT, HIDDEN), jnp.float32),
        W_c=glorot(ks[2], (D_FEAT, HIDDEN), jnp.float32),
        W_o=glorot(ks[3], (D_FEAT, HIDDEN), jnp.float32),
        U_i=ortho(ks[4], (HIDDEN, HIDDEN), jnp.float32),
        U_ste=ortho(ks[5], (HIDDEN, HIDDEN), jnp.float32),
        U_c=ortho(ks[6], (HIDDEN, HIDDEN), jnp.float32),
        U_o=ortho(ks[7], (HIDDEN, HIDDEN), jnp.float32),
        b_i=jnp.zeros((HIDDEN,), jnp.float32),
        b_ste=jnp.ones((HIDDEN,), jnp.float32),
        b_c=jnp.zeros((HIDDEN,), jnp.float32),
        b_o=jnp.zeros((HIDDEN,), jnp.float32),
        W_fre=glorot(ks[8], (D_FEAT, FREQ), jnp.float32),
        U_fre=ortho(ks[9], (HIDDEN, FREQ), jnp.float32),
        b_fre=jnp.ones((FREQ,), jnp.float32),
        U_a=ortho(ks[10], (FREQ, 1), jnp.float32),
        b_a=jnp.zeros((HIDDEN,), jnp.float32),
        W_p=glorot(ks[11], (HIDDEN, OUT_DIM), jnp.float32),
        b_p=jnp.zeros((OUT_DIM,), jnp.float32),
        # fc_out = nn.Linear(output_dim, 1)
        W_fc=jax.random.uniform(ks[12], (1, OUT_DIM), jnp.float32, -1.0, 1.0),
        b_fc=jax.random.uniform(ks[13], (1,), jnp.float32, -1.0, 1.0),
    )


def pack_params(p):
    """Offline repack: fused [i|ste|c|o|fre-expanded] blocks + fused output head."""
    H = HIDDEN
    wx = jnp.concatenate(
        [p["W_i"], p["W_ste"], p["W_c"], p["W_o"],
         jnp.repeat(p["W_fre"], H, axis=1)], axis=1)        # (D, 4H + F*H)
    uh = jnp.concatenate(
        [p["U_i"], p["U_ste"], p["U_c"], p["U_o"],
         jnp.repeat(p["U_fre"], H, axis=1)], axis=1)        # (H, 4H + F*H)
    b = jnp.concatenate(
        [p["b_i"], p["b_ste"], p["b_c"], p["b_o"],
         jnp.repeat(p["b_fre"], H)]).reshape(1, -1)         # (1, 4H + F*H)
    ua_exp = jnp.repeat(p["U_a"][:, 0], H).reshape(1, -1)   # (1, F*H)
    w_head = p["W_p"] @ p["W_fc"].T                         # (H, 1)
    b_head = (p["b_p"] @ p["W_fc"].T + p["b_fc"]).reshape(1, 1)
    return dict(Wx=wx, Uh=uh, b=b, ba=p["b_a"].reshape(1, H),
                Ua=ua_exp, Wh=w_head, bh=b_head)


def _freq_tables(T):
    """cos/sin(2*pi*(t+1)*k/F) computed in float64 on host; returned as float64 (T, F)."""
    t = np.arange(1, T + 1, dtype=np.float64)[:, None]
    fr = (np.arange(FREQ, dtype=np.float64) / FREQ)[None, :]
    omega = 2.0 * np.pi * t * fr
    return np.cos(omega), np.sin(omega)


def sfm_forward(x2d, params):
    N = x2d.shape[0]
    T = x2d.shape[1] // D_FEAT
    kp = pack_params(params)

    cos64, sin64 = _freq_tables(T)
    # H-replicated VMEM row tables: entry [t, f*H + j] = cos/sin(omega(t, f)).
    cos_tab = jnp.asarray(np.repeat(cos64, HIDDEN, axis=1), jnp.float32)  # (T, F*H)
    sin_tab = jnp.asarray(np.repeat(sin64, HIDDEN, axis=1), jnp.float32)  # (T, F*H)

    # torch: reshape(N, D, T).permute(0, 2, 1) -> (N, T, D); kernel uses flat (T*N, D).
    x_flat = x2d.reshape(N, D_FEAT, T).transpose(2, 0, 1).reshape(T * N, D_FEAT)

    vmem = pl.BlockSpec(memory_space=pltpu.MemorySpace.VMEM)

    out = pl.pallas_call(
        sfm_kernel,
        out_shape=jax.ShapeDtypeStruct((N, OUT_DIM), jnp.float32),
        in_specs=[vmem,                    # x       (T*N, D)
                  vmem, vmem, vmem,        # Wx, Uh, b
                  vmem,                    # ba      (1, H)
                  vmem,                    # Ua_exp  (1, F*H)
                  vmem, vmem,              # cos/sin (T, F*H)
                  vmem, vmem],             # W_head, b_head
        out_specs=vmem,
        scratch_shapes=[
            pltpu.VMEM((T * N, GATE_COLS), jnp.float32),        # ZX (hoisted proj)
            pltpu.VMEM((N, HIDDEN), jnp.float32),               # h
            pltpu.VMEM((N, FREQ * HIDDEN), jnp.float32),        # S_re (lane-dense)
            pltpu.VMEM((N, FREQ * HIDDEN), jnp.float32),        # S_im (lane-dense)
        ],
    )(x_flat, kp["Wx"], kp["Uh"], kp["b"], kp["ba"], kp["Ua"],
      cos_tab, sin_tab, kp["Wh"], kp["bh"])
    return out[:, 0]   # matches .squeeze() -> (N,)


def sfm_reference(x2d, p, cos_tab, sin_tab):
    """Pure-JAX replica of the PyTorch forward loop (unfused), for verification."""
    N = x2d.shape[0]
    T = x2d.shape[1] // D_FEAT
    xin = x2d.reshape(N, D_FEAT, T).transpose(0, 2, 1)   # (N, T, D)
    h = jnp.zeros((N, HIDDEN), jnp.float32)
    s_re = jnp.zeros((N, HIDDEN, FREQ), jnp.float32)
    s_im = jnp.zeros((N, HIDDEN, FREQ), jnp.float32)
    with jax.default_matmul_precision("float32"):
        for ts in range(T):
            x = xin[:, ts, :]
            i_g = _hardsigmoid(x @ p["W_i"] + p["b_i"] + h @ p["U_i"])
            ste = _hardsigmoid(x @ p["W_ste"] + p["b_ste"] + h @ p["U_ste"])
            fre = _hardsigmoid(x @ p["W_fre"] + p["b_fre"] + h @ p["U_fre"])
            c_t = jnp.tanh(x @ p["W_c"] + p["b_c"] + h @ p["U_c"])
            o_g = _hardsigmoid(x @ p["W_o"] + p["b_o"] + h @ p["U_o"])
            f = ste[:, :, None] * fre[:, None, :]
            c = (i_g * c_t)[:, :, None]
            re = cos_tab[ts][None, None, :]
            im = sin_tab[ts][None, None, :]
            s_re = f * s_re + c * re
            s_im = f * s_im + c * im
            amp = s_re ** 2 + s_im ** 2
            a_a = jnp.einsum("nhf,f->nh", amp, p["U_a"][:, 0])
            a = jnp.tanh(a_a + p["b_a"][None, :])
            h = o_g * a
        pout = h @ p["W_p"] + p["b_p"][None, :]
        return (pout @ p["W_fc"].T + p["b_fc"][None, :])[:, 0]


if __name__ == "__main__":
    key = jax.random.PRNGKey(0)
    pkey, xkey = jax.random.split(key)
    params = make_params(pkey)
    x = jax.random.normal(xkey, (BATCH, D_FEAT * SEQ), jnp.float32)

    out = sfm_forward(x, params)
    out = jax.block_until_ready(out)

    cos64, sin64 = _freq_tables(SEQ)
    ref = sfm_reference(x, params,
                        jnp.asarray(cos64, jnp.float32),
                        jnp.asarray(sin64, jnp.float32))
    np.testing.assert_allclose(np.asarray(out), np.asarray(ref),
                               rtol=2e-3, atol=2e-3)
    print("KERNEL_OK")
</pallas_src>

<mosaic_0001>
module attributes {stable_mosaic.version = 11 : i64} {
  func.func @sfm_kernel(%arg0: memref<128x6xf32, #tpu.memory_space<vmem>>, %arg1: memref<6x896xf32, #tpu.memory_space<vmem>>, %arg2: memref<64x896xf32, #tpu.memory_space<vmem>>, %arg3: memref<1x896xf32, #tpu.memory_space<vmem>>, %arg4: memref<1x64xf32, #tpu.memory_space<vmem>>, %arg5: memref<1x640xf32, #tpu.memory_space<vmem>>, %arg6: memref<8x640xf32, #tpu.memory_space<vmem>>, %arg7: memref<8x640xf32, #tpu.memory_space<vmem>>, %arg8: memref<64x1xf32, #tpu.memory_space<vmem>>, %arg9: memref<1x1xf32, #tpu.memory_space<vmem>>, %arg10: memref<16x1xf32, #tpu.memory_space<vmem>>, %arg11: memref<128x896xf32, #tpu.memory_space<vmem>>, %arg12: memref<16x64xf32, #tpu.memory_space<vmem>>, %arg13: memref<16x640xf32, #tpu.memory_space<vmem>>, %arg14: memref<16x640xf32, #tpu.memory_space<vmem>>) attributes {dimension_semantics = [], scalar_prefetch = 0 : i64, scratch_operands = 4 : i64, tpu.core_type = #tpu.core_type<tc>} {
    %c0 = arith.constant 0 : index
    %c0_0 = arith.constant 0 : index
    %0 = vector.load %arg0[%c0, %c0_0] : memref<128x6xf32, #tpu.memory_space<vmem>>, vector<128x6xf32>
    %c0_1 = arith.constant 0 : index
    %c0_2 = arith.constant 0 : index
    %1 = vector.load %arg1[%c0_1, %c0_2] : memref<6x896xf32, #tpu.memory_space<vmem>>, vector<6x896xf32>
    %cst = arith.constant dense<0.000000e+00> : vector<128x896xf32>
    %2 = tpu.matmul %0, %1, %cst {dimension_numbers = #tpu.dot_dimension_numbers<[1], [0], [0], [1], [0, 0, 1, 1], [], []>} : vector<128x6xf32>, vector<6x896xf32>, vector<128x896xf32> -> vector<128x896xf32>
    %c0_3 = arith.constant 0 : index
    %c0_4 = arith.constant 0 : index
    %3 = vector.load %arg3[%c0_3, %c0_4] : memref<1x896xf32, #tpu.memory_space<vmem>>, vector<1x896xf32>
    %4 = vector.broadcast %3 : vector<1x896xf32> to vector<128x896xf32>
    %5 = arith.addf %2, %4 : vector<128x896xf32>
    %c0_5 = arith.constant 0 : index
    %c0_6 = arith.constant 0 : index
    %6 = vector.load %arg11[%c0_5, %c0_6] : memref<128x896xf32, #tpu.memory_space<vmem>>, vector<128x896xf32>
    tpu.vector_store %arg11[%c0_5, %c0_6], %5 {strides = array<i32>} : memref<128x896xf32, #tpu.memory_space<vmem>>, vector<128x896xf32>,
    %cst_7 = arith.constant 0.000000e+00 : f32
    %7 = vector.broadcast %cst_7 : f32 to vector<16x64xf32>
    %c0_8 = arith.constant 0 : index
    %c0_9 = arith.constant 0 : index
    %8 = vector.load %arg12[%c0_8, %c0_9] : memref<16x64xf32, #tpu.memory_space<vmem>>, vector<16x64xf32>
    tpu.vector_store %arg12[%c0_8, %c0_9], %7 {strides = array<i32>} : memref<16x64xf32, #tpu.memory_space<vmem>>, vector<16x64xf32>,
    %cst_10 = arith.constant 0.000000e+00 : f32
    %9 = vector.broadcast %cst_10 : f32 to vector<16x640xf32>
    %c0_11 = arith.constant 0 : index
    %c0_12 = arith.constant 0 : index
    %10 = vector.load %arg13[%c0_11, %c0_12] : memref<16x640xf32, #tpu.memory_space<vmem>>, vector<16x640xf32>
    tpu.vector_store %arg13[%c0_11, %c0_12], %9 {strides = array<i32>} : memref<16x640xf32, #tpu.memory_space<vmem>>, vector<16x640xf32>,
    %cst_13 = arith.constant 0.000000e+00 : f32
    %11 = vector.broadcast %cst_13 : f32 to vector<16x640xf32>
    %c0_14 = arith.constant 0 : index
    %c0_15 = arith.constant 0 : index
    %12 = vector.load %arg14[%c0_14, %c0_15] : memref<16x640xf32, #tpu.memory_space<vmem>>, vector<16x640xf32>
    tpu.vector_store %arg14[%c0_14, %c0_15], %11 {strides = array<i32>} : memref<16x640xf32, #tpu.memory_space<vmem>>, vector<16x640xf32>,
    %c0_i32 = arith.constant 0 : i32
    %c0_16 = arith.constant 0 : index
    %c0_17 = arith.constant 0 : index
    %13 = vector.load %arg12[%c0_16, %c0_17] : memref<16x64xf32, #tpu.memory_space<vmem>>, vector<16x64xf32>
    %c16_i32 = arith.constant 16 : i32
    %14 = arith.muli %c0_i32, %c16_i32 : i32
    %15 = tpu.assume_multiple %14, 16 : i32
    %16 = arith.index_cast %15 : i32 to index
    %c0_18 = arith.constant 0 : index
    %17 = vector.load %arg11[%16, %c0_18] : memref<128x896xf32, #tpu.memory_space<vmem>>, vector<16x896xf32>
    %c0_19 = arith.constant 0 : index
    %c0_20 = arith.constant 0 : index
    %18 = vector.load %arg2[%c0_19, %c0_20] : memref<64x896xf32, #tpu.memory_space<vmem>>, vector<64x896xf32>
    %cst_21 = arith.constant dense<0.000000e+00> : vector<16x896xf32>
    %19 = tpu.matmul %13, %18, %cst_21 {dimension_numbers = #tpu.dot_dimension_numbers<[1], [0], [0], [1], [0, 0, 1, 1], [], []>} : vector<16x64xf32>, vector<64x896xf32>, vector<16x896xf32> -> vector<16x896xf32>
    %20 = arith.addf %17, %19 : vector<16x896xf32>
    %21 = vector.extract_strided_slice %20 {offsets = [0, 0], sizes = [16, 64], strides = [1, 1]} : vector<16x896xf32> to vector<16x64xf32>
    %cst_22 = arith.constant 6.000000e+00 : f32
    %22 = vector.broadcast %cst_22 : f32 to vector<16x64xf32>
    %23 = arith.divf %21, %22 : vector<16x64xf32>
    %cst_23 = arith.constant 5.000000e-01 : f32
    %24 = vector.broadcast %cst_23 : f32 to vector<16x64xf32>
    %25 = arith.addf %23, %24 : vector<16x64xf32>
    %cst_24 = arith.constant 0.000000e+00 : f32
    %cst_25 = arith.constant 1.000000e+00 : f32
    %26 = vector.broadcast %cst_24 : f32 to vector<16x64xf32>
    %27 = arith.maximumf %26, %25 : vector<16x64xf32>
    %28 = vector.broadcast %cst_25 : f32 to vector<16x64xf32>
    %29 = arith.minimumf %28, %27 : vector<16x64xf32>
    %30 = vector.extract_strided_slice %20 {offsets = [0, 64], sizes = [16, 64], strides = [1, 1]} : vector<16x896xf32> to vector<16x64xf32>
    %cst_26 = arith.constant 6.000000e+00 : f32
    %31 = vector.broadcast %cst_26 : f32 to vector<16x64xf32>
    %32 = arith.divf %30, %31 : vector<16x64xf32>
    %cst_27 = arith.constant 5.000000e-01 : f32
    %33 = vector.broadcast %cst_27 : f32 to vector<16x64xf32>
    %34 = arith.addf %32, %33 : vector<16x64xf32>
    %cst_28 = arith.constant 0.000000e+00 : f32
    %cst_29 = arith.constant 1.000000e+00 : f32
    %35 = vector.broadcast %cst_28 : f32 to vector<16x64xf32>
    %36 = arith.maximumf %35, %34 : vector<16x64xf32>
    %37 = vector.broadcast %cst_29 : f32 to vector<16x64xf32>
    %38 = arith.minimumf %37, %36 : vector<16x64xf32>
    %39 = vector.extract_strided_slice %20 {offsets = [0, 128], sizes = [16, 64], strides = [1, 1]} : vector<16x896xf32> to vector<16x64xf32>
    %40 = math.tanh %39 : vector<16x64xf32>
    %41 = vector.extract_strided_slice %20 {offsets = [0, 192], sizes = [16, 64], strides = [1, 1]} : vector<16x896xf32> to vector<16x64xf32>
    %cst_30 = arith.constant 6.000000e+00 : f32
    %42 = vector.broadcast %cst_30 : f32 to vector<16x64xf32>
    %43 = arith.divf %41, %42 : vector<16x64xf32>
    %cst_31 = arith.constant 5.000000e-01 : f32
    %44 = vector.broadcast %cst_31 : f32 to vector<16x64xf32>
    %45 = arith.addf %43, %44 : vector<16x64xf32>
    %cst_32 = arith.constant 0.000000e+00 : f32
    %cst_33 = arith.constant 1.000000e+00 : f32
    %46 = vector.broadcast %cst_32 : f32 to vector<16x64xf32>
    %47 = arith.maximumf %46, %45 : vector<16x64xf32>
    %48 = vector.broadcast %cst_33 : f32 to vector<16x64xf32>
    %49 = arith.minimumf %48, %47 : vector<16x64xf32>
    %50 = vector.extract_strided_slice %20 {offsets = [0, 256], sizes = [16, 640], strides = [1, 1]} : vector<16x896xf32> to vector<16x640xf32>
    %cst_34 = arith.constant 6.000000e+00 : f32
    %51 = vector.broadcast %cst_34 : f32 to vector<16x640xf32>
    %52 = arith.divf %50, %51 : vector<16x640xf32>
    %cst_35 = arith.constant 5.000000e-01 : f32
    %53 = vector.broadcast %cst_35 : f32 to vector<16x640xf32>
    %54 = arith.addf %52, %53 : vector<16x640xf32>
    %cst_36 = arith.constant 0.000000e+00 : f32
    %cst_37 = arith.constant 1.000000e+00 : f32
    %55 = vector.broadcast %cst_36 : f32 to vector<16x640xf32>
    %56 = arith.maximumf %55, %54 : vector<16x640xf32>
    %57 = vector.broadcast %cst_37 : f32 to vector<16x640xf32>
    %58 = arith.minimumf %57, %56 : vector<16x640xf32>
    %59 = arith.mulf %29, %40 : vector<16x64xf32>
    %60 = tpu.concatenate %38, %38, %38, %38, %38, %38, %38, %38, %38, %38 in 1 : vector<16x64xf32>, vector<16x64xf32>, vector<16x64xf32>, vector<16x64xf32>, vector<16x64xf32>, vector<16x64xf32>, vector<16x64xf32>, vector<16x64xf32>, vector<16x64xf32>, vector<16x64xf32> -> vector<16x640xf32>
    %61 = tpu.concatenate %59, %59, %59, %59, %59, %59, %59, %59, %59, %59 in 1 : vector<16x64xf32>, vector<16x64xf32>, vector<16x64xf32>, vector<16x64xf32>, vector<16x64xf32>, vector<16x64xf32>, vector<16x64xf32>, vector<16x64xf32>, vector<16x64xf32>, vector<16x64xf32> -> vector<16x640xf32>
    %62 = arith.mulf %60, %58 : vector<16x640xf32>
    %63 = arith.index_cast %c0_i32 : i32 to index
    %c0_38 = arith.constant 0 : index
    %64 = vector.load %arg6[%63, %c0_38] : memref<8x640xf32, #tpu.memory_space<vmem>>, vector<1x640xf32>
    %65 = arith.index_cast %c0_i32 : i32 to index
    %c0_39 = arith.constant 0 : index
    %66 = vector.load %arg7[%65, %c0_39] : memref<8x640xf32, #tpu.memory_space<vmem>>, vector<1x640xf32>
    %c0_40 = arith.constant 0 : index
    %c0_41 = arith.constant 0 : index
    %67 = vector.load %arg13[%c0_40, %c0_41] : memref<16x640xf32, #tpu.memory_space<vmem>>, vector<16x640xf32>
    %68 = arith.mulf %62, %67 : vector<16x640xf32>
    %69 = vector.broadcast %64 : vector<1x640xf32> to vector<16x640xf32>
    %70 = arith.mulf %61, %69 : vector<16x640xf32>
    %71 = arith.addf %68, %70 : vector<16x640xf32>
    %c0_42 = arith.constant 0 : index
    %c0_43 = arith.constant 0 : index
    %72 = vector.load %arg14[%c0_42, %c0_43] : memref<16x640xf32, #tpu.memory_space<vmem>>, vector<16x640xf32>
    %73 = arith.mulf %62, %72 : vector<16x640xf32>
    %74 = vector.broadcast %66 : vector<1x640xf32> to vector<16x640xf32>
    %75 = arith.mulf %61, %74 : vector<16x640xf32>
    %76 = arith.addf %73, %75 : vector<16x640xf32>
    %c0_44 = arith.constant 0 : index
    %c0_45 = arith.constant 0 : index
    %77 = vector.load %arg13[%c0_44, %c0_45] : memref<16x640xf32, #tpu.memory_space<vmem>>, vector<16x640xf32>
    tpu.vector_store %arg13[%c0_44, %c0_45], %71 {strides = array<i32>} : memref<16x640xf32, #tpu.memory_space<vmem>>, vector<16x640xf32>,
    %c0_46 = arith.constant 0 : index
    %c0_47 = arith.constant 0 : index
    %78 = vector.load %arg14[%c0_46, %c0_47] : memref<16x640xf32, #tpu.memory_space<vmem>>, vector<16x640xf32>
    tpu.vector_store %arg14[%c0_46, %c0_47], %76 {strides = array<i32>} : memref<16x640xf32, #tpu.memory_space<vmem>>, vector<16x640xf32>,
    %79 = arith.mulf %71, %71 : vector<16x640xf32>
    %80 = arith.mulf %76, %76 : vector<16x640xf32>
    %81 = arith.addf %79, %80 : vector<16x640xf32>
    %c0_48 = arith.constant 0 : index
    %c0_49 = arith.constant 0 : index
    %82 = vector.load %arg5[%c0_48, %c0_49] : memref<1x640xf32, #tpu.memory_space<vmem>>, vector<1x640xf32>
    %83 = vector.broadcast %82 : vector<1x640xf32> to vector<16x640xf32>
    %84 = arith.mulf %81, %83 : vector<16x640xf32>
    %85 = vector.extract_strided_slice %84 {offsets = [0, 0], sizes = [16, 64], strides = [1, 1]} : vector<16x640xf32> to vector<16x64xf32>
    %86 = vector.extract_strided_slice %84 {offsets = [0, 64], sizes = [16, 64], strides = [1, 1]} : vector<16x640xf32> to vector<16x64xf32>
    %87 = vector.extract_strided_slice %84 {offsets = [0, 128], sizes = [16, 64], strides = [1, 1]} : vector<16x640xf32> to vector<16x64xf32>
    %88 = vector.extract_strided_slice %84 {offsets = [0, 192], sizes = [16, 64], strides = [1, 1]} : vector<16x640xf32> to vector<16x64xf32>
    %89 = vector.extract_strided_slice %84 {offsets = [0, 256], sizes = [16, 64], strides = [1, 1]} : vector<16x640xf32> to vector<16x64xf32>
    %90 = vector.extract_strided_slice %84 {offsets = [0, 320], sizes = [16, 64], strides = [1, 1]} : vector<16x640xf32> to vector<16x64xf32>
    %91 = vector.extract_strided_slice %84 {offsets = [0, 384], sizes = [16, 64], strides = [1, 1]} : vector<16x640xf32> to vector<16x64xf32>
    %92 = vector.extract_strided_slice %84 {offsets = [0, 448], sizes = [16, 64], strides = [1, 1]} : vector<16x640xf32> to vector<16x64xf32>
    %93 = vector.extract_strided_slice %84 {offsets = [0, 512], sizes = [16, 64], strides = [1, 1]} : vector<16x640xf32> to vector<16x64xf32>
    %94 = vector.extract_strided_slice %84 {offsets = [0, 576], sizes = [16, 64], strides = [1, 1]} : vector<16x640xf32> to vector<16x64xf32>
    %95 = arith.addf %85, %86 : vector<16x64xf32>
    %96 = arith.addf %87, %88 : vector<16x64xf32>
    %97 = arith.addf %89, %90 : vector<16x64xf32>
    %98 = arith.addf %91, %92 : vector<16x64xf32>
    %99 = arith.addf %93, %94 : vector<16x64xf32>
    %100 = arith.addf %95, %96 : vector<16x64xf32>
    %101 = arith.addf %97, %98 : vector<16x64xf32>
    %102 = arith.addf %100, %101 : vector<16x64xf32>
    %103 = arith.addf %102, %99 : vector<16x64xf32>
    %c0_50 = arith.constant 0 : index
    %c0_51 = arith.constant 0 : index
    %104 = vector.load %arg4[%c0_50, %c0_51] : memref<1x64xf32, #tpu.memory_space<vmem>>, vector<1x64xf32>
    %105 = vector.broadcast %104 : vector<1x64xf32> to vector<16x64xf32>
    %106 = arith.addf %103, %105 : vector<16x64xf32>
    %107 = math.tanh %106 : vector<16x64xf32>
    %108 = arith.mulf %49, %107 : vector<16x64xf32>
    %c0_52 = arith.constant 0 : index
    %c0_53 = arith.constant 0 : index
    %109 = vector.load %arg12[%c0_52, %c0_53] : memref<16x64xf32, #tpu.memory_space<vmem>>, vector<16x64xf32>
    tpu.vector_store %arg12[%c0_52, %c0_53], %108 {strides = array<i32>} : memref<16x64xf32, #tpu.memory_space<vmem>>, vector<16x64xf32>,
    %c1_i32 = arith.constant 1 : i32
    %c0_54 = arith.constant 0 : index
    %c0_55 = arith.constant 0 : index
    %110 = vector.load %arg12[%c0_54, %c0_55] : memref<16x64xf32, #tpu.memory_space<vmem>>, vector<16x64xf32>
    %c16_i32_56 = arith.constant 16 : i32
    %111 = arith.muli %c1_i32, %c16_i32_56 : i32
    %112 = tpu.assume_multiple %111, 16 : i32
    %113 = arith.index_cast %112 : i32 to index
    %c0_57 = arith.constant 0 : index
    %114 = vector.load %arg11[%113, %c0_57] : memref<128x896xf32, #tpu.memory_space<vmem>>, vector<16x896xf32>
    %c0_58 = arith.constant 0 : index
    %c0_59 = arith.constant 0 : index
    %115 = vector.load %arg2[%c0_58, %c0_59] : memref<64x896xf32, #tpu.memory_space<vmem>>, vector<64x896xf32>
    %cst_60 = arith.constant dense<0.000000e+00> : vector<16x896xf32>
    %116 = tpu.matmul %110, %115, %cst_60 {dimension_numbers = #tpu.dot_dimension_numbers<[1], [0], [0], [1], [0, 0, 1, 1], [], []>} : vector<16x64xf32>, vector<64x896xf32>, vector<16x896xf32> -> vector<16x896xf32>
    %117 = arith.addf %114, %116 : vector<16x896xf32>
    %118 = vector.extract_strided_slice %117 {offsets = [0, 0], sizes = [16, 64], strides = [1, 1]} : vector<16x896xf32> to vector<16x64xf32>
    %cst_61 = arith.constant 6.000000e+00 : f32
    %119 = vector.broadcast %cst_61 : f32 to vector<16x64xf32>
    %120 = arith.divf %118, %119 : vector<16x64xf32>
    %cst_62 = arith.constant 5.000000e-01 : f32
    %121 = vector.broadcast %cst_62 : f32 to vector<16x64xf32>
    %122 = arith.addf %120, %121 : vector<16x64xf32>
    %cst_63 = arith.constant 0.000000e+00 : f32
    %cst_64 = arith.constant 1.000000e+00 : f32
    %123 = vector.broadcast %cst_63 : f32 to vector<16x64xf32>
    %124 = arith.maximumf %123, %122 : vector<16x64xf32>
    %125 = vector.broadcast %cst_64 : f32 to vector<16x64xf32>
    %126 = arith.minimumf %125, %124 : vector<16x64xf32>
    %127 = vector.extract_strided_slice %117 {offsets = [0, 64], sizes = [16, 64], strides = [1, 1]} : vector<16x896xf32> to vector<16x64xf32>
    %cst_65 = arith.constant 6.000000e+00 : f32
    %128 = vector.broadcast %cst_65 : f32 to vector<16x64xf32>
    %129 = arith.divf %127, %128 : vector<16x64xf32>
    %cst_66 = arith.constant 5.000000e-01 : f32
    %130 = vector.broadcast %cst_66 : f32 to vector<16x64xf32>
    %131 = arith.addf %129, %130 : vector<16x64xf32>
    %cst_67 = arith.constant 0.000000e+00 : f32
    %cst_68 = arith.constant 1.000000e+00 : f32
    %132 = vector.broadcast %cst_67 : f32 to vector<16x64xf32>
    %133 = arith.maximumf %132, %131 : vector<16x64xf32>
    %134 = vector.broadcast %cst_68 : f32 to vector<16x64xf32>
    %135 = arith.minimumf %134, %133 : vector<16x64xf32>
    %136 = vector.extract_strided_slice %117 {offsets = [0, 128], sizes = [16, 64], strides = [1, 1]} : vector<16x896xf32> to vector<16x64xf32>
    %137 = math.tanh %136 : vector<16x64xf32>
    %138 = vector.extract_strided_slice %117 {offsets = [0, 192], sizes = [16, 64], strides = [1, 1]} : vector<16x896xf32> to vector<16x64xf32>
    %cst_69 = arith.constant 6.000000e+00 : f32
    %139 = vector.broadcast %cst_69 : f32 to vector<16x64xf32>
    %140 = arith.divf %138, %139 : vector<16x64xf32>
    %cst_70 = arith.constant 5.000000e-01 : f32
    %141 = vector.broadcast %cst_70 : f32 to vector<16x64xf32>
    %142 = arith.addf %140, %141 : vector<16x64xf32>
    %cst_71 = arith.constant 0.000000e+00 : f32
    %cst_72 = arith.constant 1.000000e+00 : f32
    %143 = vector.broadcast %cst_71 : f32 to vector<16x64xf32>
    %144 = arith.maximumf %143, %142 : vector<16x64xf32>
    %145 = vector.broadcast %cst_72 : f32 to vector<16x64xf32>
    %146 = arith.minimumf %145, %144 : vector<16x64xf32>
    %147 = vector.extract_strided_slice %117 {offsets = [0, 256], sizes = [16, 640], strides = [1, 1]} : vector<16x896xf32> to vector<16x640xf32>
    %cst_73 = arith.constant 6.000000e+00 : f32
    %148 = vector.broadcast %cst_73 : f32 to vector<16x640xf32>
    %149 = arith.divf %147, %148 : vector<16x640xf32>
    %cst_74 = arith.constant 5.000000e-01 : f32
    %150 = vector.broadcast %cst_74 : f32 to vector<16x640xf32>
    %151 = arith.addf %149, %150 : vector<16x640xf32>
    %cst_75 = arith.constant 0.000000e+00 : f32
    %cst_76 = arith.constant 1.000000e+00 : f32
    %152 = vector.broadcast %cst_75 : f32 to vector<16x640xf32>
    %153 = arith.maximumf %152, %151 : vector<16x640xf32>
    %154 = vector.broadcast %cst_76 : f32 to vector<16x640xf32>
    %155 = arith.minimumf %154, %153 : vector<16x640xf32>
    %156 = arith.mulf %126, %137 : vector<16x64xf32>
    %157 = tpu.concatenate %135, %135, %135, %135, %135, %135, %135, %135, %135, %135 in 1 : vector<16x64xf32>, vector<16x64xf32>, vector<16x64xf32>, vector<16x64xf32>, vector<16x64xf32>, vector<16x64xf32>, vector<16x64xf32>, vector<16x64xf32>, vector<16x64xf32>, vector<16x64xf32> -> vector<16x640xf32>
    %158 = tpu.concatenate %156, %156, %156, %156, %156, %156, %156, %156, %156, %156 in 1 : vector<16x64xf32>, vector<16x64xf32>, vector<16x64xf32>, vector<16x64xf32>, vector<16x64xf32>, vector<16x64xf32>, vector<16x64xf32>, vector<16x64xf32>, vector<16x64xf32>, vector<16x64xf32> -> vector<16x640xf32>
    %159 = arith.mulf %157, %155 : vector<16x640xf32>
    %160 = arith.index_cast %c1_i32 : i32 to index
    %c0_77 = arith.constant 0 : index
    %161 = vector.load %arg6[%160, %c0_77] : memref<8x640xf32, #tpu.memory_space<vmem>>, vector<1x640xf32>
    %162 = arith.index_cast %c1_i32 : i32 to index
    %c0_78 = arith.constant 0 : index
    %163 = vector.load %arg7[%162, %c0_78] : memref<8x640xf32, #tpu.memory_space<vmem>>, vector<1x640xf32>
    %c0_79 = arith.constant 0 : index
    %c0_80 = arith.constant 0 : index
    %164 = vector.load %arg13[%c0_79, %c0_80] : memref<16x640xf32, #tpu.memory_space<vmem>>, vector<16x640xf32>
    %165 = arith.mulf %159, %164 : vector<16x640xf32>
    %166 = vector.broadcast %161 : vector<1x640xf32> to vector<16x640xf32>
    %167 = arith.mulf %158, %166 : vector<16x640xf32>
    %168 = arith.addf %165, %167 : vector<16x640xf32>
    %c0_81 = arith.constant 0 : index
    %c0_82 = arith.constant 0 : index
    %169 = vector.load %arg14[%c0_81, %c0_82] : memref<16x640xf32, #tpu.memory_space<vmem>>, vector<16x640xf32>
    %170 = arith.mulf %159, %169 : vector<16x640xf32>
    %171 = vector.broadcast %163 : vector<1x640xf32> to vector<16x640xf32>
    %172 = arith.mulf %158, %171 : vector<16x640xf32>
    %173 = arith.addf %170, %172 : vector<16x640xf32>
    %c0_83 = arith.constant 0 : index
    %c0_84 = arith.constant 0 : index
    %174 = vector.load %arg13[%c0_83, %c0_84] : memref<16x640xf32, #tpu.memory_space<vmem>>, vector<16x640xf32>
    tpu.vector_store %arg13[%c0_83, %c0_84], %168 {strides = array<i32>} : memref<16x640xf32, #tpu.memory_space<vmem>>, vector<16x640xf32>,
    %c0_85 = arith.constant 0 : index
    %c0_86 = arith.constant 0 : index
    %175 = vector.load %arg14[%c0_85, %c0_86] : memref<16x640xf32, #tpu.memory_space<vmem>>, vector<16x640xf32>
    tpu.vector_store %arg14[%c0_85, %c0_86], %173 {strides = array<i32>} : memref<16x640xf32, #tpu.memory_space<vmem>>, vector<16x640xf32>,
    %176 = arith.mulf %168, %168 : vector<16x640xf32>
    %177 = arith.mulf %173, %173 : vector<16x640xf32>
    %178 = arith.addf %176, %177 : vector<16x640xf32>
    %c0_87 = arith.constant 0 : index
    %c0_88 = arith.constant 0 : index
    %179 = vector.load %arg5[%c0_87, %c0_88] : memref<1x640xf32, #tpu.memory_space<vmem>>, vector<1x640xf32>
    %180 = vector.broadcast %179 : vector<1x640xf32> to vector<16x640xf32>
    %181 = arith.mulf %178, %180 : vector<16x640xf32>
    %182 = vector.extract_strided_slice %181 {offsets = [0, 0], sizes = [16, 64], strides = [1, 1]} : vector<16x640xf32> to vector<16x64xf32>
    %183 = vector.extract_strided_slice %181 {offsets = [0, 64], sizes = [16, 64], strides = [1, 1]} : vector<16x640xf32> to vector<16x64xf32>
    %184 = vector.extract_strided_slice %181 {offsets = [0, 128], sizes = [16, 64], strides = [1, 1]} : vector<16x640xf32> to vector<16x64xf32>
    %185 = vector.extract_strided_slice %181 {offsets = [0, 192], sizes = [16, 64], strides = [1, 1]} : vector<16x640xf32> to vector<16x64xf32>
    %186 = vector.extract_strided_slice %181 {offsets = [0, 256], sizes = [16, 64], strides = [1, 1]} : vector<16x640xf32> to vector<16x64xf32>
    %187 = vector.extract_strided_slice %181 {offsets = [0, 320], sizes = [16, 64], strides = [1, 1]} : vector<16x640xf32> to vector<16x64xf32>
    %188 = vector.extract_strided_slice %181 {offsets = [0, 384], sizes = [16, 64], strides = [1, 1]} : vector<16x640xf32> to vector<16x64xf32>
    %189 = vector.extract_strided_slice %181 {offsets = [0, 448], sizes = [16, 64], strides = [1, 1]} : vector<16x640xf32> to vector<16x64xf32>
    %190 = vector.extract_strided_slice %181 {offsets = [0, 512], sizes = [16, 64], strides = [1, 1]} : vector<16x640xf32> to vector<16x64xf32>
    %191 = vector.extract_strided_slice %181 {offsets = [0, 576], sizes = [16, 64], strides = [1, 1]} : vector<16x640xf32> to vector<16x64xf32>
    %192 = arith.addf %182, %183 : vector<16x64xf32>
    %193 = arith.addf %184, %185 : vector<16x64xf32>
    %194 = arith.addf %186, %187 : vector<16x64xf32>
    %195 = arith.addf %188, %189 : vector<16x64xf32>
    %196 = arith.addf %190, %191 : vector<16x64xf32>
    %197 = arith.addf %192, %193 : vector<16x64xf32>
    %198 = arith.addf %194, %195 : vector<16x64xf32>
    %199 = arith.addf %197, %198 : vector<16x64xf32>
    %200 = arith.addf %199, %196 : vector<16x64xf32>
    %c0_89 = arith.constant 0 : index
    %c0_90 = arith.constant 0 : index
    %201 = vector.load %arg4[%c0_89, %c0_90] : memref<1x64xf32, #tpu.memory_space<vmem>>, vector<1x64xf32>
    %202 = vector.broadcast %201 : vector<1x64xf32> to vector<16x64xf32>
    %203 = arith.addf %200, %202 : vector<16x64xf32>
    %204 = math.tanh %203 : vector<16x64xf32>
    %205 = arith.mulf %146, %204 : vector<16x64xf32>
    %c0_91 = arith.constant 0 : index
    %c0_92 = arith.constant 0 : index
    %206 = vector.load %arg12[%c0_91, %c0_92] : memref<16x64xf32, #tpu.memory_space<vmem>>, vector<16x64xf32>
    tpu.vector_store %arg12[%c0_91, %c0_92], %205 {strides = array<i32>} : memref<16x64xf32, #tpu.memory_space<vmem>>, vector<16x64xf32>,
    %c2_i32 = arith.constant 2 : i32
    %c0_93 = arith.constant 0 : index
    %c0_94 = arith.constant 0 : index
    %207 = vector.load %arg12[%c0_93, %c0_94] : memref<16x64xf32, #tpu.memory_space<vmem>>, vector<16x64xf32>
    %c16_i32_95 = arith.constant 16 : i32
    %208 = arith.muli %c2_i32, %c16_i32_95 : i32
    %209 = tpu.assume_multiple %208, 16 : i32
    %210 = arith.index_cast %209 : i32 to index
    %c0_96 = arith.constant 0 : index
    %211 = vector.load %arg11[%210, %c0_96] : memref<128x896xf32, #tpu.memory_space<vmem>>, vector<16x896xf32>
    %c0_97 = arith.constant 0 : index
    %c0_98 = arith.constant 0 : index
    %212 = vector.load %arg2[%c0_97, %c0_98] : memref<64x896xf32, #tpu.memory_space<vmem>>, vector<64x896xf32>
    %cst_99 = arith.constant dense<0.000000e+00> : vector<16x896xf32>
    %213 = tpu.matmul %207, %212, %cst_99 {dimension_numbers = #tpu.dot_dimension_numbers<[1], [0], [0], [1], [0, 0, 1, 1], [], []>} : vector<16x64xf32>, vector<64x896xf32>, vector<16x896xf32> -> vector<16x896xf32>
    %214 = arith.addf %211, %213 : vector<16x896xf32>
    %215 = vector.extract_strided_slice %214 {offsets = [0, 0], sizes = [16, 64], strides = [1, 1]} : vector<16x896xf32> to vector<16x64xf32>
    %cst_100 = arith.constant 6.000000e+00 : f32
    %216 = vector.broadcast %cst_100 : f32 to vector<16x64xf32>
    %217 = arith.divf %215, %216 : vector<16x64xf32>
    %cst_101 = arith.constant 5.000000e-01 : f32
    %218 = vector.broadcast %cst_101 : f32 to vector<16x64xf32>
    %219 = arith.addf %217, %218 : vector<16x64xf32>
    %cst_102 = arith.constant 0.000000e+00 : f32
    %cst_103 = arith.constant 1.000000e+00 : f32
    %220 = vector.broadcast %cst_102 : f32 to vector<16x64xf32>
    %221 = arith.maximumf %220, %219 : vector<16x64xf32>
    %222 = vector.broadcast %cst_103 : f32 to vector<16x64xf32>
    %223 = arith.minimumf %222, %221 : vector<16x64xf32>
    %224 = vector.extract_strided_slice %214 {offsets = [0, 64], sizes = [16, 64], strides = [1, 1]} : vector<16x896xf32> to vector<16x64xf32>
    %cst_104 = arith.constant 6.000000e+00 : f32
    %225 = vector.broadcast %cst_104 : f32 to vector<16x64xf32>
    %226 = arith.divf %224, %225 : vector<16x64xf32>
    %cst_105 = arith.constant 5.000000e-01 : f32
    %227 = vector.broadcast %cst_105 : f32 to vector<16x64xf32>
    %228 = arith.addf %226, %227 : vector<16x64xf32>
    %cst_106 = arith.constant 0.000000e+00 : f32
    %cst_107 = arith.constant 1.000000e+00 : f32
    %229 = vector.broadcast %cst_106 : f32 to vector<16x64xf32>
    %230 = arith.maximumf %229, %228 : vector<16x64xf32>
    %231 = vector.broadcast %cst_107 : f32 to vector<16x64xf32>
    %232 = arith.minimumf %231, %230 : vector<16x64xf32>
    %233 = vector.extract_strided_slice %214 {offsets = [0, 128], sizes = [16, 64], strides = [1, 1]} : vector<16x896xf32> to vector<16x64xf32>
    %234 = math.tanh %233 : vector<16x64xf32>
    %235 = vector.extract_strided_slice %214 {offsets = [0, 192], sizes = [16, 64], strides = [1, 1]} : vector<16x896xf32> to vector<16x64xf32>
    %cst_108 = arith.constant 6.000000e+00 : f32
    %236 = vector.broadcast %cst_108 : f32 to vector<16x64xf32>
    %237 = arith.divf %235, %236 : vector<16x64xf32>
    %cst_109 = arith.constant 5.000000e-01 : f32
    %238 = vector.broadcast %cst_109 : f32 to vector<16x64xf32>
    %239 = arith.addf %237, %238 : vector<16x64xf32>
    %cst_110 = arith.constant 0.000000e+00 : f32
    %cst_111 = arith.constant 1.000000e+00 : f32
    %240 = vector.broadcast %cst_110 : f32 to vector<16x64xf32>
    %241 = arith.maximumf %240, %239 : vector<16x64xf32>
    %242 = vector.broadcast %cst_111 : f32 to vector<16x64xf32>
    %243 = arith.minimumf %242, %241 : vector<16x64xf32>
    %244 = vector.extract_strided_slice %214 {offsets = [0, 256], sizes = [16, 640], strides = [1, 1]} : vector<16x896xf32> to vector<16x640xf32>
    %cst_112 = arith.constant 6.000000e+00 : f32
    %245 = vector.broadcast %cst_112 : f32 to vector<16x640xf32>
    %246 = arith.divf %244, %245 : vector<16x640xf32>
    %cst_113 = arith.constant 5.000000e-01 : f32
    %247 = vector.broadcast %cst_113 : f32 to vector<16x640xf32>
    %248 = arith.addf %246, %247 : vector<16x640xf32>
    %cst_114 = arith.constant 0.000000e+00 : f32
    %cst_115 = arith.constant 1.000000e+00 : f32
    %249 = vector.broadcast %cst_114 : f32 to vector<16x640xf32>
    %250 = arith.maximumf %249, %248 : vector<16x640xf32>
    %251 = vector.broadcast %cst_115 : f32 to vector<16x640xf32>
    %252 = arith.minimumf %251, %250 : vector<16x640xf32>
    %253 = arith.mulf %223, %234 : vector<16x64xf32>
    %254 = tpu.concatenate %232, %232, %232, %232, %232, %232, %232, %232, %232, %232 in 1 : vector<16x64xf32>, vector<16x64xf32>, vector<16x64xf32>, vector<16x64xf32>, vector<16x64xf32>, vector<16x64xf32>, vector<16x64xf32>, vector<16x64xf32>, vector<16x64xf32>, vector<16x64xf32> -> vector<16x640xf32>
    %255 = tpu.concatenate %253, %253, %253, %253, %253, %253, %253, %253, %253, %253 in 1 : vector<16x64xf32>, vector<16x64xf32>, vector<16x64xf32>, vector<16x64xf32>, vector<16x64xf32>, vector<16x64xf32>, vector<16x64xf32>, vector<16x64xf32>, vector<16x64xf32>, vector<16x64xf32> -> vector<16x640xf32>
    %256 = arith.mulf %254, %252 : vector<16x640xf32>
    %257 = arith.index_cast %c2_i32 : i32 to index
    %c0_116 = arith.constant 0 : index
    %258 = vector.load %arg6[%257, %c0_116] : memref<8x640xf32, #tpu.memory_space<vmem>>, vector<1x640xf32>
    %259 = arith.index_cast %c2_i32 : i32 to index
    %c0_117 = arith.constant 0 : index
    %260 = vector.load %arg7[%259, %c0_117] : memref<8x640xf32, #tpu.memory_space<vmem>>, vector<1x640xf32>
    %c0_118 = arith.constant 0 : index
    %c0_119 = arith.constant 0 : index
    %261 = vector.load %arg13[%c0_118, %c0_119] : memref<16x640xf32, #tpu.memory_space<vmem>>, vector<16x640xf32>
    %262 = arith.mulf %256, %261 : vector<16x640xf32>
    %263 = vector.broadcast %258 : vector<1x640xf32> to vector<16x640xf32>
    %264 = arith.mulf %255, %263 : vector<16x640xf32>
    %265 = arith.addf %262, %264 : vector<16x640xf32>
    %c0_120 = arith.constant 0 : index
    %c0_121 = arith.constant 0 : index
    %266 = vector.load %arg14[%c0_120, %c0_121] : memref<16x640xf32, #tpu.memory_space<vmem>>, vector<16x640xf32>
    %267 = arith.mulf %256, %266 : vector<16x640xf32>
    %268 = vector.broadcast %260 : vector<1x640xf32> to vector<16x640xf32>
    %269 = arith.mulf %255, %268 : vector<16x640xf32>
    %270 = arith.addf %267, %269 : vector<16x640xf32>
    %c0_122 = arith.constant 0 : index
    %c0_123 = arith.constant 0 : index
    %271 = vector.load %arg13[%c0_122, %c0_123] : memref<16x640xf32, #tpu.memory_space<vmem>>, vector<16x640xf32>
    tpu.vector_store %arg13[%c0_122, %c0_123], %265 {strides = array<i32>} : memref<16x640xf32, #tpu.memory_space<vmem>>, vector<16x640xf32>,
    %c0_124 = arith.constant 0 : index
    %c0_125 = arith.constant 0 : index
    %272 = vector.load %arg14[%c0_124, %c0_125] : memref<16x640xf32, #tpu.memory_space<vmem>>, vector<16x640xf32>
    tpu.vector_store %arg14[%c0_124, %c0_125], %270 {strides = array<i32>} : memref<16x640xf32, #tpu.memory_space<vmem>>, vector<16x640xf32>,
    %273 = arith.mulf %265, %265 : vector<16x640xf32>
    %274 = arith.mulf %270, %270 : vector<16x640xf32>
    %275 = arith.addf %273, %274 : vector<16x640xf32>
    %c0_126 = arith.constant 0 : index
    %c0_127 = arith.constant 0 : index
    %276 = vector.load %arg5[%c0_126, %c0_127] : memref<1x640xf32, #tpu.memory_space<vmem>>, vector<1x640xf32>
    %277 = vector.broadcast %276 : vector<1x640xf32> to vector<16x640xf32>
    %278 = arith.mulf %275, %277 : vector<16x640xf32>
    %279 = vector.extract_strided_slice %278 {offsets = [0, 0], sizes = [16, 64], strides = [1, 1]} : vector<16x640xf32> to vector<16x64xf32>
    %280 = vector.extract_strided_slice %278 {offsets = [0, 64], sizes = [16, 64], strides = [1, 1]} : vector<16x640xf32> to vector<16x64xf32>
    %281 = vector.extract_strided_slice %278 {offsets = [0, 128], sizes = [16, 64], strides = [1, 1]} : vector<16x640xf32> to vector<16x64xf32>
    %282 = vector.extract_strided_slice %278 {offsets = [0, 192], sizes = [16, 64], strides = [1, 1]} : vector<16x640xf32> to vector<16x64xf32>
    %283 = vector.extract_strided_slice %278 {offsets = [0, 256], sizes = [16, 64], strides = [1, 1]} : vector<16x640xf32> to vector<16x64xf32>
    %284 = vector.extract_strided_slice %278 {offsets = [0, 320], sizes = [16, 64], strides = [1, 1]} : vector<16x640xf32> to vector<16x64xf32>
    %285 = vector.extract_strided_slice %278 {offsets = [0, 384], sizes = [16, 64], strides = [1, 1]} : vector<16x640xf32> to vector<16x64xf32>
    %286 = vector.extract_strided_slice %278 {offsets = [0, 448], sizes = [16, 64], strides = [1, 1]} : vector<16x640xf32> to vector<16x64xf32>
    %287 = vector.extract_strided_slice %278 {offsets = [0, 512], sizes = [16, 64], strides = [1, 1]} : vector<16x640xf32> to vector<16x64xf32>
    %288 = vector.extract_strided_slice %278 {offsets = [0, 576], sizes = [16, 64], strides = [1, 1]} : vector<16x640xf32> to vector<16x64xf32>
    %289 = arith.addf %279, %280 : vector<16x64xf32>
    %290 = arith.addf %281, %282 : vector<16x64xf32>
    %291 = arith.addf %283, %284 : vector<16x64xf32>
    %292 = arith.addf %285, %286 : vector<16x64xf32>
    %293 = arith.addf %287, %288 : vector<16x64xf32>
    %294 = arith.addf %289, %290 : vector<16x64xf32>
    %295 = arith.addf %291, %292 : vector<16x64xf32>
    %296 = arith.addf %294, %295 : vector<16x64xf32>
    %297 = arith.addf %296, %293 : vector<16x64xf32>
    %c0_128 = arith.constant 0 : index
    %c0_129 = arith.constant 0 : index
    %298 = vector.load %arg4[%c0_128, %c0_129] : memref<1x64xf32, #tpu.memory_space<vmem>>, vector<1x64xf32>
    %299 = vector.broadcast %298 : vector<1x64xf32> to vector<16x64xf32>
    %300 = arith.addf %297, %299 : vector<16x64xf32>
    %301 = math.tanh %300 : vector<16x64xf32>
    %302 = arith.mulf %243, %301 : vector<16x64xf32>
    %c0_130 = arith.constant 0 : index
    %c0_131 = arith.constant 0 : index
    %303 = vector.load %arg12[%c0_130, %c0_131] : memref<16x64xf32, #tpu.memory_space<vmem>>, vector<16x64xf32>
    tpu.vector_store %arg12[%c0_130, %c0_131], %302 {strides = array<i32>} : memref<16x64xf32, #tpu.memory_space<vmem>>, vector<16x64xf32>,
    %c3_i32 = arith.constant 3 : i32
    %c0_132 = arith.constant 0 : index
    %c0_133 = arith.constant 0 : index
    %304 = vector.load %arg12[%c0_132, %c0_133] : memref<16x64xf32, #tpu.memory_space<vmem>>, vector<16x64xf32>
    %c16_i32_134 = arith.constant 16 : i32
    %305 = arith.muli %c3_i32, %c16_i32_134 : i32
    %306 = tpu.assume_multiple %305, 16 : i32
    %307 = arith.index_cast %306 : i32 to index
    %c0_135 = arith.constant 0 : index
    %308 = vector.load %arg11[%307, %c0_135] : memref<128x896xf32, #tpu.memory_space<vmem>>, vector<16x896xf32>
    %c0_136 = arith.constant 0 : index
    %c0_137 = arith.constant 0 : index
    %309 = vector.load %arg2[%c0_136, %c0_137] : memref<64x896xf32, #tpu.memory_space<vmem>>, vector<64x896xf32>
    %cst_138 = arith.constant dense<0.000000e+00> : vector<16x896xf32>
    %310 = tpu.matmul %304, %309, %cst_138 {dimension_numbers = #tpu.dot_dimension_numbers<[1], [0], [0], [1], [0, 0, 1, 1], [], []>} : vector<16x64xf32>, vector<64x896xf32>, vector<16x896xf32> -> vector<16x896xf32>
    %311 = arith.addf %308, %310 : vector<16x896xf32>
    %312 = vector.extract_strided_slice %311 {offsets = [0, 0], sizes = [16, 64], strides = [1, 1]} : vector<16x896xf32> to vector<16x64xf32>
    %cst_139 = arith.constant 6.000000e+00 : f32
    %313 = vector.broadcast %cst_139 : f32 to vector<16x64xf32>
    %314 = arith.divf %312, %313 : vector<16x64xf32>
    %cst_140 = arith.constant 5.000000e-01 : f32
    %315 = vector.broadcast %cst_140 : f32 to vector<16x64xf32>
    %316 = arith.addf %314, %315 : vector<16x64xf32>
    %cst_141 = arith.constant 0.000000e+00 : f32
    %cst_142 = arith.constant 1.000000e+00 : f32
    %317 = vector.broadcast %cst_141 : f32 to vector<16x64xf32>
    %318 = arith.maximumf %317, %316 : vector<16x64xf32>
    %319 = vector.broadcast %cst_142 : f32 to vector<16x64xf32>
    %320 = arith.minimumf %319, %318 : vector<16x64xf32>
    %321 = vector.extract_strided_slice %311 {offsets = [0, 64], sizes = [16, 64], strides = [1, 1]} : vector<16x896xf32> to vector<16x64xf32>
    %cst_143 = arith.constant 6.000000e+00 : f32
    %322 = vector.broadcast %cst_143 : f32 to vector<16x64xf32>
    %323 = arith.divf %321, %322 : vector<16x64xf32>
    %cst_144 = arith.constant 5.000000e-01 : f32
    %324 = vector.broadcast %cst_144 : f32 to vector<16x64xf32>
    %325 = arith.addf %323, %324 : vector<16x64xf32>
    %cst_145 = arith.constant 0.000000e+00 : f32
    %cst_146 = arith.constant 1.000000e+00 : f32
    %326 = vector.broadcast %cst_145 : f32 to vector<16x64xf32>
    %327 = arith.maximumf %326, %325 : vector<16x64xf32>
    %328 = vector.broadcast %cst_146 : f32 to vector<16x64xf32>
    %329 = arith.minimumf %328, %327 : vector<16x64xf32>
    %330 = vector.extract_strided_slice %311 {offsets = [0, 128], sizes = [16, 64], strides = [1, 1]} : vector<16x896xf32> to vector<16x64xf32>
    %331 = math.tanh %330 : vector<16x64xf32>
    %332 = vector.extract_strided_slice %311 {offsets = [0, 192], sizes = [16, 64], strides = [1, 1]} : vector<16x896xf32> to vector<16x64xf32>
    %cst_147 = arith.constant 6.000000e+00 : f32
    %333 = vector.broadcast %cst_147 : f32 to vector<16x64xf32>
    %334 = arith.divf %332, %333 : vector<16x64xf32>
    %cst_148 = arith.constant 5.000000e-01 : f32
    %335 = vector.broadcast %cst_148 : f32 to vector<16x64xf32>
    %336 = arith.addf %334, %335 : vector<16x64xf32>
    %cst_149 = arith.constant 0.000000e+00 : f32
    %cst_150 = arith.constant 1.000000e+00 : f32
    %337 = vector.broadcast %cst_149 : f32 to vector<16x64xf32>
    %338 = arith.maximumf %337, %336 : vector<16x64xf32>
    %339 = vector.broadcast %cst_150 : f32 to vector<16x64xf32>
    %340 = arith.minimumf %339, %338 : vector<16x64xf32>
    %341 = vector.extract_strided_slice %311 {offsets = [0, 256], sizes = [16, 640], strides = [1, 1]} : vector<16x896xf32> to vector<16x640xf32>
    %cst_151 = arith.constant 6.000000e+00 : f32
    %342 = vector.broadcast %cst_151 : f32 to vector<16x640xf32>
    %343 = arith.divf %341, %342 : vector<16x640xf32>
    %cst_152 = arith.constant 5.000000e-01 : f32
    %344 = vector.broadcast %cst_152 : f32 to vector<16x640xf32>
    %345 = arith.addf %343, %344 : vector<16x640xf32>
    %cst_153 = arith.constant 0.000000e+00 : f32
    %cst_154 = arith.constant 1.000000e+00 : f32
    %346 = vector.broadcast %cst_153 : f32 to vector<16x640xf32>
    %347 = arith.maximumf %346, %345 : vector<16x640xf32>
    %348 = vector.broadcast %cst_154 : f32 to vector<16x640xf32>
    %349 = arith.minimumf %348, %347 : vector<16x640xf32>
    %350 = arith.mulf %320, %331 : vector<16x64xf32>
    %351 = tpu.concatenate %329, %329, %329, %329, %329, %329, %329, %329, %329, %329 in 1 : vector<16x64xf32>, vector<16x64xf32>, vector<16x64xf32>, vector<16x64xf32>, vector<16x64xf32>, vector<16x64xf32>, vector<16x64xf32>, vector<16x64xf32>, vector<16x64xf32>, vector<16x64xf32> -> vector<16x640xf32>
    %352 = tpu.concatenate %350, %350, %350, %350, %350, %350, %350, %350, %350, %350 in 1 : vector<16x64xf32>, vector<16x64xf32>, vector<16x64xf32>, vector<16x64xf32>, vector<16x64xf32>, vector<16x64xf32>, vector<16x64xf32>, vector<16x64xf32>, vector<16x64xf32>, vector<16x64xf32> -> vector<16x640xf32>
    %353 = arith.mulf %351, %349 : vector<16x640xf32>
    %354 = arith.index_cast %c3_i32 : i32 to index
    %c0_155 = arith.constant 0 : index
    %355 = vector.load %arg6[%354, %c0_155] : memref<8x640xf32, #tpu.memory_space<vmem>>, vector<1x640xf32>
    %356 = arith.index_cast %c3_i32 : i32 to index
    %c0_156 = arith.constant 0 : index
    %357 = vector.load %arg7[%356, %c0_156] : memref<8x640xf32, #tpu.memory_space<vmem>>, vector<1x640xf32>
    %c0_157 = arith.constant 0 : index
    %c0_158 = arith.constant 0 : index
    %358 = vector.load %arg13[%c0_157, %c0_158] : memref<16x640xf32, #tpu.memory_space<vmem>>, vector<16x640xf32>
    %359 = arith.mulf %353, %358 : vector<16x640xf32>
    %360 = vector.broadcast %355 : vector<1x640xf32> to vector<16x640xf32>
    %361 = arith.mulf %352, %360 : vector<16x640xf32>
    %362 = arith.addf %359, %361 : vector<16x640xf32>
    %c0_159 = arith.constant 0 : index
    %c0_160 = arith.constant 0 : index
    %363 = vector.load %arg14[%c0_159, %c0_160] : memref<16x640xf32, #tpu.memory_space<vmem>>, vector<16x640xf32>
    %364 = arith.mulf %353, %363 : vector<16x640xf32>
    %365 = vector.broadcast %357 : vector<1x640xf32> to vector<16x640xf32>
    %366 = arith.mulf %352, %365 : vector<16x640xf32>
    %367 = arith.addf %364, %366 : vector<16x640xf32>
    %c0_161 = arith.constant 0 : index
    %c0_162 = arith.constant 0 : index
    %368 = vector.load %arg13[%c0_161, %c0_162] : memref<16x640xf32, #tpu.memory_space<vmem>>, vector<16x640xf32>
    tpu.vector_store %arg13[%c0_161, %c0_162], %362 {strides = array<i32>} : memref<16x640xf32, #tpu.memory_space<vmem>>, vector<16x640xf32>,
    %c0_163 = arith.constant 0 : index
    %c0_164 = arith.constant 0 : index
    %369 = vector.load %arg14[%c0_163, %c0_164] : memref<16x640xf32, #tpu.memory_space<vmem>>, vector<16x640xf32>
    tpu.vector_store %arg14[%c0_163, %c0_164], %367 {strides = array<i32>} : memref<16x640xf32, #tpu.memory_space<vmem>>, vector<16x640xf32>,
    %370 = arith.mulf %362, %362 : vector<16x640xf32>
    %371 = arith.mulf %367, %367 : vector<16x640xf32>
    %372 = arith.addf %370, %371 : vector<16x640xf32>
    %c0_165 = arith.constant 0 : index
    %c0_166 = arith.constant 0 : index
    %373 = vector.load %arg5[%c0_165, %c0_166] : memref<1x640xf32, #tpu.memory_space<vmem>>, vector<1x640xf32>
    %374 = vector.broadcast %373 : vector<1x640xf32> to vector<16x640xf32>
    %375 = arith.mulf %372, %374 : vector<16x640xf32>
    %376 = vector.extract_strided_slice %375 {offsets = [0, 0], sizes = [16, 64], strides = [1, 1]} : vector<16x640xf32> to vector<16x64xf32>
    %377 = vector.extract_strided_slice %375 {offsets = [0, 64], sizes = [16, 64], strides = [1, 1]} : vector<16x640xf32> to vector<16x64xf32>
    %378 = vector.extract_strided_slice %375 {offsets = [0, 128], sizes = [16, 64], strides = [1, 1]} : vector<16x640xf32> to vector<16x64xf32>
    %379 = vector.extract_strided_slice %375 {offsets = [0, 192], sizes = [16, 64], strides = [1, 1]} : vector<16x640xf32> to vector<16x64xf32>
    %380 = vector.extract_strided_slice %375 {offsets = [0, 256], sizes = [16, 64], strides = [1, 1]} : vector<16x640xf32> to vector<16x64xf32>
    %381 = vector.extract_strided_slice %375 {offsets = [0, 320], sizes = [16, 64], strides = [1, 1]} : vector<16x640xf32> to vector<16x64xf32>
    %382 = vector.extract_strided_slice %375 {offsets = [0, 384], sizes = [16, 64], strides = [1, 1]} : vector<16x640xf32> to vector<16x64xf32>
    %383 = vector.extract_strided_slice %375 {offsets = [0, 448], sizes = [16, 64], strides = [1, 1]} : vector<16x640xf32> to vector<16x64xf32>
    %384 = vector.extract_strided_slice %375 {offsets = [0, 512], sizes = [16, 64], strides = [1, 1]} : vector<16x640xf32> to vector<16x64xf32>
    %385 = vector.extract_strided_slice %375 {offsets = [0, 576], sizes = [16, 64], strides = [1, 1]} : vector<16x640xf32> to vector<16x64xf32>
    %386 = arith.addf %376, %377 : vector<16x64xf32>
    %387 = arith.addf %378, %379 : vector<16x64xf32>
    %388 = arith.addf %380, %381 : vector<16x64xf32>
    %389 = arith.addf %382, %383 : vector<16x64xf32>
    %390 = arith.addf %384, %385 : vector<16x64xf32>
    %391 = arith.addf %386, %387 : vector<16x64xf32>
    %392 = arith.addf %388, %389 : vector<16x64xf32>
    %393 = arith.addf %391, %392 : vector<16x64xf32>
    %394 = arith.addf %393, %390 : vector<16x64xf32>
    %c0_167 = arith.constant 0 : index
    %c0_168 = arith.constant 0 : index
    %395 = vector.load %arg4[%c0_167, %c0_168] : memref<1x64xf32, #tpu.memory_space<vmem>>, vector<1x64xf32>
    %396 = vector.broadcast %395 : vector<1x64xf32> to vector<16x64xf32>
    %397 = arith.addf %394, %396 : vector<16x64xf32>
    %398 = math.tanh %397 : vector<16x64xf32>
    %399 = arith.mulf %340, %398 : vector<16x64xf32>
    %c0_169 = arith.constant 0 : index
    %c0_170 = arith.constant 0 : index
    %400 = vector.load %arg12[%c0_169, %c0_170] : memref<16x64xf32, #tpu.memory_space<vmem>>, vector<16x64xf32>
    tpu.vector_store %arg12[%c0_169, %c0_170], %399 {strides = array<i32>} : memref<16x64xf32, #tpu.memory_space<vmem>>, vector<16x64xf32>,
    %c4_i32 = arith.constant 4 : i32
    %c0_171 = arith.constant 0 : index
    %c0_172 = arith.constant 0 : index
    %401 = vector.load %arg12[%c0_171, %c0_172] : memref<16x64xf32, #tpu.memory_space<vmem>>, vector<16x64xf32>
    %c16_i32_173 = arith.constant 16 : i32
    %402 = arith.muli %c4_i32, %c16_i32_173 : i32
    %403 = tpu.assume_multiple %402, 16 : i32
    %404 = arith.index_cast %403 : i32 to index
    %c0_174 = arith.constant 0 : index
    %405 = vector.load %arg11[%404, %c0_174] : memref<128x896xf32, #tpu.memory_space<vmem>>, vector<16x896xf32>
    %c0_175 = arith.constant 0 : index
    %c0_176 = arith.constant 0 : index
    %406 = vector.load %arg2[%c0_175, %c0_176] : memref<64x896xf32, #tpu.memory_space<vmem>>, vector<64x896xf32>
    %cst_177 = arith.constant dense<0.000000e+00> : vector<16x896xf32>
    %407 = tpu.matmul %401, %406, %cst_177 {dimension_numbers = #tpu.dot_dimension_numbers<[1], [0], [0], [1], [0, 0, 1, 1], [], []>} : vector<16x64xf32>, vector<64x896xf32>, vector<16x896xf32> -> vector<16x896xf32>
    %408 = arith.addf %405, %407 : vector<16x896xf32>
    %409 = vector.extract_strided_slice %408 {offsets = [0, 0], sizes = [16, 64], strides = [1, 1]} : vector<16x896xf32> to vector<16x64xf32>
    %cst_178 = arith.constant 6.000000e+00 : f32
    %410 = vector.broadcast %cst_178 : f32 to vector<16x64xf32>
    %411 = arith.divf %409, %410 : vector<16x64xf32>
    %cst_179 = arith.constant 5.000000e-01 : f32
    %412 = vector.broadcast %cst_179 : f32 to vector<16x64xf32>
    %413 = arith.addf %411, %412 : vector<16x64xf32>
    %cst_180 = arith.constant 0.000000e+00 : f32
    %cst_181 = arith.constant 1.000000e+00 : f32
    %414 = vector.broadcast %cst_180 : f32 to vector<16x64xf32>
    %415 = arith.maximumf %414, %413 : vector<16x64xf32>
    %416 = vector.broadcast %cst_181 : f32 to vector<16x64xf32>
    %417 = arith.minimumf %416, %415 : vector<16x64xf32>
    %418 = vector.extract_strided_slice %408 {offsets = [0, 64], sizes = [16, 64], strides = [1, 1]} : vector<16x896xf32> to vector<16x64xf32>
    %cst_182 = arith.constant 6.000000e+00 : f32
    %419 = vector.broadcast %cst_182 : f32 to vector<16x64xf32>
    %420 = arith.divf %418, %419 : vector<16x64xf32>
    %cst_183 = arith.constant 5.000000e-01 : f32
    %421 = vector.broadcast %cst_183 : f32 to vector<16x64xf32>
    %422 = arith.addf %420, %421 : vector<16x64xf32>
    %cst_184 = arith.constant 0.000000e+00 : f32
    %cst_185 = arith.constant 1.000000e+00 : f32
    %423 = vector.broadcast %cst_184 : f32 to vector<16x64xf32>
    %424 = arith.maximumf %423, %422 : vector<16x64xf32>
    %425 = vector.broadcast %cst_185 : f32 to vector<16x64xf32>
    %426 = arith.minimumf %425, %424 : vector<16x64xf32>
    %427 = vector.extract_strided_slice %408 {offsets = [0, 128], sizes = [16, 64], strides = [1, 1]} : vector<16x896xf32> to vector<16x64xf32>
    %428 = math.tanh %427 : vector<16x64xf32>
    %429 = vector.extract_strided_slice %408 {offsets = [0, 192], sizes = [16, 64], strides = [1, 1]} : vector<16x896xf32> to vector<16x64xf32>
    %cst_186 = arith.constant 6.000000e+00 : f32
    %430 = vector.broadcast %cst_186 : f32 to vector<16x64xf32>
    %431 = arith.divf %429, %430 : vector<16x64xf32>
    %cst_187 = arith.constant 5.000000e-01 : f32
    %432 = vector.broadcast %cst_187 : f32 to vector<16x64xf32>
    %433 = arith.addf %431, %432 : vector<16x64xf32>
    %cst_188 = arith.constant 0.000000e+00 : f32
    %cst_189 = arith.constant 1.000000e+00 : f32
    %434 = vector.broadcast %cst_188 : f32 to vector<16x64xf32>
    %435 = arith.maximumf %434, %433 : vector<16x64xf32>
    %436 = vector.broadcast %cst_189 : f32 to vector<16x64xf32>
    %437 = arith.minimumf %436, %435 : vector<16x64xf32>
    %438 = vector.extract_strided_slice %408 {offsets = [0, 256], sizes = [16, 640], strides = [1, 1]} : vector<16x896xf32> to vector<16x640xf32>
    %cst_190 = arith.constant 6.000000e+00 : f32
    %439 = vector.broadcast %cst_190 : f32 to vector<16x640xf32>
    %440 = arith.divf %438, %439 : vector<16x640xf32>
    %cst_191 = arith.constant 5.000000e-01 : f32
    %441 = vector.broadcast %cst_191 : f32 to vector<16x640xf32>
    %442 = arith.addf %440, %441 : vector<16x640xf32>
    %cst_192 = arith.constant 0.000000e+00 : f32
    %cst_193 = arith.constant 1.000000e+00 : f32
    %443 = vector.broadcast %cst_192 : f32 to vector<16x640xf32>
    %444 = arith.maximumf %443, %442 : vector<16x640xf32>
    %445 = vector.broadcast %cst_193 : f32 to vector<16x640xf32>
    %446 = arith.minimumf %445, %444 : vector<16x640xf32>
    %447 = arith.mulf %417, %428 : vector<16x64xf32>
    %448 = tpu.concatenate %426, %426, %426, %426, %426, %426, %426, %426, %426, %426 in 1 : vector<16x64xf32>, vector<16x64xf32>, vector<16x64xf32>, vector<16x64xf32>, vector<16x64xf32>, vector<16x64xf32>, vector<16x64xf32>, vector<16x64xf32>, vector<16x64xf32>, vector<16x64xf32> -> vector<16x640xf32>
    %449 = tpu.concatenate %447, %447, %447, %447, %447, %447, %447, %447, %447, %447 in 1 : vector<16x64xf32>, vector<16x64xf32>, vector<16x64xf32>, vector<16x64xf32>, vector<16x64xf32>, vector<16x64xf32>, vector<16x64xf32>, vector<16x64xf32>, vector<16x64xf32>, vector<16x64xf32> -> vector<16x640xf32>
    %450 = arith.mulf %448, %446 : vector<16x640xf32>
    %451 = arith.index_cast %c4_i32 : i32 to index
    %c0_194 = arith.constant 0 : index
    %452 = vector.load %arg6[%451, %c0_194] : memref<8x640xf32, #tpu.memory_space<vmem>>, vector<1x640xf32>
    %453 = arith.index_cast %c4_i32 : i32 to index
    %c0_195 = arith.constant 0 : index
    %454 = vector.load %arg7[%453, %c0_195] : memref<8x640xf32, #tpu.memory_space<vmem>>, vector<1x640xf32>
    %c0_196 = arith.constant 0 : index
    %c0_197 = arith.constant 0 : index
    %455 = vector.load %arg13[%c0_196, %c0_197] : memref<16x640xf32, #tpu.memory_space<vmem>>, vector<16x640xf32>
    %456 = arith.mulf %450, %455 : vector<16x640xf32>
    %457 = vector.broadcast %452 : vector<1x640xf32> to vector<16x640xf32>
    %458 = arith.mulf %449, %457 : vector<16x640xf32>
    %459 = arith.addf %456, %458 : vector<16x640xf32>
    %c0_198 = arith.constant 0 : index
    %c0_199 = arith.constant 0 : index
    %460 = vector.load %arg14[%c0_198, %c0_199] : memref<16x640xf32, #tpu.memory_space<vmem>>, vector<16x640xf32>
    %461 = arith.mulf %450, %460 : vector<16x640xf32>
    %462 = vector.broadcast %454 : vector<1x640xf32> to vector<16x640xf32>
    %463 = arith.mulf %449, %462 : vector<16x640xf32>
    %464 = arith.addf %461, %463 : vector<16x640xf32>
    %c0_200 = arith.constant 0 : index
    %c0_201 = arith.constant 0 : index
    %465 = vector.load %arg13[%c0_200, %c0_201] : memref<16x640xf32, #tpu.memory_space<vmem>>, vector<16x640xf32>
    tpu.vector_store %arg13[%c0_200, %c0_201], %459 {strides = array<i32>} : memref<16x640xf32, #tpu.memory_space<vmem>>, vector<16x640xf32>,
    %c0_202 = arith.constant 0 : index
    %c0_203 = arith.constant 0 : index
    %466 = vector.load %arg14[%c0_202, %c0_203] : memref<16x640xf32, #tpu.memory_space<vmem>>, vector<16x640xf32>
    tpu.vector_store %arg14[%c0_202, %c0_203], %464 {strides = array<i32>} : memref<16x640xf32, #tpu.memory_space<vmem>>, vector<16x640xf32>,
    %467 = arith.mulf %459, %459 : vector<16x640xf32>
    %468 = arith.mulf %464, %464 : vector<16x640xf32>
    %469 = arith.addf %467, %468 : vector<16x640xf32>
    %c0_204 = arith.constant 0 : index
    %c0_205 = arith.constant 0 : index
    %470 = vector.load %arg5[%c0_204, %c0_205] : memref<1x640xf32, #tpu.memory_space<vmem>>, vector<1x640xf32>
    %471 = vector.broadcast %470 : vector<1x640xf32> to vector<16x640xf32>
    %472 = arith.mulf %469, %471 : vector<16x640xf32>
    %473 = vector.extract_strided_slice %472 {offsets = [0, 0], sizes = [16, 64], strides = [1, 1]} : vector<16x640xf32> to vector<16x64xf32>
    %474 = vector.extract_strided_slice %472 {offsets = [0, 64], sizes = [16, 64], strides = [1, 1]} : vector<16x640xf32> to vector<16x64xf32>
    %475 = vector.extract_strided_slice %472 {offsets = [0, 128], sizes = [16, 64], strides = [1, 1]} : vector<16x640xf32> to vector<16x64xf32>
    %476 = vector.extract_strided_slice %472 {offsets = [0, 192], sizes = [16, 64], strides = [1, 1]} : vector<16x640xf32> to vector<16x64xf32>
    %477 = vector.extract_strided_slice %472 {offsets = [0, 256], sizes = [16, 64], strides = [1, 1]} : vector<16x640xf32> to vector<16x64xf32>
    %478 = vector.extract_strided_slice %472 {offsets = [0, 320], sizes = [16, 64], strides = [1, 1]} : vector<16x640xf32> to vector<16x64xf32>
    %479 = vector.extract_strided_slice %472 {offsets = [0, 384], sizes = [16, 64], strides = [1, 1]} : vector<16x640xf32> to vector<16x64xf32>
    %480 = vector.extract_strided_slice %472 {offsets = [0, 448], sizes = [16, 64], strides = [1, 1]} : vector<16x640xf32> to vector<16x64xf32>
    %481 = vector.extract_strided_slice %472 {offsets = [0, 512], sizes = [16, 64], strides = [1, 1]} : vector<16x640xf32> to vector<16x64xf32>
    %482 = vector.extract_strided_slice %472 {offsets = [0, 576], sizes = [16, 64], strides = [1, 1]} : vector<16x640xf32> to vector<16x64xf32>
    %483 = arith.addf %473, %474 : vector<16x64xf32>
    %484 = arith.addf %475, %476 : vector<16x64xf32>
    %485 = arith.addf %477, %478 : vector<16x64xf32>
    %486 = arith.addf %479, %480 : vector<16x64xf32>
    %487 = arith.addf %481, %482 : vector<16x64xf32>
    %488 = arith.addf %483, %484 : vector<16x64xf32>
    %489 = arith.addf %485, %486 : vector<16x64xf32>
    %490 = arith.addf %488, %489 : vector<16x64xf32>
    %491 = arith.addf %490, %487 : vector<16x64xf32>
    %c0_206 = arith.constant 0 : index
    %c0_207 = arith.constant 0 : index
    %492 = vector.load %arg4[%c0_206, %c0_207] : memref<1x64xf32, #tpu.memory_space<vmem>>, vector<1x64xf32>
    %493 = vector.broadcast %492 : vector<1x64xf32> to vector<16x64xf32>
    %494 = arith.addf %491, %493 : vector<16x64xf32>
    %495 = math.tanh %494 : vector<16x64xf32>
    %496 = arith.mulf %437, %495 : vector<16x64xf32>
    %c0_208 = arith.constant 0 : index
    %c0_209 = arith.constant 0 : index
    %497 = vector.load %arg12[%c0_208, %c0_209] : memref<16x64xf32, #tpu.memory_space<vmem>>, vector<16x64xf32>
    tpu.vector_store %arg12[%c0_208, %c0_209], %496 {strides = array<i32>} : memref<16x64xf32, #tpu.memory_space<vmem>>, vector<16x64xf32>,
    %c5_i32 = arith.constant 5 : i32
    %c0_210 = arith.constant 0 : index
    %c0_211 = arith.constant 0 : index
    %498 = vector.load %arg12[%c0_210, %c0_211] : memref<16x64xf32, #tpu.memory_space<vmem>>, vector<16x64xf32>
    %c16_i32_212 = arith.constant 16 : i32
    %499 = arith.muli %c5_i32, %c16_i32_212 : i32
    %500 = tpu.assume_multiple %499, 16 : i32
    %501 = arith.index_cast %500 : i32 to index
    %c0_213 = arith.constant 0 : index
    %502 = vector.load %arg11[%501, %c0_213] : memref<128x896xf32, #tpu.memory_space<vmem>>, vector<16x896xf32>
    %c0_214 = arith.constant 0 : index
    %c0_215 = arith.constant 0 : index
    %503 = vector.load %arg2[%c0_214, %c0_215] : memref<64x896xf32, #tpu.memory_space<vmem>>, vector<64x896xf32>
    %cst_216 = arith.constant dense<0.000000e+00> : vector<16x896xf32>
    %504 = tpu.matmul %498, %503, %cst_216 {dimension_numbers = #tpu.dot_dimension_numbers<[1], [0], [0], [1], [0, 0, 1, 1], [], []>} : vector<16x64xf32>, vector<64x896xf32>, vector<16x896xf32> -> vector<16x896xf32>
    %505 = arith.addf %502, %504 : vector<16x896xf32>
    %506 = vector.extract_strided_slice %505 {offsets = [0, 0], sizes = [16, 64], strides = [1, 1]} : vector<16x896xf32> to vector<16x64xf32>
    %cst_217 = arith.constant 6.000000e+00 : f32
    %507 = vector.broadcast %cst_217 : f32 to vector<16x64xf32>
    %508 = arith.divf %506, %507 : vector<16x64xf32>
    %cst_218 = arith.constant 5.000000e-01 : f32
    %509 = vector.broadcast %cst_218 : f32 to vector<16x64xf32>
    %510 = arith.addf %508, %509 : vector<16x64xf32>
    %cst_219 = arith.constant 0.000000e+00 : f32
    %cst_220 = arith.constant 1.000000e+00 : f32
    %511 = vector.broadcast %cst_219 : f32 to vector<16x64xf32>
    %512 = arith.maximumf %511, %510 : vector<16x64xf32>
    %513 = vector.broadcast %cst_220 : f32 to vector<16x64xf32>
    %514 = arith.minimumf %513, %512 : vector<16x64xf32>
    %515 = vector.extract_strided_slice %505 {offsets = [0, 64], sizes = [16, 64], strides = [1, 1]} : vector<16x896xf32> to vector<16x64xf32>
    %cst_221 = arith.constant 6.000000e+00 : f32
    %516 = vector.broadcast %cst_221 : f32 to vector<16x64xf32>
    %517 = arith.divf %515, %516 : vector<16x64xf32>
    %cst_222 = arith.constant 5.000000e-01 : f32
    %518 = vector.broadcast %cst_222 : f32 to vector<16x64xf32>
    %519 = arith.addf %517, %518 : vector<16x64xf32>
    %cst_223 = arith.constant 0.000000e+00 : f32
    %cst_224 = arith.constant 1.000000e+00 : f32
    %520 = vector.broadcast %cst_223 : f32 to vector<16x64xf32>
    %521 = arith.maximumf %520, %519 : vector<16x64xf32>
    %522 = vector.broadcast %cst_224 : f32 to vector<16x64xf32>
    %523 = arith.minimumf %522, %521 : vector<16x64xf32>
    %524 = vector.extract_strided_slice %505 {offsets = [0, 128], sizes = [16, 64], strides = [1, 1]} : vector<16x896xf32> to vector<16x64xf32>
    %525 = math.tanh %524 : vector<16x64xf32>
    %526 = vector.extract_strided_slice %505 {offsets = [0, 192], sizes = [16, 64], strides = [1, 1]} : vector<16x896xf32> to vector<16x64xf32>
    %cst_225 = arith.constant 6.000000e+00 : f32
    %527 = vector.broadcast %cst_225 : f32 to vector<16x64xf32>
    %528 = arith.divf %526, %527 : vector<16x64xf32>
    %cst_226 = arith.constant 5.000000e-01 : f32
    %529 = vector.broadcast %cst_226 : f32 to vector<16x64xf32>
    %530 = arith.addf %528, %529 : vector<16x64xf32>
    %cst_227 = arith.constant 0.000000e+00 : f32
    %cst_228 = arith.constant 1.000000e+00 : f32
    %531 = vector.broadcast %cst_227 : f32 to vector<16x64xf32>
    %532 = arith.maximumf %531, %530 : vector<16x64xf32>
    %533 = vector.broadcast %cst_228 : f32 to vector<16x64xf32>
    %534 = arith.minimumf %533, %532 : vector<16x64xf32>
    %535 = vector.extract_strided_slice %505 {offsets = [0, 256], sizes = [16, 640], strides = [1, 1]} : vector<16x896xf32> to vector<16x640xf32>
    %cst_229 = arith.constant 6.000000e+00 : f32
    %536 = vector.broadcast %cst_229 : f32 to vector<16x640xf32>
    %537 = arith.divf %535, %536 : vector<16x640xf32>
    %cst_230 = arith.constant 5.000000e-01 : f32
    %538 = vector.broadcast %cst_230 : f32 to vector<16x640xf32>
    %539 = arith.addf %537, %538 : vector<16x640xf32>
    %cst_231 = arith.constant 0.000000e+00 : f32
    %cst_232 = arith.constant 1.000000e+00 : f32
    %540 = vector.broadcast %cst_231 : f32 to vector<16x640xf32>
    %541 = arith.maximumf %540, %539 : vector<16x640xf32>
    %542 = vector.broadcast %cst_232 : f32 to vector<16x640xf32>
    %543 = arith.minimumf %542, %541 : vector<16x640xf32>
    %544 = arith.mulf %514, %525 : vector<16x64xf32>
    %545 = tpu.concatenate %523, %523, %523, %523, %523, %523, %523, %523, %523, %523 in 1 : vector<16x64xf32>, vector<16x64xf32>, vector<16x64xf32>, vector<16x64xf32>, vector<16x64xf32>, vector<16x64xf32>, vector<16x64xf32>, vector<16x64xf32>, vector<16x64xf32>, vector<16x64xf32> -> vector<16x640xf32>
    %546 = tpu.concatenate %544, %544, %544, %544, %544, %544, %544, %544, %544, %544 in 1 : vector<16x64xf32>, vector<16x64xf32>, vector<16x64xf32>, vector<16x64xf32>, vector<16x64xf32>, vector<16x64xf32>, vector<16x64xf32>, vector<16x64xf32>, vector<16x64xf32>, vector<16x64xf32> -> vector<16x640xf32>
    %547 = arith.mulf %545, %543 : vector<16x640xf32>
    %548 = arith.index_cast %c5_i32 : i32 to index
    %c0_233 = arith.constant 0 : index
    %549 = vector.load %arg6[%548, %c0_233] : memref<8x640xf32, #tpu.memory_space<vmem>>, vector<1x640xf32>
    %550 = arith.index_cast %c5_i32 : i32 to index
    %c0_234 = arith.constant 0 : index
    %551 = vector.load %arg7[%550, %c0_234] : memref<8x640xf32, #tpu.memory_space<vmem>>, vector<1x640xf32>
    %c0_235 = arith.constant 0 : index
    %c0_236 = arith.constant 0 : index
    %552 = vector.load %arg13[%c0_235, %c0_236] : memref<16x640xf32, #tpu.memory_space<vmem>>, vector<16x640xf32>
    %553 = arith.mulf %547, %552 : vector<16x640xf32>
    %554 = vector.broadcast %549 : vector<1x640xf32> to vector<16x640xf32>
    %555 = arith.mulf %546, %554 : vector<16x640xf32>
    %556 = arith.addf %553, %555 : vector<16x640xf32>
    %c0_237 = arith.constant 0 : index
    %c0_238 = arith.constant 0 : index
    %557 = vector.load %arg14[%c0_237, %c0_238] : memref<16x640xf32, #tpu.memory_space<vmem>>, vector<16x640xf32>
    %558 = arith.mulf %547, %557 : vector<16x640xf32>
    %559 = vector.broadcast %551 : vector<1x640xf32> to vector<16x640xf32>
    %560 = arith.mulf %546, %559 : vector<16x640xf32>
    %561 = arith.addf %558, %560 : vector<16x640xf32>
    %c0_239 = arith.constant 0 : index
    %c0_240 = arith.constant 0 : index
    %562 = vector.load %arg13[%c0_239, %c0_240] : memref<16x640xf32, #tpu.memory_space<vmem>>, vector<16x640xf32>
    tpu.vector_store %arg13[%c0_239, %c0_240], %556 {strides = array<i32>} : memref<16x640xf32, #tpu.memory_space<vmem>>, vector<16x640xf32>,
    %c0_241 = arith.constant 0 : index
    %c0_242 = arith.constant 0 : index
    %563 = vector.load %arg14[%c0_241, %c0_242] : memref<16x640xf32, #tpu.memory_space<vmem>>, vector<16x640xf32>
    tpu.vector_store %arg14[%c0_241, %c0_242], %561 {strides = array<i32>} : memref<16x640xf32, #tpu.memory_space<vmem>>, vector<16x640xf32>,
    %564 = arith.mulf %556, %556 : vector<16x640xf32>
    %565 = arith.mulf %561, %561 : vector<16x640xf32>
    %566 = arith.addf %564, %565 : vector<16x640xf32>
    %c0_243 = arith.constant 0 : index
    %c0_244 = arith.constant 0 : index
    %567 = vector.load %arg5[%c0_243, %c0_244] : memref<1x640xf32, #tpu.memory_space<vmem>>, vector<1x640xf32>
    %568 = vector.broadcast %567 : vector<1x640xf32> to vector<16x640xf32>
    %569 = arith.mulf %566, %568 : vector<16x640xf32>
    %570 = vector.extract_strided_slice %569 {offsets = [0, 0], sizes = [16, 64], strides = [1, 1]} : vector<16x640xf32> to vector<16x64xf32>
    %571 = vector.extract_strided_slice %569 {offsets = [0, 64], sizes = [16, 64], strides = [1, 1]} : vector<16x640xf32> to vector<16x64xf32>
    %572 = vector.extract_strided_slice %569 {offsets = [0, 128], sizes = [16, 64], strides = [1, 1]} : vector<16x640xf32> to vector<16x64xf32>
    %573 = vector.extract_strided_slice %569 {offsets = [0, 192], sizes = [16, 64], strides = [1, 1]} : vector<16x640xf32> to vector<16x64xf32>
    %574 = vector.extract_strided_slice %569 {offsets = [0, 256], sizes = [16, 64], strides = [1, 1]} : vector<16x640xf32> to vector<16x64xf32>
    %575 = vector.extract_strided_slice %569 {offsets = [0, 320], sizes = [16, 64], strides = [1, 1]} : vector<16x640xf32> to vector<16x64xf32>
    %576 = vector.extract_strided_slice %569 {offsets = [0, 384], sizes = [16, 64], strides = [1, 1]} : vector<16x640xf32> to vector<16x64xf32>
    %577 = vector.extract_strided_slice %569 {offsets = [0, 448], sizes = [16, 64], strides = [1, 1]} : vector<16x640xf32> to vector<16x64xf32>
    %578 = vector.extract_strided_slice %569 {offsets = [0, 512], sizes = [16, 64], strides = [1, 1]} : vector<16x640xf32> to vector<16x64xf32>
    %579 = vector.extract_strided_slice %569 {offsets = [0, 576], sizes = [16, 64], strides = [1, 1]} : vector<16x640xf32> to vector<16x64xf32>
    %580 = arith.addf %570, %571 : vector<16x64xf32>
    %581 = arith.addf %572, %573 : vector<16x64xf32>
    %582 = arith.addf %574, %575 : vector<16x64xf32>
    %583 = arith.addf %576, %577 : vector<16x64xf32>
    %584 = arith.addf %578, %579 : vector<16x64xf32>
    %585 = arith.addf %580, %581 : vector<16x64xf32>
    %586 = arith.addf %582, %583 : vector<16x64xf32>
    %587 = arith.addf %585, %586 : vector<16x64xf32>
    %588 = arith.addf %587, %584 : vector<16x64xf32>
    %c0_245 = arith.constant 0 : index
    %c0_246 = arith.constant 0 : index
    %589 = vector.load %arg4[%c0_245, %c0_246] : memref<1x64xf32, #tpu.memory_space<vmem>>, vector<1x64xf32>
    %590 = vector.broadcast %589 : vector<1x64xf32> to vector<16x64xf32>
    %591 = arith.addf %588, %590 : vector<16x64xf32>
    %592 = math.tanh %591 : vector<16x64xf32>
    %593 = arith.mulf %534, %592 : vector<16x64xf32>
    %c0_247 = arith.constant 0 : index
    %c0_248 = arith.constant 0 : index
    %594 = vector.load %arg12[%c0_247, %c0_248] : memref<16x64xf32, #tpu.memory_space<vmem>>, vector<16x64xf32>
    tpu.vector_store %arg12[%c0_247, %c0_248], %593 {strides = array<i32>} : memref<16x64xf32, #tpu.memory_space<vmem>>, vector<16x64xf32>,
    %c6_i32 = arith.constant 6 : i32
    %c0_249 = arith.constant 0 : index
    %c0_250 = arith.constant 0 : index
    %595 = vector.load %arg12[%c0_249, %c0_250] : memref<16x64xf32, #tpu.memory_space<vmem>>, vector<16x64xf32>
    %c16_i32_251 = arith.constant 16 : i32
    %596 = arith.muli %c6_i32, %c16_i32_251 : i32
    %597 = tpu.assume_multiple %596, 16 : i32
    %598 = arith.index_cast %597 : i32 to index
    %c0_252 = arith.constant 0 : index
    %599 = vector.load %arg11[%598, %c0_252] : memref<128x896xf32, #tpu.memory_space<vmem>>, vector<16x896xf32>
    %c0_253 = arith.constant 0 : index
    %c0_254 = arith.constant 0 : index
    %600 = vector.load %arg2[%c0_253, %c0_254] : memref<64x896xf32, #tpu.memory_space<vmem>>, vector<64x896xf32>
    %cst_255 = arith.constant dense<0.000000e+00> : vector<16x896xf32>
    %601 = tpu.matmul %595, %600, %cst_255 {dimension_numbers = #tpu.dot_dimension_numbers<[1], [0], [0], [1], [0, 0, 1, 1], [], []>} : vector<16x64xf32>, vector<64x896xf32>, vector<16x896xf32> -> vector<16x896xf32>
    %602 = arith.addf %599, %601 : vector<16x896xf32>
    %603 = vector.extract_strided_slice %602 {offsets = [0, 0], sizes = [16, 64], strides = [1, 1]} : vector<16x896xf32> to vector<16x64xf32>
    %cst_256 = arith.constant 6.000000e+00 : f32
    %604 = vector.broadcast %cst_256 : f32 to vector<16x64xf32>
    %605 = arith.divf %603, %604 : vector<16x64xf32>
    %cst_257 = arith.constant 5.000000e-01 : f32
    %606 = vector.broadcast %cst_257 : f32 to vector<16x64xf32>
    %607 = arith.addf %605, %606 : vector<16x64xf32>
    %cst_258 = arith.constant 0.000000e+00 : f32
    %cst_259 = arith.constant 1.000000e+00 : f32
    %608 = vector.broadcast %cst_258 : f32 to vector<16x64xf32>
    %609 = arith.maximumf %608, %607 : vector<16x64xf32>
    %610 = vector.broadcast %cst_259 : f32 to vector<16x64xf32>
    %611 = arith.minimumf %610, %609 : vector<16x64xf32>
    %612 = vector.extract_strided_slice %602 {offsets = [0, 64], sizes = [16, 64], strides = [1, 1]} : vector<16x896xf32> to vector<16x64xf32>
    %cst_260 = arith.constant 6.000000e+00 : f32
    %613 = vector.broadcast %cst_260 : f32 to vector<16x64xf32>
    %614 = arith.divf %612, %613 : vector<16x64xf32>
    %cst_261 = arith.constant 5.000000e-01 : f32
    %615 = vector.broadcast %cst_261 : f32 to vector<16x64xf32>
    %616 = arith.addf %614, %615 : vector<16x64xf32>
    %cst_262 = arith.constant 0.000000e+00 : f32
    %cst_263 = arith.constant 1.000000e+00 : f32
    %617 = vector.broadcast %cst_262 : f32 to vector<16x64xf32>
    %618 = arith.maximumf %617, %616 : vector<16x64xf32>
    %619 = vector.broadcast %cst_263 : f32 to vector<16x64xf32>
    %620 = arith.minimumf %619, %618 : vector<16x64xf32>
    %621 = vector.extract_strided_slice %602 {offsets = [0, 128], sizes = [16, 64], strides = [1, 1]} : vector<16x896xf32> to vector<16x64xf32>
    %622 = math.tanh %621 : vector<16x64xf32>
    %623 = vector.extract_strided_slice %602 {offsets = [0, 192], sizes = [16, 64], strides = [1, 1]} : vector<16x896xf32> to vector<16x64xf32>
    %cst_264 = arith.constant 6.000000e+00 : f32
    %624 = vector.broadcast %cst_264 : f32 to vector<16x64xf32>
    %625 = arith.divf %623, %624 : vector<16x64xf32>
    %cst_265 = arith.constant 5.000000e-01 : f32
    %626 = vector.broadcast %cst_265 : f32 to vector<16x64xf32>
    %627 = arith.addf %625, %626 : vector<16x64xf32>
    %cst_266 = arith.constant 0.000000e+00 : f32
    %cst_267 = arith.constant 1.000000e+00 : f32
    %628 = vector.broadcast %cst_266 : f32 to vector<16x64xf32>
    %629 = arith.maximumf %628, %627 : vector<16x64xf32>
    %630 = vector.broadcast %cst_267 : f32 to vector<16x64xf32>
    %631 = arith.minimumf %630, %629 : vector<16x64xf32>
    %632 = vector.extract_strided_slice %602 {offsets = [0, 256], sizes = [16, 640], strides = [1, 1]} : vector<16x896xf32> to vector<16x640xf32>
    %cst_268 = arith.constant 6.000000e+00 : f32
    %633 = vector.broadcast %cst_268 : f32 to vector<16x640xf32>
    %634 = arith.divf %632, %633 : vector<16x640xf32>
    %cst_269 = arith.constant 5.000000e-01 : f32
    %635 = vector.broadcast %cst_269 : f32 to vector<16x640xf32>
    %636 = arith.addf %634, %635 : vector<16x640xf32>
    %cst_270 = arith.constant 0.000000e+00 : f32
    %cst_271 = arith.constant 1.000000e+00 : f32
    %637 = vector.broadcast %cst_270 : f32 to vector<16x640xf32>
    %638 = arith.maximumf %637, %636 : vector<16x640xf32>
    %639 = vector.broadcast %cst_271 : f32 to vector<16x640xf32>
    %640 = arith.minimumf %639, %638 : vector<16x640xf32>
    %641 = arith.mulf %611, %622 : vector<16x64xf32>
    %642 = tpu.concatenate %620, %620, %620, %620, %620, %620, %620, %620, %620, %620 in 1 : vector<16x64xf32>, vector<16x64xf32>, vector<16x64xf32>, vector<16x64xf32>, vector<16x64xf32>, vector<16x64xf32>, vector<16x64xf32>, vector<16x64xf32>, vector<16x64xf32>, vector<16x64xf32> -> vector<16x640xf32>
    %643 = tpu.concatenate %641, %641, %641, %641, %641, %641, %641, %641, %641, %641 in 1 : vector<16x64xf32>, vector<16x64xf32>, vector<16x64xf32>, vector<16x64xf32>, vector<16x64xf32>, vector<16x64xf32>, vector<16x64xf32>, vector<16x64xf32>, vector<16x64xf32>, vector<16x64xf32> -> vector<16x640xf32>
    %644 = arith.mulf %642, %640 : vector<16x640xf32>
    %645 = arith.index_cast %c6_i32 : i32 to index
    %c0_272 = arith.constant 0 : index
    %646 = vector.load %arg6[%645, %c0_272] : memref<8x640xf32, #tpu.memory_space<vmem>>, vector<1x640xf32>
    %647 = arith.index_cast %c6_i32 : i32 to index
    %c0_273 = arith.constant 0 : index
    %648 = vector.load %arg7[%647, %c0_273] : memref<8x640xf32, #tpu.memory_space<vmem>>, vector<1x640xf32>
    %c0_274 = arith.constant 0 : index
    %c0_275 = arith.constant 0 : index
    %649 = vector.load %arg13[%c0_274, %c0_275] : memref<16x640xf32, #tpu.memory_space<vmem>>, vector<16x640xf32>
    %650 = arith.mulf %644, %649 : vector<16x640xf32>
    %651 = vector.broadcast %646 : vector<1x640xf32> to vector<16x640xf32>
    %652 = arith.mulf %643, %651 : vector<16x640xf32>
    %653 = arith.addf %650, %652 : vector<16x640xf32>
    %c0_276 = arith.constant 0 : index
    %c0_277 = arith.constant 0 : index
    %654 = vector.load %arg14[%c0_276, %c0_277] : memref<16x640xf32, #tpu.memory_space<vmem>>, vector<16x640xf32>
    %655 = arith.mulf %644, %654 : vector<16x640xf32>
    %656 = vector.broadcast %648 : vector<1x640xf32> to vector<16x640xf32>
    %657 = arith.mulf %643, %656 : vector<16x640xf32>
    %658 = arith.addf %655, %657 : vector<16x640xf32>
    %c0_278 = arith.constant 0 : index
    %c0_279 = arith.constant 0 : index
    %659 = vector.load %arg13[%c0_278, %c0_279] : memref<16x640xf32, #tpu.memory_space<vmem>>, vector<16x640xf32>
    tpu.vector_store %arg13[%c0_278, %c0_279], %653 {strides = array<i32>} : memref<16x640xf32, #tpu.memory_space<vmem>>, vector<16x640xf32>,
    %c0_280 = arith.constant 0 : index
    %c0_281 = arith.constant 0 : index
    %660 = vector.load %arg14[%c0_280, %c0_281] : memref<16x640xf32, #tpu.memory_space<vmem>>, vector<16x640xf32>
    tpu.vector_store %arg14[%c0_280, %c0_281], %658 {strides = array<i32>} : memref<16x640xf32, #tpu.memory_space<vmem>>, vector<16x640xf32>,
    %661 = arith.mulf %653, %653 : vector<16x640xf32>
    %662 = arith.mulf %658, %658 : vector<16x640xf32>
    %663 = arith.addf %661, %662 : vector<16x640xf32>
    %c0_282 = arith.constant 0 : index
    %c0_283 = arith.constant 0 : index
    %664 = vector.load %arg5[%c0_282, %c0_283] : memref<1x640xf32, #tpu.memory_space<vmem>>, vector<1x640xf32>
    %665 = vector.broadcast %664 : vector<1x640xf32> to vector<16x640xf32>
    %666 = arith.mulf %663, %665 : vector<16x640xf32>
    %667 = vector.extract_strided_slice %666 {offsets = [0, 0], sizes = [16, 64], strides = [1, 1]} : vector<16x640xf32> to vector<16x64xf32>
    %668 = vector.extract_strided_slice %666 {offsets = [0, 64], sizes = [16, 64], strides = [1, 1]} : vector<16x640xf32> to vector<16x64xf32>
    %669 = vector.extract_strided_slice %666 {offsets = [0, 128], sizes = [16, 64], strides = [1, 1]} : vector<16x640xf32> to vector<16x64xf32>
    %670 = vector.extract_strided_slice %666 {offsets = [0, 192], sizes = [16, 64], strides = [1, 1]} : vector<16x640xf32> to vector<16x64xf32>
    %671 = vector.extract_strided_slice %666 {offsets = [0, 256], sizes = [16, 64], strides = [1, 1]} : vector<16x640xf32> to vector<16x64xf32>
    %672 = vector.extract_strided_slice %666 {offsets = [0, 320], sizes = [16, 64], strides = [1, 1]} : vector<16x640xf32> to vector<16x64xf32>
    %673 = vector.extract_strided_slice %666 {offsets = [0, 384], sizes = [16, 64], strides = [1, 1]} : vector<16x640xf32> to vector<16x64xf32>
    %674 = vector.extract_strided_slice %666 {offsets = [0, 448], sizes = [16, 64], strides = [1, 1]} : vector<16x640xf32> to vector<16x64xf32>
    %675 = vector.extract_strided_slice %666 {offsets = [0, 512], sizes = [16, 64], strides = [1, 1]} : vector<16x640xf32> to vector<16x64xf32>
    %676 = vector.extract_strided_slice %666 {offsets = [0, 576], sizes = [16, 64], strides = [1, 1]} : vector<16x640xf32> to vector<16x64xf32>
    %677 = arith.addf %667, %668 : vector<16x64xf32>
    %678 = arith.addf %669, %670 : vector<16x64xf32>
    %679 = arith.addf %671, %672 : vector<16x64xf32>
    %680 = arith.addf %673, %674 : vector<16x64xf32>
    %681 = arith.addf %675, %676 : vector<16x64xf32>
    %682 = arith.addf %677, %678 : vector<16x64xf32>
    %683 = arith.addf %679, %680 : vector<16x64xf32>
    %684 = arith.addf %682, %683 : vector<16x64xf32>
    %685 = arith.addf %684, %681 : vector<16x64xf32>
    %c0_284 = arith.constant 0 : index
    %c0_285 = arith.constant 0 : index
    %686 = vector.load %arg4[%c0_284, %c0_285] : memref<1x64xf32, #tpu.memory_space<vmem>>, vector<1x64xf32>
    %687 = vector.broadcast %686 : vector<1x64xf32> to vector<16x64xf32>
    %688 = arith.addf %685, %687 : vector<16x64xf32>
    %689 = math.tanh %688 : vector<16x64xf32>
    %690 = arith.mulf %631, %689 : vector<16x64xf32>
    %c0_286 = arith.constant 0 : index
    %c0_287 = arith.constant 0 : index
    %691 = vector.load %arg12[%c0_286, %c0_287] : memref<16x64xf32, #tpu.memory_space<vmem>>, vector<16x64xf32>
    tpu.vector_store %arg12[%c0_286, %c0_287], %690 {strides = array<i32>} : memref<16x64xf32, #tpu.memory_space<vmem>>, vector<16x64xf32>,
    %c7_i32 = arith.constant 7 : i32
    %c0_288 = arith.constant 0 : index
    %c0_289 = arith.constant 0 : index
    %692 = vector.load %arg12[%c0_288, %c0_289] : memref<16x64xf32, #tpu.memory_space<vmem>>, vector<16x64xf32>
    %c16_i32_290 = arith.constant 16 : i32
    %693 = arith.muli %c7_i32, %c16_i32_290 : i32
    %694 = tpu.assume_multiple %693, 16 : i32
    %695 = arith.index_cast %694 : i32 to index
    %c0_291 = arith.constant 0 : index
    %696 = vector.load %arg11[%695, %c0_291] : memref<128x896xf32, #tpu.memory_space<vmem>>, vector<16x896xf32>
    %c0_292 = arith.constant 0 : index
    %c0_293 = arith.constant 0 : index
    %697 = vector.load %arg2[%c0_292, %c0_293] : memref<64x896xf32, #tpu.memory_space<vmem>>, vector<64x896xf32>
    %cst_294 = arith.constant dense<0.000000e+00> : vector<16x896xf32>
    %698 = tpu.matmul %692, %697, %cst_294 {dimension_numbers = #tpu.dot_dimension_numbers<[1], [0], [0], [1], [0, 0, 1, 1], [], []>} : vector<16x64xf32>, vector<64x896xf32>, vector<16x896xf32> -> vector<16x896xf32>
    %699 = arith.addf %696, %698 : vector<16x896xf32>
    %700 = vector.extract_strided_slice %699 {offsets = [0, 0], sizes = [16, 64], strides = [1, 1]} : vector<16x896xf32> to vector<16x64xf32>
    %cst_295 = arith.constant 6.000000e+00 : f32
    %701 = vector.broadcast %cst_295 : f32 to vector<16x64xf32>
    %702 = arith.divf %700, %701 : vector<16x64xf32>
    %cst_296 = arith.constant 5.000000e-01 : f32
    %703 = vector.broadcast %cst_296 : f32 to vector<16x64xf32>
    %704 = arith.addf %702, %703 : vector<16x64xf32>
    %cst_297 = arith.constant 0.000000e+00 : f32
    %cst_298 = arith.constant 1.000000e+00 : f32
    %705 = vector.broadcast %cst_297 : f32 to vector<16x64xf32>
    %706 = arith.maximumf %705, %704 : vector<16x64xf32>
    %707 = vector.broadcast %cst_298 : f32 to vector<16x64xf32>
    %708 = arith.minimumf %707, %706 : vector<16x64xf32>
    %709 = vector.extract_strided_slice %699 {offsets = [0, 64], sizes = [16, 64], strides = [1, 1]} : vector<16x896xf32> to vector<16x64xf32>
    %cst_299 = arith.constant 6.000000e+00 : f32
    %710 = vector.broadcast %cst_299 : f32 to vector<16x64xf32>
    %711 = arith.divf %709, %710 : vector<16x64xf32>
    %cst_300 = arith.constant 5.000000e-01 : f32
    %712 = vector.broadcast %cst_300 : f32 to vector<16x64xf32>
    %713 = arith.addf %711, %712 : vector<16x64xf32>
    %cst_301 = arith.constant 0.000000e+00 : f32
    %cst_302 = arith.constant 1.000000e+00 : f32
    %714 = vector.broadcast %cst_301 : f32 to vector<16x64xf32>
    %715 = arith.maximumf %714, %713 : vector<16x64xf32>
    %716 = vector.broadcast %cst_302 : f32 to vector<16x64xf32>
    %717 = arith.minimumf %716, %715 : vector<16x64xf32>
    %718 = vector.extract_strided_slice %699 {offsets = [0, 128], sizes = [16, 64], strides = [1, 1]} : vector<16x896xf32> to vector<16x64xf32>
    %719 = math.tanh %718 : vector<16x64xf32>
    %720 = vector.extract_strided_slice %699 {offsets = [0, 192], sizes = [16, 64], strides = [1, 1]} : vector<16x896xf32> to vector<16x64xf32>
    %cst_303 = arith.constant 6.000000e+00 : f32
    %721 = vector.broadcast %cst_303 : f32 to vector<16x64xf32>
    %722 = arith.divf %720, %721 : vector<16x64xf32>
    %cst_304 = arith.constant 5.000000e-01 : f32
    %723 = vector.broadcast %cst_304 : f32 to vector<16x64xf32>
    %724 = arith.addf %722, %723 : vector<16x64xf32>
    %cst_305 = arith.constant 0.000000e+00 : f32
    %cst_306 = arith.constant 1.000000e+00 : f32
    %725 = vector.broadcast %cst_305 : f32 to vector<16x64xf32>
    %726 = arith.maximumf %725, %724 : vector<16x64xf32>
    %727 = vector.broadcast %cst_306 : f32 to vector<16x64xf32>
    %728 = arith.minimumf %727, %726 : vector<16x64xf32>
    %729 = vector.extract_strided_slice %699 {offsets = [0, 256], sizes = [16, 640], strides = [1, 1]} : vector<16x896xf32> to vector<16x640xf32>
    %cst_307 = arith.constant 6.000000e+00 : f32
    %730 = vector.broadcast %cst_307 : f32 to vector<16x640xf32>
    %731 = arith.divf %729, %730 : vector<16x640xf32>
    %cst_308 = arith.constant 5.000000e-01 : f32
    %732 = vector.broadcast %cst_308 : f32 to vector<16x640xf32>
    %733 = arith.addf %731, %732 : vector<16x640xf32>
    %cst_309 = arith.constant 0.000000e+00 : f32
    %cst_310 = arith.constant 1.000000e+00 : f32
    %734 = vector.broadcast %cst_309 : f32 to vector<16x640xf32>
    %735 = arith.maximumf %734, %733 : vector<16x640xf32>
    %736 = vector.broadcast %cst_310 : f32 to vector<16x640xf32>
    %737 = arith.minimumf %736, %735 : vector<16x640xf32>
    %738 = arith.mulf %708, %719 : vector<16x64xf32>
    %739 = tpu.concatenate %717, %717, %717, %717, %717, %717, %717, %717, %717, %717 in 1 : vector<16x64xf32>, vector<16x64xf32>, vector<16x64xf32>, vector<16x64xf32>, vector<16x64xf32>, vector<16x64xf32>, vector<16x64xf32>, vector<16x64xf32>, vector<16x64xf32>, vector<16x64xf32> -> vector<16x640xf32>
    %740 = tpu.concatenate %738, %738, %738, %738, %738, %738, %738, %738, %738, %738 in 1 : vector<16x64xf32>, vector<16x64xf32>, vector<16x64xf32>, vector<16x64xf32>, vector<16x64xf32>, vector<16x64xf32>, vector<16x64xf32>, vector<16x64xf32>, vector<16x64xf32>, vector<16x64xf32> -> vector<16x640xf32>
    %741 = arith.mulf %739, %737 : vector<16x640xf32>
    %742 = arith.index_cast %c7_i32 : i32 to index
    %c0_311 = arith.constant 0 : index
    %743 = vector.load %arg6[%742, %c0_311] : memref<8x640xf32, #tpu.memory_space<vmem>>, vector<1x640xf32>
    %744 = arith.index_cast %c7_i32 : i32 to index
    %c0_312 = arith.constant 0 : index
    %745 = vector.load %arg7[%744, %c0_312] : memref<8x640xf32, #tpu.memory_space<vmem>>, vector<1x640xf32>
    %c0_313 = arith.constant 0 : index
    %c0_314 = arith.constant 0 : index
    %746 = vector.load %arg13[%c0_313, %c0_314] : memref<16x640xf32, #tpu.memory_space<vmem>>, vector<16x640xf32>
    %747 = arith.mulf %741, %746 : vector<16x640xf32>
    %748 = vector.broadcast %743 : vector<1x640xf32> to vector<16x640xf32>
    %749 = arith.mulf %740, %748 : vector<16x640xf32>
    %750 = arith.addf %747, %749 : vector<16x640xf32>
    %c0_315 = arith.constant 0 : index
    %c0_316 = arith.constant 0 : index
    %751 = vector.load %arg14[%c0_315, %c0_316] : memref<16x640xf32, #tpu.memory_space<vmem>>, vector<16x640xf32>
    %752 = arith.mulf %741, %751 : vector<16x640xf32>
    %753 = vector.broadcast %745 : vector<1x640xf32> to vector<16x640xf32>
    %754 = arith.mulf %740, %753 : vector<16x640xf32>
    %755 = arith.addf %752, %754 : vector<16x640xf32>
    %c0_317 = arith.constant 0 : index
    %c0_318 = arith.constant 0 : index
    %756 = vector.load %arg13[%c0_317, %c0_318] : memref<16x640xf32, #tpu.memory_space<vmem>>, vector<16x640xf32>
    tpu.vector_store %arg13[%c0_317, %c0_318], %750 {strides = array<i32>} : memref<16x640xf32, #tpu.memory_space<vmem>>, vector<16x640xf32>,
    %c0_319 = arith.constant 0 : index
    %c0_320 = arith.constant 0 : index
    %757 = vector.load %arg14[%c0_319, %c0_320] : memref<16x640xf32, #tpu.memory_space<vmem>>, vector<16x640xf32>
    tpu.vector_store %arg14[%c0_319, %c0_320], %755 {strides = array<i32>} : memref<16x640xf32, #tpu.memory_space<vmem>>, vector<16x640xf32>,
    %758 = arith.mulf %750, %750 : vector<16x640xf32>
    %759 = arith.mulf %755, %755 : vector<16x640xf32>
    %760 = arith.addf %758, %759 : vector<16x640xf32>
    %c0_321 = arith.constant 0 : index
    %c0_322 = arith.constant 0 : index
    %761 = vector.load %arg5[%c0_321, %c0_322] : memref<1x640xf32, #tpu.memory_space<vmem>>, vector<1x640xf32>
    %762 = vector.broadcast %761 : vector<1x640xf32> to vector<16x640xf32>
    %763 = arith.mulf %760, %762 : vector<16x640xf32>
    %764 = vector.extract_strided_slice %763 {offsets = [0, 0], sizes = [16, 64], strides = [1, 1]} : vector<16x640xf32> to vector<16x64xf32>
    %765 = vector.extract_strided_slice %763 {offsets = [0, 64], sizes = [16, 64], strides = [1, 1]} : vector<16x640xf32> to vector<16x64xf32>
    %766 = vector.extract_strided_slice %763 {offsets = [0, 128], sizes = [16, 64], strides = [1, 1]} : vector<16x640xf32> to vector<16x64xf32>
    %767 = vector.extract_strided_slice %763 {offsets = [0, 192], sizes = [16, 64], strides = [1, 1]} : vector<16x640xf32> to vector<16x64xf32>
    %768 = vector.extract_strided_slice %763 {offsets = [0, 256], sizes = [16, 64], strides = [1, 1]} : vector<16x640xf32> to vector<16x64xf32>
    %769 = vector.extract_strided_slice %763 {offsets = [0, 320], sizes = [16, 64], strides = [1, 1]} : vector<16x640xf32> to vector<16x64xf32>
    %770 = vector.extract_strided_slice %763 {offsets = [0, 384], sizes = [16, 64], strides = [1, 1]} : vector<16x640xf32> to vector<16x64xf32>
    %771 = vector.extract_strided_slice %763 {offsets = [0, 448], sizes = [16, 64], strides = [1, 1]} : vector<16x640xf32> to vector<16x64xf32>
    %772 = vector.extract_strided_slice %763 {offsets = [0, 512], sizes = [16, 64], strides = [1, 1]} : vector<16x640xf32> to vector<16x64xf32>
    %773 = vector.extract_strided_slice %763 {offsets = [0, 576], sizes = [16, 64], strides = [1, 1]} : vector<16x640xf32> to vector<16x64xf32>
    %774 = arith.addf %764, %765 : vector<16x64xf32>
    %775 = arith.addf %766, %767 : vector<16x64xf32>
    %776 = arith.addf %768, %769 : vector<16x64xf32>
    %777 = arith.addf %770, %771 : vector<16x64xf32>
    %778 = arith.addf %772, %773 : vector<16x64xf32>
    %779 = arith.addf %774, %775 : vector<16x64xf32>
    %780 = arith.addf %776, %777 : vector<16x64xf32>
    %781 = arith.addf %779, %780 : vector<16x64xf32>
    %782 = arith.addf %781, %778 : vector<16x64xf32>
    %c0_323 = arith.constant 0 : index
    %c0_324 = arith.constant 0 : index
    %783 = vector.load %arg4[%c0_323, %c0_324] : memref<1x64xf32, #tpu.memory_space<vmem>>, vector<1x64xf32>
    %784 = vector.broadcast %783 : vector<1x64xf32> to vector<16x64xf32>
    %785 = arith.addf %782, %784 : vector<16x64xf32>
    %786 = math.tanh %785 : vector<16x64xf32>
    %787 = arith.mulf %728, %786 : vector<16x64xf32>
    %c0_325 = arith.constant 0 : index
    %c0_326 = arith.constant 0 : index
    %788 = vector.load %arg12[%c0_325, %c0_326] : memref<16x64xf32, #tpu.memory_space<vmem>>, vector<16x64xf32>
    tpu.vector_store %arg12[%c0_325, %c0_326], %787 {strides = array<i32>} : memref<16x64xf32, #tpu.memory_space<vmem>>, vector<16x64xf32>,
    %c8_i32 = arith.constant 8 : i32
    %c0_327 = arith.constant 0 : index
    %c0_328 = arith.constant 0 : index
    %789 = vector.load %arg12[%c0_327, %c0_328] : memref<16x64xf32, #tpu.memory_space<vmem>>, vector<16x64xf32>
    %c0_329 = arith.constant 0 : index
    %c0_330 = arith.constant 0 : index
    %790 = vector.load %arg8[%c0_329, %c0_330] : memref<64x1xf32, #tpu.memory_space<vmem>>, vector<64x1xf32>
    %cst_331 = arith.constant dense<0.000000e+00> : vector<16x1xf32>
    %791 = tpu.matmul %789, %790, %cst_331 {dimension_numbers = #tpu.dot_dimension_numbers<[1], [0], [0], [1], [0, 0, 1, 1], [], []>} : vector<16x64xf32>, vector<64x1xf32>, vector<16x1xf32> -> vector<16x1xf32>
    %c0_332 = arith.constant 0 : index
    %c0_333 = arith.constant 0 : index
    %792 = vector.load %arg9[%c0_332, %c0_333] : memref<1x1xf32, #tpu.memory_space<vmem>>, vector<1x1xf32>
    %793 = vector.broadcast %792 : vector<1x1xf32> to vector<16x1xf32>
    %794 = arith.addf %791, %793 : vector<16x1xf32>
    %c0_334 = arith.constant 0 : index
    %c0_335 = arith.constant 0 : index
    %795 = vector.load %arg10[%c0_334, %c0_335] : memref<16x1xf32, #tpu.memory_space<vmem>>, vector<16x1xf32>
    tpu.vector_store %arg10[%c0_334, %c0_335], %794 {strides = array<i32>} : memref<16x1xf32, #tpu.memory_space<vmem>>, vector<16x1xf32>,
    return
  }
}

</mosaic_0001>

<llo_original>
// kernel: tpu_custom_call.1
$region0: #{tpu_custom_call.1}
  #allocation0 [shape = 'u32[]', space=smem, size = 0x4, offset = 0x4, fixed_abs, tag = 'smem constant byte address 0x4 - core index']
  #allocation1 [shape = 'u32[144,128]{1,0:T(1,128)}', space=vmem, size = 0x12000, scoped, tag = 'internal scratch']
  #allocation2 [shape = 'f32[128,896]{1,0:T(8,128)}', space=vmem, size = 0x70000, scoped, tag = 'scratch operand']
  #allocation3 [shape = 'f32[16,64]{1,0:T(8,128)}', space=vmem, size = 0x2000, scoped, tag = 'scratch operand']
  #allocation4 [shape = 'f32[16,640]{1,0:T(8,128)}', space=vmem, size = 0xa000, scoped, tag = 'scratch operand']
  #allocation5 [shape = 'f32[16,640]{1,0:T(8,128)}', space=vmem, size = 0xa000, scoped, tag = 'scratch operand']
  #allocation6 [shape = 'f32[1,1]{1,0:T(1,128)S(1)}', space=vmem, size = 0x200, scoped, tag = 'scoped memory for tpu_custom_call.1']
  %s0 = inlined_call_operand.vmem [shape: f32[128,6], index: 0, kind: input, shape index: {}]
  %s1 = inlined_call_operand.vmem [shape: f32[6,896], index: 1, kind: input, shape index: {}]
  %s2 = inlined_call_operand.hbm [shape: f32[64,896], index: 2, kind: input, shape index: {}]
  %s3 = inlined_call_operand.vmem [shape: f32[1,896], index: 3, kind: input, shape index: {}]
  %s4 = inlined_call_operand.vmem [shape: f32[1,64], index: 4, kind: input, shape index: {}]
  %s5 = inlined_call_operand.vmem [shape: f32[1,640], index: 5, kind: input, shape index: {}]
  %s6 = inlined_call_operand.vmem [shape: f32[8,640], index: 6, kind: input, shape index: {}]
  %s7 = inlined_call_operand.vmem [shape: f32[8,640], index: 7, kind: input, shape index: {}]
  %s8 = inlined_call_operand.vmem [shape: f32[64,1], index: 8, kind: input, shape index: {}]
  %s9 = inlined_call_operand.<no memory space> [shape: f32[1,1], index: 9, kind: input, shape index: {}]
  %s10 = inlined_call_operand.vmem [shape: f32[16,1], index: 10, kind: output, shape index: {}]
  %s11 = sld [smem:[#allocation0]]
  $region54: #{tpu_custom_call.1} parent=0
    _
  %s13 = ssub.s32 1, %s11
  %s14 = scalar_select 0, %s13, %s11
  %v15 = vstv %s9
  %16 = vst [vmem:[#allocation6] sm:$0x1] %v15
  $region1: #{tpu_custom_call.1} parent=0
    #allocation7 [shape = 'u8[229376]{0}', space=vmem, size = 0x38000, scoped, tag = 'input window, operand 2, single buffered']
    #allocation8 [shape = 's32[1]{0}', space=sflag, size = 0x4, scoped, tag = 'scoped memory for tpu_custom_call.1']
    %17 = vsyncpa [#allocation8], 0
    // Predicated region
    $region2: #{tpu_custom_call.1} parent=1 // pred_check
      _
    $region3: #{tpu_custom_call.1} parent=1 // pred_check_branch
      %19 = sbr.rel (0) target = $region5
    $region4: #{tpu_custom_call.1} parent=1 // pred_region
      _
    $region5: #{tpu_custom_call.1} parent=1 // pred_fallthru
      _
    // Predicated region
    $region6: #{tpu_custom_call.1} parent=1 // pred_check
      _
    $region7: #{tpu_custom_call.1} parent=1 // pred_check_branch
      %21 = sbr.rel (0) target = $region9
    $region8: #{tpu_custom_call.1} parent=1 // pred_region
      _
    $region9: #{tpu_custom_call.1} parent=1 // pred_fallthru
      _
    // Predicated region
    $region10: #{tpu_custom_call.1} parent=1 // pred_check
      _
    $region11: #{tpu_custom_call.1} parent=1 // pred_check_branch
      %23 = sbr.rel (0) target = $region13
    $region12: #{tpu_custom_call.1} parent=1 // pred_region
      %s25 = ssub.s32 7168, 7168
      %26 = vsyncadd [#allocation8], %s25
      %s27 = sshll.u32 [#allocation7], 4
      %s28 = int_to_ptr.vmem [resolvable:$true] %s27
      %33 = dma.hbm_to_vmem [thread:$0]  %s2, 7168, %s28, [#allocation8], 896, 896, 56
    $region13: #{tpu_custom_call.1} parent=1 // pred_fallthru
      _
    // Predicated region
    $region14: #{tpu_custom_call.1} parent=1 // pred_check
      _
    $region15: #{tpu_custom_call.1} parent=1 // pred_check_branch
      %35 = sbr.rel (0) target = $region17
    $region16: #{tpu_custom_call.1} parent=1 // pred_region
      _
    $region17: #{tpu_custom_call.1} parent=1 // pred_fallthru
      _
    // Predicated region
    $region18: #{tpu_custom_call.1} parent=1 // pred_check
      _
    $region19: #{tpu_custom_call.1} parent=1 // pred_check_branch
      %37 = sbr.rel (0) target = $region21
    $region20: #{tpu_custom_call.1} parent=1 // pred_region
      _
    $region21: #{tpu_custom_call.1} parent=1 // pred_fallthru
      _
    // Predicated region
    $region22: #{tpu_custom_call.1} parent=1 // pred_check
      _
    $region23: #{tpu_custom_call.1} parent=1 // pred_check_branch
      %39 = sbr.rel (0) target = $region25
    $region24: #{tpu_custom_call.1} parent=1 // pred_region
      _
    $region25: #{tpu_custom_call.1} parent=1 // pred_fallthru
      _
    // Predicated region
    $region26: #{tpu_custom_call.1} parent=1 // pred_check
      _
    $region27: #{tpu_custom_call.1} parent=1 // pred_check_branch
      %41 = sbr.rel (0) target = $region29
    $region28: #{tpu_custom_call.1} parent=1 // pred_region
      _
    $region29: #{tpu_custom_call.1} parent=1 // pred_fallthru
      _
    // Predicated region
    $region30: #{tpu_custom_call.1} parent=1 // pred_check
      _
    $region31: #{tpu_custom_call.1} parent=1 // pred_check_branch
      %43 = sbr.rel (0) target = $region33
    $region32: #{tpu_custom_call.1} parent=1 // pred_region
      _
    $region33: #{tpu_custom_call.1} parent=1 // pred_fallthru
      _
    // Predicated region
    $region34: #{tpu_custom_call.1} parent=1 // pred_check
      _
    $region35: #{tpu_custom_call.1} parent=1 // pred_check_branch
      %45 = sbr.rel (0) target = $region37
    $region36: #{tpu_custom_call.1} parent=1 // pred_region
      _
    $region37: #{tpu_custom_call.1} parent=1 // pred_fallthru
      _
    // Predicated region
    $region38: #{tpu_custom_call.1} parent=1 // pred_check
      _
    $region39: #{tpu_custom_call.1} parent=1 // pred_check_branch
      %47 = sbr.rel (0) target = $region41
    $region40: #{tpu_custom_call.1} parent=1 // pred_region
      _
    $region41: #{tpu_custom_call.1} parent=1 // pred_fallthru
      _
    // Predicated region
    $region42: #{tpu_custom_call.1} parent=1 // pred_check
      _
    $region43: #{tpu_custom_call.1} parent=1 // pred_check_branch
      %49 = sbr.rel (0) target = $region45
    $region44: #{tpu_custom_call.1} parent=1 // pred_region
      %50 = dma.done [#allocation8], 7168
    $region45: #{tpu_custom_call.1} parent=1 // pred_fallthru
      _
    %v51 = vld [vmem:[%s0] sm:$0xff]
    %v52 = vld [vmem:[%s0 + $0x8] sm:$0xff]
    %v53 = vld [vmem:[%s0 + $0x10] sm:$0xff]
    %v54 = vld [vmem:[%s0 + $0x18] sm:$0xff]
    %v55 = vld [vmem:[%s0 + $0x20] sm:$0xff]
    %v56 = vld [vmem:[%s0 + $0x28] sm:$0xff]
    %v57 = vld [vmem:[%s0 + $0x30] sm:$0xff]
    %v58 = vld [vmem:[%s0 + $0x38] sm:$0xff]
    %v59 = vld [vmem:[%s0 + $0x40] sm:$0xff]
    %v60 = vld [vmem:[%s0 + $0x48] sm:$0xff]
    %v61 = vld [vmem:[%s0 + $0x50] sm:$0xff]
    %v62 = vld [vmem:[%s0 + $0x58] sm:$0xff]
    %v63 = vld [vmem:[%s0 + $0x60] sm:$0xff]
    %v64 = vld [vmem:[%s0 + $0x68] sm:$0xff]
    %v65 = vld [vmem:[%s0 + $0x70] sm:$0xff]
    %v66 = vld [vmem:[%s0 + $0x78] sm:$0xff]
    %v67 = vld [vmem:[%s1] sm:$0x3f]
    %v68 = vld [vmem:[%s1 + $0x8] sm:$0x3f]
    %v69 = vld [vmem:[%s1 + $0x10] sm:$0x3f]
    %v70 = vld [vmem:[%s1 + $0x18] sm:$0x3f]
    %v71 = vld [vmem:[%s1 + $0x20] sm:$0x3f]
    %v72 = vld [vmem:[%s1 + $0x28] sm:$0x3f]
    %v73 = vld [vmem:[%s1 + $0x30] sm:$0x3f]
    %v74 = vld [vmem:[%s3] sm:$0xff]
    %v76 = vlaneseq
    %v77 = vshrl.u32 %v76, 7
    %v78 = vsub.s32 0, %v77
    %v79 = vrot.slane %v74, %v78
    %v80 = vlaneseq
    %v81 = vshrl.u32 %v80, 7
    %v82 = vsub.s32 1, %v81
    %v83 = vrot.slane %v74, %v82
    %v84 = vlaneseq
    %v85 = vshrl.u32 %v84, 7
    %v86 = vsub.s32 2, %v85
    %v87 = vrot.slane %v74, %v86
    %v88 = vlaneseq
    %v89 = vshrl.u32 %v88, 7
    %v90 = vsub.s32 3, %v89
    %v91 = vrot.slane %v74, %v90
    %v92 = vlaneseq
    %v93 = vshrl.u32 %v92, 7
    %v94 = vsub.s32 4, %v93
    %v95 = vrot.slane %v74, %v94
    %v96 = vlaneseq
    %v97 = vshrl.u32 %v96, 7
    %v98 = vsub.s32 5, %v97
    %v99 = vrot.slane %v74, %v98
    %v100 = vlaneseq
    %v101 = vshrl.u32 %v100, 7
    %v102 = vsub.s32 6, %v101
    %v103 = vrot.slane %v74, %v102
    %vm111 = vcmask 48128
    %v113 = vsel %vm111, %v51, 0
    %v116 = vsel %vm111, %v52, 0
    %v119 = vsel %vm111, %v53, 0
    %v122 = vsel %vm111, %v54, 0
    %v125 = vsel %vm111, %v55, 0
    %v128 = vsel %vm111, %v56, 0
    %v131 = vsel %vm111, %v57, 0
    %v134 = vsel %vm111, %v58, 0
    %v137 = vsel %vm111, %v59, 0
    %v140 = vsel %vm111, %v60, 0
    %v143 = vsel %vm111, %v61, 0
    %v146 = vsel %vm111, %v62, 0
    %v149 = vsel %vm111, %v63, 0
    %v152 = vsel %vm111, %v64, 0
    %v155 = vsel %vm111, %v65, 0
    %v158 = vsel %vm111, %v66, 0
    %vm160 = vcmask 1045504
    %v162 = vsel %vm160, %v67, 0
    %v165 = vsel %vm160, %v68, 0
    %v168 = vsel %vm160, %v69, 0
    %v171 = vsel %vm160, %v70, 0
    %v174 = vsel %vm160, %v71, 0
    %v177 = vsel %vm160, %v72, 0
    %v180 = vsel %vm160, %v73, 0
    %182 = vmatprep.subr.mxu0 0.0
    %183 = vmatpush1.msra.mxu0 0.0
    %184 = vmatprep.subr.mxu0 0.0
    %185 = vmatpush1.msra.mxu0 0.0
    %186 = vmatprep.subr.mxu0 0.0
    %187 = vmatpush1.msra.mxu0 0.0
    %188 = vmatprep.subr.mxu0 0.0
    %189 = vmatpush1.msra.mxu0 0.0
    %190 = vmatprep.subr.mxu0 0.0
    %191 = vmatpush1.msra.mxu0 0.0
    %192 = vmatprep.subr.mxu0 0.0
    %193 = vmatpush1.msra.mxu0 0.0
    %194 = vmatprep.subr.mxu0 0.0
    %195 = vmatpush1.msra.mxu0 0.0
    %196 = vmatprep.subr.mxu0 0.0
    %197 = vmatpush1.msra.mxu0 0.0
    %198 = vmatprep.subr.mxu0 0.0
    %199 = vmatpush1.msra.mxu0 0.0
    %200 = vmatprep.subr.mxu0 0.0
    %201 = vmatpush1.msra.mxu0 0.0
    %202 = vmatprep.subr.mxu0 0.0
    %203 = vmatpush1.msra.mxu0 0.0
    %204 = vmatprep.subr.mxu0 0.0
    %205 = vmatpush1.msra.mxu0 0.0
    %206 = vmatprep.subr.mxu0 0.0
    %207 = vmatpush1.msra.mxu0 0.0
    %208 = vmatprep.subr.mxu0 0.0
    %209 = vmatpush1.msra.mxu0 0.0
    %210 = vmatprep.subr.mxu0 0.0
    %211 = vmatpush1.msra.mxu0 0.0
    %212 = vmatprep.subr.mxu0 %v165
    %213 = vmatpush1.msra.mxu0 %v162
    %214 = vmatprep.subr.mxu0 0.0
    %215 = vmatpush2.msra.mxu0 0.0
    %216 = vmatprep.subr.mxu0 0.0
    %217 = vmatpush2.msra.mxu0 0.0
    %218 = vmatprep.subr.mxu0 0.0
    %219 = vmatpush2.msra.mxu0 0.0
    %220 = vmatprep.subr.mxu0 0.0
    %221 = vmatpush2.msra.mxu0 0.0
    %222 = vmatprep.subr.mxu0 0.0
    %223 = vmatpush2.msra.mxu0 0.0
    %224 = vmatprep.subr.mxu0 0.0
    %225 = vmatpush2.msra.mxu0 0.0
    %226 = vmatprep.subr.mxu0 0.0
    %227 = vmatpush2.msra.mxu0 0.0
    %228 = vmatprep.subr.mxu0 0.0
    %229 = vmatpush2.msra.mxu0 0.0
    %230 = vmatprep.subr.mxu0 0.0
    %231 = vmatpush2.msra.mxu0 0.0
    %232 = vmatprep.subr.mxu0 0.0
    %233 = vmatpush2.msra.mxu0 0.0
    %234 = vmatprep.subr.mxu0 0.0
    %235 = vmatpush2.msra.mxu0 0.0
    %236 = vmatprep.subr.mxu0 0.0
    %237 = vmatpush2.msra.mxu0 0.0
    %238 = vmatprep.subr.mxu0 0.0
    %239 = vmatpush2.msra.mxu0 0.0
    %240 = vmatprep.subr.mxu0 0.0
    %241 = vmatpush2.msra.mxu0 0.0
    %242 = vmatprep.subr.mxu0 0.0
    %243 = vmatpush2.msra.mxu0 0.0
    %244 = vmatprep.subr.mxu0 0.0
    %245 = vmatpush2.msra.mxu0 0.0
    %246 = vmatprep.mubr.f32.mxu0 0.0
    %247 = vmatmul.mubr.f32.gmra.mxu0 %v113
    %v248 = vpop.f32.mrf.mxu0
    %v249 = vadd.f32 %v79, %v248
    %v250 = vpop.f32.mrf.mxu0
    %v251 = vadd.f32 %v83, %v250
    %252 = vmatprep.mubr.f32.mxu0 0.0
    %253 = vmatmul.mubr.f32.gmra.mxu0 %v116
    %v254 = vpop.f32.mrf.mxu0
    %v255 = vadd.f32 %v79, %v254
    %v256 = vpop.f32.mrf.mxu0
    %v257 = vadd.f32 %v83, %v256
    %258 = vmatprep.mubr.f32.mxu0 0.0
    %259 = vmatmul.mubr.f32.gmra.mxu0 %v119
    %v260 = vpop.f32.mrf.mxu0
    %v261 = vadd.f32 %v79, %v260
    %v262 = vpop.f32.mrf.mxu0
    %v263 = vadd.f32 %v83, %v262
    %264 = vmatprep.mubr.f32.mxu0 0.0
    %265 = vmatmul.mubr.f32.gmra.mxu0 %v122
    %v266 = vpop.f32.mrf.mxu0
    %v267 = vadd.f32 %v79, %v266
    %v268 = vpop.f32.mrf.mxu0
    %v269 = vadd.f32 %v83, %v268
    %270 = vmatprep.mubr.f32.mxu0 0.0
    %271 = vmatmul.mubr.f32.gmra.mxu0 %v125
    %v272 = vpop.f32.mrf.mxu0
    %v273 = vadd.f32 %v79, %v272
    %v274 = vpop.f32.mrf.mxu0
    %v275 = vadd.f32 %v83, %v274
    %276 = vmatprep.mubr.f32.mxu0 0.0
    %277 = vmatmul.mubr.f32.gmra.mxu0 %v128
    %v278 = vpop.f32.mrf.mxu0
    %v279 = vadd.f32 %v79, %v278
    %v280 = vpop.f32.mrf.mxu0
    %v281 = vadd.f32 %v83, %v280
    %282 = vmatprep.mubr.f32.mxu0 0.0
    %283 = vmatmul.mubr.f32.gmra.mxu0 %v131
    %v284 = vpop.f32.mrf.mxu0
    %v285 = vadd.f32 %v79, %v284
    %v286 = vpop.f32.mrf.mxu0
    %v287 = vadd.f32 %v83, %v286
    %288 = vmatprep.mubr.f32.mxu0 0.0
    %289 = vmatmul.mubr.f32.gmra.mxu0 %v134
    %v290 = vpop.f32.mrf.mxu0
    %v291 = vadd.f32 %v79, %v290
    %v292 = vpop.f32.mrf.mxu0
    %v293 = vadd.f32 %v83, %v292
    %294 = vmatprep.mubr.f32.mxu0 0.0
    %295 = vmatmul.mubr.f32.gmra.mxu0 %v137
    %v296 = vpop.f32.mrf.mxu0
    %v297 = vadd.f32 %v79, %v296
    %v298 = vpop.f32.mrf.mxu0
    %v299 = vadd.f32 %v83, %v298
    %300 = vmatprep.mubr.f32.mxu0 0.0
    %301 = vmatmul.mubr.f32.gmra.mxu0 %v140
    %v302 = vpop.f32.mrf.mxu0
    %v303 = vadd.f32 %v79, %v302
    %v304 = vpop.f32.mrf.mxu0
    %v305 = vadd.f32 %v83, %v304
    %306 = vmatprep.mubr.f32.mxu0 0.0
    %307 = vmatmul.mubr.f32.gmra.mxu0 %v143
    %v308 = vpop.f32.mrf.mxu0
    %v309 = vadd.f32 %v79, %v308
    %v310 = vpop.f32.mrf.mxu0
    %v311 = vadd.f32 %v83, %v310
    %312 = vmatprep.mubr.f32.mxu0 0.0
    %313 = vmatmul.mubr.f32.gmra.mxu0 %v146
    %v314 = vpop.f32.mrf.mxu0
    %v315 = vadd.f32 %v79, %v314
    %v316 = vpop.f32.mrf.mxu0
    %v317 = vadd.f32 %v83, %v316
    %318 = vmatprep.mubr.f32.mxu0 0.0
    %319 = vmatmul.mubr.f32.gmra.mxu0 %v149
    %v320 = vpop.f32.mrf.mxu0
    %v321 = vadd.f32 %v79, %v320
    %v322 = vpop.f32.mrf.mxu0
    %v323 = vadd.f32 %v83, %v322
    %324 = vmatprep.mubr.f32.mxu0 0.0
    %325 = vmatmul.mubr.f32.gmra.mxu0 %v152
    %v326 = vpop.f32.mrf.mxu0
    %v327 = vadd.f32 %v79, %v326
    %v328 = vpop.f32.mrf.mxu0
    %v329 = vadd.f32 %v83, %v328
    %330 = vmatprep.mubr.f32.mxu0 0.0
    %331 = vmatmul.mubr.f32.gmra.mxu0 %v155
    %v332 = vpop.f32.mrf.mxu0
    %v333 = vadd.f32 %v79, %v332
    %v334 = vpop.f32.mrf.mxu0
    %v335 = vadd.f32 %v83, %v334
    %336 = vmatprep.mubr.f32.mxu0 0.0
    %337 = vmatmul.mubr.f32.gmra.mxu0 %v158
    %v338 = vpop.f32.mrf.mxu0
    %v339 = vadd.f32 %v79, %v338
    %v340 = vpop.f32.mrf.mxu0
    %v341 = vadd.f32 %v83, %v340
    %342 = vdwg.mxu0
    %343 = vmatprep.subr.mxu0 0.0
    %344 = vmatpush1.msra.mxu0 0.0
    %345 = vmatprep.subr.mxu0 0.0
    %346 = vmatpush1.msra.mxu0 0.0
    %347 = vmatprep.subr.mxu0 0.0
    %348 = vmatpush1.msra.mxu0 0.0
    %349 = vmatprep.subr.mxu0 0.0
    %350 = vmatpush1.msra.mxu0 0.0
    %351 = vmatprep.subr.mxu0 0.0
    %352 = vmatpush1.msra.mxu0 0.0
    %353 = vmatprep.subr.mxu0 0.0
    %354 = vmatpush1.msra.mxu0 0.0
    %355 = vmatprep.subr.mxu0 0.0
    %356 = vmatpush1.msra.mxu0 0.0
    %357 = vmatprep.subr.mxu0 0.0
    %358 = vmatpush1.msra.mxu0 0.0
    %359 = vmatprep.subr.mxu0 0.0
    %360 = vmatpush1.msra.mxu0 0.0
    %361 = vmatprep.subr.mxu0 0.0
    %362 = vmatpush1.msra.mxu0 0.0
    %363 = vmatprep.subr.mxu0 0.0
    %364 = vmatpush1.msra.mxu0 0.0
    %365 = vmatprep.subr.mxu0 0.0
    %366 = vmatpush1.msra.mxu0 0.0
    %367 = vmatprep.subr.mxu0 0.0
    %368 = vmatpush1.msra.mxu0 0.0
    %369 = vmatprep.subr.mxu0 0.0
    %370 = vmatpush1.msra.mxu0 0.0
    %371 = vmatprep.subr.mxu0 0.0
    %372 = vmatpush1.msra.mxu0 0.0
    %373 = vmatprep.subr.mxu0 %v171
    %374 = vmatpush1.msra.mxu0 %v168
    %375 = vmatprep.subr.mxu0 0.0
    %376 = vmatpush2.msra.mxu0 0.0
    %377 = vmatprep.subr.mxu0 0.0
    %378 = vmatpush2.msra.mxu0 0.0
    %379 = vmatprep.subr.mxu0 0.0
    %380 = vmatpush2.msra.mxu0 0.0
    %381 = vmatprep.subr.mxu0 0.0
    %382 = vmatpush2.msra.mxu0 0.0
    %383 = vmatprep.subr.mxu0 0.0
    %384 = vmatpush2.msra.mxu0 0.0
    %385 = vmatprep.subr.mxu0 0.0
    %386 = vmatpush2.msra.mxu0 0.0
    %387 = vmatprep.subr.mxu0 0.0
    %388 = vmatpush2.msra.mxu0 0.0
    %389 = vmatprep.subr.mxu0 0.0
    %390 = vmatpush2.msra.mxu0 0.0
    %391 = vmatprep.subr.mxu0 0.0
    %392 = vmatpush2.msra.mxu0 0.0
    %393 = vmatprep.subr.mxu0 0.0
    %394 = vmatpush2.msra.mxu0 0.0
    %395 = vmatprep.subr.mxu0 0.0
    %396 = vmatpush2.msra.mxu0 0.0
    %397 = vmatprep.subr.mxu0 0.0
    %398 = vmatpush2.msra.mxu0 0.0
    %399 = vmatprep.subr.mxu0 0.0
    %400 = vmatpush2.msra.mxu0 0.0
    %401 = vmatprep.subr.mxu0 0.0
    %402 = vmatpush2.msra.mxu0 0.0
    %403 = vmatprep.subr.mxu0 0.0
    %404 = vmatpush2.msra.mxu0 0.0
    %405 = vmatprep.subr.mxu0 0.0
    %406 = vmatpush2.msra.mxu0 0.0
    %407 = vmatprep.mubr.f32.mxu0 0.0
    %408 = vmatmul.mubr.f32.gmra.mxu0 %v113
    %v409 = vpop.f32.mrf.mxu0
    %v410 = vadd.f32 %v87, %v409
    %v411 = vpop.f32.mrf.mxu0
    %v412 = vadd.f32 %v91, %v411
    %413 = vmatprep.mubr.f32.mxu0 0.0
    %414 = vmatmul.mubr.f32.gmra.mxu0 %v116
    %v415 = vpop.f32.mrf.mxu0
    %v416 = vadd.f32 %v87, %v415
    %v417 = vpop.f32.mrf.mxu0
    %v418 = vadd.f32 %v91, %v417
    %419 = vmatprep.mubr.f32.mxu0 0.0
    %420 = vmatmul.mubr.f32.gmra.mxu0 %v119
    %v421 = vpop.f32.mrf.mxu0
    %v422 = vadd.f32 %v87, %v421
    %v423 = vpop.f32.mrf.mxu0
    %v424 = vadd.f32 %v91, %v423
    %425 = vmatprep.mubr.f32.mxu0 0.0
    %426 = vmatmul.mubr.f32.gmra.mxu0 %v122
    %v427 = vpop.f32.mrf.mxu0
    %v428 = vadd.f32 %v87, %v427
    %v429 = vpop.f32.mrf.mxu0
    %v430 = vadd.f32 %v91, %v429
    %431 = vmatprep.mubr.f32.mxu0 0.0
    %432 = vmatmul.mubr.f32.gmra.mxu0 %v125
    %v433 = vpop.f32.mrf.mxu0
    %v434 = vadd.f32 %v87, %v433
    %v435 = vpop.f32.mrf.mxu0
    %v436 = vadd.f32 %v91, %v435
    %437 = vmatprep.mubr.f32.mxu0 0.0
    %438 = vmatmul.mubr.f32.gmra.mxu0 %v128
    %v439 = vpop.f32.mrf.mxu0
    %v440 = vadd.f32 %v87, %v439
    %v441 = vpop.f32.mrf.mxu0
    %v442 = vadd.f32 %v91, %v441
    %443 = vmatprep.mubr.f32.mxu0 0.0
    %444 = vmatmul.mubr.f32.gmra.mxu0 %v131
    %v445 = vpop.f32.mrf.mxu0
    %v446 = vadd.f32 %v87, %v445
    %v447 = vpop.f32.mrf.mxu0
    %v448 = vadd.f32 %v91, %v447
    %449 = vmatprep.mubr.f32.mxu0 0.0
    %450 = vmatmul.mubr.f32.gmra.mxu0 %v134
    %v451 = vpop.f32.mrf.mxu0
    %v452 = vadd.f32 %v87, %v451
    %v453 = vpop.f32.mrf.mxu0
    %v454 = vadd.f32 %v91, %v453
    %455 = vmatprep.mubr.f32.mxu0 0.0
    %456 = vmatmul.mubr.f32.gmra.mxu0 %v137
    %v457 = vpop.f32.mrf.mxu0
    %v458 = vadd.f32 %v87, %v457
    %v459 = vpop.f32.mrf.mxu0
    %v460 = vadd.f32 %v91, %v459
    %461 = vmatprep.mubr.f32.mxu0 0.0
    %462 = vmatmul.mubr.f32.gmra.mxu0 %v140
    %v463 = vpop.f32.mrf.mxu0
    %v464 = vadd.f32 %v87, %v463
    %v465 = vpop.f32.mrf.mxu0
    %v466 = vadd.f32 %v91, %v465
    %467 = vmatprep.mubr.f32.mxu0 0.0
    %468 = vmatmul.mubr.f32.gmra.mxu0 %v143
    %v469 = vpop.f32.mrf.mxu0
    %v470 = vadd.f32 %v87, %v469
    %v471 = vpop.f32.mrf.mxu0
    %v472 = vadd.f32 %v91, %v471
    %473 = vmatprep.mubr.f32.mxu0 0.0
    %474 = vmatmul.mubr.f32.gmra.mxu0 %v146
    %v475 = vpop.f32.mrf.mxu0
    %v476 = vadd.f32 %v87, %v475
    %v477 = vpop.f32.mrf.mxu0
    %v478 = vadd.f32 %v91, %v477
    %479 = vmatprep.mubr.f32.mxu0 0.0
    %480 = vmatmul.mubr.f32.gmra.mxu0 %v149
    %v481 = vpop.f32.mrf.mxu0
    %v482 = vadd.f32 %v87, %v481
    %v483 = vpop.f32.mrf.mxu0
    %v484 = vadd.f32 %v91, %v483
    %485 = vmatprep.mubr.f32.mxu0 0.0
    %486 = vmatmul.mubr.f32.gmra.mxu0 %v152
    %v487 = vpop.f32.mrf.mxu0
    %v488 = vadd.f32 %v87, %v487
    %v489 = vpop.f32.mrf.mxu0
    %v490 = vadd.f32 %v91, %v489
    %491 = vmatprep.mubr.f32.mxu0 0.0
    %492 = vmatmul.mubr.f32.gmra.mxu0 %v155
    %v493 = vpop.f32.mrf.mxu0
    %v494 = vadd.f32 %v87, %v493
    %v495 = vpop.f32.mrf.mxu0
    %v496 = vadd.f32 %v91, %v495
    %497 = vmatprep.mubr.f32.mxu0 0.0
    %498 = vmatmul.mubr.f32.gmra.mxu0 %v158
    %v499 = vpop.f32.mrf.mxu0
    %v500 = vadd.f32 %v87, %v499
    %v501 = vpop.f32.mrf.mxu0
    %v502 = vadd.f32 %v91, %v501
    %503 = vdwg.mxu0
    %504 = vmatprep.subr.mxu0 0.0
    %505 = vmatpush1.msra.mxu0 0.0
    %506 = vmatprep.subr.mxu0 0.0
    %507 = vmatpush1.msra.mxu0 0.0
    %508 = vmatprep.subr.mxu0 0.0
    %509 = vmatpush1.msra.mxu0 0.0
    %510 = vmatprep.subr.mxu0 0.0
    %511 = vmatpush1.msra.mxu0 0.0
    %512 = vmatprep.subr.mxu0 0.0
    %513 = vmatpush1.msra.mxu0 0.0
    %514 = vmatprep.subr.mxu0 0.0
    %515 = vmatpush1.msra.mxu0 0.0
    %516 = vmatprep.subr.mxu0 0.0
    %517 = vmatpush1.msra.mxu0 0.0
    %518 = vmatprep.subr.mxu0 0.0
    %519 = vmatpush1.msra.mxu0 0.0
    %520 = vmatprep.subr.mxu0 0.0
    %521 = vmatpush1.msra.mxu0 0.0
    %522 = vmatprep.subr.mxu0 0.0
    %523 = vmatpush1.msra.mxu0 0.0
    %524 = vmatprep.subr.mxu0 0.0
    %525 = vmatpush1.msra.mxu0 0.0
    %526 = vmatprep.subr.mxu0 0.0
    %527 = vmatpush1.msra.mxu0 0.0
    %528 = vmatprep.subr.mxu0 0.0
    %529 = vmatpush1.msra.mxu0 0.0
    %530 = vmatprep.subr.mxu0 0.0
    %531 = vmatpush1.msra.mxu0 0.0
    %532 = vmatprep.subr.mxu0 0.0
    %533 = vmatpush1.msra.mxu0 0.0
    %534 = vmatprep.subr.mxu0 %v177
    %535 = vmatpush1.msra.mxu0 %v174
    %536 = vmatprep.subr.mxu0 0.0
    %537 = vmatpush2.msra.mxu0 0.0
    %538 = vmatprep.subr.mxu0 0.0
    %539 = vmatpush2.msra.mxu0 0.0
    %540 = vmatprep.subr.mxu0 0.0
    %541 = vmatpush2.msra.mxu0 0.0
    %542 = vmatprep.subr.mxu0 0.0
    %543 = vmatpush2.msra.mxu0 0.0
    %544 = vmatprep.subr.mxu0 0.0
    %545 = vmatpush2.msra.mxu0 0.0
    %546 = vmatprep.subr.mxu0 0.0
    %547 = vmatpush2.msra.mxu0 0.0
    %548 = vmatprep.subr.mxu0 0.0
    %549 = vmatpush2.msra.mxu0 0.0
    %550 = vmatprep.subr.mxu0 0.0
    %551 = vmatpush2.msra.mxu0 0.0
    %552 = vmatprep.subr.mxu0 0.0
    %553 = vmatpush2.msra.mxu0 0.0
    %554 = vmatprep.subr.mxu0 0.0
    %555 = vmatpush2.msra.mxu0 0.0
    %556 = vmatprep.subr.mxu0 0.0
    %557 = vmatpush2.msra.mxu0 0.0
    %558 = vmatprep.subr.mxu0 0.0
    %559 = vmatpush2.msra.mxu0 0.0
    %560 = vmatprep.subr.mxu0 0.0
    %561 = vmatpush2.msra.mxu0 0.0
    %562 = vmatprep.subr.mxu0 0.0
    %563 = vmatpush2.msra.mxu0 0.0
    %564 = vmatprep.subr.mxu0 0.0
    %565 = vmatpush2.msra.mxu0 0.0
    %566 = vmatprep.subr.mxu0 0.0
    %567 = vmatpush2.msra.mxu0 0.0
    %568 = vmatprep.mubr.f32.mxu0 0.0
    %569 = vmatmul.mubr.f32.gmra.mxu0 %v113
    %v570 = vpop.f32.mrf.mxu0
    %v571 = vadd.f32 %v95, %v570
    %v572 = vpop.f32.mrf.mxu0
    %v573 = vadd.f32 %v99, %v572
    %574 = vmatprep.mubr.f32.mxu0 0.0
    %575 = vmatmul.mubr.f32.gmra.mxu0 %v116
    %v576 = vpop.f32.mrf.mxu0
    %v577 = vadd.f32 %v95, %v576
    %v578 = vpop.f32.mrf.mxu0
    %v579 = vadd.f32 %v99, %v578
    %580 = vmatprep.mubr.f32.mxu0 0.0
    %581 = vmatmul.mubr.f32.gmra.mxu0 %v119
    %v582 = vpop.f32.mrf.mxu0
    %v583 = vadd.f32 %v95, %v582
    %v584 = vpop.f32.mrf.mxu0
    %v585 = vadd.f32 %v99, %v584
    %586 = vmatprep.mubr.f32.mxu0 0.0
    %587 = vmatmul.mubr.f32.gmra.mxu0 %v122
    %v588 = vpop.f32.mrf.mxu0
    %v589 = vadd.f32 %v95, %v588
    %v590 = vpop.f32.mrf.mxu0
    %v591 = vadd.f32 %v99, %v590
    %592 = vmatprep.mubr.f32.mxu0 0.0
    %593 = vmatmul.mubr.f32.gmra.mxu0 %v125
    %v594 = vpop.f32.mrf.mxu0
    %v595 = vadd.f32 %v95, %v594
    %v596 = vpop.f32.mrf.mxu0
    %v597 = vadd.f32 %v99, %v596
    %598 = vmatprep.mubr.f32.mxu0 0.0
    %599 = vmatmul.mubr.f32.gmra.mxu0 %v128
    %v600 = vpop.f32.mrf.mxu0
    %v601 = vadd.f32 %v95, %v600
    %v602 = vpop.f32.mrf.mxu0
    %v603 = vadd.f32 %v99, %v602
    %604 = vmatprep.mubr.f32.mxu0 0.0
    %605 = vmatmul.mubr.f32.gmra.mxu0 %v131
    %v606 = vpop.f32.mrf.mxu0
    %v607 = vadd.f32 %v95, %v606
    %v608 = vpop.f32.mrf.mxu0
    %v609 = vadd.f32 %v99, %v608
    %610 = vmatprep.mubr.f32.mxu0 0.0
    %611 = vmatmul.mubr.f32.gmra.mxu0 %v134
    %v612 = vpop.f32.mrf.mxu0
    %v613 = vadd.f32 %v95, %v612
    %v614 = vpop.f32.mrf.mxu0
    %v615 = vadd.f32 %v99, %v614
    %616 = vmatprep.mubr.f32.mxu0 0.0
    %617 = vmatmul.mubr.f32.gmra.mxu0 %v137
    %v618 = vpop.f32.mrf.mxu0
    %v619 = vadd.f32 %v95, %v618
    %v620 = vpop.f32.mrf.mxu0
    %v621 = vadd.f32 %v99, %v620
    %622 = vmatprep.mubr.f32.mxu0 0.0
    %623 = vmatmul.mubr.f32.gmra.mxu0 %v140
    %v624 = vpop.f32.mrf.mxu0
    %v625 = vadd.f32 %v95, %v624
    %v626 = vpop.f32.mrf.mxu0
    %v627 = vadd.f32 %v99, %v626
    %628 = vmatprep.mubr.f32.mxu0 0.0
    %629 = vmatmul.mubr.f32.gmra.mxu0 %v143
    %v630 = vpop.f32.mrf.mxu0
    %v631 = vadd.f32 %v95, %v630
    %v632 = vpop.f32.mrf.mxu0
    %v633 = vadd.f32 %v99, %v632
    %634 = vmatprep.mubr.f32.mxu0 0.0
    %635 = vmatmul.mubr.f32.gmra.mxu0 %v146
    %v636 = vpop.f32.mrf.mxu0
    %v637 = vadd.f32 %v95, %v636
    %v638 = vpop.f32.mrf.mxu0
    %v639 = vadd.f32 %v99, %v638
    %640 = vmatprep.mubr.f32.mxu0 0.0
    %641 = vmatmul.mubr.f32.gmra.mxu0 %v149
    %v642 = vpop.f32.mrf.mxu0
    %v643 = vadd.f32 %v95, %v642
    %v644 = vpop.f32.mrf.mxu0
    %v645 = vadd.f32 %v99, %v644
    %646 = vmatprep.mubr.f32.mxu0 0.0
    %647 = vmatmul.mubr.f32.gmra.mxu0 %v152
    %v648 = vpop.f32.mrf.mxu0
    %v649 = vadd.f32 %v95, %v648
    %v650 = vpop.f32.mrf.mxu0
    %v651 = vadd.f32 %v99, %v650
    %652 = vmatprep.mubr.f32.mxu0 0.0
    %653 = vmatmul.mubr.f32.gmra.mxu0 %v155
    %v654 = vpop.f32.mrf.mxu0
    %v655 = vadd.f32 %v95, %v654
    %v656 = vpop.f32.mrf.mxu0
    %v657 = vadd.f32 %v99, %v656
    %658 = vmatprep.mubr.f32.mxu0 0.0
    %659 = vmatmul.mubr.f32.gmra.mxu0 %v158
    %v660 = vpop.f32.mrf.mxu0
    %v661 = vadd.f32 %v95, %v660
    %v662 = vpop.f32.mrf.mxu0
    %v663 = vadd.f32 %v99, %v662
    %664 = vdwg.mxu0
    %665 = vmatprep.subr.mxu0 0.0
    %666 = vmatpush1.msra.mxu0 0.0
    %667 = vmatprep.subr.mxu0 0.0
    %668 = vmatpush1.msra.mxu0 0.0
    %669 = vmatprep.subr.mxu0 0.0
    %670 = vmatpush1.msra.mxu0 0.0
    %671 = vmatprep.subr.mxu0 0.0
    %672 = vmatpush1.msra.mxu0 0.0
    %673 = vmatprep.subr.mxu0 0.0
    %674 = vmatpush1.msra.mxu0 0.0
    %675 = vmatprep.subr.mxu0 0.0
    %676 = vmatpush1.msra.mxu0 0.0
    %677 = vmatprep.subr.mxu0 0.0
    %678 = vmatpush1.msra.mxu0 0.0
    %679 = vmatprep.subr.mxu0 0.0
    %680 = vmatpush1.msra.mxu0 0.0
    %681 = vmatprep.subr.mxu0 0.0
    %682 = vmatpush1.msra.mxu0 0.0
    %683 = vmatprep.subr.mxu0 0.0
    %684 = vmatpush1.msra.mxu0 0.0
    %685 = vmatprep.subr.mxu0 0.0
    %686 = vmatpush1.msra.mxu0 0.0
    %687 = vmatprep.subr.mxu0 0.0
    %688 = vmatpush1.msra.mxu0 0.0
    %689 = vmatprep.subr.mxu0 0.0
    %690 = vmatpush1.msra.mxu0 0.0
    %691 = vmatprep.subr.mxu0 0.0
    %692 = vmatpush1.msra.mxu0 0.0
    %693 = vmatprep.subr.mxu0 0.0
    %694 = vmatpush1.msra.mxu0 0.0
    %695 = vmatprep.subr.mxu0 0.0
    %696 = vmatpush1.msra.mxu0 %v180
    %697 = vmatprep.subr.mxu0 0.0
    %698 = vmatpush2.msra.mxu0 0.0
    %699 = vmatprep.subr.mxu0 0.0
    %700 = vmatpush2.msra.mxu0 0.0
    %701 = vmatprep.subr.mxu0 0.0
    %702 = vmatpush2.msra.mxu0 0.0
    %703 = vmatprep.subr.mxu0 0.0
    %704 = vmatpush2.msra.mxu0 0.0
    %705 = vmatprep.subr.mxu0 0.0
    %706 = vmatpush2.msra.mxu0 0.0
    %707 = vmatprep.subr.mxu0 0.0
    %708 = vmatpush2.msra.mxu0 0.0
    %709 = vmatprep.subr.mxu0 0.0
    %710 = vmatpush2.msra.mxu0 0.0
    %711 = vmatprep.subr.mxu0 0.0
    %712 = vmatpush2.msra.mxu0 0.0
    %713 = vmatprep.subr.mxu0 0.0
    %714 = vmatpush2.msra.mxu0 0.0
    %715 = vmatprep.subr.mxu0 0.0
    %716 = vmatpush2.msra.mxu0 0.0
    %717 = vmatprep.subr.mxu0 0.0
    %718 = vmatpush2.msra.mxu0 0.0
    %719 = vmatprep.subr.mxu0 0.0
    %720 = vmatpush2.msra.mxu0 0.0
    %721 = vmatprep.subr.mxu0 0.0
    %722 = vmatpush2.msra.mxu0 0.0
    %723 = vmatprep.subr.mxu0 0.0
    %724 = vmatpush2.msra.mxu0 0.0
    %725 = vmatprep.subr.mxu0 0.0
    %726 = vmatpush2.msra.mxu0 0.0
    %727 = vmatprep.subr.mxu0 0.0
    %728 = vmatpush2.msra.mxu0 0.0
    %729 = vmatprep.mubr.f32.mxu0 0.0
    %730 = vmatmul.mubr.f32.gmra.mxu0 %v113
    %v731 = vpop.f32.mrf.mxu0
    %v732 = vadd.f32 %v103, %v731
    %v733 = vpop.f32.mrf.mxu0
    %734 = vmatprep.mubr.f32.mxu0 0.0
    %735 = vmatmul.mubr.f32.gmra.mxu0 %v116
    %v736 = vpop.f32.mrf.mxu0
    %v737 = vadd.f32 %v103, %v736
    %v738 = vpop.f32.mrf.mxu0
    %739 = vmatprep.mubr.f32.mxu0 0.0
    %740 = vmatmul.mubr.f32.gmra.mxu0 %v119
    %v741 = vpop.f32.mrf.mxu0
    %v742 = vadd.f32 %v103, %v741
    %v743 = vpop.f32.mrf.mxu0
    %744 = vmatprep.mubr.f32.mxu0 0.0
    %745 = vmatmul.mubr.f32.gmra.mxu0 %v122
    %v746 = vpop.f32.mrf.mxu0
    %v747 = vadd.f32 %v103, %v746
    %v748 = vpop.f32.mrf.mxu0
    %749 = vmatprep.mubr.f32.mxu0 0.0
    %750 = vmatmul.mubr.f32.gmra.mxu0 %v125
    %v751 = vpop.f32.mrf.mxu0
    %v752 = vadd.f32 %v103, %v751
    %v753 = vpop.f32.mrf.mxu0
    %754 = vmatprep.mubr.f32.mxu0 0.0
    %755 = vmatmul.mubr.f32.gmra.mxu0 %v128
    %v756 = vpop.f32.mrf.mxu0
    %v757 = vadd.f32 %v103, %v756
    %v758 = vpop.f32.mrf.mxu0
    %759 = vmatprep.mubr.f32.mxu0 0.0
    %760 = vmatmul.mubr.f32.gmra.mxu0 %v131
    %v761 = vpop.f32.mrf.mxu0
    %v762 = vadd.f32 %v103, %v761
    %v763 = vpop.f32.mrf.mxu0
    %764 = vmatprep.mubr.f32.mxu0 0.0
    %765 = vmatmul.mubr.f32.gmra.mxu0 %v134
    %v766 = vpop.f32.mrf.mxu0
    %v767 = vadd.f32 %v103, %v766
    %v768 = vpop.f32.mrf.mxu0
    %769 = vmatprep.mubr.f32.mxu0 0.0
    %770 = vmatmul.mubr.f32.gmra.mxu0 %v137
    %v771 = vpop.f32.mrf.mxu0
    %v772 = vadd.f32 %v103, %v771
    %v773 = vpop.f32.mrf.mxu0
    %774 = vmatprep.mubr.f32.mxu0 0.0
    %775 = vmatmul.mubr.f32.gmra.mxu0 %v140
    %v776 = vpop.f32.mrf.mxu0
    %v777 = vadd.f32 %v103, %v776
    %v778 = vpop.f32.mrf.mxu0
    %779 = vmatprep.mubr.f32.mxu0 0.0
    %780 = vmatmul.mubr.f32.gmra.mxu0 %v143
    %v781 = vpop.f32.mrf.mxu0
    %v782 = vadd.f32 %v103, %v781
    %v783 = vpop.f32.mrf.mxu0
    %784 = vmatprep.mubr.f32.mxu0 0.0
    %785 = vmatmul.mubr.f32.gmra.mxu0 %v146
    %v786 = vpop.f32.mrf.mxu0
    %v787 = vadd.f32 %v103, %v786
    %v788 = vpop.f32.mrf.mxu0
    %789 = vmatprep.mubr.f32.mxu0 0.0
    %790 = vmatmul.mubr.f32.gmra.mxu0 %v149
    %v791 = vpop.f32.mrf.mxu0
    %v792 = vadd.f32 %v103, %v791
    %v793 = vpop.f32.mrf.mxu0
    %794 = vmatprep.mubr.f32.mxu0 0.0
    %795 = vmatmul.mubr.f32.gmra.mxu0 %v152
    %v796 = vpop.f32.mrf.mxu0
    %v797 = vadd.f32 %v103, %v796
    %v798 = vpop.f32.mrf.mxu0
    %799 = vmatprep.mubr.f32.mxu0 0.0
    %800 = vmatmul.mubr.f32.gmra.mxu0 %v155
    %v801 = vpop.f32.mrf.mxu0
    %v802 = vadd.f32 %v103, %v801
    %v803 = vpop.f32.mrf.mxu0
    %804 = vmatprep.mubr.f32.mxu0 0.0
    %805 = vmatmul.mubr.f32.gmra.mxu0 %v158
    %v806 = vpop.f32.mrf.mxu0
    %v807 = vadd.f32 %v103, %v806
    %v808 = vpop.f32.mrf.mxu0
    %809 = vdwg.mxu0
    %810 = vst [vmem:[#allocation2] sm:$0xff] %v249
    %811 = vst [vmem:[#allocation2 + $0x8] sm:$0xff] %v251
    %812 = vst [vmem:[#allocation2 + $0x10] sm:$0xff] %v410
    %813 = vst [vmem:[#allocation2 + $0x18] sm:$0xff] %v412
    %814 = vst [vmem:[#allocation2 + $0x20] sm:$0xff] %v571
    %815 = vst [vmem:[#allocation2 + $0x28] sm:$0xff] %v573
    %816 = vst [vmem:[#allocation2 + $0x30] sm:$0xff] %v732
    %817 = vst [vmem:[#allocation2 + $0x38] sm:$0xff] %v255
    %818 = vst [vmem:[#allocation2 + $0x40] sm:$0xff] %v257
    %819 = vst [vmem:[#allocation2 + $0x48] sm:$0xff] %v416
    %820 = vst [vmem:[#allocation2 + $0x50] sm:$0xff] %v418
    %821 = vst [vmem:[#allocation2 + $0x58] sm:$0xff] %v577
    %822 = vst [vmem:[#allocation2 + $0x60] sm:$0xff] %v579
    %823 = vst [vmem:[#allocation2 + $0x68] sm:$0xff] %v737
    %824 = vst [vmem:[#allocation2 + $0x70] sm:$0xff] %v261
    %825 = vst [vmem:[#allocation2 + $0x78] sm:$0xff] %v263
    %826 = vst [vmem:[#allocation2 + $0x80] sm:$0xff] %v422
    %827 = vst [vmem:[#allocation2 + $0x88] sm:$0xff] %v424
    %828 = vst [vmem:[#allocation2 + $0x90] sm:$0xff] %v583
    %829 = vst [vmem:[#allocation2 + $0x98] sm:$0xff] %v585
    %830 = vst [vmem:[#allocation2 + $0xa0] sm:$0xff] %v742
    %831 = vst [vmem:[#allocation2 + $0xa8] sm:$0xff] %v267
    %832 = vst [vmem:[#allocation2 + $0xb0] sm:$0xff] %v269
    %833 = vst [vmem:[#allocation2 + $0xb8] sm:$0xff] %v428
    %834 = vst [vmem:[#allocation2 + $0xc0] sm:$0xff] %v430
    %835 = vst [vmem:[#allocation2 + $0xc8] sm:$0xff] %v589
    %836 = vst [vmem:[#allocation2 + $0xd0] sm:$0xff] %v591
    %837 = vst [vmem:[#allocation2 + $0xd8] sm:$0xff] %v747
    %838 = vst [vmem:[#allocation2 + $0xe0] sm:$0xff] %v273
    %839 = vst [vmem:[#allocation2 + $0xe8] sm:$0xff] %v275
    %840 = vst [vmem:[#allocation2 + $0xf0] sm:$0xff] %v434
    %841 = vst [vmem:[#allocation2 + $0xf8] sm:$0xff] %v436
    %842 = vst [vmem:[#allocation2 + $0x100] sm:$0xff] %v595
    %843 = vst [vmem:[#allocation2 + $0x108] sm:$0xff] %v597
    %844 = vst [vmem:[#allocation2 + $0x110] sm:$0xff] %v752
    %845 = vst [vmem:[#allocation2 + $0x118] sm:$0xff] %v279
    %846 = vst [vmem:[#allocation2 + $0x120] sm:$0xff] %v281
    %847 = vst [vmem:[#allocation2 + $0x128] sm:$0xff] %v440
    %848 = vst [vmem:[#allocation2 + $0x130] sm:$0xff] %v442
    %849 = vst [vmem:[#allocation2 + $0x138] sm:$0xff] %v601
    %850 = vst [vmem:[#allocation2 + $0x140] sm:$0xff] %v603
    %851 = vst [vmem:[#allocation2 + $0x148] sm:$0xff] %v757
    %852 = vst [vmem:[#allocation2 + $0x150] sm:$0xff] %v285
    %853 = vst [vmem:[#allocation2 + $0x158] sm:$0xff] %v287
    %854 = vst [vmem:[#allocation2 + $0x160] sm:$0xff] %v446
    %855 = vst [vmem:[#allocation2 + $0x168] sm:$0xff] %v448
    %856 = vst [vmem:[#allocation2 + $0x170] sm:$0xff] %v607
    %857 = vst [vmem:[#allocation2 + $0x178] sm:$0xff] %v609
    %858 = vst [vmem:[#allocation2 + $0x180] sm:$0xff] %v762
    %859 = vst [vmem:[#allocation2 + $0x188] sm:$0xff] %v291
    %860 = vst [vmem:[#allocation2 + $0x190] sm:$0xff] %v293
    %861 = vst [vmem:[#allocation2 + $0x198] sm:$0xff] %v452
    %862 = vst [vmem:[#allocation2 + $0x1a0] sm:$0xff] %v454
    %863 = vst [vmem:[#allocation2 + $0x1a8] sm:$0xff] %v613
    %864 = vst [vmem:[#allocation2 + $0x1b0] sm:$0xff] %v615
    %865 = vst [vmem:[#allocation2 + $0x1b8] sm:$0xff] %v767
    %866 = vst [vmem:[#allocation2 + $0x1c0] sm:$0xff] %v297
    %867 = vst [vmem:[#allocation2 + $0x1c8] sm:$0xff] %v299
    %868 = vst [vmem:[#allocation2 + $0x1d0] sm:$0xff] %v458
    %869 = vst [vmem:[#allocation2 + $0x1d8] sm:$0xff] %v460
    %870 = vst [vmem:[#allocation2 + $0x1e0] sm:$0xff] %v619
    %871 = vst [vmem:[#allocation2 + $0x1e8] sm:$0xff] %v621
    %872 = vst [vmem:[#allocation2 + $0x1f0] sm:$0xff] %v772
    %873 = vst [vmem:[#allocation2 + $0x1f8] sm:$0xff] %v303
    %874 = vst [vmem:[#allocation2 + $0x200] sm:$0xff] %v305
    %875 = vst [vmem:[#allocation2 + $0x208] sm:$0xff] %v464
    %876 = vst [vmem:[#allocation2 + $0x210] sm:$0xff] %v466
    %877 = vst [vmem:[#allocation2 + $0x218] sm:$0xff] %v625
    %878 = vst [vmem:[#allocation2 + $0x220] sm:$0xff] %v627
    %879 = vst [vmem:[#allocation2 + $0x228] sm:$0xff] %v777
    %880 = vst [vmem:[#allocation2 + $0x230] sm:$0xff] %v309
    %881 = vst [vmem:[#allocation2 + $0x238] sm:$0xff] %v311
    %882 = vst [vmem:[#allocation2 + $0x240] sm:$0xff] %v470
    %883 = vst [vmem:[#allocation2 + $0x248] sm:$0xff] %v472
    %884 = vst [vmem:[#allocation2 + $0x250] sm:$0xff] %v631
    %885 = vst [vmem:[#allocation2 + $0x258] sm:$0xff] %v633
    %886 = vst [vmem:[#allocation2 + $0x260] sm:$0xff] %v782
    %887 = vst [vmem:[#allocation2 + $0x268] sm:$0xff] %v315
    %888 = vst [vmem:[#allocation2 + $0x270] sm:$0xff] %v317
    %889 = vst [vmem:[#allocation2 + $0x278] sm:$0xff] %v476
    %890 = vst [vmem:[#allocation2 + $0x280] sm:$0xff] %v478
    %891 = vst [vmem:[#allocation2 + $0x288] sm:$0xff] %v637
    %892 = vst [vmem:[#allocation2 + $0x290] sm:$0xff] %v639
    %893 = vst [vmem:[#allocation2 + $0x298] sm:$0xff] %v787
    %894 = vst [vmem:[#allocation2 + $0x2a0] sm:$0xff] %v321
    %895 = vst [vmem:[#allocation2 + $0x2a8] sm:$0xff] %v323
    %896 = vst [vmem:[#allocation2 + $0x2b0] sm:$0xff] %v482
    %897 = vst [vmem:[#allocation2 + $0x2b8] sm:$0xff] %v484
    %898 = vst [vmem:[#allocation2 + $0x2c0] sm:$0xff] %v643
    %899 = vst [vmem:[#allocation2 + $0x2c8] sm:$0xff] %v645
    %900 = vst [vmem:[#allocation2 + $0x2d0] sm:$0xff] %v792
    %901 = vst [vmem:[#allocation2 + $0x2d8] sm:$0xff] %v327
    %902 = vst [vmem:[#allocation2 + $0x2e0] sm:$0xff] %v329
    %903 = vst [vmem:[#allocation2 + $0x2e8] sm:$0xff] %v488
    %904 = vst [vmem:[#allocation2 + $0x2f0] sm:$0xff] %v490
    %905 = vst [vmem:[#allocation2 + $0x2f8] sm:$0xff] %v649
    %906 = vst [vmem:[#allocation2 + $0x300] sm:$0xff] %v651
    %907 = vst [vmem:[#allocation2 + $0x308] sm:$0xff] %v797
    %908 = vst [vmem:[#allocation2 + $0x310] sm:$0xff] %v333
    %909 = vst [vmem:[#allocation2 + $0x318] sm:$0xff] %v335
    %910 = vst [vmem:[#allocation2 + $0x320] sm:$0xff] %v494
    %911 = vst [vmem:[#allocation2 + $0x328] sm:$0xff] %v496
    %912 = vst [vmem:[#allocation2 + $0x330] sm:$0xff] %v655
    %913 = vst [vmem:[#allocation2 + $0x338] sm:$0xff] %v657
    %914 = vst [vmem:[#allocation2 + $0x340] sm:$0xff] %v802
    %915 = vst [vmem:[#allocation2 + $0x348] sm:$0xff] %v339
    %916 = vst [vmem:[#allocation2 + $0x350] sm:$0xff] %v341
    %917 = vst [vmem:[#allocation2 + $0x358] sm:$0xff] %v500
    %918 = vst [vmem:[#allocation2 + $0x360] sm:$0xff] %v502
    %919 = vst [vmem:[#allocation2 + $0x368] sm:$0xff] %v661
    %920 = vst [vmem:[#allocation2 + $0x370] sm:$0xff] %v663
    %921 = vst [vmem:[#allocation2 + $0x378] sm:$0xff] %v807
    %vm922 = vcmask 523264
    %923 = vst.msk [vmem:[#allocation3] sm:$0xff] %vm922, 0.0
    %924 = vst.msk [vmem:[#allocation3 + $0x8] sm:$0xff] %vm922, 0.0
    %925 = vst [vmem:[#allocation4] sm:$0xff] 0.0
    %926 = vst [vmem:[#allocation4 + $0x8] sm:$0xff] 0.0
    %927 = vst [vmem:[#allocation4 + $0x10] sm:$0xff] 0.0
    %928 = vst [vmem:[#allocation4 + $0x18] sm:$0xff] 0.0
    %929 = vst [vmem:[#allocation4 + $0x20] sm:$0xff] 0.0
    %930 = vst [vmem:[#allocation4 + $0x28] sm:$0xff] 0.0
    %931 = vst [vmem:[#allocation4 + $0x30] sm:$0xff] 0.0
    %932 = vst [vmem:[#allocation4 + $0x38] sm:$0xff] 0.0
    %933 = vst [vmem:[#allocation4 + $0x40] sm:$0xff] 0.0
    %934 = vst [vmem:[#allocation4 + $0x48] sm:$0xff] 0.0
    %935 = vst [vmem:[#allocation5] sm:$0xff] 0.0
    %936 = vst [vmem:[#allocation5 + $0x8] sm:$0xff] 0.0
    %937 = vst [vmem:[#allocation5 + $0x10] sm:$0xff] 0.0
    %938 = vst [vmem:[#allocation5 + $0x18] sm:$0xff] 0.0
    %939 = vst [vmem:[#allocation5 + $0x20] sm:$0xff] 0.0
    %940 = vst [vmem:[#allocation5 + $0x28] sm:$0xff] 0.0
    %941 = vst [vmem:[#allocation5 + $0x30] sm:$0xff] 0.0
    %942 = vst [vmem:[#allocation5 + $0x38] sm:$0xff] 0.0
    %943 = vst [vmem:[#allocation5 + $0x40] sm:$0xff] 0.0
    %944 = vst [vmem:[#allocation5 + $0x48] sm:$0xff] 0.0
    %v945 = vld [vmem:[#allocation3] sm:$0xff]
    %v946 = vld [vmem:[#allocation3 + $0x8] sm:$0xff]
    %s947 = smul.u32 0, 7
    %s948 = smul.addr %s947, 8
    %s949 = scalar_lea.vmem [#allocation2], %s948
    %v950 = vld [vmem:[%s949] sm:$0xff]
    %v951 = vld [vmem:[%s949 + $0x8] sm:$0xff]
    %v952 = vld [vmem:[%s949 + $0x10] sm:$0xff]
    %v953 = vld [vmem:[%s949 + $0x18] sm:$0xff]
    %v954 = vld [vmem:[%s949 + $0x20] sm:$0xff]
    %v955 = vld [vmem:[%s949 + $0x28] sm:$0xff]
    %v956 = vld [vmem:[%s949 + $0x30] sm:$0xff]
    %v957 = vld [vmem:[%s949 + $0x38] sm:$0xff]
    %v958 = vld [vmem:[%s949 + $0x40] sm:$0xff]
    %v959 = vld [vmem:[%s949 + $0x48] sm:$0xff]
    %v960 = vld [vmem:[%s949 + $0x50] sm:$0xff]
    %v961 = vld [vmem:[%s949 + $0x58] sm:$0xff]
    %v962 = vld [vmem:[%s949 + $0x60] sm:$0xff]
    %v963 = vld [vmem:[%s949 + $0x68] sm:$0xff]
    %v964 = vld [vmem:[#allocation7] sm:$0xff]
    %v965 = vld [vmem:[#allocation7 + $0x8] sm:$0xff]
    %v966 = vld [vmem:[#allocation7 + $0x10] sm:$0xff]
    %v967 = vld [vmem:[#allocation7 + $0x18] sm:$0xff]
    %v968 = vld [vmem:[#allocation7 + $0x20] sm:$0xff]
    %v969 = vld [vmem:[#allocation7 + $0x28] sm:$0xff]
    %v970 = vld [vmem:[#allocation7 + $0x30] sm:$0xff]
    %v971 = vld [vmem:[#allocation7 + $0x38] sm:$0xff]
    %v972 = vld [vmem:[#allocation7 + $0x40] sm:$0xff]
    %v973 = vld [vmem:[#allocation7 + $0x48] sm:$0xff]
    %v974 = vld [vmem:[#allocation7 + $0x50] sm:$0xff]
    %v975 = vld [vmem:[#allocation7 + $0x58] sm:$0xff]
    %v976 = vld [vmem:[#allocation7 + $0x60] sm:$0xff]
    %v977 = vld [vmem:[#allocation7 + $0x68] sm:$0xff]
    %v978 = vld [vmem:[#allocation7 + $0x70] sm:$0xff]
    %v979 = vld [vmem:[#allocation7 + $0x78] sm:$0xff]
    %v980 = vld [vmem:[#allocation7 + $0x80] sm:$0xff]
    %v981 = vld [vmem:[#allocation7 + $0x88] sm:$0xff]
    %v982 = vld [vmem:[#allocation7 + $0x90] sm:$0xff]
    %v983 = vld [vmem:[#allocation7 + $0x98] sm:$0xff]
    %v984 = vld [vmem:[#allocation7 + $0xa0] sm:$0xff]
    %v985 = vld [vmem:[#allocation7 + $0xa8] sm:$0xff]
    %v986 = vld [vmem:[#allocation7 + $0xb0] sm:$0xff]
    %v987 = vld [vmem:[#allocation7 + $0xb8] sm:$0xff]
    %v988 = vld [vmem:[#allocation7 + $0xc0] sm:$0xff]
    %v989 = vld [vmem:[#allocation7 + $0xc8] sm:$0xff]
    %v990 = vld [vmem:[#allocation7 + $0xd0] sm:$0xff]
    %v991 = vld [vmem:[#allocation7 + $0xd8] sm:$0xff]
    %v992 = vld [vmem:[#allocation7 + $0xe0] sm:$0xff]
    %v993 = vld [vmem:[#allocation7 + $0xe8] sm:$0xff]
    %v994 = vld [vmem:[#allocation7 + $0xf0] sm:$0xff]
    %v995 = vld [vmem:[#allocation7 + $0xf8] sm:$0xff]
    %v996 = vld [vmem:[#allocation7 + $0x100] sm:$0xff]
    %v997 = vld [vmem:[#allocation7 + $0x108] sm:$0xff]
    %v998 = vld [vmem:[#allocation7 + $0x110] sm:$0xff]
    %v999 = vld [vmem:[#allocation7 + $0x118] sm:$0xff]
    %v1000 = vld [vmem:[#allocation7 + $0x120] sm:$0xff]
    %v1001 = vld [vmem:[#allocation7 + $0x128] sm:$0xff]
    %v1002 = vld [vmem:[#allocation7 + $0x130] sm:$0xff]
    %v1003 = vld [vmem:[#allocation7 + $0x138] sm:$0xff]
    %v1004 = vld [vmem:[#allocation7 + $0x140] sm:$0xff]
    %v1005 = vld [vmem:[#allocation7 + $0x148] sm:$0xff]
    %v1006 = vld [vmem:[#allocation7 + $0x150] sm:$0xff]
    %v1007 = vld [vmem:[#allocation7 + $0x158] sm:$0xff]
    %v1008 = vld [vmem:[#allocation7 + $0x160] sm:$0xff]
    %v1009 = vld [vmem:[#allocation7 + $0x168] sm:$0xff]
    %v1010 = vld [vmem:[#allocation7 + $0x170] sm:$0xff]
    %v1011 = vld [vmem:[#allocation7 + $0x178] sm:$0xff]
    %v1012 = vld [vmem:[#allocation7 + $0x180] sm:$0xff]
    %v1013 = vld [vmem:[#allocation7 + $0x188] sm:$0xff]
    %v1014 = vld [vmem:[#allocation7 + $0x190] sm:$0xff]
    %v1015 = vld [vmem:[#allocation7 + $0x198] sm:$0xff]
    %v1016 = vld [vmem:[#allocation7 + $0x1a0] sm:$0xff]
    %v1017 = vld [vmem:[#allocation7 + $0x1a8] sm:$0xff]
    %v1018 = vld [vmem:[#allocation7 + $0x1b0] sm:$0xff]
    %v1019 = vld [vmem:[#allocation7 + $0x1b8] sm:$0xff]
    %v1021 = vsel %vm922, %v945, 0
    %v1024 = vsel %vm922, %v946, 0
    %1026 = vmatprep.subr.mxu0 0.0
    %1027 = vmatpush1.msra.mxu0 0.0
    %1028 = vmatprep.subr.mxu0 0.0
    %1029 = vmatpush1.msra.mxu0 0.0
    %1030 = vmatprep.subr.mxu0 0.0
    %1031 = vmatpush1.msra.mxu0 0.0
    %1032 = vmatprep.subr.mxu0 0.0
    %1033 = vmatpush1.msra.mxu0 0.0
    %1034 = vmatprep.subr.mxu0 0.0
    %1035 = vmatpush1.msra.mxu0 0.0
    %1036 = vmatprep.subr.mxu0 0.0
    %1037 = vmatpush1.msra.mxu0 0.0
    %1038 = vmatprep.subr.mxu0 0.0
    %1039 = vmatpush1.msra.mxu0 0.0
    %1040 = vmatprep.subr.mxu0 0.0
    %1041 = vmatpush1.msra.mxu0 0.0
    %1042 = vmatprep.subr.mxu0 %v1014
    %1043 = vmatpush1.msra.mxu0 %v1013
    %1044 = vmatprep.subr.mxu0 %v1007
    %1045 = vmatpush1.msra.mxu0 %v1006
    %1046 = vmatprep.subr.mxu0 %v1000
    %1047 = vmatpush1.msra.mxu0 %v999
    %1048 = vmatprep.subr.mxu0 %v993
    %1049 = vmatpush1.msra.mxu0 %v992
    %1050 = vmatprep.subr.mxu0 %v986
    %1051 = vmatpush1.msra.mxu0 %v985
    %1052 = vmatprep.subr.mxu0 %v979
    %1053 = vmatpush1.msra.mxu0 %v978
    %1054 = vmatprep.subr.mxu0 %v972
    %1055 = vmatpush1.msra.mxu0 %v971
    %1056 = vmatprep.subr.mxu0 %v965
    %1057 = vmatpush1.msra.mxu0 %v964
    %1058 = vmatprep.subr.mxu0 0.0
    %1059 = vmatpush2.msra.mxu0 0.0
    %1060 = vmatprep.subr.mxu0 0.0
    %1061 = vmatpush2.msra.mxu0 0.0
    %1062 = vmatprep.subr.mxu0 0.0
    %1063 = vmatpush2.msra.mxu0 0.0
    %1064 = vmatprep.subr.mxu0 0.0
    %1065 = vmatpush2.msra.mxu0 0.0
    %1066 = vmatprep.subr.mxu0 0.0
    %1067 = vmatpush2.msra.mxu0 0.0
    %1068 = vmatprep.subr.mxu0 0.0
    %1069 = vmatpush2.msra.mxu0 0.0
    %1070 = vmatprep.subr.mxu0 0.0
    %1071 = vmatpush2.msra.mxu0 0.0
    %1072 = vmatprep.subr.mxu0 0.0
    %1073 = vmatpush2.msra.mxu0 0.0
    %1074 = vmatprep.subr.mxu0 0.0
    %1075 = vmatpush2.msra.mxu0 0.0
    %1076 = vmatprep.subr.mxu0 0.0
    %1077 = vmatpush2.msra.mxu0 0.0
    %1078 = vmatprep.subr.mxu0 0.0
    %1079 = vmatpush2.msra.mxu0 0.0
    %1080 = vmatprep.subr.mxu0 0.0
    %1081 = vmatpush2.msra.mxu0 0.0
    %1082 = vmatprep.subr.mxu0 0.0
    %1083 = vmatpush2.msra.mxu0 0.0
    %1084 = vmatprep.subr.mxu0 0.0
    %1085 = vmatpush2.msra.mxu0 0.0
    %1086 = vmatprep.subr.mxu0 0.0
    %1087 = vmatpush2.msra.mxu0 0.0
    %1088 = vmatprep.subr.mxu0 0.0
    %1089 = vmatpush2.msra.mxu0 0.0
    %1090 = vmatprep.mubr.f32.mxu0 0.0
    %1091 = vmatmul.mubr.f32.gmra.mxu0 %v1021
    %v1092 = vpop.f32.mrf.mxu0
    %v1093 = vadd.f32 0.0, %v1092
    %v1094 = vpop.f32.mrf.mxu0
    %v1095 = vadd.f32 0.0, %v1094
    %1096 = vmatprep.mubr.f32.mxu0 0.0
    %1097 = vmatmul.mubr.f32.gmra.mxu0 %v1024
    %v1098 = vpop.f32.mrf.mxu0
    %v1099 = vadd.f32 0.0, %v1098
    %v1100 = vpop.f32.mrf.mxu0
    %v1101 = vadd.f32 0.0, %v1100
    %1102 = vdwg.mxu0
    %1103 = vmatprep.subr.mxu0 0.0
    %1104 = vmatpush1.msra.mxu0 0.0
    %1105 = vmatprep.subr.mxu0 0.0
    %1106 = vmatpush1.msra.mxu0 0.0
    %1107 = vmatprep.subr.mxu0 0.0
    %1108 = vmatpush1.msra.mxu0 0.0
    %1109 = vmatprep.subr.mxu0 0.0
    %1110 = vmatpush1.msra.mxu0 0.0
    %1111 = vmatprep.subr.mxu0 0.0
    %1112 = vmatpush1.msra.mxu0 0.0
    %1113 = vmatprep.subr.mxu0 0.0
    %1114 = vmatpush1.msra.mxu0 0.0
    %1115 = vmatprep.subr.mxu0 0.0
    %1116 = vmatpush1.msra.mxu0 0.0
    %1117 = vmatprep.subr.mxu0 0.0
    %1118 = vmatpush1.msra.mxu0 0.0
    %1119 = vmatprep.subr.mxu0 %v1016
    %1120 = vmatpush1.msra.mxu0 %v1015
    %1121 = vmatprep.subr.mxu0 %v1009
    %1122 = vmatpush1.msra.mxu0 %v1008
    %1123 = vmatprep.subr.mxu0 %v1002
    %1124 = vmatpush1.msra.mxu0 %v1001
    %1125 = vmatprep.subr.mxu0 %v995
    %1126 = vmatpush1.msra.mxu0 %v994
    %1127 = vmatprep.subr.mxu0 %v988
    %1128 = vmatpush1.msra.mxu0 %v987
    %1129 = vmatprep.subr.mxu0 %v981
    %1130 = vmatpush1.msra.mxu0 %v980
    %1131 = vmatprep.subr.mxu0 %v974
    %1132 = vmatpush1.msra.mxu0 %v973
    %1133 = vmatprep.subr.mxu0 %v967
    %1134 = vmatpush1.msra.mxu0 %v966
    %1135 = vmatprep.subr.mxu0 0.0
    %1136 = vmatpush2.msra.mxu0 0.0
    %1137 = vmatprep.subr.mxu0 0.0
    %1138 = vmatpush2.msra.mxu0 0.0
    %1139 = vmatprep.subr.mxu0 0.0
    %1140 = vmatpush2.msra.mxu0 0.0
    %1141 = vmatprep.subr.mxu0 0.0
    %1142 = vmatpush2.msra.mxu0 0.0
    %1143 = vmatprep.subr.mxu0 0.0
    %1144 = vmatpush2.msra.mxu0 0.0
    %1145 = vmatprep.subr.mxu0 0.0
    %1146 = vmatpush2.msra.mxu0 0.0
    %1147 = vmatprep.subr.mxu0 0.0
    %1148 = vmatpush2.msra.mxu0 0.0
    %1149 = vmatprep.subr.mxu0 0.0
    %1150 = vmatpush2.msra.mxu0 0.0
    %1151 = vmatprep.subr.mxu0 0.0
    %1152 = vmatpush2.msra.mxu0 0.0
    %1153 = vmatprep.subr.mxu0 0.0
    %1154 = vmatpush2.msra.mxu0 0.0
    %1155 = vmatprep.subr.mxu0 0.0
    %1156 = vmatpush2.msra.mxu0 0.0
    %1157 = vmatprep.subr.mxu0 0.0
    %1158 = vmatpush2.msra.mxu0 0.0
    %1159 = vmatprep.subr.mxu0 0.0
    %1160 = vmatpush2.msra.mxu0 0.0
    %1161 = vmatprep.subr.mxu0 0.0
    %1162 = vmatpush2.msra.mxu0 0.0
    %1163 = vmatprep.subr.mxu0 0.0
    %1164 = vmatpush2.msra.mxu0 0.0
    %1165 = vmatprep.subr.mxu0 0.0
    %1166 = vmatpush2.msra.mxu0 0.0
    %1167 = vmatprep.mubr.f32.mxu0 0.0
    %1168 = vmatmul.mubr.f32.gmra.mxu0 %v1021
    %v1169 = vpop.f32.mrf.mxu0
    %v1170 = vadd.f32 0.0, %v1169
    %v1171 = vpop.f32.mrf.mxu0
    %v1172 = vadd.f32 0.0, %v1171
    %1173 = vmatprep.mubr.f32.mxu0 0.0
    %1174 = vmatmul.mubr.f32.gmra.mxu0 %v1024
    %v1175 = vpop.f32.mrf.mxu0
    %v1176 = vadd.f32 0.0, %v1175
    %v1177 = vpop.f32.mrf.mxu0
    %v1178 = vadd.f32 0.0, %v1177
    %1179 = vdwg.mxu0
    %1180 = vmatprep.subr.mxu0 0.0
    %1181 = vmatpush1.msra.mxu0 0.0
    %1182 = vmatprep.subr.mxu0 0.0
    %1183 = vmatpush1.msra.mxu0 0.0
    %1184 = vmatprep.subr.mxu0 0.0
    %1185 = vmatpush1.msra.mxu0 0.0
    %1186 = vmatprep.subr.mxu0 0.0
    %1187 = vmatpush1.msra.mxu0 0.0
    %1188 = vmatprep.subr.mxu0 0.0
    %1189 = vmatpush1.msra.mxu0 0.0
    %1190 = vmatprep.subr.mxu0 0.0
    %1191 = vmatpush1.msra.mxu0 0.0
    %1192 = vmatprep.subr.mxu0 0.0
    %1193 = vmatpush1.msra.mxu0 0.0
    %1194 = vmatprep.subr.mxu0 0.0
    %1195 = vmatpush1.msra.mxu0 0.0
    %1196 = vmatprep.subr.mxu0 %v1018
    %1197 = vmatpush1.msra.mxu0 %v1017
    %1198 = vmatprep.subr.mxu0 %v1011
    %1199 = vmatpush1.msra.mxu0 %v1010
    %1200 = vmatprep.subr.mxu0 %v1004
    %1201 = vmatpush1.msra.mxu0 %v1003
    %1202 = vmatprep.subr.mxu0 %v997
    %1203 = vmatpush1.msra.mxu0 %v996
    %1204 = vmatprep.subr.mxu0 %v990
    %1205 = vmatpush1.msra.mxu0 %v989
    %1206 = vmatprep.subr.mxu0 %v983
    %1207 = vmatpush1.msra.mxu0 %v982
    %1208 = vmatprep.subr.mxu0 %v976
    %1209 = vmatpush1.msra.mxu0 %v975
    %1210 = vmatprep.subr.mxu0 %v969
    %1211 = vmatpush1.msra.mxu0 %v968
    %1212 = vmatprep.subr.mxu0 0.0
    %1213 = vmatpush2.msra.mxu0 0.0
    %1214 = vmatprep.subr.mxu0 0.0
    %1215 = vmatpush2.msra.mxu0 0.0
    %1216 = vmatprep.subr.mxu0 0.0
    %1217 = vmatpush2.msra.mxu0 0.0
    %1218 = vmatprep.subr.mxu0 0.0
    %1219 = vmatpush2.msra.mxu0 0.0
    %1220 = vmatprep.subr.mxu0 0.0
    %1221 = vmatpush2.msra.mxu0 0.0
    %1222 = vmatprep.subr.mxu0 0.0
    %1223 = vmatpush2.msra.mxu0 0.0
    %1224 = vmatprep.subr.mxu0 0.0
    %1225 = vmatpush2.msra.mxu0 0.0
    %1226 = vmatprep.subr.mxu0 0.0
    %1227 = vmatpush2.msra.mxu0 0.0
    %1228 = vmatprep.subr.mxu0 0.0
    %1229 = vmatpush2.msra.mxu0 0.0
    %1230 = vmatprep.subr.mxu0 0.0
    %1231 = vmatpush2.msra.mxu0 0.0
    %1232 = vmatprep.subr.mxu0 0.0
    %1233 = vmatpush2.msra.mxu0 0.0
    %1234 = vmatprep.subr.mxu0 0.0
    %1235 = vmatpush2.msra.mxu0 0.0
    %1236 = vmatprep.subr.mxu0 0.0
    %1237 = vmatpush2.msra.mxu0 0.0
    %1238 = vmatprep.subr.mxu0 0.0
    %1239 = vmatpush2.msra.mxu0 0.0
    %1240 = vmatprep.subr.mxu0 0.0
    %1241 = vmatpush2.msra.mxu0 0.0
    %1242 = vmatprep.subr.mxu0 0.0
    %1243 = vmatpush2.msra.mxu0 0.0
    %1244 = vmatprep.mubr.f32.mxu0 0.0
    %1245 = vmatmul.mubr.f32.gmra.mxu0 %v1021
    %v1246 = vpop.f32.mrf.mxu0
    %v1247 = vadd.f32 0.0, %v1246
    %v1248 = vpop.f32.mrf.mxu0
    %v1249 = vadd.f32 0.0, %v1248
    %1250 = vmatprep.mubr.f32.mxu0 0.0
    %1251 = vmatmul.mubr.f32.gmra.mxu0 %v1024
    %v1252 = vpop.f32.mrf.mxu0
    %v1253 = vadd.f32 0.0, %v1252
    %v1254 = vpop.f32.mrf.mxu0
    %v1255 = vadd.f32 0.0, %v1254
    %1256 = vdwg.mxu0
    %1257 = vmatprep.subr.mxu0 0.0
    %1258 = vmatpush1.msra.mxu0 0.0
    %1259 = vmatprep.subr.mxu0 0.0
    %1260 = vmatpush1.msra.mxu0 0.0
    %1261 = vmatprep.subr.mxu0 0.0
    %1262 = vmatpush1.msra.mxu0 0.0
    %1263 = vmatprep.subr.mxu0 0.0
    %1264 = vmatpush1.msra.mxu0 0.0
    %1265 = vmatprep.subr.mxu0 0.0
    %1266 = vmatpush1.msra.mxu0 0.0
    %1267 = vmatprep.subr.mxu0 0.0
    %1268 = vmatpush1.msra.mxu0 0.0
    %1269 = vmatprep.subr.mxu0 0.0
    %1270 = vmatpush1.msra.mxu0 0.0
    %1271 = vmatprep.subr.mxu0 0.0
    %1272 = vmatpush1.msra.mxu0 0.0
    %1273 = vmatprep.subr.mxu0 0.0
    %1274 = vmatpush1.msra.mxu0 %v1019
    %1275 = vmatprep.subr.mxu0 0.0
    %1276 = vmatpush1.msra.mxu0 %v1012
    %1277 = vmatprep.subr.mxu0 0.0
    %1278 = vmatpush1.msra.mxu0 %v1005
    %1279 = vmatprep.subr.mxu0 0.0
    %1280 = vmatpush1.msra.mxu0 %v998
    %1281 = vmatprep.subr.mxu0 0.0
    %1282 = vmatpush1.msra.mxu0 %v991
    %1283 = vmatprep.subr.mxu0 0.0
    %1284 = vmatpush1.msra.mxu0 %v984
    %1285 = vmatprep.subr.mxu0 0.0
    %1286 = vmatpush1.msra.mxu0 %v977
    %1287 = vmatprep.subr.mxu0 0.0
    %1288 = vmatpush1.msra.mxu0 %v970
    %1289 = vmatprep.subr.mxu0 0.0
    %1290 = vmatpush2.msra.mxu0 0.0
    %1291 = vmatprep.subr.mxu0 0.0
    %1292 = vmatpush2.msra.mxu0 0.0
    %1293 = vmatprep.subr.mxu0 0.0
    %1294 = vmatpush2.msra.mxu0 0.0
    %1295 = vmatprep.subr.mxu0 0.0
    %1296 = vmatpush2.msra.mxu0 0.0
    %1297 = vmatprep.subr.mxu0 0.0
    %1298 = vmatpush2.msra.mxu0 0.0
    %1299 = vmatprep.subr.mxu0 0.0
    %1300 = vmatpush2.msra.mxu0 0.0
    %1301 = vmatprep.subr.mxu0 0.0
    %1302 = vmatpush2.msra.mxu0 0.0
    %1303 = vmatprep.subr.mxu0 0.0
    %1304 = vmatpush2.msra.mxu0 0.0
    %1305 = vmatprep.subr.mxu0 0.0
    %1306 = vmatpush2.msra.mxu0 0.0
    %1307 = vmatprep.subr.mxu0 0.0
    %1308 = vmatpush2.msra.mxu0 0.0
    %1309 = vmatprep.subr.mxu0 0.0
    %1310 = vmatpush2.msra.mxu0 0.0
    %1311 = vmatprep.subr.mxu0 0.0
    %1312 = vmatpush2.msra.mxu0 0.0
    %1313 = vmatprep.subr.mxu0 0.0
    %1314 = vmatpush2.msra.mxu0 0.0
    %1315 = vmatprep.subr.mxu0 0.0
    %1316 = vmatpush2.msra.mxu0 0.0
    %1317 = vmatprep.subr.mxu0 0.0
    %1318 = vmatpush2.msra.mxu0 0.0
    %1319 = vmatprep.subr.mxu0 0.0
    %1320 = vmatpush2.msra.mxu0 0.0
    %1321 = vmatprep.mubr.f32.mxu0 0.0
    %1322 = vmatmul.mubr.f32.gmra.mxu0 %v1021
    %v1323 = vpop.f32.mrf.mxu0
    %v1324 = vadd.f32 0.0, %v1323
    %v1325 = vpop.f32.mrf.mxu0
    %1326 = vmatprep.mubr.f32.mxu0 0.0
    %1327 = vmatmul.mubr.f32.gmra.mxu0 %v1024
    %v1328 = vpop.f32.mrf.mxu0
    %v1329 = vadd.f32 0.0, %v1328
    %v1330 = vpop.f32.mrf.mxu0
    %1331 = vdwg.mxu0
    %v1332 = vadd.f32 %v950, %v1093
    %v1333 = vadd.f32 %v951, %v1095
    %v1334 = vadd.f32 %v952, %v1170
    %v1335 = vadd.f32 %v953, %v1172
    %v1336 = vadd.f32 %v954, %v1247
    %v1337 = vadd.f32 %v955, %v1249
    %v1338 = vadd.f32 %v956, %v1324
    %v1339 = vadd.f32 %v957, %v1099
    %v1340 = vadd.f32 %v958, %v1101
    %v1341 = vadd.f32 %v959, %v1176
    %v1342 = vadd.f32 %v960, %v1178
    %v1343 = vadd.f32 %v961, %v1253
    %v1344 = vadd.f32 %v962, %v1255
    %v1345 = vadd.f32 %v963, %v1329
    %v1346 = vrcp.pop 6.0
    %v1347 = vmul.f32 %v1332, %v1346
    %v1348 = vmul.f32 %v1339, %v1346
    %v1349 = vadd.f32 %v1347, 0.5
    %v1350 = vadd.f32 %v1348, 0.5
    %v1351 = vmax.f32 %v1349, 0.0
    %v1352 = vmax.f32 %v1350, 0.0
    %v1353 = vmin.f32 %v1351, 1.0
    %v1354 = vmin.f32 %v1352, 1.0
    %v1355 = vtanh.pop %v1333
    %v1356 = vtanh.pop %v1340
    %v1357 = vmul.f32 %v1333, %v1346
    %v1358 = vmul.f32 %v1340, %v1346
    %v1359 = vadd.f32 %v1357, 0.5
    %v1360 = vadd.f32 %v1358, 0.5
    %v1361 = vmax.f32 %v1359, 0.0
    %v1362 = vmax.f32 %v1360, 0.0
    %v1363 = vmin.f32 %v1361, 1.0
    %v1364 = vmin.f32 %v1362, 1.0
    %v1365 = vmul.f32 %v1334, %v1346
    %v1366 = vmul.f32 %v1335, %v1346
    %v1367 = vmul.f32 %v1336, %v1346
    %v1368 = vmul.f32 %v1337, %v1346
    %v1369 = vmul.f32 %v1338, %v1346
    %v1370 = vmul.f32 %v1341, %v1346
    %v1371 = vmul.f32 %v1342, %v1346
    %v1372 = vmul.f32 %v1343, %v1346
    %v1373 = vmul.f32 %v1344, %v1346
    %v1374 = vmul.f32 %v1345, %v1346
    %v1375 = vadd.f32 %v1365, 0.5
    %v1376 = vadd.f32 %v1366, 0.5
    %v1377 = vadd.f32 %v1367, 0.5
    %v1378 = vadd.f32 %v1368, 0.5
    %v1379 = vadd.f32 %v1369, 0.5
    %v1380 = vadd.f32 %v1370, 0.5
    %v1381 = vadd.f32 %v1371, 0.5
    %v1382 = vadd.f32 %v1372, 0.5
    %v1383 = vadd.f32 %v1373, 0.5
    %v1384 = vadd.f32 %v1374, 0.5
    %v1385 = vmax.f32 %v1375, 0.0
    %v1386 = vmax.f32 %v1376, 0.0
    %v1387 = vmax.f32 %v1377, 0.0
    %v1388 = vmax.f32 %v1378, 0.0
    %v1389 = vmax.f32 %v1379, 0.0
    %v1390 = vmax.f32 %v1380, 0.0
    %v1391 = vmax.f32 %v1381, 0.0
    %v1392 = vmax.f32 %v1382, 0.0
    %v1393 = vmax.f32 %v1383, 0.0
    %v1394 = vmax.f32 %v1384, 0.0
    %v1395 = vmin.f32 %v1385, 1.0
    %v1396 = vmin.f32 %v1386, 1.0
    %v1397 = vmin.f32 %v1387, 1.0
    %v1398 = vmin.f32 %v1388, 1.0
    %v1399 = vmin.f32 %v1389, 1.0
    %v1400 = vmin.f32 %v1390, 1.0
    %v1401 = vmin.f32 %v1391, 1.0
    %v1402 = vmin.f32 %v1392, 1.0
    %v1403 = vmin.f32 %v1393, 1.0
    %v1404 = vmin.f32 %v1394, 1.0
    %v1405 = vmul.f32 %v1353, %v1355
    %v1406 = vmul.f32 %v1354, %v1356
    %1409 = vrot.lane.b32.xlu0 %v1353, 64
    %v1410 = vpop.permute.xlu0 %1409
    %1411 = vrot.lane.b32.xlu0 %v1354, 64
    %v1412 = vpop.permute.xlu0 %1411
    %v1415 = vsel %vm922, %v1410, %v1353
    %v1416 = vsel %vm922, %v1412, %v1354
    %1419 = vrot.lane.b32.xlu0 %v1405, 64
    %v1420 = vpop.permute.xlu0 %1419
    %1421 = vrot.lane.b32.xlu0 %v1406, 64
    %v1422 = vpop.permute.xlu0 %1421
    %v1425 = vsel %vm922, %v1405, %v1420
    %v1426 = vsel %vm922, %v1406, %v1422
    %v1427 = vmul.f32 %v1415, %v1395
    %v1428 = vmul.f32 %v1415, %v1396
    %v1429 = vmul.f32 %v1415, %v1397
    %v1430 = vmul.f32 %v1415, %v1398
    %v1431 = vmul.f32 %v1415, %v1399
    %v1432 = vmul.f32 %v1416, %v1400
    %v1433 = vmul.f32 %v1416, %v1401
    %v1434 = vmul.f32 %v1416, %v1402
    %v1435 = vmul.f32 %v1416, %v1403
    %v1436 = vmul.f32 %v1416, %v1404
    %v1437 = vld [vmem:[%s6] ss:$8 sm:$0xf]
    %v1438 = vld [vmem:[%s6] ss:$8 sm:$0x10]
    %v1439 = vor.u32 %v1437, %v1438
    %v1440 = vld [vmem:[%s7] ss:$8 sm:$0xf]
    %v1441 = vld [vmem:[%s7] ss:$8 sm:$0x10]
    %v1442 = vor.u32 %v1440, %v1441
    %v1443 = vld [vmem:[#allocation4] sm:$0xff]
    %v1444 = vld [vmem:[#allocation4 + $0x8] sm:$0xff]
    %v1445 = vld [vmem:[#allocation4 + $0x10] sm:$0xff]
    %v1446 = vld [vmem:[#allocation4 + $0x18] sm:$0xff]
    %v1447 = vld [vmem:[#allocation4 + $0x20] sm:$0xff]
    %v1448 = vld [vmem:[#allocation4 + $0x28] sm:$0xff]
    %v1449 = vld [vmem:[#allocation4 + $0x30] sm:$0xff]
    %v1450 = vld [vmem:[#allocation4 + $0x38] sm:$0xff]
    %v1451 = vld [vmem:[#allocation4 + $0x40] sm:$0xff]
    %v1452 = vld [vmem:[#allocation4 + $0x48] sm:$0xff]
    %v1453 = vmul.f32 %v1427, %v1443
    %v1454 = vmul.f32 %v1428, %v1444
    %v1455 = vmul.f32 %v1429, %v1445
    %v1456 = vmul.f32 %v1430, %v1446
    %v1457 = vmul.f32 %v1431, %v1447
    %v1458 = vmul.f32 %v1432, %v1448
    %v1459 = vmul.f32 %v1433, %v1449
    %v1460 = vmul.f32 %v1434, %v1450
    %v1461 = vmul.f32 %v1435, %v1451
    %v1462 = vmul.f32 %v1436, %v1452
    %v1464 = vlaneseq
    %v1465 = vshrl.u32 %v1464, 7
    %v1466 = vsub.s32 0, %v1465
    %v1467 = vrot.slane %v1439, %v1466
    %v1468 = vlaneseq
    %v1469 = vshrl.u32 %v1468, 7
    %v1470 = vsub.s32 1, %v1469
    %v1471 = vrot.slane %v1439, %v1470
    %v1472 = vlaneseq
    %v1473 = vshrl.u32 %v1472, 7
    %v1474 = vsub.s32 2, %v1473
    %v1475 = vrot.slane %v1439, %v1474
    %v1476 = vlaneseq
    %v1477 = vshrl.u32 %v1476, 7
    %v1478 = vsub.s32 3, %v1477
    %v1479 = vrot.slane %v1439, %v1478
    %v1480 = vlaneseq
    %v1481 = vshrl.u32 %v1480, 7
    %v1482 = vsub.s32 4, %v1481
    %v1483 = vrot.slane %v1439, %v1482
    %v1489 = vmul.f32 %v1425, %v1467
    %v1490 = vmul.f32 %v1425, %v1471
    %v1491 = vmul.f32 %v1425, %v1475
    %v1492 = vmul.f32 %v1425, %v1479
    %v1493 = vmul.f32 %v1425, %v1483
    %v1494 = vmul.f32 %v1426, %v1467
    %v1495 = vmul.f32 %v1426, %v1471
    %v1496 = vmul.f32 %v1426, %v1475
    %v1497 = vmul.f32 %v1426, %v1479
    %v1498 = vmul.f32 %v1426, %v1483
    %v1499 = vadd.f32 %v1453, %v1489
    %v1500 = vadd.f32 %v1454, %v1490
    %v1501 = vadd.f32 %v1455, %v1491
    %v1502 = vadd.f32 %v1456, %v1492
    %v1503 = vadd.f32 %v1457, %v1493
    %v1504 = vadd.f32 %v1458, %v1494
    %v1505 = vadd.f32 %v1459, %v1495
    %v1506 = vadd.f32 %v1460, %v1496
    %v1507 = vadd.f32 %v1461, %v1497
    %v1508 = vadd.f32 %v1462, %v1498
    %v1509 = vld [vmem:[#allocation5] sm:$0xff]
    %v1510 = vld [vmem:[#allocation5 + $0x8] sm:$0xff]
    %v1511 = vld [vmem:[#allocation5 + $0x10] sm:$0xff]
    %v1512 = vld [vmem:[#allocation5 + $0x18] sm:$0xff]
    %v1513 = vld [vmem:[#allocation5 + $0x20] sm:$0xff]
    %v1514 = vld [vmem:[#allocation5 + $0x28] sm:$0xff]
    %v1515 = vld [vmem:[#allocation5 + $0x30] sm:$0xff]
    %v1516 = vld [vmem:[#allocation5 + $0x38] sm:$0xff]
    %v1517 = vld [vmem:[#allocation5 + $0x40] sm:$0xff]
    %v1518 = vld [vmem:[#allocation5 + $0x48] sm:$0xff]
    %v1519 = vmul.f32 %v1427, %v1509
    %v1520 = vmul.f32 %v1428, %v1510
    %v1521 = vmul.f32 %v1429, %v1511
    %v1522 = vmul.f32 %v1430, %v1512
    %v1523 = vmul.f32 %v1431, %v1513
    %v1524 = vmul.f32 %v1432, %v1514
    %v1525 = vmul.f32 %v1433, %v1515
    %v1526 = vmul.f32 %v1434, %v1516
    %v1527 = vmul.f32 %v1435, %v1517
    %v1528 = vmul.f32 %v1436, %v1518
    %v1530 = vlaneseq
    %v1531 = vshrl.u32 %v1530, 7
    %v1532 = vsub.s32 0, %v1531
    %v1533 = vrot.slane %v1442, %v1532
    %v1534 = vlaneseq
    %v1535 = vshrl.u32 %v1534, 7
    %v1536 = vsub.s32 1, %v1535
    %v1537 = vrot.slane %v1442, %v1536
    %v1538 = vlaneseq
    %v1539 = vshrl.u32 %v1538, 7
    %v1540 = vsub.s32 2, %v1539
    %v1541 = vrot.slane %v1442, %v1540
    %v1542 = vlaneseq
    %v1543 = vshrl.u32 %v1542, 7
    %v1544 = vsub.s32 3, %v1543
    %v1545 = vrot.slane %v1442, %v1544
    %v1546 = vlaneseq
    %v1547 = vshrl.u32 %v1546, 7
    %v1548 = vsub.s32 4, %v1547
    %v1549 = vrot.slane %v1442, %v1548
    %v1555 = vmul.f32 %v1425, %v1533
    %v1556 = vmul.f32 %v1425, %v1537
    %v1557 = vmul.f32 %v1425, %v1541
    %v1558 = vmul.f32 %v1425, %v1545
    %v1559 = vmul.f32 %v1425, %v1549
    %v1560 = vmul.f32 %v1426, %v1533
    %v1561 = vmul.f32 %v1426, %v1537
    %v1562 = vmul.f32 %v1426, %v1541
    %v1563 = vmul.f32 %v1426, %v1545
    %v1564 = vmul.f32 %v1426, %v1549
    %v1565 = vadd.f32 %v1519, %v1555
    %v1566 = vadd.f32 %v1520, %v1556
    %v1567 = vadd.f32 %v1521, %v1557
    %v1568 = vadd.f32 %v1522, %v1558
    %v1569 = vadd.f32 %v1523, %v1559
    %v1570 = vadd.f32 %v1524, %v1560
    %v1571 = vadd.f32 %v1525, %v1561
    %v1572 = vadd.f32 %v1526, %v1562
    %v1573 = vadd.f32 %v1527, %v1563
    %v1574 = vadd.f32 %v1528, %v1564
    %1575 = vst [vmem:[#allocation4] sm:$0xff] %v1499
    %1576 = vst [vmem:[#allocation4 + $0x8] sm:$0xff] %v1500
    %1577 = vst [vmem:[#allocation4 + $0x10] sm:$0xff] %v1501
    %1578 = vst [vmem:[#allocation4 + $0x18] sm:$0xff] %v1502
    %1579 = vst [vmem:[#allocation4 + $0x20] sm:$0xff] %v1503
    %1580 = vst [vmem:[#allocation4 + $0x28] sm:$0xff] %v1504
    %1581 = vst [vmem:[#allocation4 + $0x30] sm:$0xff] %v1505
    %1582 = vst [vmem:[#allocation4 + $0x38] sm:$0xff] %v1506
    %1583 = vst [vmem:[#allocation4 + $0x40] sm:$0xff] %v1507
    %1584 = vst [vmem:[#allocation4 + $0x48] sm:$0xff] %v1508
    %1585 = vst [vmem:[#allocation5] sm:$0xff] %v1565
    %1586 = vst [vmem:[#allocation5 + $0x8] sm:$0xff] %v1566
    %1587 = vst [vmem:[#allocation5 + $0x10] sm:$0xff] %v1567
    %1588 = vst [vmem:[#allocation5 + $0x18] sm:$0xff] %v1568
    %1589 = vst [vmem:[#allocation5 + $0x20] sm:$0xff] %v1569
    %1590 = vst [vmem:[#allocation5 + $0x28] sm:$0xff] %v1570
    %1591 = vst [vmem:[#allocation5 + $0x30] sm:$0xff] %v1571
    %1592 = vst [vmem:[#allocation5 + $0x38] sm:$0xff] %v1572
    %1593 = vst [vmem:[#allocation5 + $0x40] sm:$0xff] %v1573
    %1594 = vst [vmem:[#allocation5 + $0x48] sm:$0xff] %v1574
    %v1595 = vmul.f32 %v1499, %v1499
    %v1596 = vmul.f32 %v1500, %v1500
    %v1597 = vmul.f32 %v1501, %v1501
    %v1598 = vmul.f32 %v1502, %v1502
    %v1599 = vmul.f32 %v1503, %v1503
    %v1600 = vmul.f32 %v1504, %v1504
    %v1601 = vmul.f32 %v1505, %v1505
    %v1602 = vmul.f32 %v1506, %v1506
    %v1603 = vmul.f32 %v1507, %v1507
    %v1604 = vmul.f32 %v1508, %v1508
    %v1605 = vmul.f32 %v1565, %v1565
    %v1606 = vmul.f32 %v1566, %v1566
    %v1607 = vmul.f32 %v1567, %v1567
    %v1608 = vmul.f32 %v1568, %v1568
    %v1609 = vmul.f32 %v1569, %v1569
    %v1610 = vmul.f32 %v1570, %v1570
    %v1611 = vmul.f32 %v1571, %v1571
    %v1612 = vmul.f32 %v1572, %v1572
    %v1613 = vmul.f32 %v1573, %v1573
    %v1614 = vmul.f32 %v1574, %v1574
    %v1615 = vadd.f32 %v1595, %v1605
    %v1616 = vadd.f32 %v1596, %v1606
    %v1617 = vadd.f32 %v1597, %v1607
    %v1618 = vadd.f32 %v1598, %v1608
    %v1619 = vadd.f32 %v1599, %v1609
    %v1620 = vadd.f32 %v1600, %v1610
    %v1621 = vadd.f32 %v1601, %v1611
    %v1622 = vadd.f32 %v1602, %v1612
    %v1623 = vadd.f32 %v1603, %v1613
    %v1624 = vadd.f32 %v1604, %v1614
    %v1625 = vld [vmem:[%s5] sm:$0x1f]
    %v1627 = vlaneseq
    %v1628 = vshrl.u32 %v1627, 7
    %v1629 = vsub.s32 0, %v1628
    %v1630 = vrot.slane %v1625, %v1629
    %v1631 = vlaneseq
    %v1632 = vshrl.u32 %v1631, 7
    %v1633 = vsub.s32 1, %v1632
    %v1634 = vrot.slane %v1625, %v1633
    %v1635 = vlaneseq
    %v1636 = vshrl.u32 %v1635, 7
    %v1637 = vsub.s32 2, %v1636
    %v1638 = vrot.slane %v1625, %v1637
    %v1639 = vlaneseq
    %v1640 = vshrl.u32 %v1639, 7
    %v1641 = vsub.s32 3, %v1640
    %v1642 = vrot.slane %v1625, %v1641
    %v1643 = vlaneseq
    %v1644 = vshrl.u32 %v1643, 7
    %v1645 = vsub.s32 4, %v1644
    %v1646 = vrot.slane %v1625, %v1645
    %v1652 = vmul.f32 %v1615, %v1630
    %v1653 = vmul.f32 %v1616, %v1634
    %v1654 = vmul.f32 %v1617, %v1638
    %v1655 = vmul.f32 %v1618, %v1642
    %v1656 = vmul.f32 %v1619, %v1646
    %v1657 = vmul.f32 %v1620, %v1630
    %v1658 = vmul.f32 %v1621, %v1634
    %v1659 = vmul.f32 %v1622, %v1638
    %v1660 = vmul.f32 %v1623, %v1642
    %v1661 = vmul.f32 %v1624, %v1646
    %1664 = vrot.lane.b32.xlu0 %v1652, 64
    %v1665 = vpop.permute.xlu0 %1664
    %1666 = vrot.lane.b32.xlu0 %v1657, 64
    %v1667 = vpop.permute.xlu0 %1666
    %v1670 = vadd.f32 %v1652, %v1665
    %v1671 = vadd.f32 %v1657, %v1667
    %1674 = vrot.lane.b32.xlu0 %v1653, 64
    %v1675 = vpop.permute.xlu0 %1674
    %1676 = vrot.lane.b32.xlu0 %v1658, 64
    %v1677 = vpop.permute.xlu0 %1676
    %v1680 = vadd.f32 %v1653, %v1675
    %v1681 = vadd.f32 %v1658, %v1677
    %1684 = vrot.lane.b32.xlu0 %v1654, 64
    %v1685 = vpop.permute.xlu0 %1684
    %1686 = vrot.lane.b32.xlu0 %v1659, 64
    %v1687 = vpop.permute.xlu0 %1686
    %v1690 = vadd.f32 %v1654, %v1685
    %v1691 = vadd.f32 %v1659, %v1687
    %1694 = vrot.lane.b32.xlu0 %v1655, 64
    %v1695 = vpop.permute.xlu0 %1694
    %1696 = vrot.lane.b32.xlu0 %v1660, 64
    %v1697 = vpop.permute.xlu0 %1696
    %v1700 = vadd.f32 %v1655, %v1695
    %v1701 = vadd.f32 %v1660, %v1697
    %1704 = vrot.lane.b32.xlu0 %v1656, 64
    %v1705 = vpop.permute.xlu0 %1704
    %1706 = vrot.lane.b32.xlu0 %v1661, 64
    %v1707 = vpop.permute.xlu0 %1706
    %v1710 = vadd.f32 %v1656, %v1705
    %v1711 = vadd.f32 %v1661, %v1707
    %v1712 = vadd.f32 %v1670, %v1680
    %v1713 = vadd.f32 %v1671, %v1681
    %v1714 = vadd.f32 %v1690, %v1700
    %v1715 = vadd.f32 %v1691, %v1701
    %v1716 = vadd.f32 %v1712, %v1714
    %v1717 = vadd.f32 %v1713, %v1715
    %v1718 = vadd.f32 %v1716, %v1710
    %v1719 = vadd.f32 %v1717, %v1711
    %v1720 = vld [vmem:[%s4] sm:$0x1]
    %v1722 = vlaneseq
    %v1723 = vshrl.u32 %v1722, 7
    %v1724 = vsub.s32 0, %v1723
    %v1725 = vrot.slane %v1720, %v1724
    %v1727 = vadd.f32 %v1718, %v1725
    %v1728 = vadd.f32 %v1719, %v1725
    %v1729 = vtanh.pop %v1727
    %v1730 = vtanh.pop %v1728
    %1733 = vrot.lane.b32.xlu0 %v1729, 64
    %v1734 = vpop.permute.xlu0 %1733
    %1735 = vrot.lane.b32.xlu0 %v1730, 64
    %v1736 = vpop.permute.xlu0 %1735
    %v1739 = vmul.f32 %v1363, %v1734
    %v1740 = vmul.f32 %v1364, %v1736
    %1743 = vrot.lane.b32.xlu0 %v1739, 64
    %v1744 = vpop.permute.xlu0 %1743
    %1745 = vrot.lane.b32.xlu0 %v1740, 64
    %v1746 = vpop.permute.xlu0 %1745
    %1749 = vst.msk [vmem:[#allocation3] sm:$0xff] %vm922, %v1744
    %1750 = vst.msk [vmem:[#allocation3 + $0x8] sm:$0xff] %vm922, %v1746
    %v1751 = vld [vmem:[#allocation3] sm:$0xff]
    %v1752 = vld [vmem:[#allocation3 + $0x8] sm:$0xff]
    %s1753 = smul.u32 2, 7
    %s1754 = smul.addr %s1753, 8
    %s1755 = scalar_lea.vmem [#allocation2], %s1754
    %v1756 = vld [vmem:[%s1755] sm:$0xff]
    %v1757 = vld [vmem:[%s1755 + $0x8] sm:$0xff]
    %v1758 = vld [vmem:[%s1755 + $0x10] sm:$0xff]
    %v1759 = vld [vmem:[%s1755 + $0x18] sm:$0xff]
    %v1760 = vld [vmem:[%s1755 + $0x20] sm:$0xff]
    %v1761 = vld [vmem:[%s1755 + $0x28] sm:$0xff]
    %v1762 = vld [vmem:[%s1755 + $0x30] sm:$0xff]
    %v1763 = vld [vmem:[%s1755 + $0x38] sm:$0xff]
    %v1764 = vld [vmem:[%s1755 + $0x40] sm:$0xff]
    %v1765 = vld [vmem:[%s1755 + $0x48] sm:$0xff]
    %v1766 = vld [vmem:[%s1755 + $0x50] sm:$0xff]
    %v1767 = vld [vmem:[%s1755 + $0x58] sm:$0xff]
    %v1768 = vld [vmem:[%s1755 + $0x60] sm:$0xff]
    %v1769 = vld [vmem:[%s1755 + $0x68] sm:$0xff]
    %v1770 = vld [vmem:[#allocation7] sm:$0xff]
    %v1771 = vld [vmem:[#allocation7 + $0x8] sm:$0xff]
    %v1772 = vld [vmem:[#allocation7 + $0x10] sm:$0xff]
    %v1773 = vld [vmem:[#allocation7 + $0x18] sm:$0xff]
    %v1774 = vld [vmem:[#allocation7 + $0x20] sm:$0xff]
    %v1775 = vld [vmem:[#allocation7 + $0x28] sm:$0xff]
    %v1776 = vld [vmem:[#allocation7 + $0x30] sm:$0xff]
    %v1777 = vld [vmem:[#allocation7 + $0x38] sm:$0xff]
    %v1778 = vld [vmem:[#allocation7 + $0x40] sm:$0xff]
    %v1779 = vld [vmem:[#allocation7 + $0x48] sm:$0xff]
    %v1780 = vld [vmem:[#allocation7 + $0x50] sm:$0xff]
    %v1781 = vld [vmem:[#allocation7 + $0x58] sm:$0xff]
    %v1782 = vld [vmem:[#allocation7 + $0x60] sm:$0xff]
    %v1783 = vld [vmem:[#allocation7 + $0x68] sm:$0xff]
    %v1784 = vld [vmem:[#allocation7 + $0x70] sm:$0xff]
    %v1785 = vld [vmem:[#allocation7 + $0x78] sm:$0xff]
    %v1786 = vld [vmem:[#allocation7 + $0x80] sm:$0xff]
    %v1787 = vld [vmem:[#allocation7 + $0x88] sm:$0xff]
    %v1788 = vld [vmem:[#allocation7 + $0x90] sm:$0xff]
    %v1789 = vld [vmem:[#allocation7 + $0x98] sm:$0xff]
    %v1790 = vld [vmem:[#allocation7 + $0xa0] sm:$0xff]
    %v1791 = vld [vmem:[#allocation7 + $0xa8] sm:$0xff]
    %v1792 = vld [vmem:[#allocation7 + $0xb0] sm:$0xff]
    %v1793 = vld [vmem:[#allocation7 + $0xb8] sm:$0xff]
    %v1794 = vld [vmem:[#allocation7 + $0xc0] sm:$0xff]
    %v1795 = vld [vmem:[#allocation7 + $0xc8] sm:$0xff]
    %v1796 = vld [vmem:[#allocation7 + $0xd0] sm:$0xff]
    %v1797 = vld [vmem:[#allocation7 + $0xd8] sm:$0xff]
    %v1798 = vld [vmem:[#allocation7 + $0xe0] sm:$0xff]
    %v1799 = vld [vmem:[#allocation7 + $0xe8] sm:$0xff]
    %v1800 = vld [vmem:[#allocation7 + $0xf0] sm:$0xff]
    %v1801 = vld [vmem:[#allocation7 + $0xf8] sm:$0xff]
    %v1802 = vld [vmem:[#allocation7 + $0x100] sm:$0xff]
    %v1803 = vld [vmem:[#allocation7 + $0x108] sm:$0xff]
    %v1804 = vld [vmem:[#allocation7 + $0x110] sm:$0xff]
    %v1805 = vld [vmem:[#allocation7 + $0x118] sm:$0xff]
    %v1806 = vld [vmem:[#allocation7 + $0x120] sm:$0xff]
    %v1807 = vld [vmem:[#allocation7 + $0x128] sm:$0xff]
    %v1808 = vld [vmem:[#allocation7 + $0x130] sm:$0xff]
    %v1809 = vld [vmem:[#allocation7 + $0x138] sm:$0xff]
    %v1810 = vld [vmem:[#allocation7 + $0x140] sm:$0xff]
    %v1811 = vld [vmem:[#allocation7 + $0x148] sm:$0xff]
    %v1812 = vld [vmem:[#allocation7 + $0x150] sm:$0xff]
    %v1813 = vld [vmem:[#allocation7 + $0x158] sm:$0xff]
    %v1814 = vld [vmem:[#allocation7 + $0x160] sm:$0xff]
    %v1815 = vld [vmem:[#allocation7 + $0x168] sm:$0xff]
    %v1816 = vld [vmem:[#allocation7 + $0x170] sm:$0xff]
    %v1817 = vld [vmem:[#allocation7 + $0x178] sm:$0xff]
    %v1818 = vld [vmem:[#allocation7 + $0x180] sm:$0xff]
    %v1819 = vld [vmem:[#allocation7 + $0x188] sm:$0xff]
    %v1820 = vld [vmem:[#allocation7 + $0x190] sm:$0xff]
    %v1821 = vld [vmem:[#allocation7 + $0x198] sm:$0xff]
    %v1822 = vld [vmem:[#allocation7 + $0x1a0] sm:$0xff]
    %v1823 = vld [vmem:[#allocation7 + $0x1a8] sm:$0xff]
    %v1824 = vld [vmem:[#allocation7 + $0x1b0] sm:$0xff]
    %v1825 = vld [vmem:[#allocation7 + $0x1b8] sm:$0xff]
    %v1827 = vsel %vm922, %v1751, 0
    %v1830 = vsel %vm922, %v1752, 0
    %1832 = vmatprep.subr.mxu0 0.0
    %1833 = vmatpush1.msra.mxu0 0.0
    %1834 = vmatprep.subr.mxu0 0.0
    %1835 = vmatpush1.msra.mxu0 0.0
    %1836 = vmatprep.subr.mxu0 0.0
    %1837 = vmatpush1.msra.mxu0 0.0
    %1838 = vmatprep.subr.mxu0 0.0
    %1839 = vmatpush1.msra.mxu0 0.0
    %1840 = vmatprep.subr.mxu0 0.0
    %1841 = vmatpush1.msra.mxu0 0.0
    %1842 = vmatprep.subr.mxu0 0.0
    %1843 = vmatpush1.msra.mxu0 0.0
    %1844 = vmatprep.subr.mxu0 0.0
    %1845 = vmatpush1.msra.mxu0 0.0
    %1846 = vmatprep.subr.mxu0 0.0
    %1847 = vmatpush1.msra.mxu0 0.0
    %1848 = vmatprep.subr.mxu0 %v1820
    %1849 = vmatpush1.msra.mxu0 %v1819
    %1850 = vmatprep.subr.mxu0 %v1813
    %1851 = vmatpush1.msra.mxu0 %v1812
    %1852 = vmatprep.subr.mxu0 %v1806
    %1853 = vmatpush1.msra.mxu0 %v1805
    %1854 = vmatprep.subr.mxu0 %v1799
    %1855 = vmatpush1.msra.mxu0 %v1798
    %1856 = vmatprep.subr.mxu0 %v1792
    %1857 = vmatpush1.msra.mxu0 %v1791
    %1858 = vmatprep.subr.mxu0 %v1785
    %1859 = vmatpush1.msra.mxu0 %v1784
    %1860 = vmatprep.subr.mxu0 %v1778
    %1861 = vmatpush1.msra.mxu0 %v1777
    %1862 = vmatprep.subr.mxu0 %v1771
    %1863 = vmatpush1.msra.mxu0 %v1770
    %1864 = vmatprep.subr.mxu0 0.0
    %1865 = vmatpush2.msra.mxu0 0.0
    %1866 = vmatprep.subr.mxu0 0.0
    %1867 = vmatpush2.msra.mxu0 0.0
    %1868 = vmatprep.subr.mxu0 0.0
    %1869 = vmatpush2.msra.mxu0 0.0
    %1870 = vmatprep.subr.mxu0 0.0
    %1871 = vmatpush2.msra.mxu0 0.0
    %1872 = vmatprep.subr.mxu0 0.0
    %1873 = vmatpush2.msra.mxu0 0.0
    %1874 = vmatprep.subr.mxu0 0.0
    %1875 = vmatpush2.msra.mxu0 0.0
    %1876 = vmatprep.subr.mxu0 0.0
    %1877 = vmatpush2.msra.mxu0 0.0
    %1878 = vmatprep.subr.mxu0 0.0
    %1879 = vmatpush2.msra.mxu0 0.0
    %1880 = vmatprep.subr.mxu0 0.0
    %1881 = vmatpush2.msra.mxu0 0.0
    %1882 = vmatprep.subr.mxu0 0.0
    %1883 = vmatpush2.msra.mxu0 0.0
    %1884 = vmatprep.subr.mxu0 0.0
    %1885 = vmatpush2.msra.mxu0 0.0
    %1886 = vmatprep.subr.mxu0 0.0
    %1887 = vmatpush2.msra.mxu0 0.0
    %1888 = vmatprep.subr.mxu0 0.0
    %1889 = vmatpush2.msra.mxu0 0.0
    %1890 = vmatprep.subr.mxu0 0.0
    %1891 = vmatpush2.msra.mxu0 0.0
    %1892 = vmatprep.subr.mxu0 0.0
    %1893 = vmatpush2.msra.mxu0 0.0
    %1894 = vmatprep.subr.mxu0 0.0
    %1895 = vmatpush2.msra.mxu0 0.0
    %1896 = vmatprep.mubr.f32.mxu0 0.0
    %1897 = vmatmul.mubr.f32.gmra.mxu0 %v1827
    %v1898 = vpop.f32.mrf.mxu0
    %v1899 = vadd.f32 0.0, %v1898
    %v1900 = vpop.f32.mrf.mxu0
    %v1901 = vadd.f32 0.0, %v1900
    %1902 = vmatprep.mubr.f32.mxu0 0.0
    %1903 = vmatmul.mubr.f32.gmra.mxu0 %v1830
    %v1904 = vpop.f32.mrf.mxu0
    %v1905 = vadd.f32 0.0, %v1904
    %v1906 = vpop.f32.mrf.mxu0
    %v1907 = vadd.f32 0.0, %v1906
    %1908 = vdwg.mxu0
    %1909 = vmatprep.subr.mxu0 0.0
    %1910 = vmatpush1.msra.mxu0 0.0
    %1911 = vmatprep.subr.mxu0 0.0
    %1912 = vmatpush1.msra.mxu0 0.0
    %1913 = vmatprep.subr.mxu0 0.0
    %1914 = vmatpush1.msra.mxu0 0.0
    %1915 = vmatprep.subr.mxu0 0.0
    %1916 = vmatpush1.msra.mxu0 0.0
    %1917 = vmatprep.subr.mxu0 0.0
    %1918 = vmatpush1.msra.mxu0 0.0
    %1919 = vmatprep.subr.mxu0 0.0
    %1920 = vmatpush1.msra.mxu0 0.0
    %1921 = vmatprep.subr.mxu0 0.0
    %1922 = vmatpush1.msra.mxu0 0.0
    %1923 = vmatprep.subr.mxu0 0.0
    %1924 = vmatpush1.msra.mxu0 0.0
    %1925 = vmatprep.subr.mxu0 %v1822
    %1926 = vmatpush1.msra.mxu0 %v1821
    %1927 = vmatprep.subr.mxu0 %v1815
    %1928 = vmatpush1.msra.mxu0 %v1814
    %1929 = vmatprep.subr.mxu0 %v1808
    %1930 = vmatpush1.msra.mxu0 %v1807
    %1931 = vmatprep.subr.mxu0 %v1801
    %1932 = vmatpush1.msra.mxu0 %v1800
    %1933 = vmatprep.subr.mxu0 %v1794
    %1934 = vmatpush1.msra.mxu0 %v1793
    %1935 = vmatprep.subr.mxu0 %v1787
    %1936 = vmatpush1.msra.mxu0 %v1786
    %1937 = vmatprep.subr.mxu0 %v1780
    %1938 = vmatpush1.msra.mxu0 %v1779
    %1939 = vmatprep.subr.mxu0 %v1773
    %1940 = vmatpush1.msra.mxu0 %v1772
    %1941 = vmatprep.subr.mxu0 0.0
    %1942 = vmatpush2.msra.mxu0 0.0
    %1943 = vmatprep.subr.mxu0 0.0
    %1944 = vmatpush2.msra.mxu0 0.0
    %1945 = vmatprep.subr.mxu0 0.0
    %1946 = vmatpush2.msra.mxu0 0.0
    %1947 = vmatprep.subr.mxu0 0.0
    %1948 = vmatpush2.msra.mxu0 0.0
    %1949 = vmatprep.subr.mxu0 0.0
    %1950 = vmatpush2.msra.mxu0 0.0
    %1951 = vmatprep.subr.mxu0 0.0
    %1952 = vmatpush2.msra.mxu0 0.0
    %1953 = vmatprep.subr.mxu0 0.0
    %1954 = vmatpush2.msra.mxu0 0.0
    %1955 = vmatprep.subr.mxu0 0.0
    %1956 = vmatpush2.msra.mxu0 0.0
    %1957 = vmatprep.subr.mxu0 0.0
    %1958 = vmatpush2.msra.mxu0 0.0
    %1959 = vmatprep.subr.mxu0 0.0
    %1960 = vmatpush2.msra.mxu0 0.0
    %1961 = vmatprep.subr.mxu0 0.0
    %1962 = vmatpush2.msra.mxu0 0.0
    %1963 = vmatprep.subr.mxu0 0.0
    %1964 = vmatpush2.msra.mxu0 0.0
    %1965 = vmatprep.subr.mxu0 0.0
    %1966 = vmatpush2.msra.mxu0 0.0
    %1967 = vmatprep.subr.mxu0 0.0
    %1968 = vmatpush2.msra.mxu0 0.0
    %1969 = vmatprep.subr.mxu0 0.0
    %1970 = vmatpush2.msra.mxu0 0.0
    %1971 = vmatprep.subr.mxu0 0.0
    %1972 = vmatpush2.msra.mxu0 0.0
    %1973 = vmatprep.mubr.f32.mxu0 0.0
    %1974 = vmatmul.mubr.f32.gmra.mxu0 %v1827
    %v1975 = vpop.f32.mrf.mxu0
    %v1976 = vadd.f32 0.0, %v1975
    %v1977 = vpop.f32.mrf.mxu0
    %v1978 = vadd.f32 0.0, %v1977
    %1979 = vmatprep.mubr.f32.mxu0 0.0
    %1980 = vmatmul.mubr.f32.gmra.mxu0 %v1830
    %v1981 = vpop.f32.mrf.mxu0
    %v1982 = vadd.f32 0.0, %v1981
    %v1983 = vpop.f32.mrf.mxu0
    %v1984 = vadd.f32 0.0, %v1983
    %1985 = vdwg.mxu0
    %1986 = vmatprep.subr.mxu0 0.0
    %1987 = vmatpush1.msra.mxu0 0.0
    %1988 = vmatprep.subr.mxu0 0.0
    %1989 = vmatpush1.msra.mxu0 0.0
    %1990 = vmatprep.subr.mxu0 0.0
    %1991 = vmatpush1.msra.mxu0 0.0
    %1992 = vmatprep.subr.mxu0 0.0
    %1993 = vmatpush1.msra.mxu0 0.0
    %1994 = vmatprep.subr.mxu0 0.0
    %1995 = vmatpush1.msra.mxu0 0.0
    %1996 = vmatprep.subr.mxu0 0.0
    %1997 = vmatpush1.msra.mxu0 0.0
    %1998 = vmatprep.subr.mxu0 0.0
    %1999 = vmatpush1.msra.mxu0 0.0
    %2000 = vmatprep.subr.mxu0 0.0
    %2001 = vmatpush1.msra.mxu0 0.0
    %2002 = vmatprep.subr.mxu0 %v1824
    %2003 = vmatpush1.msra.mxu0 %v1823
    %2004 = vmatprep.subr.mxu0 %v1817
    %2005 = vmatpush1.msra.mxu0 %v1816
    %2006 = vmatprep.subr.mxu0 %v1810
    %2007 = vmatpush1.msra.mxu0 %v1809
    %2008 = vmatprep.subr.mxu0 %v1803
    %2009 = vmatpush1.msra.mxu0 %v1802
    %2010 = vmatprep.subr.mxu0 %v1796
    %2011 = vmatpush1.msra.mxu0 %v1795
    %2012 = vmatprep.subr.mxu0 %v1789
    %2013 = vmatpush1.msra.mxu0 %v1788
    %2014 = vmatprep.subr.mxu0 %v1782
    %2015 = vmatpush1.msra.mxu0 %v1781
    %2016 = vmatprep.subr.mxu0 %v1775
    %2017 = vmatpush1.msra.mxu0 %v1774
    %2018 = vmatprep.subr.mxu0 0.0
    %2019 = vmatpush2.msra.mxu0 0.0
    %2020 = vmatprep.subr.mxu0 0.0
    %2021 = vmatpush2.msra.mxu0 0.0
    %2022 = vmatprep.subr.mxu0 0.0
    %2023 = vmatpush2.msra.mxu0 0.0
    %2024 = vmatprep.subr.mxu0 0.0
    %2025 = vmatpush2.msra.mxu0 0.0
    %2026 = vmatprep.subr.mxu0 0.0
    %2027 = vmatpush2.msra.mxu0 0.0
    %2028 = vmatprep.subr.mxu0 0.0
    %2029 = vmatpush2.msra.mxu0 0.0
    %2030 = vmatprep.subr.mxu0 0.0
    %2031 = vmatpush2.msra.mxu0 0.0
    %2032 = vmatprep.subr.mxu0 0.0
    %2033 = vmatpush2.msra.mxu0 0.0
    %2034 = vmatprep.subr.mxu0 0.0
    %2035 = vmatpush2.msra.mxu0 0.0
    %2036 = vmatprep.subr.mxu0 0.0
    %2037 = vmatpush2.msra.mxu0 0.0
    %2038 = vmatprep.subr.mxu0 0.0
    %2039 = vmatpush2.msra.mxu0 0.0
    %2040 = vmatprep.subr.mxu0 0.0
    %2041 = vmatpush2.msra.mxu0 0.0
    %2042 = vmatprep.subr.mxu0 0.0
    %2043 = vmatpush2.msra.mxu0 0.0
    %2044 = vmatprep.subr.mxu0 0.0
    %2045 = vmatpush2.msra.mxu0 0.0
    %2046 = vmatprep.subr.mxu0 0.0
    %2047 = vmatpush2.msra.mxu0 0.0
    %2048 = vmatprep.subr.mxu0 0.0
    %2049 = vmatpush2.msra.mxu0 0.0
    %2050 = vmatprep.mubr.f32.mxu0 0.0
    %2051 = vmatmul.mubr.f32.gmra.mxu0 %v1827
    %v2052 = vpop.f32.mrf.mxu0
    %v2053 = vadd.f32 0.0, %v2052
    %v2054 = vpop.f32.mrf.mxu0
    %v2055 = vadd.f32 0.0, %v2054
    %2056 = vmatprep.mubr.f32.mxu0 0.0
    %2057 = vmatmul.mubr.f32.gmra.mxu0 %v1830
    %v2058 = vpop.f32.mrf.mxu0
    %v2059 = vadd.f32 0.0, %v2058
    %v2060 = vpop.f32.mrf.mxu0
    %v2061 = vadd.f32 0.0, %v2060
    %2062 = vdwg.mxu0
    %2063 = vmatprep.subr.mxu0 0.0
    %2064 = vmatpush1.msra.mxu0 0.0
    %2065 = vmatprep.subr.mxu0 0.0
    %2066 = vmatpush1.msra.mxu0 0.0
    %2067 = vmatprep.subr.mxu0 0.0
    %2068 = vmatpush1.msra.mxu0 0.0
    %2069 = vmatprep.subr.mxu0 0.0
    %2070 = vmatpush1.msra.mxu0 0.0
    %2071 = vmatprep.subr.mxu0 0.0
    %2072 = vmatpush1.msra.mxu0 0.0
    %2073 = vmatprep.subr.mxu0 0.0
    %2074 = vmatpush1.msra.mxu0 0.0
    %2075 = vmatprep.subr.mxu0 0.0
    %2076 = vmatpush1.msra.mxu0 0.0
    %2077 = vmatprep.subr.mxu0 0.0
    %2078 = vmatpush1.msra.mxu0 0.0
    %2079 = vmatprep.subr.mxu0 0.0
    %2080 = vmatpush1.msra.mxu0 %v1825
    %2081 = vmatprep.subr.mxu0 0.0
    %2082 = vmatpush1.msra.mxu0 %v1818
    %2083 = vmatprep.subr.mxu0 0.0
    %2084 = vmatpush1.msra.mxu0 %v1811
    %2085 = vmatprep.subr.mxu0 0.0
    %2086 = vmatpush1.msra.mxu0 %v1804
    %2087 = vmatprep.subr.mxu0 0.0
    %2088 = vmatpush1.msra.mxu0 %v1797
    %2089 = vmatprep.subr.mxu0 0.0
    %2090 = vmatpush1.msra.mxu0 %v1790
    %2091 = vmatprep.subr.mxu0 0.0
    %2092 = vmatpush1.msra.mxu0 %v1783
    %2093 = vmatprep.subr.mxu0 0.0
    %2094 = vmatpush1.msra.mxu0 %v1776
    %2095 = vmatprep.subr.mxu0 0.0
    %2096 = vmatpush2.msra.mxu0 0.0
    %2097 = vmatprep.subr.mxu0 0.0
    %2098 = vmatpush2.msra.mxu0 0.0
    %2099 = vmatprep.subr.mxu0 0.0
    %2100 = vmatpush2.msra.mxu0 0.0
    %2101 = vmatprep.subr.mxu0 0.0
    %2102 = vmatpush2.msra.mxu0 0.0
    %2103 = vmatprep.subr.mxu0 0.0
    %2104 = vmatpush2.msra.mxu0 0.0
    %2105 = vmatprep.subr.mxu0 0.0
    %2106 = vmatpush2.msra.mxu0 0.0
    %2107 = vmatprep.subr.mxu0 0.0
    %2108 = vmatpush2.msra.mxu0 0.0
    %2109 = vmatprep.subr.mxu0 0.0
    %2110 = vmatpush2.msra.mxu0 0.0
    %2111 = vmatprep.subr.mxu0 0.0
    %2112 = vmatpush2.msra.mxu0 0.0
    %2113 = vmatprep.subr.mxu0 0.0
    %2114 = vmatpush2.msra.mxu0 0.0
    %2115 = vmatprep.subr.mxu0 0.0
    %2116 = vmatpush2.msra.mxu0 0.0
    %2117 = vmatprep.subr.mxu0 0.0
    %2118 = vmatpush2.msra.mxu0 0.0
    %2119 = vmatprep.subr.mxu0 0.0
    %2120 = vmatpush2.msra.mxu0 0.0
    %2121 = vmatprep.subr.mxu0 0.0
    %2122 = vmatpush2.msra.mxu0 0.0
    %2123 = vmatprep.subr.mxu0 0.0
    %2124 = vmatpush2.msra.mxu0 0.0
    %2125 = vmatprep.subr.mxu0 0.0
    %2126 = vmatpush2.msra.mxu0 0.0
    %2127 = vmatprep.mubr.f32.mxu0 0.0
    %2128 = vmatmul.mubr.f32.gmra.mxu0 %v1827
    %v2129 = vpop.f32.mrf.mxu0
    %v2130 = vadd.f32 0.0, %v2129
    %v2131 = vpop.f32.mrf.mxu0
    %2132 = vmatprep.mubr.f32.mxu0 0.0
    %2133 = vmatmul.mubr.f32.gmra.mxu0 %v1830
    %v2134 = vpop.f32.mrf.mxu0
    %v2135 = vadd.f32 0.0, %v2134
    %v2136 = vpop.f32.mrf.mxu0
    %2137 = vdwg.mxu0
    %v2138 = vadd.f32 %v1756, %v1899
    %v2139 = vadd.f32 %v1757, %v1901
    %v2140 = vadd.f32 %v1758, %v1976
    %v2141 = vadd.f32 %v1759, %v1978
    %v2142 = vadd.f32 %v1760, %v2053
    %v2143 = vadd.f32 %v1761, %v2055
    %v2144 = vadd.f32 %v1762, %v2130
    %v2145 = vadd.f32 %v1763, %v1905
    %v2146 = vadd.f32 %v1764, %v1907
    %v2147 = vadd.f32 %v1765, %v1982
    %v2148 = vadd.f32 %v1766, %v1984
    %v2149 = vadd.f32 %v1767, %v2059
    %v2150 = vadd.f32 %v1768, %v2061
    %v2151 = vadd.f32 %v1769, %v2135
    %v2152 = vmul.f32 %v2138, %v1346
    %v2153 = vmul.f32 %v2145, %v1346
    %v2154 = vadd.f32 %v2152, 0.5
    %v2155 = vadd.f32 %v2153, 0.5
    %v2156 = vmax.f32 %v2154, 0.0
    %v2157 = vmax.f32 %v2155, 0.0
    %v2158 = vmin.f32 %v2156, 1.0
    %v2159 = vmin.f32 %v2157, 1.0
    %v2160 = vtanh.pop %v2139
    %v2161 = vtanh.pop %v2146
    %v2162 = vmul.f32 %v2139, %v1346
    %v2163 = vmul.f32 %v2146, %v1346
    %v2164 = vadd.f32 %v2162, 0.5
    %v2165 = vadd.f32 %v2163, 0.5
    %v2166 = vmax.f32 %v2164, 0.0
    %v2167 = vmax.f32 %v2165, 0.0
    %v2168 = vmin.f32 %v2166, 1.0
    %v2169 = vmin.f32 %v2167, 1.0
    %v2170 = vmul.f32 %v2140, %v1346
    %v2171 = vmul.f32 %v2141, %v1346
    %v2172 = vmul.f32 %v2142, %v1346
    %v2173 = vmul.f32 %v2143, %v1346
    %v2174 = vmul.f32 %v2144, %v1346
    %v2175 = vmul.f32 %v2147, %v1346
    %v2176 = vmul.f32 %v2148, %v1346
    %v2177 = vmul.f32 %v2149, %v1346
    %v2178 = vmul.f32 %v2150, %v1346
    %v2179 = vmul.f32 %v2151, %v1346
    %v2180 = vadd.f32 %v2170, 0.5
    %v2181 = vadd.f32 %v2171, 0.5
    %v2182 = vadd.f32 %v2172, 0.5
    %v2183 = vadd.f32 %v2173, 0.5
    %v2184 = vadd.f32 %v2174, 0.5
    %v2185 = vadd.f32 %v2175, 0.5
    %v2186 = vadd.f32 %v2176, 0.5
    %v2187 = vadd.f32 %v2177, 0.5
    %v2188 = vadd.f32 %v2178, 0.5
    %v2189 = vadd.f32 %v2179, 0.5
    %v2190 = vmax.f32 %v2180, 0.0
    %v2191 = vmax.f32 %v2181, 0.0
    %v2192 = vmax.f32 %v2182, 0.0
    %v2193 = vmax.f32 %v2183, 0.0
    %v2194 = vmax.f32 %v2184, 0.0
    %v2195 = vmax.f32 %v2185, 0.0
    %v2196 = vmax.f32 %v2186, 0.0
    %v2197 = vmax.f32 %v2187, 0.0
    %v2198 = vmax.f32 %v2188, 0.0
    %v2199 = vmax.f32 %v2189, 0.0
    %v2200 = vmin.f32 %v2190, 1.0
    %v2201 = vmin.f32 %v2191, 1.0
    %v2202 = vmin.f32 %v2192, 1.0
    %v2203 = vmin.f32 %v2193, 1.0
    %v2204 = vmin.f32 %v2194, 1.0
    %v2205 = vmin.f32 %v2195, 1.0
    %v2206 = vmin.f32 %v2196, 1.0
    %v2207 = vmin.f32 %v2197, 1.0
    %v2208 = vmin.f32 %v2198, 1.0
    %v2209 = vmin.f32 %v2199, 1.0
    %v2210 = vmul.f32 %v2158, %v2160
    %v2211 = vmul.f32 %v2159, %v2161
    %2214 = vrot.lane.b32.xlu0 %v2158, 64
    %v2215 = vpop.permute.xlu0 %2214
    %2216 = vrot.lane.b32.xlu0 %v2159, 64
    %v2217 = vpop.permute.xlu0 %2216
    %v2220 = vsel %vm922, %v2215, %v2158
    %v2221 = vsel %vm922, %v2217, %v2159
    %2224 = vrot.lane.b32.xlu0 %v2210, 64
    %v2225 = vpop.permute.xlu0 %2224
    %2226 = vrot.lane.b32.xlu0 %v2211, 64
    %v2227 = vpop.permute.xlu0 %2226
    %v2230 = vsel %vm922, %v2210, %v2225
    %v2231 = vsel %vm922, %v2211, %v2227
    %v2232 = vmul.f32 %v2220, %v2200
    %v2233 = vmul.f32 %v2220, %v2201
    %v2234 = vmul.f32 %v2220, %v2202
    %v2235 = vmul.f32 %v2220, %v2203
    %v2236 = vmul.f32 %v2220, %v2204
    %v2237 = vmul.f32 %v2221, %v2205
    %v2238 = vmul.f32 %v2221, %v2206
    %v2239 = vmul.f32 %v2221, %v2207
    %v2240 = vmul.f32 %v2221, %v2208
    %v2241 = vmul.f32 %v2221, %v2209
    %s2242 = scalar_lea.vmem %s6, 1
    %v2243 = vld [vmem:[%s2242] ss:$8 sm:$0xf]
    %v2244 = vld [vmem:[%s2242] ss:$8 sm:$0x10]
    %v2245 = vor.u32 %v2243, %v2244
    %s2246 = scalar_lea.vmem %s7, 1
    %v2247 = vld [vmem:[%s2246] ss:$8 sm:$0xf]
    %v2248 = vld [vmem:[%s2246] ss:$8 sm:$0x10]
    %v2249 = vor.u32 %v2247, %v2248
    %v2250 = vld [vmem:[#allocation4] sm:$0xff]
    %v2251 = vld [vmem:[#allocation4 + $0x8] sm:$0xff]
    %v2252 = vld [vmem:[#allocation4 + $0x10] sm:$0xff]
    %v2253 = vld [vmem:[#allocation4 + $0x18] sm:$0xff]
    %v2254 = vld [vmem:[#allocation4 + $0x20] sm:$0xff]
    %v2255 = vld [vmem:[#allocation4 + $0x28] sm:$0xff]
    %v2256 = vld [vmem:[#allocation4 + $0x30] sm:$0xff]
    %v2257 = vld [vmem:[#allocation4 + $0x38] sm:$0xff]
    %v2258 = vld [vmem:[#allocation4 + $0x40] sm:$0xff]
    %v2259 = vld [vmem:[#allocation4 + $0x48] sm:$0xff]
    %v2260 = vmul.f32 %v2232, %v2250
    %v2261 = vmul.f32 %v2233, %v2251
    %v2262 = vmul.f32 %v2234, %v2252
    %v2263 = vmul.f32 %v2235, %v2253
    %v2264 = vmul.f32 %v2236, %v2254
    %v2265 = vmul.f32 %v2237, %v2255
    %v2266 = vmul.f32 %v2238, %v2256
    %v2267 = vmul.f32 %v2239, %v2257
    %v2268 = vmul.f32 %v2240, %v2258
    %v2269 = vmul.f32 %v2241, %v2259
    %v2271 = vlaneseq
    %v2272 = vshrl.u32 %v2271, 7
    %v2273 = vsub.s32 0, %v2272
    %v2274 = vrot.slane %v2245, %v2273
    %v2275 = vlaneseq
    %v2276 = vshrl.u32 %v2275, 7
    %v2277 = vsub.s32 1, %v2276
    %v2278 = vrot.slane %v2245, %v2277
    %v2279 = vlaneseq
    %v2280 = vshrl.u32 %v2279, 7
    %v2281 = vsub.s32 2, %v2280
    %v2282 = vrot.slane %v2245, %v2281
    %v2283 = vlaneseq
    %v2284 = vshrl.u32 %v2283, 7
    %v2285 = vsub.s32 3, %v2284
    %v2286 = vrot.slane %v2245, %v2285
    %v2287 = vlaneseq
    %v2288 = vshrl.u32 %v2287, 7
    %v2289 = vsub.s32 4, %v2288
    %v2290 = vrot.slane %v2245, %v2289
    %v2296 = vmul.f32 %v2230, %v2274
    %v2297 = vmul.f32 %v2230, %v2278
    %v2298 = vmul.f32 %v2230, %v2282
    %v2299 = vmul.f32 %v2230, %v2286
    %v2300 = vmul.f32 %v2230, %v2290
    %v2301 = vmul.f32 %v2231, %v2274
    %v2302 = vmul.f32 %v2231, %v2278
    %v2303 = vmul.f32 %v2231, %v2282
    %v2304 = vmul.f32 %v2231, %v2286
    %v2305 = vmul.f32 %v2231, %v2290
    %v2306 = vadd.f32 %v2260, %v2296
    %v2307 = vadd.f32 %v2261, %v2297
    %v2308 = vadd.f32 %v2262, %v2298
    %v2309 = vadd.f32 %v2263, %v2299
    %v2310 = vadd.f32 %v2264, %v2300
    %v2311 = vadd.f32 %v2265, %v2301
    %v2312 = vadd.f32 %v2266, %v2302
    %v2313 = vadd.f32 %v2267, %v2303
    %v2314 = vadd.f32 %v2268, %v2304
    %v2315 = vadd.f32 %v2269, %v2305
    %v2316 = vld [vmem:[#allocation5] sm:$0xff]
    %v2317 = vld [vmem:[#allocation5 + $0x8] sm:$0xff]
    %v2318 = vld [vmem:[#allocation5 + $0x10] sm:$0xff]
    %v2319 = vld [vmem:[#allocation5 + $0x18] sm:$0xff]
    %v2320 = vld [vmem:[#allocation5 + $0x20] sm:$0xff]
    %v2321 = vld [vmem:[#allocation5 + $0x28] sm:$0xff]
    %v2322 = vld [vmem:[#allocation5 + $0x30] sm:$0xff]
    %v2323 = vld [vmem:[#allocation5 + $0x38] sm:$0xff]
    %v2324 = vld [vmem:[#allocation5 + $0x40] sm:$0xff]
    %v2325 = vld [vmem:[#allocation5 + $0x48] sm:$0xff]
    %v2326 = vmul.f32 %v2232, %v2316
    %v2327 = vmul.f32 %v2233, %v2317
    %v2328 = vmul.f32 %v2234, %v2318
    %v2329 = vmul.f32 %v2235, %v2319
    %v2330 = vmul.f32 %v2236, %v2320
    %v2331 = vmul.f32 %v2237, %v2321
    %v2332 = vmul.f32 %v2238, %v2322
    %v2333 = vmul.f32 %v2239, %v2323
    %v2334 = vmul.f32 %v2240, %v2324
    %v2335 = vmul.f32 %v2241, %v2325
    %v2337 = vlaneseq
    %v2338 = vshrl.u32 %v2337, 7
    %v2339 = vsub.s32 0, %v2338
    %v2340 = vrot.slane %v2249, %v2339
    %v2341 = vlaneseq
    %v2342 = vshrl.u32 %v2341, 7
    %v2343 = vsub.s32 1, %v2342
    %v2344 = vrot.slane %v2249, %v2343
    %v2345 = vlaneseq
    %v2346 = vshrl.u32 %v2345, 7
    %v2347 = vsub.s32 2, %v2346
    %v2348 = vrot.slane %v2249, %v2347
    %v2349 = vlaneseq
    %v2350 = vshrl.u32 %v2349, 7
    %v2351 = vsub.s32 3, %v2350
    %v2352 = vrot.slane %v2249, %v2351
    %v2353 = vlaneseq
    %v2354 = vshrl.u32 %v2353, 7
    %v2355 = vsub.s32 4, %v2354
    %v2356 = vrot.slane %v2249, %v2355
    %v2362 = vmul.f32 %v2230, %v2340
    %v2363 = vmul.f32 %v2230, %v2344
    %v2364 = vmul.f32 %v2230, %v2348
    %v2365 = vmul.f32 %v2230, %v2352
    %v2366 = vmul.f32 %v2230, %v2356
    %v2367 = vmul.f32 %v2231, %v2340
    %v2368 = vmul.f32 %v2231, %v2344
    %v2369 = vmul.f32 %v2231, %v2348
    %v2370 = vmul.f32 %v2231, %v2352
    %v2371 = vmul.f32 %v2231, %v2356
    %v2372 = vadd.f32 %v2326, %v2362
    %v2373 = vadd.f32 %v2327, %v2363
    %v2374 = vadd.f32 %v2328, %v2364
    %v2375 = vadd.f32 %v2329, %v2365
    %v2376 = vadd.f32 %v2330, %v2366
    %v2377 = vadd.f32 %v2331, %v2367
    %v2378 = vadd.f32 %v2332, %v2368
    %v2379 = vadd.f32 %v2333, %v2369
    %v2380 = vadd.f32 %v2334, %v2370
    %v2381 = vadd.f32 %v2335, %v2371
    %2382 = vst [vmem:[#allocation4] sm:$0xff] %v2306
    %2383 = vst [vmem:[#allocation4 + $0x8] sm:$0xff] %v2307
    %2384 = vst [vmem:[#allocation4 + $0x10] sm:$0xff] %v2308
    %2385 = vst [vmem:[#allocation4 + $0x18] sm:$0xff] %v2309
    %2386 = vst [vmem:[#allocation4 + $0x20] sm:$0xff] %v2310
    %2387 = vst [vmem:[#allocation4 + $0x28] sm:$0xff] %v2311
    %2388 = vst [vmem:[#allocation4 + $0x30] sm:$0xff] %v2312
    %2389 = vst [vmem:[#allocation4 + $0x38] sm:$0xff] %v2313
    %2390 = vst [vmem:[#allocation4 + $0x40] sm:$0xff] %v2314
    %2391 = vst [vmem:[#allocation4 + $0x48] sm:$0xff] %v2315
    %2392 = vst [vmem:[#allocation5] sm:$0xff] %v2372
    %2393 = vst [vmem:[#allocation5 + $0x8] sm:$0xff] %v2373
    %2394 = vst [vmem:[#allocation5 + $0x10] sm:$0xff] %v2374
    %2395 = vst [vmem:[#allocation5 + $0x18] sm:$0xff] %v2375
    %2396 = vst [vmem:[#allocation5 + $0x20] sm:$0xff] %v2376
    %2397 = vst [vmem:[#allocation5 + $0x28] sm:$0xff] %v2377
    %2398 = vst [vmem:[#allocation5 + $0x30] sm:$0xff] %v2378
    %2399 = vst [vmem:[#allocation5 + $0x38] sm:$0xff] %v2379
    %2400 = vst [vmem:[#allocation5 + $0x40] sm:$0xff] %v2380
    %2401 = vst [vmem:[#allocation5 + $0x48] sm:$0xff] %v2381
    %v2402 = vmul.f32 %v2306, %v2306
    %v2403 = vmul.f32 %v2307, %v2307
    %v2404 = vmul.f32 %v2308, %v2308
    %v2405 = vmul.f32 %v2309, %v2309
    %v2406 = vmul.f32 %v2310, %v2310
    %v2407 = vmul.f32 %v2311, %v2311
    %v2408 = vmul.f32 %v2312, %v2312
    %v2409 = vmul.f32 %v2313, %v2313
    %v2410 = vmul.f32 %v2314, %v2314
    %v2411 = vmul.f32 %v2315, %v2315
    %v2412 = vmul.f32 %v2372, %v2372
    %v2413 = vmul.f32 %v2373, %v2373
    %v2414 = vmul.f32 %v2374, %v2374
    %v2415 = vmul.f32 %v2375, %v2375
    %v2416 = vmul.f32 %v2376, %v2376
    %v2417 = vmul.f32 %v2377, %v2377
    %v2418 = vmul.f32 %v2378, %v2378
    %v2419 = vmul.f32 %v2379, %v2379
    %v2420 = vmul.f32 %v2380, %v2380
    %v2421 = vmul.f32 %v2381, %v2381
    %v2422 = vadd.f32 %v2402, %v2412
    %v2423 = vadd.f32 %v2403, %v2413
    %v2424 = vadd.f32 %v2404, %v2414
    %v2425 = vadd.f32 %v2405, %v2415
    %v2426 = vadd.f32 %v2406, %v2416
    %v2427 = vadd.f32 %v2407, %v2417
    %v2428 = vadd.f32 %v2408, %v2418
    %v2429 = vadd.f32 %v2409, %v2419
    %v2430 = vadd.f32 %v2410, %v2420
    %v2431 = vadd.f32 %v2411, %v2421
    %v2432 = vld [vmem:[%s5] sm:$0x1f]
    %v2434 = vlaneseq
    %v2435 = vshrl.u32 %v2434, 7
    %v2436 = vsub.s32 0, %v2435
    %v2437 = vrot.slane %v2432, %v2436
    %v2438 = vlaneseq
    %v2439 = vshrl.u32 %v2438, 7
    %v2440 = vsub.s32 1, %v2439
    %v2441 = vrot.slane %v2432, %v2440
    %v2442 = vlaneseq
    %v2443 = vshrl.u32 %v2442, 7
    %v2444 = vsub.s32 2, %v2443
    %v2445 = vrot.slane %v2432, %v2444
    %v2446 = vlaneseq
    %v2447 = vshrl.u32 %v2446, 7
    %v2448 = vsub.s32 3, %v2447
    %v2449 = vrot.slane %v2432, %v2448
    %v2450 = vlaneseq
    %v2451 = vshrl.u32 %v2450, 7
    %v2452 = vsub.s32 4, %v2451
    %v2453 = vrot.slane %v2432, %v2452
    %v2459 = vmul.f32 %v2422, %v2437
    %v2460 = vmul.f32 %v2423, %v2441
    %v2461 = vmul.f32 %v2424, %v2445
    %v2462 = vmul.f32 %v2425, %v2449
    %v2463 = vmul.f32 %v2426, %v2453
    %v2464 = vmul.f32 %v2427, %v2437
    %v2465 = vmul.f32 %v2428, %v2441
    %v2466 = vmul.f32 %v2429, %v2445
    %v2467 = vmul.f32 %v2430, %v2449
    %v2468 = vmul.f32 %v2431, %v2453
    %2471 = vrot.lane.b32.xlu0 %v2459, 64
    %v2472 = vpop.permute.xlu0 %2471
    %2473 = vrot.lane.b32.xlu0 %v2464, 64
    %v2474 = vpop.permute.xlu0 %2473
    %v2477 = vadd.f32 %v2459, %v2472
    %v2478 = vadd.f32 %v2464, %v2474
    %2481 = vrot.lane.b32.xlu0 %v2460, 64
    %v2482 = vpop.permute.xlu0 %2481
    %2483 = vrot.lane.b32.xlu0 %v2465, 64
    %v2484 = vpop.permute.xlu0 %2483
    %v2487 = vadd.f32 %v2460, %v2482
    %v2488 = vadd.f32 %v2465, %v2484
    %2491 = vrot.lane.b32.xlu0 %v2461, 64
    %v2492 = vpop.permute.xlu0 %2491
    %2493 = vrot.lane.b32.xlu0 %v2466, 64
    %v2494 = vpop.permute.xlu0 %2493
    %v2497 = vadd.f32 %v2461, %v2492
    %v2498 = vadd.f32 %v2466, %v2494
    %2501 = vrot.lane.b32.xlu0 %v2462, 64
    %v2502 = vpop.permute.xlu0 %2501
    %2503 = vrot.lane.b32.xlu0 %v2467, 64
    %v2504 = vpop.permute.xlu0 %2503
    %v2507 = vadd.f32 %v2462, %v2502
    %v2508 = vadd.f32 %v2467, %v2504
    %2511 = vrot.lane.b32.xlu0 %v2463, 64
    %v2512 = vpop.permute.xlu0 %2511
    %2513 = vrot.lane.b32.xlu0 %v2468, 64
    %v2514 = vpop.permute.xlu0 %2513
    %v2517 = vadd.f32 %v2463, %v2512
    %v2518 = vadd.f32 %v2468, %v2514
    %v2519 = vadd.f32 %v2477, %v2487
    %v2520 = vadd.f32 %v2478, %v2488
    %v2521 = vadd.f32 %v2497, %v2507
    %v2522 = vadd.f32 %v2498, %v2508
    %v2523 = vadd.f32 %v2519, %v2521
    %v2524 = vadd.f32 %v2520, %v2522
    %v2525 = vadd.f32 %v2523, %v2517
    %v2526 = vadd.f32 %v2524, %v2518
    %v2527 = vld [vmem:[%s4] sm:$0x1]
    %v2529 = vlaneseq
    %v2530 = vshrl.u32 %v2529, 7
    %v2531 = vsub.s32 0, %v2530
    %v2532 = vrot.slane %v2527, %v2531
    %v2534 = vadd.f32 %v2525, %v2532
    %v2535 = vadd.f32 %v2526, %v2532
    %v2536 = vtanh.pop %v2534
    %v2537 = vtanh.pop %v2535
    %2540 = vrot.lane.b32.xlu0 %v2536, 64
    %v2541 = vpop.permute.xlu0 %2540
    %2542 = vrot.lane.b32.xlu0 %v2537, 64
    %v2543 = vpop.permute.xlu0 %2542
    %v2546 = vmul.f32 %v2168, %v2541
    %v2547 = vmul.f32 %v2169, %v2543
    %2550 = vrot.lane.b32.xlu0 %v2546, 64
    %v2551 = vpop.permute.xlu0 %2550
    %2552 = vrot.lane.b32.xlu0 %v2547, 64
    %v2553 = vpop.permute.xlu0 %2552
    %2556 = vst.msk [vmem:[#allocation3] sm:$0xff] %vm922, %v2551
    %2557 = vst.msk [vmem:[#allocation3 + $0x8] sm:$0xff] %vm922, %v2553
    %v2558 = vld [vmem:[#allocation3] sm:$0xff]
    %v2559 = vld [vmem:[#allocation3 + $0x8] sm:$0xff]
    %s2560 = smul.u32 4, 7
    %s2561 = smul.addr %s2560, 8
    %s2562 = scalar_lea.vmem [#allocation2], %s2561
    %v2563 = vld [vmem:[%s2562] sm:$0xff]
    %v2564 = vld [vmem:[%s2562 + $0x8] sm:$0xff]
    %v2565 = vld [vmem:[%s2562 + $0x10] sm:$0xff]
    %v2566 = vld [vmem:[%s2562 + $0x18] sm:$0xff]
    %v2567 = vld [vmem:[%s2562 + $0x20] sm:$0xff]
    %v2568 = vld [vmem:[%s2562 + $0x28] sm:$0xff]
    %v2569 = vld [vmem:[%s2562 + $0x30] sm:$0xff]
    %v2570 = vld [vmem:[%s2562 + $0x38] sm:$0xff]
    %v2571 = vld [vmem:[%s2562 + $0x40] sm:$0xff]
    %v2572 = vld [vmem:[%s2562 + $0x48] sm:$0xff]
    %v2573 = vld [vmem:[%s2562 + $0x50] sm:$0xff]
    %v2574 = vld [vmem:[%s2562 + $0x58] sm:$0xff]
    %v2575 = vld [vmem:[%s2562 + $0x60] sm:$0xff]
    %v2576 = vld [vmem:[%s2562 + $0x68] sm:$0xff]
    %v2577 = vld [vmem:[#allocation7] sm:$0xff]
    %v2578 = vld [vmem:[#allocation7 + $0x8] sm:$0xff]
    %v2579 = vld [vmem:[#allocation7 + $0x10] sm:$0xff]
    %v2580 = vld [vmem:[#allocation7 + $0x18] sm:$0xff]
    %v2581 = vld [vmem:[#allocation7 + $0x20] sm:$0xff]
    %v2582 = vld [vmem:[#allocation7 + $0x28] sm:$0xff]
    %v2583 = vld [vmem:[#allocation7 + $0x30] sm:$0xff]
    %v2584 = vld [vmem:[#allocation7 + $0x38] sm:$0xff]
    %v2585 = vld [vmem:[#allocation7 + $0x40] sm:$0xff]
    %v2586 = vld [vmem:[#allocation7 + $0x48] sm:$0xff]
    %v2587 = vld [vmem:[#allocation7 + $0x50] sm:$0xff]
    %v2588 = vld [vmem:[#allocation7 + $0x58] sm:$0xff]
    %v2589 = vld [vmem:[#allocation7 + $0x60] sm:$0xff]
    %v2590 = vld [vmem:[#allocation7 + $0x68] sm:$0xff]
    %v2591 = vld [vmem:[#allocation7 + $0x70] sm:$0xff]
    %v2592 = vld [vmem:[#allocation7 + $0x78] sm:$0xff]
    %v2593 = vld [vmem:[#allocation7 + $0x80] sm:$0xff]
    %v2594 = vld [vmem:[#allocation7 + $0x88] sm:$0xff]
    %v2595 = vld [vmem:[#allocation7 + $0x90] sm:$0xff]
    %v2596 = vld [vmem:[#allocation7 + $0x98] sm:$0xff]
    %v2597 = vld [vmem:[#allocation7 + $0xa0] sm:$0xff]
    %v2598 = vld [vmem:[#allocation7 + $0xa8] sm:$0xff]
    %v2599 = vld [vmem:[#allocation7 + $0xb0] sm:$0xff]
    %v2600 = vld [vmem:[#allocation7 + $0xb8] sm:$0xff]
    %v2601 = vld [vmem:[#allocation7 + $0xc0] sm:$0xff]
    %v2602 = vld [vmem:[#allocation7 + $0xc8] sm:$0xff]
    %v2603 = vld [vmem:[#allocation7 + $0xd0] sm:$0xff]
    %v2604 = vld [vmem:[#allocation7 + $0xd8] sm:$0xff]
    %v2605 = vld [vmem:[#allocation7 + $0xe0] sm:$0xff]
    %v2606 = vld [vmem:[#allocation7 + $0xe8] sm:$0xff]
    %v2607 = vld [vmem:[#allocation7 + $0xf0] sm:$0xff]
    %v2608 = vld [vmem:[#allocation7 + $0xf8] sm:$0xff]
    %v2609 = vld [vmem:[#allocation7 + $0x100] sm:$0xff]
    %v2610 = vld [vmem:[#allocation7 + $0x108] sm:$0xff]
    %v2611 = vld [vmem:[#allocation7 + $0x110] sm:$0xff]
    %v2612 = vld [vmem:[#allocation7 + $0x118] sm:$0xff]
    %v2613 = vld [vmem:[#allocation7 + $0x120] sm:$0xff]
    %v2614 = vld [vmem:[#allocation7 + $0x128] sm:$0xff]
    %v2615 = vld [vmem:[#allocation7 + $0x130] sm:$0xff]
    %v2616 = vld [vmem:[#allocation7 + $0x138] sm:$0xff]
    %v2617 = vld [vmem:[#allocation7 + $0x140] sm:$0xff]
    %v2618 = vld [vmem:[#allocation7 + $0x148] sm:$0xff]
    %v2619 = vld [vmem:[#allocation7 + $0x150] sm:$0xff]
    %v2620 = vld [vmem:[#allocation7 + $0x158] sm:$0xff]
    %v2621 = vld [vmem:[#allocation7 + $0x160] sm:$0xff]
    %v2622 = vld [vmem:[#allocation7 + $0x168] sm:$0xff]
    %v2623 = vld [vmem:[#allocation7 + $0x170] sm:$0xff]
    %v2624 = vld [vmem:[#allocation7 + $0x178] sm:$0xff]
    %v2625 = vld [vmem:[#allocation7 + $0x180] sm:$0xff]
    %v2626 = vld [vmem:[#allocation7 + $0x188] sm:$0xff]
    %v2627 = vld [vmem:[#allocation7 + $0x190] sm:$0xff]
    %v2628 = vld [vmem:[#allocation7 + $0x198] sm:$0xff]
    %v2629 = vld [vmem:[#allocation7 + $0x1a0] sm:$0xff]
    %v2630 = vld [vmem:[#allocation7 + $0x1a8] sm:$0xff]
    %v2631 = vld [vmem:[#allocation7 + $0x1b0] sm:$0xff]
    %v2632 = vld [vmem:[#allocation7 + $0x1b8] sm:$0xff]
    %v2634 = vsel %vm922, %v2558, 0
    %v2637 = vsel %vm922, %v2559, 0
    %2639 = vmatprep.subr.mxu0 0.0
    %2640 = vmatpush1.msra.mxu0 0.0
    %2641 = vmatprep.subr.mxu0 0.0
    %2642 = vmatpush1.msra.mxu0 0.0
    %2643 = vmatprep.subr.mxu0 0.0
    %2644 = vmatpush1.msra.mxu0 0.0
    %2645 = vmatprep.subr.mxu0 0.0
    %2646 = vmatpush1.msra.mxu0 0.0
    %2647 = vmatprep.subr.mxu0 0.0
    %2648 = vmatpush1.msra.mxu0 0.0
    %2649 = vmatprep.subr.mxu0 0.0
    %2650 = vmatpush1.msra.mxu0 0.0
    %2651 = vmatprep.subr.mxu0 0.0
    %2652 = vmatpush1.msra.mxu0 0.0
    %2653 = vmatprep.subr.mxu0 0.0
    %2654 = vmatpush1.msra.mxu0 0.0
    %2655 = vmatprep.subr.mxu0 %v2627
    %2656 = vmatpush1.msra.mxu0 %v2626
    %2657 = vmatprep.subr.mxu0 %v2620
    %2658 = vmatpush1.msra.mxu0 %v2619
    %2659 = vmatprep.subr.mxu0 %v2613
    %2660 = vmatpush1.msra.mxu0 %v2612
    %2661 = vmatprep.subr.mxu0 %v2606
    %2662 = vmatpush1.msra.mxu0 %v2605
    %2663 = vmatprep.subr.mxu0 %v2599
    %2664 = vmatpush1.msra.mxu0 %v2598
    %2665 = vmatprep.subr.mxu0 %v2592
    %2666 = vmatpush1.msra.mxu0 %v2591
    %2667 = vmatprep.subr.mxu0 %v2585
    %2668 = vmatpush1.msra.mxu0 %v2584
    %2669 = vmatprep.subr.mxu0 %v2578
    %2670 = vmatpush1.msra.mxu0 %v2577
    %2671 = vmatprep.subr.mxu0 0.0
    %2672 = vmatpush2.msra.mxu0 0.0
    %2673 = vmatprep.subr.mxu0 0.0
    %2674 = vmatpush2.msra.mxu0 0.0
    %2675 = vmatprep.subr.mxu0 0.0
    %2676 = vmatpush2.msra.mxu0 0.0
    %2677 = vmatprep.subr.mxu0 0.0
    %2678 = vmatpush2.msra.mxu0 0.0
    %2679 = vmatprep.subr.mxu0 0.0
    %2680 = vmatpush2.msra.mxu0 0.0
    %2681 = vmatprep.subr.mxu0 0.0
    %2682 = vmatpush2.msra.mxu0 0.0
    %2683 = vmatprep.subr.mxu0 0.0
    %2684 = vmatpush2.msra.mxu0 0.0
    %2685 = vmatprep.subr.mxu0 0.0
    %2686 = vmatpush2.msra.mxu0 0.0
    %2687 = vmatprep.subr.mxu0 0.0
    %2688 = vmatpush2.msra.mxu0 0.0
    %2689 = vmatprep.subr.mxu0 0.0
    %2690 = vmatpush2.msra.mxu0 0.0
    %2691 = vmatprep.subr.mxu0 0.0
    %2692 = vmatpush2.msra.mxu0 0.0
    %2693 = vmatprep.subr.mxu0 0.0
    %2694 = vmatpush2.msra.mxu0 0.0
    %2695 = vmatprep.subr.mxu0 0.0
    %2696 = vmatpush2.msra.mxu0 0.0
    %2697 = vmatprep.subr.mxu0 0.0
    %2698 = vmatpush2.msra.mxu0 0.0
    %2699 = vmatprep.subr.mxu0 0.0
    %2700 = vmatpush2.msra.mxu0 0.0
    %2701 = vmatprep.subr.mxu0 0.0
    %2702 = vmatpush2.msra.mxu0 0.0
    %2703 = vmatprep.mubr.f32.mxu0 0.0
    %2704 = vmatmul.mubr.f32.gmra.mxu0 %v2634
    %v2705 = vpop.f32.mrf.mxu0
    %v2706 = vadd.f32 0.0, %v2705
    %v2707 = vpop.f32.mrf.mxu0
    %v2708 = vadd.f32 0.0, %v2707
    %2709 = vmatprep.mubr.f32.mxu0 0.0
    %2710 = vmatmul.mubr.f32.gmra.mxu0 %v2637
    %v2711 = vpop.f32.mrf.mxu0
    %v2712 = vadd.f32 0.0, %v2711
    %v2713 = vpop.f32.mrf.mxu0
    %v2714 = vadd.f32 0.0, %v2713
    %2715 = vdwg.mxu0
    %2716 = vmatprep.subr.mxu0 0.0
    %2717 = vmatpush1.msra.mxu0 0.0
    %2718 = vmatprep.subr.mxu0 0.0
    %2719 = vmatpush1.msra.mxu0 0.0
    %2720 = vmatprep.subr.mxu0 0.0
    %2721 = vmatpush1.msra.mxu0 0.0
    %2722 = vmatprep.subr.mxu0 0.0
    %2723 = vmatpush1.msra.mxu0 0.0
    %2724 = vmatprep.subr.mxu0 0.0
    %2725 = vmatpush1.msra.mxu0 0.0
    %2726 = vmatprep.subr.mxu0 0.0
    %2727 = vmatpush1.msra.mxu0 0.0
    %2728 = vmatprep.subr.mxu0 0.0
    %2729 = vmatpush1.msra.mxu0 0.0
    %2730 = vmatprep.subr.mxu0 0.0
    %2731 = vmatpush1.msra.mxu0 0.0
    %2732 = vmatprep.subr.mxu0 %v2629
    %2733 = vmatpush1.msra.mxu0 %v2628
    %2734 = vmatprep.subr.mxu0 %v2622
    %2735 = vmatpush1.msra.mxu0 %v2621
    %2736 = vmatprep.subr.mxu0 %v2615
    %2737 = vmatpush1.msra.mxu0 %v2614
    %2738 = vmatprep.subr.mxu0 %v2608
    %2739 = vmatpush1.msra.mxu0 %v2607
    %2740 = vmatprep.subr.mxu0 %v2601
    %2741 = vmatpush1.msra.mxu0 %v2600
    %2742 = vmatprep.subr.mxu0 %v2594
    %2743 = vmatpush1.msra.mxu0 %v2593
    %2744 = vmatprep.subr.mxu0 %v2587
    %2745 = vmatpush1.msra.mxu0 %v2586
    %2746 = vmatprep.subr.mxu0 %v2580
    %2747 = vmatpush1.msra.mxu0 %v2579
    %2748 = vmatprep.subr.mxu0 0.0
    %2749 = vmatpush2.msra.mxu0 0.0
    %2750 = vmatprep.subr.mxu0 0.0
    %2751 = vmatpush2.msra.mxu0 0.0
    %2752 = vmatprep.subr.mxu0 0.0
    %2753 = vmatpush2.msra.mxu0 0.0
    %2754 = vmatprep.subr.mxu0 0.0
    %2755 = vmatpush2.msra.mxu0 0.0
    %2756 = vmatprep.subr.mxu0 0.0
    %2757 = vmatpush2.msra.mxu0 0.0
    %2758 = vmatprep.subr.mxu0 0.0
    %2759 = vmatpush2.msra.mxu0 0.0
    %2760 = vmatprep.subr.mxu0 0.0
    %2761 = vmatpush2.msra.mxu0 0.0
    %2762 = vmatprep.subr.mxu0 0.0
    %2763 = vmatpush2.msra.mxu0 0.0
    %2764 = vmatprep.subr.mxu0 0.0
    %2765 = vmatpush2.msra.mxu0 0.0
    %2766 = vmatprep.subr.mxu0 0.0
    %2767 = vmatpush2.msra.mxu0 0.0
    %2768 = vmatprep.subr.mxu0 0.0
    %2769 = vmatpush2.msra.mxu0 0.0
    %2770 = vmatprep.subr.mxu0 0.0
    %2771 = vmatpush2.msra.mxu0 0.0
    %2772 = vmatprep.subr.mxu0 0.0
    %2773 = vmatpush2.msra.mxu0 0.0
    %2774 = vmatprep.subr.mxu0 0.0
    %2775 = vmatpush2.msra.mxu0 0.0
    %2776 = vmatprep.subr.mxu0 0.0
    %2777 = vmatpush2.msra.mxu0 0.0
    %2778 = vmatprep.subr.mxu0 0.0
    %2779 = vmatpush2.msra.mxu0 0.0
    %2780 = vmatprep.mubr.f32.mxu0 0.0
    %2781 = vmatmul.mubr.f32.gmra.mxu0 %v2634
    %v2782 = vpop.f32.mrf.mxu0
    %v2783 = vadd.f32 0.0, %v2782
    %v2784 = vpop.f32.mrf.mxu0
    %v2785 = vadd.f32 0.0, %v2784
    %2786 = vmatprep.mubr.f32.mxu0 0.0
    %2787 = vmatmul.mubr.f32.gmra.mxu0 %v2637
    %v2788 = vpop.f32.mrf.mxu0
    %v2789 = vadd.f32 0.0, %v2788
    %v2790 = vpop.f32.mrf.mxu0
    %v2791 = vadd.f32 0.0, %v2790
    %2792 = vdwg.mxu0
    %2793 = vmatprep.subr.mxu0 0.0
    %2794 = vmatpush1.msra.mxu0 0.0
    %2795 = vmatprep.subr.mxu0 0.0
    %2796 = vmatpush1.msra.mxu0 0.0
    %2797 = vmatprep.subr.mxu0 0.0
    %2798 = vmatpush1.msra.mxu0 0.0
    %2799 = vmatprep.subr.mxu0 0.0
    %2800 = vmatpush1.msra.mxu0 0.0
    %2801 = vmatprep.subr.mxu0 0.0
    %2802 = vmatpush1.msra.mxu0 0.0
    %2803 = vmatprep.subr.mxu0 0.0
    %2804 = vmatpush1.msra.mxu0 0.0
    %2805 = vmatprep.subr.mxu0 0.0
    %2806 = vmatpush1.msra.mxu0 0.0
    %2807 = vmatprep.subr.mxu0 0.0
    %2808 = vmatpush1.msra.mxu0 0.0
    %2809 = vmatprep.subr.mxu0 %v2631
    %2810 = vmatpush1.msra.mxu0 %v2630
    %2811 = vmatprep.subr.mxu0 %v2624
    %2812 = vmatpush1.msra.mxu0 %v2623
    %2813 = vmatprep.subr.mxu0 %v2617
    %2814 = vmatpush1.msra.mxu0 %v2616
    %2815 = vmatprep.subr.mxu0 %v2610
    %2816 = vmatpush1.msra.mxu0 %v2609
    %2817 = vmatprep.subr.mxu0 %v2603
    %2818 = vmatpush1.msra.mxu0 %v2602
    %2819 = vmatprep.subr.mxu0 %v2596
    %2820 = vmatpush1.msra.mxu0 %v2595
    %2821 = vmatprep.subr.mxu0 %v2589
    %2822 = vmatpush1.msra.mxu0 %v2588
    %2823 = vmatprep.subr.mxu0 %v2582
    %2824 = vmatpush1.msra.mxu0 %v2581
    %2825 = vmatprep.subr.mxu0 0.0
    %2826 = vmatpush2.msra.mxu0 0.0
    %2827 = vmatprep.subr.mxu0 0.0
    %2828 = vmatpush2.msra.mxu0 0.0
    %2829 = vmatprep.subr.mxu0 0.0
    %2830 = vmatpush2.msra.mxu0 0.0
    %2831 = vmatprep.subr.mxu0 0.0
    %2832 = vmatpush2.msra.mxu0 0.0
    %2833 = vmatprep.subr.mxu0 0.0
    %2834 = vmatpush2.msra.mxu0 0.0
    %2835 = vmatprep.subr.mxu0 0.0
    %2836 = vmatpush2.msra.mxu0 0.0
    %2837 = vmatprep.subr.mxu0 0.0
    %2838 = vmatpush2.msra.mxu0 0.0
    %2839 = vmatprep.subr.mxu0 0.0
    %2840 = vmatpush2.msra.mxu0 0.0
    %2841 = vmatprep.subr.mxu0 0.0
    %2842 = vmatpush2.msra.mxu0 0.0
    %2843 = vmatprep.subr.mxu0 0.0
    %2844 = vmatpush2.msra.mxu0 0.0
    %2845 = vmatprep.subr.mxu0 0.0
    %2846 = vmatpush2.msra.mxu0 0.0
    %2847 = vmatprep.subr.mxu0 0.0
    %2848 = vmatpush2.msra.mxu0 0.0
    %2849 = vmatprep.subr.mxu0 0.0
    %2850 = vmatpush2.msra.mxu0 0.0
    %2851 = vmatprep.subr.mxu0 0.0
    %2852 = vmatpush2.msra.mxu0 0.0
    %2853 = vmatprep.subr.mxu0 0.0
    %2854 = vmatpush2.msra.mxu0 0.0
    %2855 = vmatprep.subr.mxu0 0.0
    %2856 = vmatpush2.msra.mxu0 0.0
    %2857 = vmatprep.mubr.f32.mxu0 0.0
    %2858 = vmatmul.mubr.f32.gmra.mxu0 %v2634
    %v2859 = vpop.f32.mrf.mxu0
    %v2860 = vadd.f32 0.0, %v2859
    %v2861 = vpop.f32.mrf.mxu0
    %v2862 = vadd.f32 0.0, %v2861
    %2863 = vmatprep.mubr.f32.mxu0 0.0
    %2864 = vmatmul.mubr.f32.gmra.mxu0 %v2637
    %v2865 = vpop.f32.mrf.mxu0
    %v2866 = vadd.f32 0.0, %v2865
    %v2867 = vpop.f32.mrf.mxu0
    %v2868 = vadd.f32 0.0, %v2867
    %2869 = vdwg.mxu0
    %2870 = vmatprep.subr.mxu0 0.0
    %2871 = vmatpush1.msra.mxu0 0.0
    %2872 = vmatprep.subr.mxu0 0.0
    %2873 = vmatpush1.msra.mxu0 0.0
    %2874 = vmatprep.subr.mxu0 0.0
    %2875 = vmatpush1.msra.mxu0 0.0
    %2876 = vmatprep.subr.mxu0 0.0
    %2877 = vmatpush1.msra.mxu0 0.0
    %2878 = vmatprep.subr.mxu0 0.0
    %2879 = vmatpush1.msra.mxu0 0.0
    %2880 = vmatprep.subr.mxu0 0.0
    %2881 = vmatpush1.msra.mxu0 0.0
    %2882 = vmatprep.subr.mxu0 0.0
    %2883 = vmatpush1.msra.mxu0 0.0
    %2884 = vmatprep.subr.mxu0 0.0
    %2885 = vmatpush1.msra.mxu0 0.0
    %2886 = vmatprep.subr.mxu0 0.0
    %2887 = vmatpush1.msra.mxu0 %v2632
    %2888 = vmatprep.subr.mxu0 0.0
    %2889 = vmatpush1.msra.mxu0 %v2625
    %2890 = vmatprep.subr.mxu0 0.0
    %2891 = vmatpush1.msra.mxu0 %v2618
    %2892 = vmatprep.subr.mxu0 0.0
    %2893 = vmatpush1.msra.mxu0 %v2611
    %2894 = vmatprep.subr.mxu0 0.0
    %2895 = vmatpush1.msra.mxu0 %v2604
    %2896 = vmatprep.subr.mxu0 0.0
    %2897 = vmatpush1.msra.mxu0 %v2597
    %2898 = vmatprep.subr.mxu0 0.0
    %2899 = vmatpush1.msra.mxu0 %v2590
    %2900 = vmatprep.subr.mxu0 0.0
    %2901 = vmatpush1.msra.mxu0 %v2583
    %2902 = vmatprep.subr.mxu0 0.0
    %2903 = vmatpush2.msra.mxu0 0.0
    %2904 = vmatprep.subr.mxu0 0.0
    %2905 = vmatpush2.msra.mxu0 0.0
    %2906 = vmatprep.subr.mxu0 0.0
    %2907 = vmatpush2.msra.mxu0 0.0
    %2908 = vmatprep.subr.mxu0 0.0
    %2909 = vmatpush2.msra.mxu0 0.0
    %2910 = vmatprep.subr.mxu0 0.0
    %2911 = vmatpush2.msra.mxu0 0.0
    %2912 = vmatprep.subr.mxu0 0.0
    %2913 = vmatpush2.msra.mxu0 0.0
    %2914 = vmatprep.subr.mxu0 0.0
    %2915 = vmatpush2.msra.mxu0 0.0
    %2916 = vmatprep.subr.mxu0 0.0
    %2917 = vmatpush2.msra.mxu0 0.0
    %2918 = vmatprep.subr.mxu0 0.0
    %2919 = vmatpush2.msra.mxu0 0.0
    %2920 = vmatprep.subr.mxu0 0.0
    %2921 = vmatpush2.msra.mxu0 0.0
    %2922 = vmatprep.subr.mxu0 0.0
    %2923 = vmatpush2.msra.mxu0 0.0
    %2924 = vmatprep.subr.mxu0 0.0
    %2925 = vmatpush2.msra.mxu0 0.0
    %2926 = vmatprep.subr.mxu0 0.0
    %2927 = vmatpush2.msra.mxu0 0.0
    %2928 = vmatprep.subr.mxu0 0.0
    %2929 = vmatpush2.msra.mxu0 0.0
    %2930 = vmatprep.subr.mxu0 0.0
    %2931 = vmatpush2.msra.mxu0 0.0
    %2932 = vmatprep.subr.mxu0 0.0
    %2933 = vmatpush2.msra.mxu0 0.0
    %2934 = vmatprep.mubr.f32.mxu0 0.0
    %2935 = vmatmul.mubr.f32.gmra.mxu0 %v2634
    %v2936 = vpop.f32.mrf.mxu0
    %v2937 = vadd.f32 0.0, %v2936
    %v2938 = vpop.f32.mrf.mxu0
    %2939 = vmatprep.mubr.f32.mxu0 0.0
    %2940 = vmatmul.mubr.f32.gmra.mxu0 %v2637
    %v2941 = vpop.f32.mrf.mxu0
    %v2942 = vadd.f32 0.0, %v2941
    %v2943 = vpop.f32.mrf.mxu0
    %2944 = vdwg.mxu0
    %v2945 = vadd.f32 %v2563, %v2706
    %v2946 = vadd.f32 %v2564, %v2708
    %v2947 = vadd.f32 %v2565, %v2783
    %v2948 = vadd.f32 %v2566, %v2785
    %v2949 = vadd.f32 %v2567, %v2860
    %v2950 = vadd.f32 %v2568, %v2862
    %v2951 = vadd.f32 %v2569, %v2937
    %v2952 = vadd.f32 %v2570, %v2712
    %v2953 = vadd.f32 %v2571, %v2714
    %v2954 = vadd.f32 %v2572, %v2789
    %v2955 = vadd.f32 %v2573, %v2791
    %v2956 = vadd.f32 %v2574, %v2866
    %v2957 = vadd.f32 %v2575, %v2868
    %v2958 = vadd.f32 %v2576, %v2942
    %v2959 = vmul.f32 %v2945, %v1346
    %v2960 = vmul.f32 %v2952, %v1346
    %v2961 = vadd.f32 %v2959, 0.5
    %v2962 = vadd.f32 %v2960, 0.5
    %v2963 = vmax.f32 %v2961, 0.0
    %v2964 = vmax.f32 %v2962, 0.0
    %v2965 = vmin.f32 %v2963, 1.0
    %v2966 = vmin.f32 %v2964, 1.0
    %v2967 = vtanh.pop %v2946
    %v2968 = vtanh.pop %v2953
    %v2969 = vmul.f32 %v2946, %v1346
    %v2970 = vmul.f32 %v2953, %v1346
    %v2971 = vadd.f32 %v2969, 0.5
    %v2972 = vadd.f32 %v2970, 0.5
    %v2973 = vmax.f32 %v2971, 0.0
    %v2974 = vmax.f32 %v2972, 0.0
    %v2975 = vmin.f32 %v2973, 1.0
    %v2976 = vmin.f32 %v2974, 1.0
    %v2977 = vmul.f32 %v2947, %v1346
    %v2978 = vmul.f32 %v2948, %v1346
    %v2979 = vmul.f32 %v2949, %v1346
    %v2980 = vmul.f32 %v2950, %v1346
    %v2981 = vmul.f32 %v2951, %v1346
    %v2982 = vmul.f32 %v2954, %v1346
    %v2983 = vmul.f32 %v2955, %v1346
    %v2984 = vmul.f32 %v2956, %v1346
    %v2985 = vmul.f32 %v2957, %v1346
    %v2986 = vmul.f32 %v2958, %v1346
    %v2987 = vadd.f32 %v2977, 0.5
    %v2988 = vadd.f32 %v2978, 0.5
    %v2989 = vadd.f32 %v2979, 0.5
    %v2990 = vadd.f32 %v2980, 0.5
    %v2991 = vadd.f32 %v2981, 0.5
    %v2992 = vadd.f32 %v2982, 0.5
    %v2993 = vadd.f32 %v2983, 0.5
    %v2994 = vadd.f32 %v2984, 0.5
    %v2995 = vadd.f32 %v2985, 0.5
    %v2996 = vadd.f32 %v2986, 0.5
    %v2997 = vmax.f32 %v2987, 0.0
    %v2998 = vmax.f32 %v2988, 0.0
    %v2999 = vmax.f32 %v2989, 0.0
    %v3000 = vmax.f32 %v2990, 0.0
    %v3001 = vmax.f32 %v2991, 0.0
    %v3002 = vmax.f32 %v2992, 0.0
    %v3003 = vmax.f32 %v2993, 0.0
    %v3004 = vmax.f32 %v2994, 0.0
    %v3005 = vmax.f32 %v2995, 0.0
    %v3006 = vmax.f32 %v2996, 0.0
    %v3007 = vmin.f32 %v2997, 1.0
    %v3008 = vmin.f32 %v2998, 1.0
    %v3009 = vmin.f32 %v2999, 1.0
    %v3010 = vmin.f32 %v3000, 1.0
    %v3011 = vmin.f32 %v3001, 1.0
    %v3012 = vmin.f32 %v3002, 1.0
    %v3013 = vmin.f32 %v3003, 1.0
    %v3014 = vmin.f32 %v3004, 1.0
    %v3015 = vmin.f32 %v3005, 1.0
    %v3016 = vmin.f32 %v3006, 1.0
    %v3017 = vmul.f32 %v2965, %v2967
    %v3018 = vmul.f32 %v2966, %v2968
    %3021 = vrot.lane.b32.xlu0 %v2965, 64
    %v3022 = vpop.permute.xlu0 %3021
    %3023 = vrot.lane.b32.xlu0 %v2966, 64
    %v3024 = vpop.permute.xlu0 %3023
    %v3027 = vsel %vm922, %v3022, %v2965
    %v3028 = vsel %vm922, %v3024, %v2966
    %3031 = vrot.lane.b32.xlu0 %v3017, 64
    %v3032 = vpop.permute.xlu0 %3031
    %3033 = vrot.lane.b32.xlu0 %v3018, 64
    %v3034 = vpop.permute.xlu0 %3033
    %v3037 = vsel %vm922, %v3017, %v3032
    %v3038 = vsel %vm922, %v3018, %v3034
    %v3039 = vmul.f32 %v3027, %v3007
    %v3040 = vmul.f32 %v3027, %v3008
    %v3041 = vmul.f32 %v3027, %v3009
    %v3042 = vmul.f32 %v3027, %v3010
    %v3043 = vmul.f32 %v3027, %v3011
    %v3044 = vmul.f32 %v3028, %v3012
    %v3045 = vmul.f32 %v3028, %v3013
    %v3046 = vmul.f32 %v3028, %v3014
    %v3047 = vmul.f32 %v3028, %v3015
    %v3048 = vmul.f32 %v3028, %v3016
    %s3049 = scalar_lea.vmem %s6, 2
    %v3050 = vld [vmem:[%s3049] ss:$8 sm:$0xf]
    %v3051 = vld [vmem:[%s3049] ss:$8 sm:$0x10]
    %v3052 = vor.u32 %v3050, %v3051
    %s3053 = scalar_lea.vmem %s7, 2
    %v3054 = vld [vmem:[%s3053] ss:$8 sm:$0xf]
    %v3055 = vld [vmem:[%s3053] ss:$8 sm:$0x10]
    %v3056 = vor.u32 %v3054, %v3055
    %v3057 = vld [vmem:[#allocation4] sm:$0xff]
    %v3058 = vld [vmem:[#allocation4 + $0x8] sm:$0xff]
    %v3059 = vld [vmem:[#allocation4 + $0x10] sm:$0xff]
    %v3060 = vld [vmem:[#allocation4 + $0x18] sm:$0xff]
    %v3061 = vld [vmem:[#allocation4 + $0x20] sm:$0xff]
    %v3062 = vld [vmem:[#allocation4 + $0x28] sm:$0xff]
    %v3063 = vld [vmem:[#allocation4 + $0x30] sm:$0xff]
    %v3064 = vld [vmem:[#allocation4 + $0x38] sm:$0xff]
    %v3065 = vld [vmem:[#allocation4 + $0x40] sm:$0xff]
    %v3066 = vld [vmem:[#allocation4 + $0x48] sm:$0xff]
    %v3067 = vmul.f32 %v3039, %v3057
    %v3068 = vmul.f32 %v3040, %v3058
    %v3069 = vmul.f32 %v3041, %v3059
    %v3070 = vmul.f32 %v3042, %v3060
    %v3071 = vmul.f32 %v3043, %v3061
    %v3072 = vmul.f32 %v3044, %v3062
    %v3073 = vmul.f32 %v3045, %v3063
    %v3074 = vmul.f32 %v3046, %v3064
    %v3075 = vmul.f32 %v3047, %v3065
    %v3076 = vmul.f32 %v3048, %v3066
    %v3078 = vlaneseq
    %v3079 = vshrl.u32 %v3078, 7
    %v3080 = vsub.s32 0, %v3079
    %v3081 = vrot.slane %v3052, %v3080
    %v3082 = vlaneseq
    %v3083 = vshrl.u32 %v3082, 7
    %v3084 = vsub.s32 1, %v3083
    %v3085 = vrot.slane %v3052, %v3084
    %v3086 = vlaneseq
    %v3087 = vshrl.u32 %v3086, 7
    %v3088 = vsub.s32 2, %v3087
    %v3089 = vrot.slane %v3052, %v3088
    %v3090 = vlaneseq
    %v3091 = vshrl.u32 %v3090, 7
    %v3092 = vsub.s32 3, %v3091
    %v3093 = vrot.slane %v3052, %v3092
    %v3094 = vlaneseq
    %v3095 = vshrl.u32 %v3094, 7
    %v3096 = vsub.s32 4, %v3095
    %v3097 = vrot.slane %v3052, %v3096
    %v3103 = vmul.f32 %v3037, %v3081
    %v3104 = vmul.f32 %v3037, %v3085
    %v3105 = vmul.f32 %v3037, %v3089
    %v3106 = vmul.f32 %v3037, %v3093
    %v3107 = vmul.f32 %v3037, %v3097
    %v3108 = vmul.f32 %v3038, %v3081
    %v3109 = vmul.f32 %v3038, %v3085
    %v3110 = vmul.f32 %v3038, %v3089
    %v3111 = vmul.f32 %v3038, %v3093
    %v3112 = vmul.f32 %v3038, %v3097
    %v3113 = vadd.f32 %v3067, %v3103
    %v3114 = vadd.f32 %v3068, %v3104
    %v3115 = vadd.f32 %v3069, %v3105
    %v3116 = vadd.f32 %v3070, %v3106
    %v3117 = vadd.f32 %v3071, %v3107
    %v3118 = vadd.f32 %v3072, %v3108
    %v3119 = vadd.f32 %v3073, %v3109
    %v3120 = vadd.f32 %v3074, %v3110
    %v3121 = vadd.f32 %v3075, %v3111
    %v3122 = vadd.f32 %v3076, %v3112
    %v3123 = vld [vmem:[#allocation5] sm:$0xff]
    %v3124 = vld [vmem:[#allocation5 + $0x8] sm:$0xff]
    %v3125 = vld [vmem:[#allocation5 + $0x10] sm:$0xff]
    %v3126 = vld [vmem:[#allocation5 + $0x18] sm:$0xff]
    %v3127 = vld [vmem:[#allocation5 + $0x20] sm:$0xff]
    %v3128 = vld [vmem:[#allocation5 + $0x28] sm:$0xff]
    %v3129 = vld [vmem:[#allocation5 + $0x30] sm:$0xff]
    %v3130 = vld [vmem:[#allocation5 + $0x38] sm:$0xff]
    %v3131 = vld [vmem:[#allocation5 + $0x40] sm:$0xff]
    %v3132 = vld [vmem:[#allocation5 + $0x48] sm:$0xff]
    %v3133 = vmul.f32 %v3039, %v3123
    %v3134 = vmul.f32 %v3040, %v3124
    %v3135 = vmul.f32 %v3041, %v3125
    %v3136 = vmul.f32 %v3042, %v3126
    %v3137 = vmul.f32 %v3043, %v3127
    %v3138 = vmul.f32 %v3044, %v3128
    %v3139 = vmul.f32 %v3045, %v3129
    %v3140 = vmul.f32 %v3046, %v3130
    %v3141 = vmul.f32 %v3047, %v3131
    %v3142 = vmul.f32 %v3048, %v3132
    %v3144 = vlaneseq
    %v3145 = vshrl.u32 %v3144, 7
    %v3146 = vsub.s32 0, %v3145
    %v3147 = vrot.slane %v3056, %v3146
    %v3148 = vlaneseq
    %v3149 = vshrl.u32 %v3148, 7
    %v3150 = vsub.s32 1, %v3149
    %v3151 = vrot.slane %v3056, %v3150
    %v3152 = vlaneseq
    %v3153 = vshrl.u32 %v3152, 7
    %v3154 = vsub.s32 2, %v3153
    %v3155 = vrot.slane %v3056, %v3154
    %v3156 = vlaneseq
    %v3157 = vshrl.u32 %v3156, 7
    %v3158 = vsub.s32 3, %v3157
    %v3159 = vrot.slane %v3056, %v3158
    %v3160 = vlaneseq
    %v3161 = vshrl.u32 %v3160, 7
    %v3162 = vsub.s32 4, %v3161
    %v3163 = vrot.slane %v3056, %v3162
    %v3169 = vmul.f32 %v3037, %v3147
    %v3170 = vmul.f32 %v3037, %v3151
    %v3171 = vmul.f32 %v3037, %v3155
    %v3172 = vmul.f32 %v3037, %v3159
    %v3173 = vmul.f32 %v3037, %v3163
    %v3174 = vmul.f32 %v3038, %v3147
    %v3175 = vmul.f32 %v3038, %v3151
    %v3176 = vmul.f32 %v3038, %v3155
    %v3177 = vmul.f32 %v3038, %v3159
    %v3178 = vmul.f32 %v3038, %v3163
    %v3179 = vadd.f32 %v3133, %v3169
    %v3180 = vadd.f32 %v3134, %v3170
    %v3181 = vadd.f32 %v3135, %v3171
    %v3182 = vadd.f32 %v3136, %v3172
    %v3183 = vadd.f32 %v3137, %v3173
    %v3184 = vadd.f32 %v3138, %v3174
    %v3185 = vadd.f32 %v3139, %v3175
    %v3186 = vadd.f32 %v3140, %v3176
    %v3187 = vadd.f32 %v3141, %v3177
    %v3188 = vadd.f32 %v3142, %v3178
    %3189 = vst [vmem:[#allocation4] sm:$0xff] %v3113
    %3190 = vst [vmem:[#allocation4 + $0x8] sm:$0xff] %v3114
    %3191 = vst [vmem:[#allocation4 + $0x10] sm:$0xff] %v3115
    %3192 = vst [vmem:[#allocation4 + $0x18] sm:$0xff] %v3116
    %3193 = vst [vmem:[#allocation4 + $0x20] sm:$0xff] %v3117
    %3194 = vst [vmem:[#allocation4 + $0x28] sm:$0xff] %v3118
    %3195 = vst [vmem:[#allocation4 + $0x30] sm:$0xff] %v3119
    %3196 = vst [vmem:[#allocation4 + $0x38] sm:$0xff] %v3120
    %3197 = vst [vmem:[#allocation4 + $0x40] sm:$0xff] %v3121
    %3198 = vst [vmem:[#allocation4 + $0x48] sm:$0xff] %v3122
    %3199 = vst [vmem:[#allocation5] sm:$0xff] %v3179
    %3200 = vst [vmem:[#allocation5 + $0x8] sm:$0xff] %v3180
    %3201 = vst [vmem:[#allocation5 + $0x10] sm:$0xff] %v3181
    %3202 = vst [vmem:[#allocation5 + $0x18] sm:$0xff] %v3182
    %3203 = vst [vmem:[#allocation5 + $0x20] sm:$0xff] %v3183
    %3204 = vst [vmem:[#allocation5 + $0x28] sm:$0xff] %v3184
    %3205 = vst [vmem:[#allocation5 + $0x30] sm:$0xff] %v3185
    %3206 = vst [vmem:[#allocation5 + $0x38] sm:$0xff] %v3186
    %3207 = vst [vmem:[#allocation5 + $0x40] sm:$0xff] %v3187
    %3208 = vst [vmem:[#allocation5 + $0x48] sm:$0xff] %v3188
    %v3209 = vmul.f32 %v3113, %v3113
    %v3210 = vmul.f32 %v3114, %v3114
    %v3211 = vmul.f32 %v3115, %v3115
    %v3212 = vmul.f32 %v3116, %v3116
    %v3213 = vmul.f32 %v3117, %v3117
    %v3214 = vmul.f32 %v3118, %v3118
    %v3215 = vmul.f32 %v3119, %v3119
    %v3216 = vmul.f32 %v3120, %v3120
    %v3217 = vmul.f32 %v3121, %v3121
    %v3218 = vmul.f32 %v3122, %v3122
    %v3219 = vmul.f32 %v3179, %v3179
    %v3220 = vmul.f32 %v3180, %v3180
    %v3221 = vmul.f32 %v3181, %v3181
    %v3222 = vmul.f32 %v3182, %v3182
    %v3223 = vmul.f32 %v3183, %v3183
    %v3224 = vmul.f32 %v3184, %v3184
    %v3225 = vmul.f32 %v3185, %v3185
    %v3226 = vmul.f32 %v3186, %v3186
    %v3227 = vmul.f32 %v3187, %v3187
    %v3228 = vmul.f32 %v3188, %v3188
    %v3229 = vadd.f32 %v3209, %v3219
    %v3230 = vadd.f32 %v3210, %v3220
    %v3231 = vadd.f32 %v3211, %v3221
    %v3232 = vadd.f32 %v3212, %v3222
    %v3233 = vadd.f32 %v3213, %v3223
    %v3234 = vadd.f32 %v3214, %v3224
    %v3235 = vadd.f32 %v3215, %v3225
    %v3236 = vadd.f32 %v3216, %v3226
    %v3237 = vadd.f32 %v3217, %v3227
    %v3238 = vadd.f32 %v3218, %v3228
    %v3239 = vld [vmem:[%s5] sm:$0x1f]
    %v3241 = vlaneseq
    %v3242 = vshrl.u32 %v3241, 7
    %v3243 = vsub.s32 0, %v3242
    %v3244 = vrot.slane %v3239, %v3243
    %v3245 = vlaneseq
    %v3246 = vshrl.u32 %v3245, 7
    %v3247 = vsub.s32 1, %v3246
    %v3248 = vrot.slane %v3239, %v3247
    %v3249 = vlaneseq
    %v3250 = vshrl.u32 %v3249, 7
    %v3251 = vsub.s32 2, %v3250
    %v3252 = vrot.slane %v3239, %v3251
    %v3253 = vlaneseq
    %v3254 = vshrl.u32 %v3253, 7
    %v3255 = vsub.s32 3, %v3254
    %v3256 = vrot.slane %v3239, %v3255
    %v3257 = vlaneseq
    %v3258 = vshrl.u32 %v3257, 7
    %v3259 = vsub.s32 4, %v3258
    %v3260 = vrot.slane %v3239, %v3259
    %v3266 = vmul.f32 %v3229, %v3244
    %v3267 = vmul.f32 %v3230, %v3248
    %v3268 = vmul.f32 %v3231, %v3252
    %v3269 = vmul.f32 %v3232, %v3256
    %v3270 = vmul.f32 %v3233, %v3260
    %v3271 = vmul.f32 %v3234, %v3244
    %v3272 = vmul.f32 %v3235, %v3248
    %v3273 = vmul.f32 %v3236, %v3252
    %v3274 = vmul.f32 %v3237, %v3256
    %v3275 = vmul.f32 %v3238, %v3260
    %3278 = vrot.lane.b32.xlu0 %v3266, 64
    %v3279 = vpop.permute.xlu0 %3278
    %3280 = vrot.lane.b32.xlu0 %v3271, 64
    %v3281 = vpop.permute.xlu0 %3280
    %v3284 = vadd.f32 %v3266, %v3279
    %v3285 = vadd.f32 %v3271, %v3281
    %3288 = vrot.lane.b32.xlu0 %v3267, 64
    %v3289 = vpop.permute.xlu0 %3288
    %3290 = vrot.lane.b32.xlu0 %v3272, 64
    %v3291 = vpop.permute.xlu0 %3290
    %v3294 = vadd.f32 %v3267, %v3289
    %v3295 = vadd.f32 %v3272, %v3291
    %3298 = vrot.lane.b32.xlu0 %v3268, 64
    %v3299 = vpop.permute.xlu0 %3298
    %3300 = vrot.lane.b32.xlu0 %v3273, 64
    %v3301 = vpop.permute.xlu0 %3300
    %v3304 = vadd.f32 %v3268, %v3299
    %v3305 = vadd.f32 %v3273, %v3301
    %3308 = vrot.lane.b32.xlu0 %v3269, 64
    %v3309 = vpop.permute.xlu0 %3308
    %3310 = vrot.lane.b32.xlu0 %v3274, 64
    %v3311 = vpop.permute.xlu0 %3310
    %v3314 = vadd.f32 %v3269, %v3309
    %v3315 = vadd.f32 %v3274, %v3311
    %3318 = vrot.lane.b32.xlu0 %v3270, 64
    %v3319 = vpop.permute.xlu0 %3318
    %3320 = vrot.lane.b32.xlu0 %v3275, 64
    %v3321 = vpop.permute.xlu0 %3320
    %v3324 = vadd.f32 %v3270, %v3319
    %v3325 = vadd.f32 %v3275, %v3321
    %v3326 = vadd.f32 %v3284, %v3294
    %v3327 = vadd.f32 %v3285, %v3295
    %v3328 = vadd.f32 %v3304, %v3314
    %v3329 = vadd.f32 %v3305, %v3315
    %v3330 = vadd.f32 %v3326, %v3328
    %v3331 = vadd.f32 %v3327, %v3329
    %v3332 = vadd.f32 %v3330, %v3324
    %v3333 = vadd.f32 %v3331, %v3325
    %v3334 = vld [vmem:[%s4] sm:$0x1]
    %v3336 = vlaneseq
    %v3337 = vshrl.u32 %v3336, 7
    %v3338 = vsub.s32 0, %v3337
    %v3339 = vrot.slane %v3334, %v3338
    %v3341 = vadd.f32 %v3332, %v3339
    %v3342 = vadd.f32 %v3333, %v3339
    %v3343 = vtanh.pop %v3341
    %v3344 = vtanh.pop %v3342
    %3347 = vrot.lane.b32.xlu0 %v3343, 64
    %v3348 = vpop.permute.xlu0 %3347
    %3349 = vrot.lane.b32.xlu0 %v3344, 64
    %v3350 = vpop.permute.xlu0 %3349
    %v3353 = vmul.f32 %v2975, %v3348
    %v3354 = vmul.f32 %v2976, %v3350
    %3357 = vrot.lane.b32.xlu0 %v3353, 64
    %v3358 = vpop.permute.xlu0 %3357
    %3359 = vrot.lane.b32.xlu0 %v3354, 64
    %v3360 = vpop.permute.xlu0 %3359
    %3363 = vst.msk [vmem:[#allocation3] sm:$0xff] %vm922, %v3358
    %3364 = vst.msk [vmem:[#allocation3 + $0x8] sm:$0xff] %vm922, %v3360
    %v3365 = vld [vmem:[#allocation3] sm:$0xff]
    %v3366 = vld [vmem:[#allocation3 + $0x8] sm:$0xff]
    %s3367 = smul.u32 6, 7
    %s3368 = smul.addr %s3367, 8
    %s3369 = scalar_lea.vmem [#allocation2], %s3368
    %v3370 = vld [vmem:[%s3369] sm:$0xff]
    %v3371 = vld [vmem:[%s3369 + $0x8] sm:$0xff]
    %v3372 = vld [vmem:[%s3369 + $0x10] sm:$0xff]
    %v3373 = vld [vmem:[%s3369 + $0x18] sm:$0xff]
    %v3374 = vld [vmem:[%s3369 + $0x20] sm:$0xff]
    %v3375 = vld [vmem:[%s3369 + $0x28] sm:$0xff]
    %v3376 = vld [vmem:[%s3369 + $0x30] sm:$0xff]
    %v3377 = vld [vmem:[%s3369 + $0x38] sm:$0xff]
    %v3378 = vld [vmem:[%s3369 + $0x40] sm:$0xff]
    %v3379 = vld [vmem:[%s3369 + $0x48] sm:$0xff]
    %v3380 = vld [vmem:[%s3369 + $0x50] sm:$0xff]
    %v3381 = vld [vmem:[%s3369 + $0x58] sm:$0xff]
    %v3382 = vld [vmem:[%s3369 + $0x60] sm:$0xff]
    %v3383 = vld [vmem:[%s3369 + $0x68] sm:$0xff]
    %v3384 = vld [vmem:[#allocation7] sm:$0xff]
    %v3385 = vld [vmem:[#allocation7 + $0x8] sm:$0xff]
    %v3386 = vld [vmem:[#allocation7 + $0x10] sm:$0xff]
    %v3387 = vld [vmem:[#allocation7 + $0x18] sm:$0xff]
    %v3388 = vld [vmem:[#allocation7 + $0x20] sm:$0xff]
    %v3389 = vld [vmem:[#allocation7 + $0x28] sm:$0xff]
    %v3390 = vld [vmem:[#allocation7 + $0x30] sm:$0xff]
    %v3391 = vld [vmem:[#allocation7 + $0x38] sm:$0xff]
    %v3392 = vld [vmem:[#allocation7 + $0x40] sm:$0xff]
    %v3393 = vld [vmem:[#allocation7 + $0x48] sm:$0xff]
    %v3394 = vld [vmem:[#allocation7 + $0x50] sm:$0xff]
    %v3395 = vld [vmem:[#allocation7 + $0x58] sm:$0xff]
    %v3396 = vld [vmem:[#allocation7 + $0x60] sm:$0xff]
    %v3397 = vld [vmem:[#allocation7 + $0x68] sm:$0xff]
    %v3398 = vld [vmem:[#allocation7 + $0x70] sm:$0xff]
    %v3399 = vld [vmem:[#allocation7 + $0x78] sm:$0xff]
    %v3400 = vld [vmem:[#allocation7 + $0x80] sm:$0xff]
    %v3401 = vld [vmem:[#allocation7 + $0x88] sm:$0xff]
    %v3402 = vld [vmem:[#allocation7 + $0x90] sm:$0xff]
    %v3403 = vld [vmem:[#allocation7 + $0x98] sm:$0xff]
    %v3404 = vld [vmem:[#allocation7 + $0xa0] sm:$0xff]
    %v3405 = vld [vmem:[#allocation7 + $0xa8] sm:$0xff]
    %v3406 = vld [vmem:[#allocation7 + $0xb0] sm:$0xff]
    %v3407 = vld [vmem:[#allocation7 + $0xb8] sm:$0xff]
    %v3408 = vld [vmem:[#allocation7 + $0xc0] sm:$0xff]
    %v3409 = vld [vmem:[#allocation7 + $0xc8] sm:$0xff]
    %v3410 = vld [vmem:[#allocation7 + $0xd0] sm:$0xff]
    %v3411 = vld [vmem:[#allocation7 + $0xd8] sm:$0xff]
    %v3412 = vld [vmem:[#allocation7 + $0xe0] sm:$0xff]
    %v3413 = vld [vmem:[#allocation7 + $0xe8] sm:$0xff]
    %v3414 = vld [vmem:[#allocation7 + $0xf0] sm:$0xff]
    %v3415 = vld [vmem:[#allocation7 + $0xf8] sm:$0xff]
    %v3416 = vld [vmem:[#allocation7 + $0x100] sm:$0xff]
    %v3417 = vld [vmem:[#allocation7 + $0x108] sm:$0xff]
    %v3418 = vld [vmem:[#allocation7 + $0x110] sm:$0xff]
    %v3419 = vld [vmem:[#allocation7 + $0x118] sm:$0xff]
    %v3420 = vld [vmem:[#allocation7 + $0x120] sm:$0xff]
    %v3421 = vld [vmem:[#allocation7 + $0x128] sm:$0xff]
    %v3422 = vld [vmem:[#allocation7 + $0x130] sm:$0xff]
    %v3423 = vld [vmem:[#allocation7 + $0x138] sm:$0xff]
    %v3424 = vld [vmem:[#allocation7 + $0x140] sm:$0xff]
    %v3425 = vld [vmem:[#allocation7 + $0x148] sm:$0xff]
    %v3426 = vld [vmem:[#allocation7 + $0x150] sm:$0xff]
    %v3427 = vld [vmem:[#allocation7 + $0x158] sm:$0xff]
    %v3428 = vld [vmem:[#allocation7 + $0x160] sm:$0xff]
    %v3429 = vld [vmem:[#allocation7 + $0x168] sm:$0xff]
    %v3430 = vld [vmem:[#allocation7 + $0x170] sm:$0xff]
    %v3431 = vld [vmem:[#allocation7 + $0x178] sm:$0xff]
    %v3432 = vld [vmem:[#allocation7 + $0x180] sm:$0xff]
    %v3433 = vld [vmem:[#allocation7 + $0x188] sm:$0xff]
    %v3434 = vld [vmem:[#allocation7 + $0x190] sm:$0xff]
    %v3435 = vld [vmem:[#allocation7 + $0x198] sm:$0xff]
    %v3436 = vld [vmem:[#allocation7 + $0x1a0] sm:$0xff]
    %v3437 = vld [vmem:[#allocation7 + $0x1a8] sm:$0xff]
    %v3438 = vld [vmem:[#allocation7 + $0x1b0] sm:$0xff]
    %v3439 = vld [vmem:[#allocation7 + $0x1b8] sm:$0xff]
    %v3441 = vsel %vm922, %v3365, 0
    %v3444 = vsel %vm922, %v3366, 0
    %3446 = vmatprep.subr.mxu0 0.0
    %3447 = vmatpush1.msra.mxu0 0.0
    %3448 = vmatprep.subr.mxu0 0.0
    %3449 = vmatpush1.msra.mxu0 0.0
    %3450 = vmatprep.subr.mxu0 0.0
    %3451 = vmatpush1.msra.mxu0 0.0
    %3452 = vmatprep.subr.mxu0 0.0
    %3453 = vmatpush1.msra.mxu0 0.0
    %3454 = vmatprep.subr.mxu0 0.0
    %3455 = vmatpush1.msra.mxu0 0.0
    %3456 = vmatprep.subr.mxu0 0.0
    %3457 = vmatpush1.msra.mxu0 0.0
    %3458 = vmatprep.subr.mxu0 0.0
    %3459 = vmatpush1.msra.mxu0 0.0
    %3460 = vmatprep.subr.mxu0 0.0
    %3461 = vmatpush1.msra.mxu0 0.0
    %3462 = vmatprep.subr.mxu0 %v3434
    %3463 = vmatpush1.msra.mxu0 %v3433
    %3464 = vmatprep.subr.mxu0 %v3427
    %3465 = vmatpush1.msra.mxu0 %v3426
    %3466 = vmatprep.subr.mxu0 %v3420
    %3467 = vmatpush1.msra.mxu0 %v3419
    %3468 = vmatprep.subr.mxu0 %v3413
    %3469 = vmatpush1.msra.mxu0 %v3412
    %3470 = vmatprep.subr.mxu0 %v3406
    %3471 = vmatpush1.msra.mxu0 %v3405
    %3472 = vmatprep.subr.mxu0 %v3399
    %3473 = vmatpush1.msra.mxu0 %v3398
    %3474 = vmatprep.subr.mxu0 %v3392
    %3475 = vmatpush1.msra.mxu0 %v3391
    %3476 = vmatprep.subr.mxu0 %v3385
    %3477 = vmatpush1.msra.mxu0 %v3384
    %3478 = vmatprep.subr.mxu0 0.0
    %3479 = vmatpush2.msra.mxu0 0.0
    %3480 = vmatprep.subr.mxu0 0.0
    %3481 = vmatpush2.msra.mxu0 0.0
    %3482 = vmatprep.subr.mxu0 0.0
    %3483 = vmatpush2.msra.mxu0 0.0
    %3484 = vmatprep.subr.mxu0 0.0
    %3485 = vmatpush2.msra.mxu0 0.0
    %3486 = vmatprep.subr.mxu0 0.0
    %3487 = vmatpush2.msra.mxu0 0.0
    %3488 = vmatprep.subr.mxu0 0.0
    %3489 = vmatpush2.msra.mxu0 0.0
    %3490 = vmatprep.subr.mxu0 0.0
    %3491 = vmatpush2.msra.mxu0 0.0
    %3492 = vmatprep.subr.mxu0 0.0
    %3493 = vmatpush2.msra.mxu0 0.0
    %3494 = vmatprep.subr.mxu0 0.0
    %3495 = vmatpush2.msra.mxu0 0.0
    %3496 = vmatprep.subr.mxu0 0.0
    %3497 = vmatpush2.msra.mxu0 0.0
    %3498 = vmatprep.subr.mxu0 0.0
    %3499 = vmatpush2.msra.mxu0 0.0
    %3500 = vmatprep.subr.mxu0 0.0
    %3501 = vmatpush2.msra.mxu0 0.0
    %3502 = vmatprep.subr.mxu0 0.0
    %3503 = vmatpush2.msra.mxu0 0.0
    %3504 = vmatprep.subr.mxu0 0.0
    %3505 = vmatpush2.msra.mxu0 0.0
    %3506 = vmatprep.subr.mxu0 0.0
    %3507 = vmatpush2.msra.mxu0 0.0
    %3508 = vmatprep.subr.mxu0 0.0
    %3509 = vmatpush2.msra.mxu0 0.0
    %3510 = vmatprep.mubr.f32.mxu0 0.0
    %3511 = vmatmul.mubr.f32.gmra.mxu0 %v3441
    %v3512 = vpop.f32.mrf.mxu0
    %v3513 = vadd.f32 0.0, %v3512
    %v3514 = vpop.f32.mrf.mxu0
    %v3515 = vadd.f32 0.0, %v3514
    %3516 = vmatprep.mubr.f32.mxu0 0.0
    %3517 = vmatmul.mubr.f32.gmra.mxu0 %v3444
    %v3518 = vpop.f32.mrf.mxu0
    %v3519 = vadd.f32 0.0, %v3518
    %v3520 = vpop.f32.mrf.mxu0
    %v3521 = vadd.f32 0.0, %v3520
    %3522 = vdwg.mxu0
    %3523 = vmatprep.subr.mxu0 0.0
    %3524 = vmatpush1.msra.mxu0 0.0
    %3525 = vmatprep.subr.mxu0 0.0
    %3526 = vmatpush1.msra.mxu0 0.0
    %3527 = vmatprep.subr.mxu0 0.0
    %3528 = vmatpush1.msra.mxu0 0.0
    %3529 = vmatprep.subr.mxu0 0.0
    %3530 = vmatpush1.msra.mxu0 0.0
    %3531 = vmatprep.subr.mxu0 0.0
    %3532 = vmatpush1.msra.mxu0 0.0
    %3533 = vmatprep.subr.mxu0 0.0
    %3534 = vmatpush1.msra.mxu0 0.0
    %3535 = vmatprep.subr.mxu0 0.0
    %3536 = vmatpush1.msra.mxu0 0.0
    %3537 = vmatprep.subr.mxu0 0.0
    %3538 = vmatpush1.msra.mxu0 0.0
    %3539 = vmatprep.subr.mxu0 %v3436
    %3540 = vmatpush1.msra.mxu0 %v3435
    %3541 = vmatprep.subr.mxu0 %v3429
    %3542 = vmatpush1.msra.mxu0 %v3428
    %3543 = vmatprep.subr.mxu0 %v3422
    %3544 = vmatpush1.msra.mxu0 %v3421
    %3545 = vmatprep.subr.mxu0 %v3415
    %3546 = vmatpush1.msra.mxu0 %v3414
    %3547 = vmatprep.subr.mxu0 %v3408
    %3548 = vmatpush1.msra.mxu0 %v3407
    %3549 = vmatprep.subr.mxu0 %v3401
    %3550 = vmatpush1.msra.mxu0 %v3400
    %3551 = vmatprep.subr.mxu0 %v3394
    %3552 = vmatpush1.msra.mxu0 %v3393
    %3553 = vmatprep.subr.mxu0 %v3387
    %3554 = vmatpush1.msra.mxu0 %v3386
    %3555 = vmatprep.subr.mxu0 0.0
    %3556 = vmatpush2.msra.mxu0 0.0
    %3557 = vmatprep.subr.mxu0 0.0
    %3558 = vmatpush2.msra.mxu0 0.0
    %3559 = vmatprep.subr.mxu0 0.0
    %3560 = vmatpush2.msra.mxu0 0.0
    %3561 = vmatprep.subr.mxu0 0.0
    %3562 = vmatpush2.msra.mxu0 0.0
    %3563 = vmatprep.subr.mxu0 0.0
    %3564 = vmatpush2.msra.mxu0 0.0
    %3565 = vmatprep.subr.mxu0 0.0
    %3566 = vmatpush2.msra.mxu0 0.0
    %3567 = vmatprep.subr.mxu0 0.0
    %3568 = vmatpush2.msra.mxu0 0.0
    %3569 = vmatprep.subr.mxu0 0.0
    %3570 = vmatpush2.msra.mxu0 0.0
    %3571 = vmatprep.subr.mxu0 0.0
    %3572 = vmatpush2.msra.mxu0 0.0
    %3573 = vmatprep.subr.mxu0 0.0
    %3574 = vmatpush2.msra.mxu0 0.0
    %3575 = vmatprep.subr.mxu0 0.0
    %3576 = vmatpush2.msra.mxu0 0.0
    %3577 = vmatprep.subr.mxu0 0.0
    %3578 = vmatpush2.msra.mxu0 0.0
    %3579 = vmatprep.subr.mxu0 0.0
    %3580 = vmatpush2.msra.mxu0 0.0
    %3581 = vmatprep.subr.mxu0 0.0
    %3582 = vmatpush2.msra.mxu0 0.0
    %3583 = vmatprep.subr.mxu0 0.0
    %3584 = vmatpush2.msra.mxu0 0.0
    %3585 = vmatprep.subr.mxu0 0.0
    %3586 = vmatpush2.msra.mxu0 0.0
    %3587 = vmatprep.mubr.f32.mxu0 0.0
    %3588 = vmatmul.mubr.f32.gmra.mxu0 %v3441
    %v3589 = vpop.f32.mrf.mxu0
    %v3590 = vadd.f32 0.0, %v3589
    %v3591 = vpop.f32.mrf.mxu0
    %v3592 = vadd.f32 0.0, %v3591
    %3593 = vmatprep.mubr.f32.mxu0 0.0
    %3594 = vmatmul.mubr.f32.gmra.mxu0 %v3444
    %v3595 = vpop.f32.mrf.mxu0
    %v3596 = vadd.f32 0.0, %v3595
    %v3597 = vpop.f32.mrf.mxu0
    %v3598 = vadd.f32 0.0, %v3597
    %3599 = vdwg.mxu0
    %3600 = vmatprep.subr.mxu0 0.0
    %3601 = vmatpush1.msra.mxu0 0.0
    %3602 = vmatprep.subr.mxu0 0.0
    %3603 = vmatpush1.msra.mxu0 0.0
    %3604 = vmatprep.subr.mxu0 0.0
    %3605 = vmatpush1.msra.mxu0 0.0
    %3606 = vmatprep.subr.mxu0 0.0
    %3607 = vmatpush1.msra.mxu0 0.0
    %3608 = vmatprep.subr.mxu0 0.0
    %3609 = vmatpush1.msra.mxu0 0.0
    %3610 = vmatprep.subr.mxu0 0.0
    %3611 = vmatpush1.msra.mxu0 0.0
    %3612 = vmatprep.subr.mxu0 0.0
    %3613 = vmatpush1.msra.mxu0 0.0
    %3614 = vmatprep.subr.mxu0 0.0
    %3615 = vmatpush1.msra.mxu0 0.0
    %3616 = vmatprep.subr.mxu0 %v3438
    %3617 = vmatpush1.msra.mxu0 %v3437
    %3618 = vmatprep.subr.mxu0 %v3431
    %3619 = vmatpush1.msra.mxu0 %v3430
    %3620 = vmatprep.subr.mxu0 %v3424
    %3621 = vmatpush1.msra.mxu0 %v3423
    %3622 = vmatprep.subr.mxu0 %v3417
    %3623 = vmatpush1.msra.mxu0 %v3416
    %3624 = vmatprep.subr.mxu0 %v3410
    %3625 = vmatpush1.msra.mxu0 %v3409
    %3626 = vmatprep.subr.mxu0 %v3403
    %3627 = vmatpush1.msra.mxu0 %v3402
    %3628 = vmatprep.subr.mxu0 %v3396
    %3629 = vmatpush1.msra.mxu0 %v3395
    %3630 = vmatprep.subr.mxu0 %v3389
    %3631 = vmatpush1.msra.mxu0 %v3388
    %3632 = vmatprep.subr.mxu0 0.0
    %3633 = vmatpush2.msra.mxu0 0.0
    %3634 = vmatprep.subr.mxu0 0.0
    %3635 = vmatpush2.msra.mxu0 0.0
    %3636 = vmatprep.subr.mxu0 0.0
    %3637 = vmatpush2.msra.mxu0 0.0
    %3638 = vmatprep.subr.mxu0 0.0
    %3639 = vmatpush2.msra.mxu0 0.0
    %3640 = vmatprep.subr.mxu0 0.0
    %3641 = vmatpush2.msra.mxu0 0.0
    %3642 = vmatprep.subr.mxu0 0.0
    %3643 = vmatpush2.msra.mxu0 0.0
    %3644 = vmatprep.subr.mxu0 0.0
    %3645 = vmatpush2.msra.mxu0 0.0
    %3646 = vmatprep.subr.mxu0 0.0
    %3647 = vmatpush2.msra.mxu0 0.0
    %3648 = vmatprep.subr.mxu0 0.0
    %3649 = vmatpush2.msra.mxu0 0.0
    %3650 = vmatprep.subr.mxu0 0.0
    %3651 = vmatpush2.msra.mxu0 0.0
    %3652 = vmatprep.subr.mxu0 0.0
    %3653 = vmatpush2.msra.mxu0 0.0
    %3654 = vmatprep.subr.mxu0 0.0
    %3655 = vmatpush2.msra.mxu0 0.0
    %3656 = vmatprep.subr.mxu0 0.0
    %3657 = vmatpush2.msra.mxu0 0.0
    %3658 = vmatprep.subr.mxu0 0.0
    %3659 = vmatpush2.msra.mxu0 0.0
    %3660 = vmatprep.subr.mxu0 0.0
    %3661 = vmatpush2.msra.mxu0 0.0
    %3662 = vmatprep.subr.mxu0 0.0
    %3663 = vmatpush2.msra.mxu0 0.0
    %3664 = vmatprep.mubr.f32.mxu0 0.0
    %3665 = vmatmul.mubr.f32.gmra.mxu0 %v3441
    %v3666 = vpop.f32.mrf.mxu0
    %v3667 = vadd.f32 0.0, %v3666
    %v3668 = vpop.f32.mrf.mxu0
    %v3669 = vadd.f32 0.0, %v3668
    %3670 = vmatprep.mubr.f32.mxu0 0.0
    %3671 = vmatmul.mubr.f32.gmra.mxu0 %v3444
    %v3672 = vpop.f32.mrf.mxu0
    %v3673 = vadd.f32 0.0, %v3672
    %v3674 = vpop.f32.mrf.mxu0
    %v3675 = vadd.f32 0.0, %v3674
    %3676 = vdwg.mxu0
    %3677 = vmatprep.subr.mxu0 0.0
    %3678 = vmatpush1.msra.mxu0 0.0
    %3679 = vmatprep.subr.mxu0 0.0
    %3680 = vmatpush1.msra.mxu0 0.0
    %3681 = vmatprep.subr.mxu0 0.0
    %3682 = vmatpush1.msra.mxu0 0.0
    %3683 = vmatprep.subr.mxu0 0.0
    %3684 = vmatpush1.msra.mxu0 0.0
    %3685 = vmatprep.subr.mxu0 0.0
    %3686 = vmatpush1.msra.mxu0 0.0
    %3687 = vmatprep.subr.mxu0 0.0
    %3688 = vmatpush1.msra.mxu0 0.0
    %3689 = vmatprep.subr.mxu0 0.0
    %3690 = vmatpush1.msra.mxu0 0.0
    %3691 = vmatprep.subr.mxu0 0.0
    %3692 = vmatpush1.msra.mxu0 0.0
    %3693 = vmatprep.subr.mxu0 0.0
    %3694 = vmatpush1.msra.mxu0 %v3439
    %3695 = vmatprep.subr.mxu0 0.0
    %3696 = vmatpush1.msra.mxu0 %v3432
    %3697 = vmatprep.subr.mxu0 0.0
    %3698 = vmatpush1.msra.mxu0 %v3425
    %3699 = vmatprep.subr.mxu0 0.0
    %3700 = vmatpush1.msra.mxu0 %v3418
    %3701 = vmatprep.subr.mxu0 0.0
    %3702 = vmatpush1.msra.mxu0 %v3411
    %3703 = vmatprep.subr.mxu0 0.0
    %3704 = vmatpush1.msra.mxu0 %v3404
    %3705 = vmatprep.subr.mxu0 0.0
    %3706 = vmatpush1.msra.mxu0 %v3397
    %3707 = vmatprep.subr.mxu0 0.0
    %3708 = vmatpush1.msra.mxu0 %v3390
    %3709 = vmatprep.subr.mxu0 0.0
    %3710 = vmatpush2.msra.mxu0 0.0
    %3711 = vmatprep.subr.mxu0 0.0
    %3712 = vmatpush2.msra.mxu0 0.0
    %3713 = vmatprep.subr.mxu0 0.0
    %3714 = vmatpush2.msra.mxu0 0.0
    %3715 = vmatprep.subr.mxu0 0.0
    %3716 = vmatpush2.msra.mxu0 0.0
    %3717 = vmatprep.subr.mxu0 0.0
    %3718 = vmatpush2.msra.mxu0 0.0
    %3719 = vmatprep.subr.mxu0 0.0
    %3720 = vmatpush2.msra.mxu0 0.0
    %3721 = vmatprep.subr.mxu0 0.0
    %3722 = vmatpush2.msra.mxu0 0.0
    %3723 = vmatprep.subr.mxu0 0.0
    %3724 = vmatpush2.msra.mxu0 0.0
    %3725 = vmatprep.subr.mxu0 0.0
    %3726 = vmatpush2.msra.mxu0 0.0
    %3727 = vmatprep.subr.mxu0 0.0
    %3728 = vmatpush2.msra.mxu0 0.0
    %3729 = vmatprep.subr.mxu0 0.0
    %3730 = vmatpush2.msra.mxu0 0.0
    %3731 = vmatprep.subr.mxu0 0.0
    %3732 = vmatpush2.msra.mxu0 0.0
    %3733 = vmatprep.subr.mxu0 0.0
    %3734 = vmatpush2.msra.mxu0 0.0
    %3735 = vmatprep.subr.mxu0 0.0
    %3736 = vmatpush2.msra.mxu0 0.0
    %3737 = vmatprep.subr.mxu0 0.0
    %3738 = vmatpush2.msra.mxu0 0.0
    %3739 = vmatprep.subr.mxu0 0.0
    %3740 = vmatpush2.msra.mxu0 0.0
    %3741 = vmatprep.mubr.f32.mxu0 0.0
    %3742 = vmatmul.mubr.f32.gmra.mxu0 %v3441
    %v3743 = vpop.f32.mrf.mxu0
    %v3744 = vadd.f32 0.0, %v3743
    %v3745 = vpop.f32.mrf.mxu0
    %3746 = vmatprep.mubr.f32.mxu0 0.0
    %3747 = vmatmul.mubr.f32.gmra.mxu0 %v3444
    %v3748 = vpop.f32.mrf.mxu0
    %v3749 = vadd.f32 0.0, %v3748
    %v3750 = vpop.f32.mrf.mxu0
    %3751 = vdwg.mxu0
    %v3752 = vadd.f32 %v3370, %v3513
    %v3753 = vadd.f32 %v3371, %v3515
    %v3754 = vadd.f32 %v3372, %v3590
    %v3755 = vadd.f32 %v3373, %v3592
    %v3756 = vadd.f32 %v3374, %v3667
    %v3757 = vadd.f32 %v3375, %v3669
    %v3758 = vadd.f32 %v3376, %v3744
    %v3759 = vadd.f32 %v3377, %v3519
    %v3760 = vadd.f32 %v3378, %v3521
    %v3761 = vadd.f32 %v3379, %v3596
    %v3762 = vadd.f32 %v3380, %v3598
    %v3763 = vadd.f32 %v3381, %v3673
    %v3764 = vadd.f32 %v3382, %v3675
    %v3765 = vadd.f32 %v3383, %v3749
    %v3766 = vmul.f32 %v3752, %v1346
    %v3767 = vmul.f32 %v3759, %v1346
    %v3768 = vadd.f32 %v3766, 0.5
    %v3769 = vadd.f32 %v3767, 0.5
    %v3770 = vmax.f32 %v3768, 0.0
    %v3771 = vmax.f32 %v3769, 0.0
    %v3772 = vmin.f32 %v3770, 1.0
    %v3773 = vmin.f32 %v3771, 1.0
    %v3774 = vtanh.pop %v3753
    %v3775 = vtanh.pop %v3760
    %v3776 = vmul.f32 %v3753, %v1346
    %v3777 = vmul.f32 %v3760, %v1346
    %v3778 = vadd.f32 %v3776, 0.5
    %v3779 = vadd.f32 %v3777, 0.5
    %v3780 = vmax.f32 %v3778, 0.0
    %v3781 = vmax.f32 %v3779, 0.0
    %v3782 = vmin.f32 %v3780, 1.0
    %v3783 = vmin.f32 %v3781, 1.0
    %v3784 = vmul.f32 %v3754, %v1346
    %v3785 = vmul.f32 %v3755, %v1346
    %v3786 = vmul.f32 %v3756, %v1346
    %v3787 = vmul.f32 %v3757, %v1346
    %v3788 = vmul.f32 %v3758, %v1346
    %v3789 = vmul.f32 %v3761, %v1346
    %v3790 = vmul.f32 %v3762, %v1346
    %v3791 = vmul.f32 %v3763, %v1346
    %v3792 = vmul.f32 %v3764, %v1346
    %v3793 = vmul.f32 %v3765, %v1346
    %v3794 = vadd.f32 %v3784, 0.5
    %v3795 = vadd.f32 %v3785, 0.5
    %v3796 = vadd.f32 %v3786, 0.5
    %v3797 = vadd.f32 %v3787, 0.5
    %v3798 = vadd.f32 %v3788, 0.5
    %v3799 = vadd.f32 %v3789, 0.5
    %v3800 = vadd.f32 %v3790, 0.5
    %v3801 = vadd.f32 %v3791, 0.5
    %v3802 = vadd.f32 %v3792, 0.5
    %v3803 = vadd.f32 %v3793, 0.5
    %v3804 = vmax.f32 %v3794, 0.0
    %v3805 = vmax.f32 %v3795, 0.0
    %v3806 = vmax.f32 %v3796, 0.0
    %v3807 = vmax.f32 %v3797, 0.0
    %v3808 = vmax.f32 %v3798, 0.0
    %v3809 = vmax.f32 %v3799, 0.0
    %v3810 = vmax.f32 %v3800, 0.0
    %v3811 = vmax.f32 %v3801, 0.0
    %v3812 = vmax.f32 %v3802, 0.0
    %v3813 = vmax.f32 %v3803, 0.0
    %v3814 = vmin.f32 %v3804, 1.0
    %v3815 = vmin.f32 %v3805, 1.0
    %v3816 = vmin.f32 %v3806, 1.0
    %v3817 = vmin.f32 %v3807, 1.0
    %v3818 = vmin.f32 %v3808, 1.0
    %v3819 = vmin.f32 %v3809, 1.0
    %v3820 = vmin.f32 %v3810, 1.0
    %v3821 = vmin.f32 %v3811, 1.0
    %v3822 = vmin.f32 %v3812, 1.0
    %v3823 = vmin.f32 %v3813, 1.0
    %v3824 = vmul.f32 %v3772, %v3774
    %v3825 = vmul.f32 %v3773, %v3775
    %3828 = vrot.lane.b32.xlu0 %v3772, 64
    %v3829 = vpop.permute.xlu0 %3828
    %3830 = vrot.lane.b32.xlu0 %v3773, 64
    %v3831 = vpop.permute.xlu0 %3830
    %v3834 = vsel %vm922, %v3829, %v3772
    %v3835 = vsel %vm922, %v3831, %v3773
    %3838 = vrot.lane.b32.xlu0 %v3824, 64
    %v3839 = vpop.permute.xlu0 %3838
    %3840 = vrot.lane.b32.xlu0 %v3825, 64
    %v3841 = vpop.permute.xlu0 %3840
    %v3844 = vsel %vm922, %v3824, %v3839
    %v3845 = vsel %vm922, %v3825, %v3841
    %v3846 = vmul.f32 %v3834, %v3814
    %v3847 = vmul.f32 %v3834, %v3815
    %v3848 = vmul.f32 %v3834, %v3816
    %v3849 = vmul.f32 %v3834, %v3817
    %v3850 = vmul.f32 %v3834, %v3818
    %v3851 = vmul.f32 %v3835, %v3819
    %v3852 = vmul.f32 %v3835, %v3820
    %v3853 = vmul.f32 %v3835, %v3821
    %v3854 = vmul.f32 %v3835, %v3822
    %v3855 = vmul.f32 %v3835, %v3823
    %s3856 = scalar_lea.vmem %s6, 3
    %v3857 = vld [vmem:[%s3856] ss:$8 sm:$0xf]
    %v3858 = vld [vmem:[%s3856] ss:$8 sm:$0x10]
    %v3859 = vor.u32 %v3857, %v3858
    %s3860 = scalar_lea.vmem %s7, 3
    %v3861 = vld [vmem:[%s3860] ss:$8 sm:$0xf]
    %v3862 = vld [vmem:[%s3860] ss:$8 sm:$0x10]
    %v3863 = vor.u32 %v3861, %v3862
    %v3864 = vld [vmem:[#allocation4] sm:$0xff]
    %v3865 = vld [vmem:[#allocation4 + $0x8] sm:$0xff]
    %v3866 = vld [vmem:[#allocation4 + $0x10] sm:$0xff]
    %v3867 = vld [vmem:[#allocation4 + $0x18] sm:$0xff]
    %v3868 = vld [vmem:[#allocation4 + $0x20] sm:$0xff]
    %v3869 = vld [vmem:[#allocation4 + $0x28] sm:$0xff]
    %v3870 = vld [vmem:[#allocation4 + $0x30] sm:$0xff]
    %v3871 = vld [vmem:[#allocation4 + $0x38] sm:$0xff]
    %v3872 = vld [vmem:[#allocation4 + $0x40] sm:$0xff]
    %v3873 = vld [vmem:[#allocation4 + $0x48] sm:$0xff]
    %v3874 = vmul.f32 %v3846, %v3864
    %v3875 = vmul.f32 %v3847, %v3865
    %v3876 = vmul.f32 %v3848, %v3866
    %v3877 = vmul.f32 %v3849, %v3867
    %v3878 = vmul.f32 %v3850, %v3868
    %v3879 = vmul.f32 %v3851, %v3869
    %v3880 = vmul.f32 %v3852, %v3870
    %v3881 = vmul.f32 %v3853, %v3871
    %v3882 = vmul.f32 %v3854, %v3872
    %v3883 = vmul.f32 %v3855, %v3873
    %v3885 = vlaneseq
    %v3886 = vshrl.u32 %v3885, 7
    %v3887 = vsub.s32 0, %v3886
    %v3888 = vrot.slane %v3859, %v3887
    %v3889 = vlaneseq
    %v3890 = vshrl.u32 %v3889, 7
    %v3891 = vsub.s32 1, %v3890
    %v3892 = vrot.slane %v3859, %v3891
    %v3893 = vlaneseq
    %v3894 = vshrl.u32 %v3893, 7
    %v3895 = vsub.s32 2, %v3894
    %v3896 = vrot.slane %v3859, %v3895
    %v3897 = vlaneseq
    %v3898 = vshrl.u32 %v3897, 7
    %v3899 = vsub.s32 3, %v3898
    %v3900 = vrot.slane %v3859, %v3899
    %v3901 = vlaneseq
    %v3902 = vshrl.u32 %v3901, 7
    %v3903 = vsub.s32 4, %v3902
    %v3904 = vrot.slane %v3859, %v3903
    %v3910 = vmul.f32 %v3844, %v3888
    %v3911 = vmul.f32 %v3844, %v3892
    %v3912 = vmul.f32 %v3844, %v3896
    %v3913 = vmul.f32 %v3844, %v3900
    %v3914 = vmul.f32 %v3844, %v3904
    %v3915 = vmul.f32 %v3845, %v3888
    %v3916 = vmul.f32 %v3845, %v3892
    %v3917 = vmul.f32 %v3845, %v3896
    %v3918 = vmul.f32 %v3845, %v3900
    %v3919 = vmul.f32 %v3845, %v3904
    %v3920 = vadd.f32 %v3874, %v3910
    %v3921 = vadd.f32 %v3875, %v3911
    %v3922 = vadd.f32 %v3876, %v3912
    %v3923 = vadd.f32 %v3877, %v3913
    %v3924 = vadd.f32 %v3878, %v3914
    %v3925 = vadd.f32 %v3879, %v3915
    %v3926 = vadd.f32 %v3880, %v3916
    %v3927 = vadd.f32 %v3881, %v3917
    %v3928 = vadd.f32 %v3882, %v3918
    %v3929 = vadd.f32 %v3883, %v3919
    %v3930 = vld [vmem:[#allocation5] sm:$0xff]
    %v3931 = vld [vmem:[#allocation5 + $0x8] sm:$0xff]
    %v3932 = vld [vmem:[#allocation5 + $0x10] sm:$0xff]
    %v3933 = vld [vmem:[#allocation5 + $0x18] sm:$0xff]
    %v3934 = vld [vmem:[#allocation5 + $0x20] sm:$0xff]
    %v3935 = vld [vmem:[#allocation5 + $0x28] sm:$0xff]
    %v3936 = vld [vmem:[#allocation5 + $0x30] sm:$0xff]
    %v3937 = vld [vmem:[#allocation5 + $0x38] sm:$0xff]
    %v3938 = vld [vmem:[#allocation5 + $0x40] sm:$0xff]
    %v3939 = vld [vmem:[#allocation5 + $0x48] sm:$0xff]
    %v3940 = vmul.f32 %v3846, %v3930
    %v3941 = vmul.f32 %v3847, %v3931
    %v3942 = vmul.f32 %v3848, %v3932
    %v3943 = vmul.f32 %v3849, %v3933
    %v3944 = vmul.f32 %v3850, %v3934
    %v3945 = vmul.f32 %v3851, %v3935
    %v3946 = vmul.f32 %v3852, %v3936
    %v3947 = vmul.f32 %v3853, %v3937
    %v3948 = vmul.f32 %v3854, %v3938
    %v3949 = vmul.f32 %v3855, %v3939
    %v3951 = vlaneseq
    %v3952 = vshrl.u32 %v3951, 7
    %v3953 = vsub.s32 0, %v3952
    %v3954 = vrot.slane %v3863, %v3953
    %v3955 = vlaneseq
    %v3956 = vshrl.u32 %v3955, 7
    %v3957 = vsub.s32 1, %v3956
    %v3958 = vrot.slane %v3863, %v3957
    %v3959 = vlaneseq
    %v3960 = vshrl.u32 %v3959, 7
    %v3961 = vsub.s32 2, %v3960
    %v3962 = vrot.slane %v3863, %v3961
    %v3963 = vlaneseq
    %v3964 = vshrl.u32 %v3963, 7
    %v3965 = vsub.s32 3, %v3964
    %v3966 = vrot.slane %v3863, %v3965
    %v3967 = vlaneseq
    %v3968 = vshrl.u32 %v3967, 7
    %v3969 = vsub.s32 4, %v3968
    %v3970 = vrot.slane %v3863, %v3969
    %v3976 = vmul.f32 %v3844, %v3954
    %v3977 = vmul.f32 %v3844, %v3958
    %v3978 = vmul.f32 %v3844, %v3962
    %v3979 = vmul.f32 %v3844, %v3966
    %v3980 = vmul.f32 %v3844, %v3970
    %v3981 = vmul.f32 %v3845, %v3954
    %v3982 = vmul.f32 %v3845, %v3958
    %v3983 = vmul.f32 %v3845, %v3962
    %v3984 = vmul.f32 %v3845, %v3966
    %v3985 = vmul.f32 %v3845, %v3970
    %v3986 = vadd.f32 %v3940, %v3976
    %v3987 = vadd.f32 %v3941, %v3977
    %v3988 = vadd.f32 %v3942, %v3978
    %v3989 = vadd.f32 %v3943, %v3979
    %v3990 = vadd.f32 %v3944, %v3980
    %v3991 = vadd.f32 %v3945, %v3981
    %v3992 = vadd.f32 %v3946, %v3982
    %v3993 = vadd.f32 %v3947, %v3983
    %v3994 = vadd.f32 %v3948, %v3984
    %v3995 = vadd.f32 %v3949, %v3985
    %3996 = vst [vmem:[#allocation4] sm:$0xff] %v3920
    %3997 = vst [vmem:[#allocation4 + $0x8] sm:$0xff] %v3921
    %3998 = vst [vmem:[#allocation4 + $0x10] sm:$0xff] %v3922
    %3999 = vst [vmem:[#allocation4 + $0x18] sm:$0xff] %v3923
    %4000 = vst [vmem:[#allocation4 + $0x20] sm:$0xff] %v3924
    %4001 = vst [vmem:[#allocation4 + $0x28] sm:$0xff] %v3925
    %4002 = vst [vmem:[#allocation4 + $0x30] sm:$0xff] %v3926
    %4003 = vst [vmem:[#allocation4 + $0x38] sm:$0xff] %v3927
    %4004 = vst [vmem:[#allocation4 + $0x40] sm:$0xff] %v3928
    %4005 = vst [vmem:[#allocation4 + $0x48] sm:$0xff] %v3929
    %4006 = vst [vmem:[#allocation5] sm:$0xff] %v3986
    %4007 = vst [vmem:[#allocation5 + $0x8] sm:$0xff] %v3987
    %4008 = vst [vmem:[#allocation5 + $0x10] sm:$0xff] %v3988
    %4009 = vst [vmem:[#allocation5 + $0x18] sm:$0xff] %v3989
    %4010 = vst [vmem:[#allocation5 + $0x20] sm:$0xff] %v3990
    %4011 = vst [vmem:[#allocation5 + $0x28] sm:$0xff] %v3991
    %4012 = vst [vmem:[#allocation5 + $0x30] sm:$0xff] %v3992
    %4013 = vst [vmem:[#allocation5 + $0x38] sm:$0xff] %v3993
    %4014 = vst [vmem:[#allocation5 + $0x40] sm:$0xff] %v3994
    %4015 = vst [vmem:[#allocation5 + $0x48] sm:$0xff] %v3995
    %v4016 = vmul.f32 %v3920, %v3920
    %v4017 = vmul.f32 %v3921, %v3921
    %v4018 = vmul.f32 %v3922, %v3922
    %v4019 = vmul.f32 %v3923, %v3923
    %v4020 = vmul.f32 %v3924, %v3924
    %v4021 = vmul.f32 %v3925, %v3925
    %v4022 = vmul.f32 %v3926, %v3926
    %v4023 = vmul.f32 %v3927, %v3927
    %v4024 = vmul.f32 %v3928, %v3928
    %v4025 = vmul.f32 %v3929, %v3929
    %v4026 = vmul.f32 %v3986, %v3986
    %v4027 = vmul.f32 %v3987, %v3987
    %v4028 = vmul.f32 %v3988, %v3988
    %v4029 = vmul.f32 %v3989, %v3989
    %v4030 = vmul.f32 %v3990, %v3990
    %v4031 = vmul.f32 %v3991, %v3991
    %v4032 = vmul.f32 %v3992, %v3992
    %v4033 = vmul.f32 %v3993, %v3993
    %v4034 = vmul.f32 %v3994, %v3994
    %v4035 = vmul.f32 %v3995, %v3995
    %v4036 = vadd.f32 %v4016, %v4026
    %v4037 = vadd.f32 %v4017, %v4027
    %v4038 = vadd.f32 %v4018, %v4028
    %v4039 = vadd.f32 %v4019, %v4029
    %v4040 = vadd.f32 %v4020, %v4030
    %v4041 = vadd.f32 %v4021, %v4031
    %v4042 = vadd.f32 %v4022, %v4032
    %v4043 = vadd.f32 %v4023, %v4033
    %v4044 = vadd.f32 %v4024, %v4034
    %v4045 = vadd.f32 %v4025, %v4035
    %v4046 = vld [vmem:[%s5] sm:$0x1f]
    %v4048 = vlaneseq
    %v4049 = vshrl.u32 %v4048, 7
    %v4050 = vsub.s32 0, %v4049
    %v4051 = vrot.slane %v4046, %v4050
    %v4052 = vlaneseq
    %v4053 = vshrl.u32 %v4052, 7
    %v4054 = vsub.s32 1, %v4053
    %v4055 = vrot.slane %v4046, %v4054
    %v4056 = vlaneseq
    %v4057 = vshrl.u32 %v4056, 7
    %v4058 = vsub.s32 2, %v4057
    %v4059 = vrot.slane %v4046, %v4058
    %v4060 = vlaneseq
    %v4061 = vshrl.u32 %v4060, 7
    %v4062 = vsub.s32 3, %v4061
    %v4063 = vrot.slane %v4046, %v4062
    %v4064 = vlaneseq
    %v4065 = vshrl.u32 %v4064, 7
    %v4066 = vsub.s32 4, %v4065
    %v4067 = vrot.slane %v4046, %v4066
    %v4073 = vmul.f32 %v4036, %v4051
    %v4074 = vmul.f32 %v4037, %v4055
    %v4075 = vmul.f32 %v4038, %v4059
    %v4076 = vmul.f32 %v4039, %v4063
    %v4077 = vmul.f32 %v4040, %v4067
    %v4078 = vmul.f32 %v4041, %v4051
    %v4079 = vmul.f32 %v4042, %v4055
    %v4080 = vmul.f32 %v4043, %v4059
    %v4081 = vmul.f32 %v4044, %v4063
    %v4082 = vmul.f32 %v4045, %v4067
    %4085 = vrot.lane.b32.xlu0 %v4073, 64
    %v4086 = vpop.permute.xlu0 %4085
    %4087 = vrot.lane.b32.xlu0 %v4078, 64
    %v4088 = vpop.permute.xlu0 %4087
    %v4091 = vadd.f32 %v4073, %v4086
    %v4092 = vadd.f32 %v4078, %v4088
    %4095 = vrot.lane.b32.xlu0 %v4074, 64
    %v4096 = vpop.permute.xlu0 %4095
    %4097 = vrot.lane.b32.xlu0 %v4079, 64
    %v4098 = vpop.permute.xlu0 %4097
    %v4101 = vadd.f32 %v4074, %v4096
    %v4102 = vadd.f32 %v4079, %v4098
    %4105 = vrot.lane.b32.xlu0 %v4075, 64
    %v4106 = vpop.permute.xlu0 %4105
    %4107 = vrot.lane.b32.xlu0 %v4080, 64
    %v4108 = vpop.permute.xlu0 %4107
    %v4111 = vadd.f32 %v4075, %v4106
    %v4112 = vadd.f32 %v4080, %v4108
    %4115 = vrot.lane.b32.xlu0 %v4076, 64
    %v4116 = vpop.permute.xlu0 %4115
    %4117 = vrot.lane.b32.xlu0 %v4081, 64
    %v4118 = vpop.permute.xlu0 %4117
    %v4121 = vadd.f32 %v4076, %v4116
    %v4122 = vadd.f32 %v4081, %v4118
    %4125 = vrot.lane.b32.xlu0 %v4077, 64
    %v4126 = vpop.permute.xlu0 %4125
    %4127 = vrot.lane.b32.xlu0 %v4082, 64
    %v4128 = vpop.permute.xlu0 %4127
    %v4131 = vadd.f32 %v4077, %v4126
    %v4132 = vadd.f32 %v4082, %v4128
    %v4133 = vadd.f32 %v4091, %v4101
    %v4134 = vadd.f32 %v4092, %v4102
    %v4135 = vadd.f32 %v4111, %v4121
    %v4136 = vadd.f32 %v4112, %v4122
    %v4137 = vadd.f32 %v4133, %v4135
    %v4138 = vadd.f32 %v4134, %v4136
    %v4139 = vadd.f32 %v4137, %v4131
    %v4140 = vadd.f32 %v4138, %v4132
    %v4141 = vld [vmem:[%s4] sm:$0x1]
    %v4143 = vlaneseq
    %v4144 = vshrl.u32 %v4143, 7
    %v4145 = vsub.s32 0, %v4144
    %v4146 = vrot.slane %v4141, %v4145
    %v4148 = vadd.f32 %v4139, %v4146
    %v4149 = vadd.f32 %v4140, %v4146
    %v4150 = vtanh.pop %v4148
    %v4151 = vtanh.pop %v4149
    %4154 = vrot.lane.b32.xlu0 %v4150, 64
    %v4155 = vpop.permute.xlu0 %4154
    %4156 = vrot.lane.b32.xlu0 %v4151, 64
    %v4157 = vpop.permute.xlu0 %4156
    %v4160 = vmul.f32 %v3782, %v4155
    %v4161 = vmul.f32 %v3783, %v4157
    %4164 = vrot.lane.b32.xlu0 %v4160, 64
    %v4165 = vpop.permute.xlu0 %4164
    %4166 = vrot.lane.b32.xlu0 %v4161, 64
    %v4167 = vpop.permute.xlu0 %4166
    %4170 = vst.msk [vmem:[#allocation3] sm:$0xff] %vm922, %v4165
    %4171 = vst.msk [vmem:[#allocation3 + $0x8] sm:$0xff] %vm922, %v4167
    %v4172 = vld [vmem:[#allocation3] sm:$0xff]
    %v4173 = vld [vmem:[#allocation3 + $0x8] sm:$0xff]
    %s4174 = smul.u32 8, 7
    %s4175 = smul.addr %s4174, 8
    %s4176 = scalar_lea.vmem [#allocation2], %s4175
    %v4177 = vld [vmem:[%s4176] sm:$0xff]
    %v4178 = vld [vmem:[%s4176 + $0x8] sm:$0xff]
    %v4179 = vld [vmem:[%s4176 + $0x10] sm:$0xff]
    %v4180 = vld [vmem:[%s4176 + $0x18] sm:$0xff]
    %v4181 = vld [vmem:[%s4176 + $0x20] sm:$0xff]
    %v4182 = vld [vmem:[%s4176 + $0x28] sm:$0xff]
    %v4183 = vld [vmem:[%s4176 + $0x30] sm:$0xff]
    %v4184 = vld [vmem:[%s4176 + $0x38] sm:$0xff]
    %v4185 = vld [vmem:[%s4176 + $0x40] sm:$0xff]
    %v4186 = vld [vmem:[%s4176 + $0x48] sm:$0xff]
    %v4187 = vld [vmem:[%s4176 + $0x50] sm:$0xff]
    %v4188 = vld [vmem:[%s4176 + $0x58] sm:$0xff]
    %v4189 = vld [vmem:[%s4176 + $0x60] sm:$0xff]
    %v4190 = vld [vmem:[%s4176 + $0x68] sm:$0xff]
    %v4191 = vld [vmem:[#allocation7] sm:$0xff]
    %v4192 = vld [vmem:[#allocation7 + $0x8] sm:$0xff]
    %v4193 = vld [vmem:[#allocation7 + $0x10] sm:$0xff]
    %v4194 = vld [vmem:[#allocation7 + $0x18] sm:$0xff]
    %v4195 = vld [vmem:[#allocation7 + $0x20] sm:$0xff]
    %v4196 = vld [vmem:[#allocation7 + $0x28] sm:$0xff]
    %v4197 = vld [vmem:[#allocation7 + $0x30] sm:$0xff]
    %v4198 = vld [vmem:[#allocation7 + $0x38] sm:$0xff]
    %v4199 = vld [vmem:[#allocation7 + $0x40] sm:$0xff]
    %v4200 = vld [vmem:[#allocation7 + $0x48] sm:$0xff]
    %v4201 = vld [vmem:[#allocation7 + $0x50] sm:$0xff]
    %v4202 = vld [vmem:[#allocation7 + $0x58] sm:$0xff]
    %v4203 = vld [vmem:[#allocation7 + $0x60] sm:$0xff]
    %v4204 = vld [vmem:[#allocation7 + $0x68] sm:$0xff]
    %v4205 = vld [vmem:[#allocation7 + $0x70] sm:$0xff]
    %v4206 = vld [vmem:[#allocation7 + $0x78] sm:$0xff]
    %v4207 = vld [vmem:[#allocation7 + $0x80] sm:$0xff]
    %v4208 = vld [vmem:[#allocation7 + $0x88] sm:$0xff]
    %v4209 = vld [vmem:[#allocation7 + $0x90] sm:$0xff]
    %v4210 = vld [vmem:[#allocation7 + $0x98] sm:$0xff]
    %v4211 = vld [vmem:[#allocation7 + $0xa0] sm:$0xff]
    %v4212 = vld [vmem:[#allocation7 + $0xa8] sm:$0xff]
    %v4213 = vld [vmem:[#allocation7 + $0xb0] sm:$0xff]
    %v4214 = vld [vmem:[#allocation7 + $0xb8] sm:$0xff]
    %v4215 = vld [vmem:[#allocation7 + $0xc0] sm:$0xff]
    %v4216 = vld [vmem:[#allocation7 + $0xc8] sm:$0xff]
    %v4217 = vld [vmem:[#allocation7 + $0xd0] sm:$0xff]
    %v4218 = vld [vmem:[#allocation7 + $0xd8] sm:$0xff]
    %v4219 = vld [vmem:[#allocation7 + $0xe0] sm:$0xff]
    %v4220 = vld [vmem:[#allocation7 + $0xe8] sm:$0xff]
    %v4221 = vld [vmem:[#allocation7 + $0xf0] sm:$0xff]
    %v4222 = vld [vmem:[#allocation7 + $0xf8] sm:$0xff]
    %v4223 = vld [vmem:[#allocation7 + $0x100] sm:$0xff]
    %v4224 = vld [vmem:[#allocation7 + $0x108] sm:$0xff]
    %v4225 = vld [vmem:[#allocation7 + $0x110] sm:$0xff]
    %v4226 = vld [vmem:[#allocation7 + $0x118] sm:$0xff]
    %v4227 = vld [vmem:[#allocation7 + $0x120] sm:$0xff]
    %v4228 = vld [vmem:[#allocation7 + $0x128] sm:$0xff]
    %v4229 = vld [vmem:[#allocation7 + $0x130] sm:$0xff]
    %v4230 = vld [vmem:[#allocation7 + $0x138] sm:$0xff]
    %v4231 = vld [vmem:[#allocation7 + $0x140] sm:$0xff]
    %v4232 = vld [vmem:[#allocation7 + $0x148] sm:$0xff]
    %v4233 = vld [vmem:[#allocation7 + $0x150] sm:$0xff]
    %v4234 = vld [vmem:[#allocation7 + $0x158] sm:$0xff]
    %v4235 = vld [vmem:[#allocation7 + $0x160] sm:$0xff]
    %v4236 = vld [vmem:[#allocation7 + $0x168] sm:$0xff]
    %v4237 = vld [vmem:[#allocation7 + $0x170] sm:$0xff]
    %v4238 = vld [vmem:[#allocation7 + $0x178] sm:$0xff]
    %v4239 = vld [vmem:[#allocation7 + $0x180] sm:$0xff]
    %v4240 = vld [vmem:[#allocation7 + $0x188] sm:$0xff]
    %v4241 = vld [vmem:[#allocation7 + $0x190] sm:$0xff]
    %v4242 = vld [vmem:[#allocation7 + $0x198] sm:$0xff]
    %v4243 = vld [vmem:[#allocation7 + $0x1a0] sm:$0xff]
    %v4244 = vld [vmem:[#allocation7 + $0x1a8] sm:$0xff]
    %v4245 = vld [vmem:[#allocation7 + $0x1b0] sm:$0xff]
    %v4246 = vld [vmem:[#allocation7 + $0x1b8] sm:$0xff]
    %v4248 = vsel %vm922, %v4172, 0
    %v4251 = vsel %vm922, %v4173, 0
    %4253 = vmatprep.subr.mxu0 0.0
    %4254 = vmatpush1.msra.mxu0 0.0
    %4255 = vmatprep.subr.mxu0 0.0
    %4256 = vmatpush1.msra.mxu0 0.0
    %4257 = vmatprep.subr.mxu0 0.0
    %4258 = vmatpush1.msra.mxu0 0.0
    %4259 = vmatprep.subr.mxu0 0.0
    %4260 = vmatpush1.msra.mxu0 0.0
    %4261 = vmatprep.subr.mxu0 0.0
    %4262 = vmatpush1.msra.mxu0 0.0
    %4263 = vmatprep.subr.mxu0 0.0
    %4264 = vmatpush1.msra.mxu0 0.0
    %4265 = vmatprep.subr.mxu0 0.0
    %4266 = vmatpush1.msra.mxu0 0.0
    %4267 = vmatprep.subr.mxu0 0.0
    %4268 = vmatpush1.msra.mxu0 0.0
    %4269 = vmatprep.subr.mxu0 %v4241
    %4270 = vmatpush1.msra.mxu0 %v4240
    %4271 = vmatprep.subr.mxu0 %v4234
    %4272 = vmatpush1.msra.mxu0 %v4233
    %4273 = vmatprep.subr.mxu0 %v4227
    %4274 = vmatpush1.msra.mxu0 %v4226
    %4275 = vmatprep.subr.mxu0 %v4220
    %4276 = vmatpush1.msra.mxu0 %v4219
    %4277 = vmatprep.subr.mxu0 %v4213
    %4278 = vmatpush1.msra.mxu0 %v4212
    %4279 = vmatprep.subr.mxu0 %v4206
    %4280 = vmatpush1.msra.mxu0 %v4205
    %4281 = vmatprep.subr.mxu0 %v4199
    %4282 = vmatpush1.msra.mxu0 %v4198
    %4283 = vmatprep.subr.mxu0 %v4192
    %4284 = vmatpush1.msra.mxu0 %v4191
    %4285 = vmatprep.subr.mxu0 0.0
    %4286 = vmatpush2.msra.mxu0 0.0
    %4287 = vmatprep.subr.mxu0 0.0
    %4288 = vmatpush2.msra.mxu0 0.0
    %4289 = vmatprep.subr.mxu0 0.0
    %4290 = vmatpush2.msra.mxu0 0.0
    %4291 = vmatprep.subr.mxu0 0.0
    %4292 = vmatpush2.msra.mxu0 0.0
    %4293 = vmatprep.subr.mxu0 0.0
    %4294 = vmatpush2.msra.mxu0 0.0
    %4295 = vmatprep.subr.mxu0 0.0
    %4296 = vmatpush2.msra.mxu0 0.0
    %4297 = vmatprep.subr.mxu0 0.0
    %4298 = vmatpush2.msra.mxu0 0.0
    %4299 = vmatprep.subr.mxu0 0.0
    %4300 = vmatpush2.msra.mxu0 0.0
    %4301 = vmatprep.subr.mxu0 0.0
    %4302 = vmatpush2.msra.mxu0 0.0
    %4303 = vmatprep.subr.mxu0 0.0
    %4304 = vmatpush2.msra.mxu0 0.0
    %4305 = vmatprep.subr.mxu0 0.0
    %4306 = vmatpush2.msra.mxu0 0.0
    %4307 = vmatprep.subr.mxu0 0.0
    %4308 = vmatpush2.msra.mxu0 0.0
    %4309 = vmatprep.subr.mxu0 0.0
    %4310 = vmatpush2.msra.mxu0 0.0
    %4311 = vmatprep.subr.mxu0 0.0
    %4312 = vmatpush2.msra.mxu0 0.0
    %4313 = vmatprep.subr.mxu0 0.0
    %4314 = vmatpush2.msra.mxu0 0.0
    %4315 = vmatprep.subr.mxu0 0.0
    %4316 = vmatpush2.msra.mxu0 0.0
    %4317 = vmatprep.mubr.f32.mxu0 0.0
    %4318 = vmatmul.mubr.f32.gmra.mxu0 %v4248
    %v4319 = vpop.f32.mrf.mxu0
    %v4320 = vadd.f32 0.0, %v4319
    %v4321 = vpop.f32.mrf.mxu0
    %v4322 = vadd.f32 0.0, %v4321
    %4323 = vmatprep.mubr.f32.mxu0 0.0
    %4324 = vmatmul.mubr.f32.gmra.mxu0 %v4251
    %v4325 = vpop.f32.mrf.mxu0
    %v4326 = vadd.f32 0.0, %v4325
    %v4327 = vpop.f32.mrf.mxu0
    %v4328 = vadd.f32 0.0, %v4327
    %4329 = vdwg.mxu0
    %4330 = vmatprep.subr.mxu0 0.0
    %4331 = vmatpush1.msra.mxu0 0.0
    %4332 = vmatprep.subr.mxu0 0.0
    %4333 = vmatpush1.msra.mxu0 0.0
    %4334 = vmatprep.subr.mxu0 0.0
    %4335 = vmatpush1.msra.mxu0 0.0
    %4336 = vmatprep.subr.mxu0 0.0
    %4337 = vmatpush1.msra.mxu0 0.0
    %4338 = vmatprep.subr.mxu0 0.0
    %4339 = vmatpush1.msra.mxu0 0.0
    %4340 = vmatprep.subr.mxu0 0.0
    %4341 = vmatpush1.msra.mxu0 0.0
    %4342 = vmatprep.subr.mxu0 0.0
    %4343 = vmatpush1.msra.mxu0 0.0
    %4344 = vmatprep.subr.mxu0 0.0
    %4345 = vmatpush1.msra.mxu0 0.0
    %4346 = vmatprep.subr.mxu0 %v4243
    %4347 = vmatpush1.msra.mxu0 %v4242
    %4348 = vmatprep.subr.mxu0 %v4236
    %4349 = vmatpush1.msra.mxu0 %v4235
    %4350 = vmatprep.subr.mxu0 %v4229
    %4351 = vmatpush1.msra.mxu0 %v4228
    %4352 = vmatprep.subr.mxu0 %v4222
    %4353 = vmatpush1.msra.mxu0 %v4221
    %4354 = vmatprep.subr.mxu0 %v4215
    %4355 = vmatpush1.msra.mxu0 %v4214
    %4356 = vmatprep.subr.mxu0 %v4208
    %4357 = vmatpush1.msra.mxu0 %v4207
    %4358 = vmatprep.subr.mxu0 %v4201
    %4359 = vmatpush1.msra.mxu0 %v4200
    %4360 = vmatprep.subr.mxu0 %v4194
    %4361 = vmatpush1.msra.mxu0 %v4193
    %4362 = vmatprep.subr.mxu0 0.0
    %4363 = vmatpush2.msra.mxu0 0.0
    %4364 = vmatprep.subr.mxu0 0.0
    %4365 = vmatpush2.msra.mxu0 0.0
    %4366 = vmatprep.subr.mxu0 0.0
    %4367 = vmatpush2.msra.mxu0 0.0
    %4368 = vmatprep.subr.mxu0 0.0
    %4369 = vmatpush2.msra.mxu0 0.0
    %4370 = vmatprep.subr.mxu0 0.0
    %4371 = vmatpush2.msra.mxu0 0.0
    %4372 = vmatprep.subr.mxu0 0.0
    %4373 = vmatpush2.msra.mxu0 0.0
    %4374 = vmatprep.subr.mxu0 0.0
    %4375 = vmatpush2.msra.mxu0 0.0
    %4376 = vmatprep.subr.mxu0 0.0
    %4377 = vmatpush2.msra.mxu0 0.0
    %4378 = vmatprep.subr.mxu0 0.0
    %4379 = vmatpush2.msra.mxu0 0.0
    %4380 = vmatprep.subr.mxu0 0.0
    %4381 = vmatpush2.msra.mxu0 0.0
    %4382 = vmatprep.subr.mxu0 0.0
    %4383 = vmatpush2.msra.mxu0 0.0
    %4384 = vmatprep.subr.mxu0 0.0
    %4385 = vmatpush2.msra.mxu0 0.0
    %4386 = vmatprep.subr.mxu0 0.0
    %4387 = vmatpush2.msra.mxu0 0.0
    %4388 = vmatprep.subr.mxu0 0.0
    %4389 = vmatpush2.msra.mxu0 0.0
    %4390 = vmatprep.subr.mxu0 0.0
    %4391 = vmatpush2.msra.mxu0 0.0
    %4392 = vmatprep.subr.mxu0 0.0
    %4393 = vmatpush2.msra.mxu0 0.0
    %4394 = vmatprep.mubr.f32.mxu0 0.0
    %4395 = vmatmul.mubr.f32.gmra.mxu0 %v4248
    %v4396 = vpop.f32.mrf.mxu0
    %v4397 = vadd.f32 0.0, %v4396
    %v4398 = vpop.f32.mrf.mxu0
    %v4399 = vadd.f32 0.0, %v4398
    %4400 = vmatprep.mubr.f32.mxu0 0.0
    %4401 = vmatmul.mubr.f32.gmra.mxu0 %v4251
    %v4402 = vpop.f32.mrf.mxu0
    %v4403 = vadd.f32 0.0, %v4402
    %v4404 = vpop.f32.mrf.mxu0
    %v4405 = vadd.f32 0.0, %v4404
    %4406 = vdwg.mxu0
    %4407 = vmatprep.subr.mxu0 0.0
    %4408 = vmatpush1.msra.mxu0 0.0
    %4409 = vmatprep.subr.mxu0 0.0
    %4410 = vmatpush1.msra.mxu0 0.0
    %4411 = vmatprep.subr.mxu0 0.0
    %4412 = vmatpush1.msra.mxu0 0.0
    %4413 = vmatprep.subr.mxu0 0.0
    %4414 = vmatpush1.msra.mxu0 0.0
    %4415 = vmatprep.subr.mxu0 0.0
    %4416 = vmatpush1.msra.mxu0 0.0
    %4417 = vmatprep.subr.mxu0 0.0
    %4418 = vmatpush1.msra.mxu0 0.0
    %4419 = vmatprep.subr.mxu0 0.0
    %4420 = vmatpush1.msra.mxu0 0.0
    %4421 = vmatprep.subr.mxu0 0.0
    %4422 = vmatpush1.msra.mxu0 0.0
    %4423 = vmatprep.subr.mxu0 %v4245
    %4424 = vmatpush1.msra.mxu0 %v4244
    %4425 = vmatprep.subr.mxu0 %v4238
    %4426 = vmatpush1.msra.mxu0 %v4237
    %4427 = vmatprep.subr.mxu0 %v4231
    %4428 = vmatpush1.msra.mxu0 %v4230
    %4429 = vmatprep.subr.mxu0 %v4224
    %4430 = vmatpush1.msra.mxu0 %v4223
    %4431 = vmatprep.subr.mxu0 %v4217
    %4432 = vmatpush1.msra.mxu0 %v4216
    %4433 = vmatprep.subr.mxu0 %v4210
    %4434 = vmatpush1.msra.mxu0 %v4209
    %4435 = vmatprep.subr.mxu0 %v4203
    %4436 = vmatpush1.msra.mxu0 %v4202
    %4437 = vmatprep.subr.mxu0 %v4196
    %4438 = vmatpush1.msra.mxu0 %v4195
    %4439 = vmatprep.subr.mxu0 0.0
    %4440 = vmatpush2.msra.mxu0 0.0
    %4441 = vmatprep.subr.mxu0 0.0
    %4442 = vmatpush2.msra.mxu0 0.0
    %4443 = vmatprep.subr.mxu0 0.0
    %4444 = vmatpush2.msra.mxu0 0.0
    %4445 = vmatprep.subr.mxu0 0.0
    %4446 = vmatpush2.msra.mxu0 0.0
    %4447 = vmatprep.subr.mxu0 0.0
    %4448 = vmatpush2.msra.mxu0 0.0
    %4449 = vmatprep.subr.mxu0 0.0
    %4450 = vmatpush2.msra.mxu0 0.0
    %4451 = vmatprep.subr.mxu0 0.0
    %4452 = vmatpush2.msra.mxu0 0.0
    %4453 = vmatprep.subr.mxu0 0.0
    %4454 = vmatpush2.msra.mxu0 0.0
    %4455 = vmatprep.subr.mxu0 0.0
    %4456 = vmatpush2.msra.mxu0 0.0
    %4457 = vmatprep.subr.mxu0 0.0
    %4458 = vmatpush2.msra.mxu0 0.0
    %4459 = vmatprep.subr.mxu0 0.0
    %4460 = vmatpush2.msra.mxu0 0.0
    %4461 = vmatprep.subr.mxu0 0.0
    %4462 = vmatpush2.msra.mxu0 0.0
    %4463 = vmatprep.subr.mxu0 0.0
    %4464 = vmatpush2.msra.mxu0 0.0
    %4465 = vmatprep.subr.mxu0 0.0
    %4466 = vmatpush2.msra.mxu0 0.0
    %4467 = vmatprep.subr.mxu0 0.0
    %4468 = vmatpush2.msra.mxu0 0.0
    %4469 = vmatprep.subr.mxu0 0.0
    %4470 = vmatpush2.msra.mxu0 0.0
    %4471 = vmatprep.mubr.f32.mxu0 0.0
    %4472 = vmatmul.mubr.f32.gmra.mxu0 %v4248
    %v4473 = vpop.f32.mrf.mxu0
    %v4474 = vadd.f32 0.0, %v4473
    %v4475 = vpop.f32.mrf.mxu0
    %v4476 = vadd.f32 0.0, %v4475
    %4477 = vmatprep.mubr.f32.mxu0 0.0
    %4478 = vmatmul.mubr.f32.gmra.mxu0 %v4251
    %v4479 = vpop.f32.mrf.mxu0
    %v4480 = vadd.f32 0.0, %v4479
    %v4481 = vpop.f32.mrf.mxu0
    %v4482 = vadd.f32 0.0, %v4481
    %4483 = vdwg.mxu0
    %4484 = vmatprep.subr.mxu0 0.0
    %4485 = vmatpush1.msra.mxu0 0.0
    %4486 = vmatprep.subr.mxu0 0.0
    %4487 = vmatpush1.msra.mxu0 0.0
    %4488 = vmatprep.subr.mxu0 0.0
    %4489 = vmatpush1.msra.mxu0 0.0
    %4490 = vmatprep.subr.mxu0 0.0
    %4491 = vmatpush1.msra.mxu0 0.0
    %4492 = vmatprep.subr.mxu0 0.0
    %4493 = vmatpush1.msra.mxu0 0.0
    %4494 = vmatprep.subr.mxu0 0.0
    %4495 = vmatpush1.msra.mxu0 0.0
    %4496 = vmatprep.subr.mxu0 0.0
    %4497 = vmatpush1.msra.mxu0 0.0
    %4498 = vmatprep.subr.mxu0 0.0
    %4499 = vmatpush1.msra.mxu0 0.0
    %4500 = vmatprep.subr.mxu0 0.0
    %4501 = vmatpush1.msra.mxu0 %v4246
    %4502 = vmatprep.subr.mxu0 0.0
    %4503 = vmatpush1.msra.mxu0 %v4239
    %4504 = vmatprep.subr.mxu0 0.0
    %4505 = vmatpush1.msra.mxu0 %v4232
    %4506 = vmatprep.subr.mxu0 0.0
    %4507 = vmatpush1.msra.mxu0 %v4225
    %4508 = vmatprep.subr.mxu0 0.0
    %4509 = vmatpush1.msra.mxu0 %v4218
    %4510 = vmatprep.subr.mxu0 0.0
    %4511 = vmatpush1.msra.mxu0 %v4211
    %4512 = vmatprep.subr.mxu0 0.0
    %4513 = vmatpush1.msra.mxu0 %v4204
    %4514 = vmatprep.subr.mxu0 0.0
    %4515 = vmatpush1.msra.mxu0 %v4197
    %4516 = vmatprep.subr.mxu0 0.0
    %4517 = vmatpush2.msra.mxu0 0.0
    %4518 = vmatprep.subr.mxu0 0.0
    %4519 = vmatpush2.msra.mxu0 0.0
    %4520 = vmatprep.subr.mxu0 0.0
    %4521 = vmatpush2.msra.mxu0 0.0
    %4522 = vmatprep.subr.mxu0 0.0
    %4523 = vmatpush2.msra.mxu0 0.0
    %4524 = vmatprep.subr.mxu0 0.0
    %4525 = vmatpush2.msra.mxu0 0.0
    %4526 = vmatprep.subr.mxu0 0.0
    %4527 = vmatpush2.msra.mxu0 0.0
    %4528 = vmatprep.subr.mxu0 0.0
    %4529 = vmatpush2.msra.mxu0 0.0
    %4530 = vmatprep.subr.mxu0 0.0
    %4531 = vmatpush2.msra.mxu0 0.0
    %4532 = vmatprep.subr.mxu0 0.0
    %4533 = vmatpush2.msra.mxu0 0.0
    %4534 = vmatprep.subr.mxu0 0.0
    %4535 = vmatpush2.msra.mxu0 0.0
    %4536 = vmatprep.subr.mxu0 0.0
    %4537 = vmatpush2.msra.mxu0 0.0
    %4538 = vmatprep.subr.mxu0 0.0
    %4539 = vmatpush2.msra.mxu0 0.0
    %4540 = vmatprep.subr.mxu0 0.0
    %4541 = vmatpush2.msra.mxu0 0.0
    %4542 = vmatprep.subr.mxu0 0.0
    %4543 = vmatpush2.msra.mxu0 0.0
    %4544 = vmatprep.subr.mxu0 0.0
    %4545 = vmatpush2.msra.mxu0 0.0
    %4546 = vmatprep.subr.mxu0 0.0
    %4547 = vmatpush2.msra.mxu0 0.0
    %4548 = vmatprep.mubr.f32.mxu0 0.0
    %4549 = vmatmul.mubr.f32.gmra.mxu0 %v4248
    %v4550 = vpop.f32.mrf.mxu0
    %v4551 = vadd.f32 0.0, %v4550
    %v4552 = vpop.f32.mrf.mxu0
    %4553 = vmatprep.mubr.f32.mxu0 0.0
    %4554 = vmatmul.mubr.f32.gmra.mxu0 %v4251
    %v4555 = vpop.f32.mrf.mxu0
    %v4556 = vadd.f32 0.0, %v4555
    %v4557 = vpop.f32.mrf.mxu0
    %4558 = vdwg.mxu0
    %v4559 = vadd.f32 %v4177, %v4320
    %v4560 = vadd.f32 %v4178, %v4322
    %v4561 = vadd.f32 %v4179, %v4397
    %v4562 = vadd.f32 %v4180, %v4399
    %v4563 = vadd.f32 %v4181, %v4474
    %v4564 = vadd.f32 %v4182, %v4476
    %v4565 = vadd.f32 %v4183, %v4551
    %v4566 = vadd.f32 %v4184, %v4326
    %v4567 = vadd.f32 %v4185, %v4328
    %v4568 = vadd.f32 %v4186, %v4403
    %v4569 = vadd.f32 %v4187, %v4405
    %v4570 = vadd.f32 %v4188, %v4480
    %v4571 = vadd.f32 %v4189, %v4482
    %v4572 = vadd.f32 %v4190, %v4556
    %v4573 = vmul.f32 %v4559, %v1346
    %v4574 = vmul.f32 %v4566, %v1346
    %v4575 = vadd.f32 %v4573, 0.5
    %v4576 = vadd.f32 %v4574, 0.5
    %v4577 = vmax.f32 %v4575, 0.0
    %v4578 = vmax.f32 %v4576, 0.0
    %v4579 = vmin.f32 %v4577, 1.0
    %v4580 = vmin.f32 %v4578, 1.0
    %v4581 = vtanh.pop %v4560
    %v4582 = vtanh.pop %v4567
    %v4583 = vmul.f32 %v4560, %v1346
    %v4584 = vmul.f32 %v4567, %v1346
    %v4585 = vadd.f32 %v4583, 0.5
    %v4586 = vadd.f32 %v4584, 0.5
    %v4587 = vmax.f32 %v4585, 0.0
    %v4588 = vmax.f32 %v4586, 0.0
    %v4589 = vmin.f32 %v4587, 1.0
    %v4590 = vmin.f32 %v4588, 1.0
    %v4591 = vmul.f32 %v4561, %v1346
    %v4592 = vmul.f32 %v4562, %v1346
    %v4593 = vmul.f32 %v4563, %v1346
    %v4594 = vmul.f32 %v4564, %v1346
    %v4595 = vmul.f32 %v4565, %v1346
    %v4596 = vmul.f32 %v4568, %v1346
    %v4597 = vmul.f32 %v4569, %v1346
    %v4598 = vmul.f32 %v4570, %v1346
    %v4599 = vmul.f32 %v4571, %v1346
    %v4600 = vmul.f32 %v4572, %v1346
    %v4601 = vadd.f32 %v4591, 0.5
    %v4602 = vadd.f32 %v4592, 0.5
    %v4603 = vadd.f32 %v4593, 0.5
    %v4604 = vadd.f32 %v4594, 0.5
    %v4605 = vadd.f32 %v4595, 0.5
    %v4606 = vadd.f32 %v4596, 0.5
    %v4607 = vadd.f32 %v4597, 0.5
    %v4608 = vadd.f32 %v4598, 0.5
    %v4609 = vadd.f32 %v4599, 0.5
    %v4610 = vadd.f32 %v4600, 0.5
    %v4611 = vmax.f32 %v4601, 0.0
    %v4612 = vmax.f32 %v4602, 0.0
    %v4613 = vmax.f32 %v4603, 0.0
    %v4614 = vmax.f32 %v4604, 0.0
    %v4615 = vmax.f32 %v4605, 0.0
    %v4616 = vmax.f32 %v4606, 0.0
    %v4617 = vmax.f32 %v4607, 0.0
    %v4618 = vmax.f32 %v4608, 0.0
    %v4619 = vmax.f32 %v4609, 0.0
    %v4620 = vmax.f32 %v4610, 0.0
    %v4621 = vmin.f32 %v4611, 1.0
    %v4622 = vmin.f32 %v4612, 1.0
    %v4623 = vmin.f32 %v4613, 1.0
    %v4624 = vmin.f32 %v4614, 1.0
    %v4625 = vmin.f32 %v4615, 1.0
    %v4626 = vmin.f32 %v4616, 1.0
    %v4627 = vmin.f32 %v4617, 1.0
    %v4628 = vmin.f32 %v4618, 1.0
    %v4629 = vmin.f32 %v4619, 1.0
    %v4630 = vmin.f32 %v4620, 1.0
    %v4631 = vmul.f32 %v4579, %v4581
    %v4632 = vmul.f32 %v4580, %v4582
    %4635 = vrot.lane.b32.xlu0 %v4579, 64
    %v4636 = vpop.permute.xlu0 %4635
    %4637 = vrot.lane.b32.xlu0 %v4580, 64
    %v4638 = vpop.permute.xlu0 %4637
    %v4641 = vsel %vm922, %v4636, %v4579
    %v4642 = vsel %vm922, %v4638, %v4580
    %4645 = vrot.lane.b32.xlu0 %v4631, 64
    %v4646 = vpop.permute.xlu0 %4645
    %4647 = vrot.lane.b32.xlu0 %v4632, 64
    %v4648 = vpop.permute.xlu0 %4647
    %v4651 = vsel %vm922, %v4631, %v4646
    %v4652 = vsel %vm922, %v4632, %v4648
    %v4653 = vmul.f32 %v4641, %v4621
    %v4654 = vmul.f32 %v4641, %v4622
    %v4655 = vmul.f32 %v4641, %v4623
    %v4656 = vmul.f32 %v4641, %v4624
    %v4657 = vmul.f32 %v4641, %v4625
    %v4658 = vmul.f32 %v4642, %v4626
    %v4659 = vmul.f32 %v4642, %v4627
    %v4660 = vmul.f32 %v4642, %v4628
    %v4661 = vmul.f32 %v4642, %v4629
    %v4662 = vmul.f32 %v4642, %v4630
    %s4663 = scalar_lea.vmem %s6, 4
    %v4664 = vld [vmem:[%s4663] ss:$8 sm:$0xf]
    %v4665 = vld [vmem:[%s4663] ss:$8 sm:$0x10]
    %v4666 = vor.u32 %v4664, %v4665
    %s4667 = scalar_lea.vmem %s7, 4
    %v4668 = vld [vmem:[%s4667] ss:$8 sm:$0xf]
    %v4669 = vld [vmem:[%s4667] ss:$8 sm:$0x10]
    %v4670 = vor.u32 %v4668, %v4669
    %v4671 = vld [vmem:[#allocation4] sm:$0xff]
    %v4672 = vld [vmem:[#allocation4 + $0x8] sm:$0xff]
    %v4673 = vld [vmem:[#allocation4 + $0x10] sm:$0xff]
    %v4674 = vld [vmem:[#allocation4 + $0x18] sm:$0xff]
    %v4675 = vld [vmem:[#allocation4 + $0x20] sm:$0xff]
    %v4676 = vld [vmem:[#allocation4 + $0x28] sm:$0xff]
    %v4677 = vld [vmem:[#allocation4 + $0x30] sm:$0xff]
    %v4678 = vld [vmem:[#allocation4 + $0x38] sm:$0xff]
    %v4679 = vld [vmem:[#allocation4 + $0x40] sm:$0xff]
    %v4680 = vld [vmem:[#allocation4 + $0x48] sm:$0xff]
    %v4681 = vmul.f32 %v4653, %v4671
    %v4682 = vmul.f32 %v4654, %v4672
    %v4683 = vmul.f32 %v4655, %v4673
    %v4684 = vmul.f32 %v4656, %v4674
    %v4685 = vmul.f32 %v4657, %v4675
    %v4686 = vmul.f32 %v4658, %v4676
    %v4687 = vmul.f32 %v4659, %v4677
    %v4688 = vmul.f32 %v4660, %v4678
    %v4689 = vmul.f32 %v4661, %v4679
    %v4690 = vmul.f32 %v4662, %v4680
    %v4692 = vlaneseq
    %v4693 = vshrl.u32 %v4692, 7
    %v4694 = vsub.s32 0, %v4693
    %v4695 = vrot.slane %v4666, %v4694
    %v4696 = vlaneseq
    %v4697 = vshrl.u32 %v4696, 7
    %v4698 = vsub.s32 1, %v4697
    %v4699 = vrot.slane %v4666, %v4698
    %v4700 = vlaneseq
    %v4701 = vshrl.u32 %v4700, 7
    %v4702 = vsub.s32 2, %v4701
    %v4703 = vrot.slane %v4666, %v4702
    %v4704 = vlaneseq
    %v4705 = vshrl.u32 %v4704, 7
    %v4706 = vsub.s32 3, %v4705
    %v4707 = vrot.slane %v4666, %v4706
    %v4708 = vlaneseq
    %v4709 = vshrl.u32 %v4708, 7
    %v4710 = vsub.s32 4, %v4709
    %v4711 = vrot.slane %v4666, %v4710
    %v4717 = vmul.f32 %v4651, %v4695
    %v4718 = vmul.f32 %v4651, %v4699
    %v4719 = vmul.f32 %v4651, %v4703
    %v4720 = vmul.f32 %v4651, %v4707
    %v4721 = vmul.f32 %v4651, %v4711
    %v4722 = vmul.f32 %v4652, %v4695
    %v4723 = vmul.f32 %v4652, %v4699
    %v4724 = vmul.f32 %v4652, %v4703
    %v4725 = vmul.f32 %v4652, %v4707
    %v4726 = vmul.f32 %v4652, %v4711
    %v4727 = vadd.f32 %v4681, %v4717
    %v4728 = vadd.f32 %v4682, %v4718
    %v4729 = vadd.f32 %v4683, %v4719
    %v4730 = vadd.f32 %v4684, %v4720
    %v4731 = vadd.f32 %v4685, %v4721
    %v4732 = vadd.f32 %v4686, %v4722
    %v4733 = vadd.f32 %v4687, %v4723
    %v4734 = vadd.f32 %v4688, %v4724
    %v4735 = vadd.f32 %v4689, %v4725
    %v4736 = vadd.f32 %v4690, %v4726
    %v4737 = vld [vmem:[#allocation5] sm:$0xff]
    %v4738 = vld [vmem:[#allocation5 + $0x8] sm:$0xff]
    %v4739 = vld [vmem:[#allocation5 + $0x10] sm:$0xff]
    %v4740 = vld [vmem:[#allocation5 + $0x18] sm:$0xff]
    %v4741 = vld [vmem:[#allocation5 + $0x20] sm:$0xff]
    %v4742 = vld [vmem:[#allocation5 + $0x28] sm:$0xff]
    %v4743 = vld [vmem:[#allocation5 + $0x30] sm:$0xff]
    %v4744 = vld [vmem:[#allocation5 + $0x38] sm:$0xff]
    %v4745 = vld [vmem:[#allocation5 + $0x40] sm:$0xff]
    %v4746 = vld [vmem:[#allocation5 + $0x48] sm:$0xff]
    %v4747 = vmul.f32 %v4653, %v4737
    %v4748 = vmul.f32 %v4654, %v4738
    %v4749 = vmul.f32 %v4655, %v4739
    %v4750 = vmul.f32 %v4656, %v4740
    %v4751 = vmul.f32 %v4657, %v4741
    %v4752 = vmul.f32 %v4658, %v4742
    %v4753 = vmul.f32 %v4659, %v4743
    %v4754 = vmul.f32 %v4660, %v4744
    %v4755 = vmul.f32 %v4661, %v4745
    %v4756 = vmul.f32 %v4662, %v4746
    %v4758 = vlaneseq
    %v4759 = vshrl.u32 %v4758, 7
    %v4760 = vsub.s32 0, %v4759
    %v4761 = vrot.slane %v4670, %v4760
    %v4762 = vlaneseq
    %v4763 = vshrl.u32 %v4762, 7
    %v4764 = vsub.s32 1, %v4763
    %v4765 = vrot.slane %v4670, %v4764
    %v4766 = vlaneseq
    %v4767 = vshrl.u32 %v4766, 7
    %v4768 = vsub.s32 2, %v4767
    %v4769 = vrot.slane %v4670, %v4768
    %v4770 = vlaneseq
    %v4771 = vshrl.u32 %v4770, 7
    %v4772 = vsub.s32 3, %v4771
    %v4773 = vrot.slane %v4670, %v4772
    %v4774 = vlaneseq
    %v4775 = vshrl.u32 %v4774, 7
    %v4776 = vsub.s32 4, %v4775
    %v4777 = vrot.slane %v4670, %v4776
    %v4783 = vmul.f32 %v4651, %v4761
    %v4784 = vmul.f32 %v4651, %v4765
    %v4785 = vmul.f32 %v4651, %v4769
    %v4786 = vmul.f32 %v4651, %v4773
    %v4787 = vmul.f32 %v4651, %v4777
    %v4788 = vmul.f32 %v4652, %v4761
    %v4789 = vmul.f32 %v4652, %v4765
    %v4790 = vmul.f32 %v4652, %v4769
    %v4791 = vmul.f32 %v4652, %v4773
    %v4792 = vmul.f32 %v4652, %v4777
    %v4793 = vadd.f32 %v4747, %v4783
    %v4794 = vadd.f32 %v4748, %v4784
    %v4795 = vadd.f32 %v4749, %v4785
    %v4796 = vadd.f32 %v4750, %v4786
    %v4797 = vadd.f32 %v4751, %v4787
    %v4798 = vadd.f32 %v4752, %v4788
    %v4799 = vadd.f32 %v4753, %v4789
    %v4800 = vadd.f32 %v4754, %v4790
    %v4801 = vadd.f32 %v4755, %v4791
    %v4802 = vadd.f32 %v4756, %v4792
    %4803 = vst [vmem:[#allocation4] sm:$0xff] %v4727
    %4804 = vst [vmem:[#allocation4 + $0x8] sm:$0xff] %v4728
    %4805 = vst [vmem:[#allocation4 + $0x10] sm:$0xff] %v4729
    %4806 = vst [vmem:[#allocation4 + $0x18] sm:$0xff] %v4730
    %4807 = vst [vmem:[#allocation4 + $0x20] sm:$0xff] %v4731
    %4808 = vst [vmem:[#allocation4 + $0x28] sm:$0xff] %v4732
    %4809 = vst [vmem:[#allocation4 + $0x30] sm:$0xff] %v4733
    %4810 = vst [vmem:[#allocation4 + $0x38] sm:$0xff] %v4734
    %4811 = vst [vmem:[#allocation4 + $0x40] sm:$0xff] %v4735
    %4812 = vst [vmem:[#allocation4 + $0x48] sm:$0xff] %v4736
    %4813 = vst [vmem:[#allocation5] sm:$0xff] %v4793
    %4814 = vst [vmem:[#allocation5 + $0x8] sm:$0xff] %v4794
    %4815 = vst [vmem:[#allocation5 + $0x10] sm:$0xff] %v4795
    %4816 = vst [vmem:[#allocation5 + $0x18] sm:$0xff] %v4796
    %4817 = vst [vmem:[#allocation5 + $0x20] sm:$0xff] %v4797
    %4818 = vst [vmem:[#allocation5 + $0x28] sm:$0xff] %v4798
    %4819 = vst [vmem:[#allocation5 + $0x30] sm:$0xff] %v4799
    %4820 = vst [vmem:[#allocation5 + $0x38] sm:$0xff] %v4800
    %4821 = vst [vmem:[#allocation5 + $0x40] sm:$0xff] %v4801
    %4822 = vst [vmem:[#allocation5 + $0x48] sm:$0xff] %v4802
    %v4823 = vmul.f32 %v4727, %v4727
    %v4824 = vmul.f32 %v4728, %v4728
    %v4825 = vmul.f32 %v4729, %v4729
    %v4826 = vmul.f32 %v4730, %v4730
    %v4827 = vmul.f32 %v4731, %v4731
    %v4828 = vmul.f32 %v4732, %v4732
    %v4829 = vmul.f32 %v4733, %v4733
    %v4830 = vmul.f32 %v4734, %v4734
    %v4831 = vmul.f32 %v4735, %v4735
    %v4832 = vmul.f32 %v4736, %v4736
    %v4833 = vmul.f32 %v4793, %v4793
    %v4834 = vmul.f32 %v4794, %v4794
    %v4835 = vmul.f32 %v4795, %v4795
    %v4836 = vmul.f32 %v4796, %v4796
    %v4837 = vmul.f32 %v4797, %v4797
    %v4838 = vmul.f32 %v4798, %v4798
    %v4839 = vmul.f32 %v4799, %v4799
    %v4840 = vmul.f32 %v4800, %v4800
    %v4841 = vmul.f32 %v4801, %v4801
    %v4842 = vmul.f32 %v4802, %v4802
    %v4843 = vadd.f32 %v4823, %v4833
    %v4844 = vadd.f32 %v4824, %v4834
    %v4845 = vadd.f32 %v4825, %v4835
    %v4846 = vadd.f32 %v4826, %v4836
    %v4847 = vadd.f32 %v4827, %v4837
    %v4848 = vadd.f32 %v4828, %v4838
    %v4849 = vadd.f32 %v4829, %v4839
    %v4850 = vadd.f32 %v4830, %v4840
    %v4851 = vadd.f32 %v4831, %v4841
    %v4852 = vadd.f32 %v4832, %v4842
    %v4853 = vld [vmem:[%s5] sm:$0x1f]
    %v4855 = vlaneseq
    %v4856 = vshrl.u32 %v4855, 7
    %v4857 = vsub.s32 0, %v4856
    %v4858 = vrot.slane %v4853, %v4857
    %v4859 = vlaneseq
    %v4860 = vshrl.u32 %v4859, 7
    %v4861 = vsub.s32 1, %v4860
    %v4862 = vrot.slane %v4853, %v4861
    %v4863 = vlaneseq
    %v4864 = vshrl.u32 %v4863, 7
    %v4865 = vsub.s32 2, %v4864
    %v4866 = vrot.slane %v4853, %v4865
    %v4867 = vlaneseq
    %v4868 = vshrl.u32 %v4867, 7
    %v4869 = vsub.s32 3, %v4868
    %v4870 = vrot.slane %v4853, %v4869
    %v4871 = vlaneseq
    %v4872 = vshrl.u32 %v4871, 7
    %v4873 = vsub.s32 4, %v4872
    %v4874 = vrot.slane %v4853, %v4873
    %v4880 = vmul.f32 %v4843, %v4858
    %v4881 = vmul.f32 %v4844, %v4862
    %v4882 = vmul.f32 %v4845, %v4866
    %v4883 = vmul.f32 %v4846, %v4870
    %v4884 = vmul.f32 %v4847, %v4874
    %v4885 = vmul.f32 %v4848, %v4858
    %v4886 = vmul.f32 %v4849, %v4862
    %v4887 = vmul.f32 %v4850, %v4866
    %v4888 = vmul.f32 %v4851, %v4870
    %v4889 = vmul.f32 %v4852, %v4874
    %4892 = vrot.lane.b32.xlu0 %v4880, 64
    %v4893 = vpop.permute.xlu0 %4892
    %4894 = vrot.lane.b32.xlu0 %v4885, 64
    %v4895 = vpop.permute.xlu0 %4894
    %v4898 = vadd.f32 %v4880, %v4893
    %v4899 = vadd.f32 %v4885, %v4895
    %4902 = vrot.lane.b32.xlu0 %v4881, 64
    %v4903 = vpop.permute.xlu0 %4902
    %4904 = vrot.lane.b32.xlu0 %v4886, 64
    %v4905 = vpop.permute.xlu0 %4904
    %v4908 = vadd.f32 %v4881, %v4903
    %v4909 = vadd.f32 %v4886, %v4905
    %4912 = vrot.lane.b32.xlu0 %v4882, 64
    %v4913 = vpop.permute.xlu0 %4912
    %4914 = vrot.lane.b32.xlu0 %v4887, 64
    %v4915 = vpop.permute.xlu0 %4914
    %v4918 = vadd.f32 %v4882, %v4913
    %v4919 = vadd.f32 %v4887, %v4915
    %4922 = vrot.lane.b32.xlu0 %v4883, 64
    %v4923 = vpop.permute.xlu0 %4922
    %4924 = vrot.lane.b32.xlu0 %v4888, 64
    %v4925 = vpop.permute.xlu0 %4924
    %v4928 = vadd.f32 %v4883, %v4923
    %v4929 = vadd.f32 %v4888, %v4925
    %4932 = vrot.lane.b32.xlu0 %v4884, 64
    %v4933 = vpop.permute.xlu0 %4932
    %4934 = vrot.lane.b32.xlu0 %v4889, 64
    %v4935 = vpop.permute.xlu0 %4934
    %v4938 = vadd.f32 %v4884, %v4933
    %v4939 = vadd.f32 %v4889, %v4935
    %v4940 = vadd.f32 %v4898, %v4908
    %v4941 = vadd.f32 %v4899, %v4909
    %v4942 = vadd.f32 %v4918, %v4928
    %v4943 = vadd.f32 %v4919, %v4929
    %v4944 = vadd.f32 %v4940, %v4942
    %v4945 = vadd.f32 %v4941, %v4943
    %v4946 = vadd.f32 %v4944, %v4938
    %v4947 = vadd.f32 %v4945, %v4939
    %v4948 = vld [vmem:[%s4] sm:$0x1]
    %v4950 = vlaneseq
    %v4951 = vshrl.u32 %v4950, 7
    %v4952 = vsub.s32 0, %v4951
    %v4953 = vrot.slane %v4948, %v4952
    %v4955 = vadd.f32 %v4946, %v4953
    %v4956 = vadd.f32 %v4947, %v4953
    %v4957 = vtanh.pop %v4955
    %v4958 = vtanh.pop %v4956
    %4961 = vrot.lane.b32.xlu0 %v4957, 64
    %v4962 = vpop.permute.xlu0 %4961
    %4963 = vrot.lane.b32.xlu0 %v4958, 64
    %v4964 = vpop.permute.xlu0 %4963
    %v4967 = vmul.f32 %v4589, %v4962
    %v4968 = vmul.f32 %v4590, %v4964
    %4971 = vrot.lane.b32.xlu0 %v4967, 64
    %v4972 = vpop.permute.xlu0 %4971
    %4973 = vrot.lane.b32.xlu0 %v4968, 64
    %v4974 = vpop.permute.xlu0 %4973
    %4977 = vst.msk [vmem:[#allocation3] sm:$0xff] %vm922, %v4972
    %4978 = vst.msk [vmem:[#allocation3 + $0x8] sm:$0xff] %vm922, %v4974
    %v4979 = vld [vmem:[#allocation3] sm:$0xff]
    %v4980 = vld [vmem:[#allocation3 + $0x8] sm:$0xff]
    %s4981 = smul.u32 10, 7
    %s4982 = smul.addr %s4981, 8
    %s4983 = scalar_lea.vmem [#allocation2], %s4982
    %v4984 = vld [vmem:[%s4983] sm:$0xff]
    %v4985 = vld [vmem:[%s4983 + $0x8] sm:$0xff]
    %v4986 = vld [vmem:[%s4983 + $0x10] sm:$0xff]
    %v4987 = vld [vmem:[%s4983 + $0x18] sm:$0xff]
    %v4988 = vld [vmem:[%s4983 + $0x20] sm:$0xff]
    %v4989 = vld [vmem:[%s4983 + $0x28] sm:$0xff]
    %v4990 = vld [vmem:[%s4983 + $0x30] sm:$0xff]
    %v4991 = vld [vmem:[%s4983 + $0x38] sm:$0xff]
    %v4992 = vld [vmem:[%s4983 + $0x40] sm:$0xff]
    %v4993 = vld [vmem:[%s4983 + $0x48] sm:$0xff]
    %v4994 = vld [vmem:[%s4983 + $0x50] sm:$0xff]
    %v4995 = vld [vmem:[%s4983 + $0x58] sm:$0xff]
    %v4996 = vld [vmem:[%s4983 + $0x60] sm:$0xff]
    %v4997 = vld [vmem:[%s4983 + $0x68] sm:$0xff]
    %v4998 = vld [vmem:[#allocation7] sm:$0xff]
    %v4999 = vld [vmem:[#allocation7 + $0x8] sm:$0xff]
    %v5000 = vld [vmem:[#allocation7 + $0x10] sm:$0xff]
    %v5001 = vld [vmem:[#allocation7 + $0x18] sm:$0xff]
    %v5002 = vld [vmem:[#allocation7 + $0x20] sm:$0xff]
    %v5003 = vld [vmem:[#allocation7 + $0x28] sm:$0xff]
    %v5004 = vld [vmem:[#allocation7 + $0x30] sm:$0xff]
    %v5005 = vld [vmem:[#allocation7 + $0x38] sm:$0xff]
    %v5006 = vld [vmem:[#allocation7 + $0x40] sm:$0xff]
    %v5007 = vld [vmem:[#allocation7 + $0x48] sm:$0xff]
    %v5008 = vld [vmem:[#allocation7 + $0x50] sm:$0xff]
    %v5009 = vld [vmem:[#allocation7 + $0x58] sm:$0xff]
    %v5010 = vld [vmem:[#allocation7 + $0x60] sm:$0xff]
    %v5011 = vld [vmem:[#allocation7 + $0x68] sm:$0xff]
    %v5012 = vld [vmem:[#allocation7 + $0x70] sm:$0xff]
    %v5013 = vld [vmem:[#allocation7 + $0x78] sm:$0xff]
    %v5014 = vld [vmem:[#allocation7 + $0x80] sm:$0xff]
    %v5015 = vld [vmem:[#allocation7 + $0x88] sm:$0xff]
    %v5016 = vld [vmem:[#allocation7 + $0x90] sm:$0xff]
    %v5017 = vld [vmem:[#allocation7 + $0x98] sm:$0xff]
    %v5018 = vld [vmem:[#allocation7 + $0xa0] sm:$0xff]
    %v5019 = vld [vmem:[#allocation7 + $0xa8] sm:$0xff]
    %v5020 = vld [vmem:[#allocation7 + $0xb0] sm:$0xff]
    %v5021 = vld [vmem:[#allocation7 + $0xb8] sm:$0xff]
    %v5022 = vld [vmem:[#allocation7 + $0xc0] sm:$0xff]
    %v5023 = vld [vmem:[#allocation7 + $0xc8] sm:$0xff]
    %v5024 = vld [vmem:[#allocation7 + $0xd0] sm:$0xff]
    %v5025 = vld [vmem:[#allocation7 + $0xd8] sm:$0xff]
    %v5026 = vld [vmem:[#allocation7 + $0xe0] sm:$0xff]
    %v5027 = vld [vmem:[#allocation7 + $0xe8] sm:$0xff]
    %v5028 = vld [vmem:[#allocation7 + $0xf0] sm:$0xff]
    %v5029 = vld [vmem:[#allocation7 + $0xf8] sm:$0xff]
    %v5030 = vld [vmem:[#allocation7 + $0x100] sm:$0xff]
    %v5031 = vld [vmem:[#allocation7 + $0x108] sm:$0xff]
    %v5032 = vld [vmem:[#allocation7 + $0x110] sm:$0xff]
    %v5033 = vld [vmem:[#allocation7 + $0x118] sm:$0xff]
    %v5034 = vld [vmem:[#allocation7 + $0x120] sm:$0xff]
    %v5035 = vld [vmem:[#allocation7 + $0x128] sm:$0xff]
    %v5036 = vld [vmem:[#allocation7 + $0x130] sm:$0xff]
    %v5037 = vld [vmem:[#allocation7 + $0x138] sm:$0xff]
    %v5038 = vld [vmem:[#allocation7 + $0x140] sm:$0xff]
    %v5039 = vld [vmem:[#allocation7 + $0x148] sm:$0xff]
    %v5040 = vld [vmem:[#allocation7 + $0x150] sm:$0xff]
    %v5041 = vld [vmem:[#allocation7 + $0x158] sm:$0xff]
    %v5042 = vld [vmem:[#allocation7 + $0x160] sm:$0xff]
    %v5043 = vld [vmem:[#allocation7 + $0x168] sm:$0xff]
    %v5044 = vld [vmem:[#allocation7 + $0x170] sm:$0xff]
    %v5045 = vld [vmem:[#allocation7 + $0x178] sm:$0xff]
    %v5046 = vld [vmem:[#allocation7 + $0x180] sm:$0xff]
    %v5047 = vld [vmem:[#allocation7 + $0x188] sm:$0xff]
    %v5048 = vld [vmem:[#allocation7 + $0x190] sm:$0xff]
    %v5049 = vld [vmem:[#allocation7 + $0x198] sm:$0xff]
    %v5050 = vld [vmem:[#allocation7 + $0x1a0] sm:$0xff]
    %v5051 = vld [vmem:[#allocation7 + $0x1a8] sm:$0xff]
    %v5052 = vld [vmem:[#allocation7 + $0x1b0] sm:$0xff]
    %v5053 = vld [vmem:[#allocation7 + $0x1b8] sm:$0xff]
    %v5055 = vsel %vm922, %v4979, 0
    %v5058 = vsel %vm922, %v4980, 0
    %5060 = vmatprep.subr.mxu0 0.0
    %5061 = vmatpush1.msra.mxu0 0.0
    %5062 = vmatprep.subr.mxu0 0.0
    %5063 = vmatpush1.msra.mxu0 0.0
    %5064 = vmatprep.subr.mxu0 0.0
    %5065 = vmatpush1.msra.mxu0 0.0
    %5066 = vmatprep.subr.mxu0 0.0
    %5067 = vmatpush1.msra.mxu0 0.0
    %5068 = vmatprep.subr.mxu0 0.0
    %5069 = vmatpush1.msra.mxu0 0.0
    %5070 = vmatprep.subr.mxu0 0.0
    %5071 = vmatpush1.msra.mxu0 0.0
    %5072 = vmatprep.subr.mxu0 0.0
    %5073 = vmatpush1.msra.mxu0 0.0
    %5074 = vmatprep.subr.mxu0 0.0
    %5075 = vmatpush1.msra.mxu0 0.0
    %5076 = vmatprep.subr.mxu0 %v5048
    %5077 = vmatpush1.msra.mxu0 %v5047
    %5078 = vmatprep.subr.mxu0 %v5041
    %5079 = vmatpush1.msra.mxu0 %v5040
    %5080 = vmatprep.subr.mxu0 %v5034
    %5081 = vmatpush1.msra.mxu0 %v5033
    %5082 = vmatprep.subr.mxu0 %v5027
    %5083 = vmatpush1.msra.mxu0 %v5026
    %5084 = vmatprep.subr.mxu0 %v5020
    %5085 = vmatpush1.msra.mxu0 %v5019
    %5086 = vmatprep.subr.mxu0 %v5013
    %5087 = vmatpush1.msra.mxu0 %v5012
    %5088 = vmatprep.subr.mxu0 %v5006
    %5089 = vmatpush1.msra.mxu0 %v5005
    %5090 = vmatprep.subr.mxu0 %v4999
    %5091 = vmatpush1.msra.mxu0 %v4998
    %5092 = vmatprep.subr.mxu0 0.0
    %5093 = vmatpush2.msra.mxu0 0.0
    %5094 = vmatprep.subr.mxu0 0.0
    %5095 = vmatpush2.msra.mxu0 0.0
    %5096 = vmatprep.subr.mxu0 0.0
    %5097 = vmatpush2.msra.mxu0 0.0
    %5098 = vmatprep.subr.mxu0 0.0
    %5099 = vmatpush2.msra.mxu0 0.0
    %5100 = vmatprep.subr.mxu0 0.0
    %5101 = vmatpush2.msra.mxu0 0.0
    %5102 = vmatprep.subr.mxu0 0.0
    %5103 = vmatpush2.msra.mxu0 0.0
    %5104 = vmatprep.subr.mxu0 0.0
    %5105 = vmatpush2.msra.mxu0 0.0
    %5106 = vmatprep.subr.mxu0 0.0
    %5107 = vmatpush2.msra.mxu0 0.0
    %5108 = vmatprep.subr.mxu0 0.0
    %5109 = vmatpush2.msra.mxu0 0.0
    %5110 = vmatprep.subr.mxu0 0.0
    %5111 = vmatpush2.msra.mxu0 0.0
    %5112 = vmatprep.subr.mxu0 0.0
    %5113 = vmatpush2.msra.mxu0 0.0
    %5114 = vmatprep.subr.mxu0 0.0
    %5115 = vmatpush2.msra.mxu0 0.0
    %5116 = vmatprep.subr.mxu0 0.0
    %5117 = vmatpush2.msra.mxu0 0.0
    %5118 = vmatprep.subr.mxu0 0.0
    %5119 = vmatpush2.msra.mxu0 0.0
    %5120 = vmatprep.subr.mxu0 0.0
    %5121 = vmatpush2.msra.mxu0 0.0
    %5122 = vmatprep.subr.mxu0 0.0
    %5123 = vmatpush2.msra.mxu0 0.0
    %5124 = vmatprep.mubr.f32.mxu0 0.0
    %5125 = vmatmul.mubr.f32.gmra.mxu0 %v5055
    %v5126 = vpop.f32.mrf.mxu0
    %v5127 = vadd.f32 0.0, %v5126
    %v5128 = vpop.f32.mrf.mxu0
    %v5129 = vadd.f32 0.0, %v5128
    %5130 = vmatprep.mubr.f32.mxu0 0.0
    %5131 = vmatmul.mubr.f32.gmra.mxu0 %v5058
    %v5132 = vpop.f32.mrf.mxu0
    %v5133 = vadd.f32 0.0, %v5132
    %v5134 = vpop.f32.mrf.mxu0
    %v5135 = vadd.f32 0.0, %v5134
    %5136 = vdwg.mxu0
    %5137 = vmatprep.subr.mxu0 0.0
    %5138 = vmatpush1.msra.mxu0 0.0
    %5139 = vmatprep.subr.mxu0 0.0
    %5140 = vmatpush1.msra.mxu0 0.0
    %5141 = vmatprep.subr.mxu0 0.0
    %5142 = vmatpush1.msra.mxu0 0.0
    %5143 = vmatprep.subr.mxu0 0.0
    %5144 = vmatpush1.msra.mxu0 0.0
    %5145 = vmatprep.subr.mxu0 0.0
    %5146 = vmatpush1.msra.mxu0 0.0
    %5147 = vmatprep.subr.mxu0 0.0
    %5148 = vmatpush1.msra.mxu0 0.0
    %5149 = vmatprep.subr.mxu0 0.0
    %5150 = vmatpush1.msra.mxu0 0.0
    %5151 = vmatprep.subr.mxu0 0.0
    %5152 = vmatpush1.msra.mxu0 0.0
    %5153 = vmatprep.subr.mxu0 %v5050
    %5154 = vmatpush1.msra.mxu0 %v5049
    %5155 = vmatprep.subr.mxu0 %v5043
    %5156 = vmatpush1.msra.mxu0 %v5042
    %5157 = vmatprep.subr.mxu0 %v5036
    %5158 = vmatpush1.msra.mxu0 %v5035
    %5159 = vmatprep.subr.mxu0 %v5029
    %5160 = vmatpush1.msra.mxu0 %v5028
    %5161 = vmatprep.subr.mxu0 %v5022
    %5162 = vmatpush1.msra.mxu0 %v5021
    %5163 = vmatprep.subr.mxu0 %v5015
    %5164 = vmatpush1.msra.mxu0 %v5014
    %5165 = vmatprep.subr.mxu0 %v5008
    %5166 = vmatpush1.msra.mxu0 %v5007
    %5167 = vmatprep.subr.mxu0 %v5001
    %5168 = vmatpush1.msra.mxu0 %v5000
    %5169 = vmatprep.subr.mxu0 0.0
    %5170 = vmatpush2.msra.mxu0 0.0
    %5171 = vmatprep.subr.mxu0 0.0
    %5172 = vmatpush2.msra.mxu0 0.0
    %5173 = vmatprep.subr.mxu0 0.0
    %5174 = vmatpush2.msra.mxu0 0.0
    %5175 = vmatprep.subr.mxu0 0.0
    %5176 = vmatpush2.msra.mxu0 0.0
    %5177 = vmatprep.subr.mxu0 0.0
    %5178 = vmatpush2.msra.mxu0 0.0
    %5179 = vmatprep.subr.mxu0 0.0
    %5180 = vmatpush2.msra.mxu0 0.0
    %5181 = vmatprep.subr.mxu0 0.0
    %5182 = vmatpush2.msra.mxu0 0.0
    %5183 = vmatprep.subr.mxu0 0.0
    %5184 = vmatpush2.msra.mxu0 0.0
    %5185 = vmatprep.subr.mxu0 0.0
    %5186 = vmatpush2.msra.mxu0 0.0
    %5187 = vmatprep.subr.mxu0 0.0
    %5188 = vmatpush2.msra.mxu0 0.0
    %5189 = vmatprep.subr.mxu0 0.0
    %5190 = vmatpush2.msra.mxu0 0.0
    %5191 = vmatprep.subr.mxu0 0.0
    %5192 = vmatpush2.msra.mxu0 0.0
    %5193 = vmatprep.subr.mxu0 0.0
    %5194 = vmatpush2.msra.mxu0 0.0
    %5195 = vmatprep.subr.mxu0 0.0
    %5196 = vmatpush2.msra.mxu0 0.0
    %5197 = vmatprep.subr.mxu0 0.0
    %5198 = vmatpush2.msra.mxu0 0.0
    %5199 = vmatprep.subr.mxu0 0.0
    %5200 = vmatpush2.msra.mxu0 0.0
    %5201 = vmatprep.mubr.f32.mxu0 0.0
    %5202 = vmatmul.mubr.f32.gmra.mxu0 %v5055
    %v5203 = vpop.f32.mrf.mxu0
    %v5204 = vadd.f32 0.0, %v5203
    %v5205 = vpop.f32.mrf.mxu0
    %v5206 = vadd.f32 0.0, %v5205
    %5207 = vmatprep.mubr.f32.mxu0 0.0
    %5208 = vmatmul.mubr.f32.gmra.mxu0 %v5058
    %v5209 = vpop.f32.mrf.mxu0
    %v5210 = vadd.f32 0.0, %v5209
    %v5211 = vpop.f32.mrf.mxu0
    %v5212 = vadd.f32 0.0, %v5211
    %5213 = vdwg.mxu0
    %5214 = vmatprep.subr.mxu0 0.0
    %5215 = vmatpush1.msra.mxu0 0.0
    %5216 = vmatprep.subr.mxu0 0.0
    %5217 = vmatpush1.msra.mxu0 0.0
    %5218 = vmatprep.subr.mxu0 0.0
    %5219 = vmatpush1.msra.mxu0 0.0
    %5220 = vmatprep.subr.mxu0 0.0
    %5221 = vmatpush1.msra.mxu0 0.0
    %5222 = vmatprep.subr.mxu0 0.0
    %5223 = vmatpush1.msra.mxu0 0.0
    %5224 = vmatprep.subr.mxu0 0.0
    %5225 = vmatpush1.msra.mxu0 0.0
    %5226 = vmatprep.subr.mxu0 0.0
    %5227 = vmatpush1.msra.mxu0 0.0
    %5228 = vmatprep.subr.mxu0 0.0
    %5229 = vmatpush1.msra.mxu0 0.0
    %5230 = vmatprep.subr.mxu0 %v5052
    %5231 = vmatpush1.msra.mxu0 %v5051
    %5232 = vmatprep.subr.mxu0 %v5045
    %5233 = vmatpush1.msra.mxu0 %v5044
    %5234 = vmatprep.subr.mxu0 %v5038
    %5235 = vmatpush1.msra.mxu0 %v5037
    %5236 = vmatprep.subr.mxu0 %v5031
    %5237 = vmatpush1.msra.mxu0 %v5030
    %5238 = vmatprep.subr.mxu0 %v5024
    %5239 = vmatpush1.msra.mxu0 %v5023
    %5240 = vmatprep.subr.mxu0 %v5017
    %5241 = vmatpush1.msra.mxu0 %v5016
    %5242 = vmatprep.subr.mxu0 %v5010
    %5243 = vmatpush1.msra.mxu0 %v5009
    %5244 = vmatprep.subr.mxu0 %v5003
    %5245 = vmatpush1.msra.mxu0 %v5002
    %5246 = vmatprep.subr.mxu0 0.0
    %5247 = vmatpush2.msra.mxu0 0.0
    %5248 = vmatprep.subr.mxu0 0.0
    %5249 = vmatpush2.msra.mxu0 0.0
    %5250 = vmatprep.subr.mxu0 0.0
    %5251 = vmatpush2.msra.mxu0 0.0
    %5252 = vmatprep.subr.mxu0 0.0
    %5253 = vmatpush2.msra.mxu0 0.0
    %5254 = vmatprep.subr.mxu0 0.0
    %5255 = vmatpush2.msra.mxu0 0.0
    %5256 = vmatprep.subr.mxu0 0.0
    %5257 = vmatpush2.msra.mxu0 0.0
    %5258 = vmatprep.subr.mxu0 0.0
    %5259 = vmatpush2.msra.mxu0 0.0
    %5260 = vmatprep.subr.mxu0 0.0
    %5261 = vmatpush2.msra.mxu0 0.0
    %5262 = vmatprep.subr.mxu0 0.0
    %5263 = vmatpush2.msra.mxu0 0.0
    %5264 = vmatprep.subr.mxu0 0.0
    %5265 = vmatpush2.msra.mxu0 0.0
    %5266 = vmatprep.subr.mxu0 0.0
    %5267 = vmatpush2.msra.mxu0 0.0
    %5268 = vmatprep.subr.mxu0 0.0
    %5269 = vmatpush2.msra.mxu0 0.0
    %5270 = vmatprep.subr.mxu0 0.0
    %5271 = vmatpush2.msra.mxu0 0.0
    %5272 = vmatprep.subr.mxu0 0.0
    %5273 = vmatpush2.msra.mxu0 0.0
    %5274 = vmatprep.subr.mxu0 0.0
    %5275 = vmatpush2.msra.mxu0 0.0
    %5276 = vmatprep.subr.mxu0 0.0
    %5277 = vmatpush2.msra.mxu0 0.0
    %5278 = vmatprep.mubr.f32.mxu0 0.0
    %5279 = vmatmul.mubr.f32.gmra.mxu0 %v5055
    %v5280 = vpop.f32.mrf.mxu0
    %v5281 = vadd.f32 0.0, %v5280
    %v5282 = vpop.f32.mrf.mxu0
    %v5283 = vadd.f32 0.0, %v5282
    %5284 = vmatprep.mubr.f32.mxu0 0.0
    %5285 = vmatmul.mubr.f32.gmra.mxu0 %v5058
    %v5286 = vpop.f32.mrf.mxu0
    %v5287 = vadd.f32 0.0, %v5286
    %v5288 = vpop.f32.mrf.mxu0
    %v5289 = vadd.f32 0.0, %v5288
    %5290 = vdwg.mxu0
    %5291 = vmatprep.subr.mxu0 0.0
    %5292 = vmatpush1.msra.mxu0 0.0
    %5293 = vmatprep.subr.mxu0 0.0
    %5294 = vmatpush1.msra.mxu0 0.0
    %5295 = vmatprep.subr.mxu0 0.0
    %5296 = vmatpush1.msra.mxu0 0.0
    %5297 = vmatprep.subr.mxu0 0.0
    %5298 = vmatpush1.msra.mxu0 0.0
    %5299 = vmatprep.subr.mxu0 0.0
    %5300 = vmatpush1.msra.mxu0 0.0
    %5301 = vmatprep.subr.mxu0 0.0
    %5302 = vmatpush1.msra.mxu0 0.0
    %5303 = vmatprep.subr.mxu0 0.0
    %5304 = vmatpush1.msra.mxu0 0.0
    %5305 = vmatprep.subr.mxu0 0.0
    %5306 = vmatpush1.msra.mxu0 0.0
    %5307 = vmatprep.subr.mxu0 0.0
    %5308 = vmatpush1.msra.mxu0 %v5053
    %5309 = vmatprep.subr.mxu0 0.0
    %5310 = vmatpush1.msra.mxu0 %v5046
    %5311 = vmatprep.subr.mxu0 0.0
    %5312 = vmatpush1.msra.mxu0 %v5039
    %5313 = vmatprep.subr.mxu0 0.0
    %5314 = vmatpush1.msra.mxu0 %v5032
    %5315 = vmatprep.subr.mxu0 0.0
    %5316 = vmatpush1.msra.mxu0 %v5025
    %5317 = vmatprep.subr.mxu0 0.0
    %5318 = vmatpush1.msra.mxu0 %v5018
    %5319 = vmatprep.subr.mxu0 0.0
    %5320 = vmatpush1.msra.mxu0 %v5011
    %5321 = vmatprep.subr.mxu0 0.0
    %5322 = vmatpush1.msra.mxu0 %v5004
    %5323 = vmatprep.subr.mxu0 0.0
    %5324 = vmatpush2.msra.mxu0 0.0
    %5325 = vmatprep.subr.mxu0 0.0
    %5326 = vmatpush2.msra.mxu0 0.0
    %5327 = vmatprep.subr.mxu0 0.0
    %5328 = vmatpush2.msra.mxu0 0.0
    %5329 = vmatprep.subr.mxu0 0.0
    %5330 = vmatpush2.msra.mxu0 0.0
    %5331 = vmatprep.subr.mxu0 0.0
    %5332 = vmatpush2.msra.mxu0 0.0
    %5333 = vmatprep.subr.mxu0 0.0
    %5334 = vmatpush2.msra.mxu0 0.0
    %5335 = vmatprep.subr.mxu0 0.0
    %5336 = vmatpush2.msra.mxu0 0.0
    %5337 = vmatprep.subr.mxu0 0.0
    %5338 = vmatpush2.msra.mxu0 0.0
    %5339 = vmatprep.subr.mxu0 0.0
    %5340 = vmatpush2.msra.mxu0 0.0
    %5341 = vmatprep.subr.mxu0 0.0
    %5342 = vmatpush2.msra.mxu0 0.0
    %5343 = vmatprep.subr.mxu0 0.0
    %5344 = vmatpush2.msra.mxu0 0.0
    %5345 = vmatprep.subr.mxu0 0.0
    %5346 = vmatpush2.msra.mxu0 0.0
    %5347 = vmatprep.subr.mxu0 0.0
    %5348 = vmatpush2.msra.mxu0 0.0
    %5349 = vmatprep.subr.mxu0 0.0
    %5350 = vmatpush2.msra.mxu0 0.0
    %5351 = vmatprep.subr.mxu0 0.0
    %5352 = vmatpush2.msra.mxu0 0.0
    %5353 = vmatprep.subr.mxu0 0.0
    %5354 = vmatpush2.msra.mxu0 0.0
    %5355 = vmatprep.mubr.f32.mxu0 0.0
    %5356 = vmatmul.mubr.f32.gmra.mxu0 %v5055
    %v5357 = vpop.f32.mrf.mxu0
    %v5358 = vadd.f32 0.0, %v5357
    %v5359 = vpop.f32.mrf.mxu0
    %5360 = vmatprep.mubr.f32.mxu0 0.0
    %5361 = vmatmul.mubr.f32.gmra.mxu0 %v5058
    %v5362 = vpop.f32.mrf.mxu0
    %v5363 = vadd.f32 0.0, %v5362
    %v5364 = vpop.f32.mrf.mxu0
    %5365 = vdwg.mxu0
    %v5366 = vadd.f32 %v4984, %v5127
    %v5367 = vadd.f32 %v4985, %v5129
    %v5368 = vadd.f32 %v4986, %v5204
    %v5369 = vadd.f32 %v4987, %v5206
    %v5370 = vadd.f32 %v4988, %v5281
    %v5371 = vadd.f32 %v4989, %v5283
    %v5372 = vadd.f32 %v4990, %v5358
    %v5373 = vadd.f32 %v4991, %v5133
    %v5374 = vadd.f32 %v4992, %v5135
    %v5375 = vadd.f32 %v4993, %v5210
    %v5376 = vadd.f32 %v4994, %v5212
    %v5377 = vadd.f32 %v4995, %v5287
    %v5378 = vadd.f32 %v4996, %v5289
    %v5379 = vadd.f32 %v4997, %v5363
    %v5380 = vmul.f32 %v5366, %v1346
    %v5381 = vmul.f32 %v5373, %v1346
    %v5382 = vadd.f32 %v5380, 0.5
    %v5383 = vadd.f32 %v5381, 0.5
    %v5384 = vmax.f32 %v5382, 0.0
    %v5385 = vmax.f32 %v5383, 0.0
    %v5386 = vmin.f32 %v5384, 1.0
    %v5387 = vmin.f32 %v5385, 1.0
    %v5388 = vtanh.pop %v5367
    %v5389 = vtanh.pop %v5374
    %v5390 = vmul.f32 %v5367, %v1346
    %v5391 = vmul.f32 %v5374, %v1346
    %v5392 = vadd.f32 %v5390, 0.5
    %v5393 = vadd.f32 %v5391, 0.5
    %v5394 = vmax.f32 %v5392, 0.0
    %v5395 = vmax.f32 %v5393, 0.0
    %v5396 = vmin.f32 %v5394, 1.0
    %v5397 = vmin.f32 %v5395, 1.0
    %v5398 = vmul.f32 %v5368, %v1346
    %v5399 = vmul.f32 %v5369, %v1346
    %v5400 = vmul.f32 %v5370, %v1346
    %v5401 = vmul.f32 %v5371, %v1346
    %v5402 = vmul.f32 %v5372, %v1346
    %v5403 = vmul.f32 %v5375, %v1346
    %v5404 = vmul.f32 %v5376, %v1346
    %v5405 = vmul.f32 %v5377, %v1346
    %v5406 = vmul.f32 %v5378, %v1346
    %v5407 = vmul.f32 %v5379, %v1346
    %v5408 = vadd.f32 %v5398, 0.5
    %v5409 = vadd.f32 %v5399, 0.5
    %v5410 = vadd.f32 %v5400, 0.5
    %v5411 = vadd.f32 %v5401, 0.5
    %v5412 = vadd.f32 %v5402, 0.5
    %v5413 = vadd.f32 %v5403, 0.5
    %v5414 = vadd.f32 %v5404, 0.5
    %v5415 = vadd.f32 %v5405, 0.5
    %v5416 = vadd.f32 %v5406, 0.5
    %v5417 = vadd.f32 %v5407, 0.5
    %v5418 = vmax.f32 %v5408, 0.0
    %v5419 = vmax.f32 %v5409, 0.0
    %v5420 = vmax.f32 %v5410, 0.0
    %v5421 = vmax.f32 %v5411, 0.0
    %v5422 = vmax.f32 %v5412, 0.0
    %v5423 = vmax.f32 %v5413, 0.0
    %v5424 = vmax.f32 %v5414, 0.0
    %v5425 = vmax.f32 %v5415, 0.0
    %v5426 = vmax.f32 %v5416, 0.0
    %v5427 = vmax.f32 %v5417, 0.0
    %v5428 = vmin.f32 %v5418, 1.0
    %v5429 = vmin.f32 %v5419, 1.0
    %v5430 = vmin.f32 %v5420, 1.0
    %v5431 = vmin.f32 %v5421, 1.0
    %v5432 = vmin.f32 %v5422, 1.0
    %v5433 = vmin.f32 %v5423, 1.0
    %v5434 = vmin.f32 %v5424, 1.0
    %v5435 = vmin.f32 %v5425, 1.0
    %v5436 = vmin.f32 %v5426, 1.0
    %v5437 = vmin.f32 %v5427, 1.0
    %v5438 = vmul.f32 %v5386, %v5388
    %v5439 = vmul.f32 %v5387, %v5389
    %5442 = vrot.lane.b32.xlu0 %v5386, 64
    %v5443 = vpop.permute.xlu0 %5442
    %5444 = vrot.lane.b32.xlu0 %v5387, 64
    %v5445 = vpop.permute.xlu0 %5444
    %v5448 = vsel %vm922, %v5443, %v5386
    %v5449 = vsel %vm922, %v5445, %v5387
    %5452 = vrot.lane.b32.xlu0 %v5438, 64
    %v5453 = vpop.permute.xlu0 %5452
    %5454 = vrot.lane.b32.xlu0 %v5439, 64
    %v5455 = vpop.permute.xlu0 %5454
    %v5458 = vsel %vm922, %v5438, %v5453
    %v5459 = vsel %vm922, %v5439, %v5455
    %v5460 = vmul.f32 %v5448, %v5428
    %v5461 = vmul.f32 %v5448, %v5429
    %v5462 = vmul.f32 %v5448, %v5430
    %v5463 = vmul.f32 %v5448, %v5431
    %v5464 = vmul.f32 %v5448, %v5432
    %v5465 = vmul.f32 %v5449, %v5433
    %v5466 = vmul.f32 %v5449, %v5434
    %v5467 = vmul.f32 %v5449, %v5435
    %v5468 = vmul.f32 %v5449, %v5436
    %v5469 = vmul.f32 %v5449, %v5437
    %s5470 = scalar_lea.vmem %s6, 5
    %v5471 = vld [vmem:[%s5470] ss:$8 sm:$0xf]
    %v5472 = vld [vmem:[%s5470] ss:$8 sm:$0x10]
    %v5473 = vor.u32 %v5471, %v5472
    %s5474 = scalar_lea.vmem %s7, 5
    %v5475 = vld [vmem:[%s5474] ss:$8 sm:$0xf]
    %v5476 = vld [vmem:[%s5474] ss:$8 sm:$0x10]
    %v5477 = vor.u32 %v5475, %v5476
    %v5478 = vld [vmem:[#allocation4] sm:$0xff]
    %v5479 = vld [vmem:[#allocation4 + $0x8] sm:$0xff]
    %v5480 = vld [vmem:[#allocation4 + $0x10] sm:$0xff]
    %v5481 = vld [vmem:[#allocation4 + $0x18] sm:$0xff]
    %v5482 = vld [vmem:[#allocation4 + $0x20] sm:$0xff]
    %v5483 = vld [vmem:[#allocation4 + $0x28] sm:$0xff]
    %v5484 = vld [vmem:[#allocation4 + $0x30] sm:$0xff]
    %v5485 = vld [vmem:[#allocation4 + $0x38] sm:$0xff]
    %v5486 = vld [vmem:[#allocation4 + $0x40] sm:$0xff]
    %v5487 = vld [vmem:[#allocation4 + $0x48] sm:$0xff]
    %v5488 = vmul.f32 %v5460, %v5478
    %v5489 = vmul.f32 %v5461, %v5479
    %v5490 = vmul.f32 %v5462, %v5480
    %v5491 = vmul.f32 %v5463, %v5481
    %v5492 = vmul.f32 %v5464, %v5482
    %v5493 = vmul.f32 %v5465, %v5483
    %v5494 = vmul.f32 %v5466, %v5484
    %v5495 = vmul.f32 %v5467, %v5485
    %v5496 = vmul.f32 %v5468, %v5486
    %v5497 = vmul.f32 %v5469, %v5487
    %v5499 = vlaneseq
    %v5500 = vshrl.u32 %v5499, 7
    %v5501 = vsub.s32 0, %v5500
    %v5502 = vrot.slane %v5473, %v5501
    %v5503 = vlaneseq
    %v5504 = vshrl.u32 %v5503, 7
    %v5505 = vsub.s32 1, %v5504
    %v5506 = vrot.slane %v5473, %v5505
    %v5507 = vlaneseq
    %v5508 = vshrl.u32 %v5507, 7
    %v5509 = vsub.s32 2, %v5508
    %v5510 = vrot.slane %v5473, %v5509
    %v5511 = vlaneseq
    %v5512 = vshrl.u32 %v5511, 7
    %v5513 = vsub.s32 3, %v5512
    %v5514 = vrot.slane %v5473, %v5513
    %v5515 = vlaneseq
    %v5516 = vshrl.u32 %v5515, 7
    %v5517 = vsub.s32 4, %v5516
    %v5518 = vrot.slane %v5473, %v5517
    %v5524 = vmul.f32 %v5458, %v5502
    %v5525 = vmul.f32 %v5458, %v5506
    %v5526 = vmul.f32 %v5458, %v5510
    %v5527 = vmul.f32 %v5458, %v5514
    %v5528 = vmul.f32 %v5458, %v5518
    %v5529 = vmul.f32 %v5459, %v5502
    %v5530 = vmul.f32 %v5459, %v5506
    %v5531 = vmul.f32 %v5459, %v5510
    %v5532 = vmul.f32 %v5459, %v5514
    %v5533 = vmul.f32 %v5459, %v5518
    %v5534 = vadd.f32 %v5488, %v5524
    %v5535 = vadd.f32 %v5489, %v5525
    %v5536 = vadd.f32 %v5490, %v5526
    %v5537 = vadd.f32 %v5491, %v5527
    %v5538 = vadd.f32 %v5492, %v5528
    %v5539 = vadd.f32 %v5493, %v5529
    %v5540 = vadd.f32 %v5494, %v5530
    %v5541 = vadd.f32 %v5495, %v5531
    %v5542 = vadd.f32 %v5496, %v5532
    %v5543 = vadd.f32 %v5497, %v5533
    %v5544 = vld [vmem:[#allocation5] sm:$0xff]
    %v5545 = vld [vmem:[#allocation5 + $0x8] sm:$0xff]
    %v5546 = vld [vmem:[#allocation5 + $0x10] sm:$0xff]
    %v5547 = vld [vmem:[#allocation5 + $0x18] sm:$0xff]
    %v5548 = vld [vmem:[#allocation5 + $0x20] sm:$0xff]
    %v5549 = vld [vmem:[#allocation5 + $0x28] sm:$0xff]
    %v5550 = vld [vmem:[#allocation5 + $0x30] sm:$0xff]
    %v5551 = vld [vmem:[#allocation5 + $0x38] sm:$0xff]
    %v5552 = vld [vmem:[#allocation5 + $0x40] sm:$0xff]
    %v5553 = vld [vmem:[#allocation5 + $0x48] sm:$0xff]
    %v5554 = vmul.f32 %v5460, %v5544
    %v5555 = vmul.f32 %v5461, %v5545
    %v5556 = vmul.f32 %v5462, %v5546
    %v5557 = vmul.f32 %v5463, %v5547
    %v5558 = vmul.f32 %v5464, %v5548
    %v5559 = vmul.f32 %v5465, %v5549
    %v5560 = vmul.f32 %v5466, %v5550
    %v5561 = vmul.f32 %v5467, %v5551
    %v5562 = vmul.f32 %v5468, %v5552
    %v5563 = vmul.f32 %v5469, %v5553
    %v5565 = vlaneseq
    %v5566 = vshrl.u32 %v5565, 7
    %v5567 = vsub.s32 0, %v5566
    %v5568 = vrot.slane %v5477, %v5567
    %v5569 = vlaneseq
    %v5570 = vshrl.u32 %v5569, 7
    %v5571 = vsub.s32 1, %v5570
    %v5572 = vrot.slane %v5477, %v5571
    %v5573 = vlaneseq
    %v5574 = vshrl.u32 %v5573, 7
    %v5575 = vsub.s32 2, %v5574
    %v5576 = vrot.slane %v5477, %v5575
    %v5577 = vlaneseq
    %v5578 = vshrl.u32 %v5577, 7
    %v5579 = vsub.s32 3, %v5578
    %v5580 = vrot.slane %v5477, %v5579
    %v5581 = vlaneseq
    %v5582 = vshrl.u32 %v5581, 7
    %v5583 = vsub.s32 4, %v5582
    %v5584 = vrot.slane %v5477, %v5583
    %v5590 = vmul.f32 %v5458, %v5568
    %v5591 = vmul.f32 %v5458, %v5572
    %v5592 = vmul.f32 %v5458, %v5576
    %v5593 = vmul.f32 %v5458, %v5580
    %v5594 = vmul.f32 %v5458, %v5584
    %v5595 = vmul.f32 %v5459, %v5568
    %v5596 = vmul.f32 %v5459, %v5572
    %v5597 = vmul.f32 %v5459, %v5576
    %v5598 = vmul.f32 %v5459, %v5580
    %v5599 = vmul.f32 %v5459, %v5584
    %v5600 = vadd.f32 %v5554, %v5590
    %v5601 = vadd.f32 %v5555, %v5591
    %v5602 = vadd.f32 %v5556, %v5592
    %v5603 = vadd.f32 %v5557, %v5593
    %v5604 = vadd.f32 %v5558, %v5594
    %v5605 = vadd.f32 %v5559, %v5595
    %v5606 = vadd.f32 %v5560, %v5596
    %v5607 = vadd.f32 %v5561, %v5597
    %v5608 = vadd.f32 %v5562, %v5598
    %v5609 = vadd.f32 %v5563, %v5599
    %5610 = vst [vmem:[#allocation4] sm:$0xff] %v5534
    %5611 = vst [vmem:[#allocation4 + $0x8] sm:$0xff] %v5535
    %5612 = vst [vmem:[#allocation4 + $0x10] sm:$0xff] %v5536
    %5613 = vst [vmem:[#allocation4 + $0x18] sm:$0xff] %v5537
    %5614 = vst [vmem:[#allocation4 + $0x20] sm:$0xff] %v5538
    %5615 = vst [vmem:[#allocation4 + $0x28] sm:$0xff] %v5539
    %5616 = vst [vmem:[#allocation4 + $0x30] sm:$0xff] %v5540
    %5617 = vst [vmem:[#allocation4 + $0x38] sm:$0xff] %v5541
    %5618 = vst [vmem:[#allocation4 + $0x40] sm:$0xff] %v5542
    %5619 = vst [vmem:[#allocation4 + $0x48] sm:$0xff] %v5543
    %5620 = vst [vmem:[#allocation5] sm:$0xff] %v5600
    %5621 = vst [vmem:[#allocation5 + $0x8] sm:$0xff] %v5601
    %5622 = vst [vmem:[#allocation5 + $0x10] sm:$0xff] %v5602
    %5623 = vst [vmem:[#allocation5 + $0x18] sm:$0xff] %v5603
    %5624 = vst [vmem:[#allocation5 + $0x20] sm:$0xff] %v5604
    %5625 = vst [vmem:[#allocation5 + $0x28] sm:$0xff] %v5605
    %5626 = vst [vmem:[#allocation5 + $0x30] sm:$0xff] %v5606
    %5627 = vst [vmem:[#allocation5 + $0x38] sm:$0xff] %v5607
    %5628 = vst [vmem:[#allocation5 + $0x40] sm:$0xff] %v5608
    %5629 = vst [vmem:[#allocation5 + $0x48] sm:$0xff] %v5609
    %v5630 = vmul.f32 %v5534, %v5534
    %v5631 = vmul.f32 %v5535, %v5535
    %v5632 = vmul.f32 %v5536, %v5536
    %v5633 = vmul.f32 %v5537, %v5537
    %v5634 = vmul.f32 %v5538, %v5538
    %v5635 = vmul.f32 %v5539, %v5539
    %v5636 = vmul.f32 %v5540, %v5540
    %v5637 = vmul.f32 %v5541, %v5541
    %v5638 = vmul.f32 %v5542, %v5542
    %v5639 = vmul.f32 %v5543, %v5543
    %v5640 = vmul.f32 %v5600, %v5600
    %v5641 = vmul.f32 %v5601, %v5601
    %v5642 = vmul.f32 %v5602, %v5602
    %v5643 = vmul.f32 %v5603, %v5603
    %v5644 = vmul.f32 %v5604, %v5604
    %v5645 = vmul.f32 %v5605, %v5605
    %v5646 = vmul.f32 %v5606, %v5606
    %v5647 = vmul.f32 %v5607, %v5607
    %v5648 = vmul.f32 %v5608, %v5608
    %v5649 = vmul.f32 %v5609, %v5609
    %v5650 = vadd.f32 %v5630, %v5640
    %v5651 = vadd.f32 %v5631, %v5641
    %v5652 = vadd.f32 %v5632, %v5642
    %v5653 = vadd.f32 %v5633, %v5643
    %v5654 = vadd.f32 %v5634, %v5644
    %v5655 = vadd.f32 %v5635, %v5645
    %v5656 = vadd.f32 %v5636, %v5646
    %v5657 = vadd.f32 %v5637, %v5647
    %v5658 = vadd.f32 %v5638, %v5648
    %v5659 = vadd.f32 %v5639, %v5649
    %v5660 = vld [vmem:[%s5] sm:$0x1f]
    %v5662 = vlaneseq
    %v5663 = vshrl.u32 %v5662, 7
    %v5664 = vsub.s32 0, %v5663
    %v5665 = vrot.slane %v5660, %v5664
    %v5666 = vlaneseq
    %v5667 = vshrl.u32 %v5666, 7
    %v5668 = vsub.s32 1, %v5667
    %v5669 = vrot.slane %v5660, %v5668
    %v5670 = vlaneseq
    %v5671 = vshrl.u32 %v5670, 7
    %v5672 = vsub.s32 2, %v5671
    %v5673 = vrot.slane %v5660, %v5672
    %v5674 = vlaneseq
    %v5675 = vshrl.u32 %v5674, 7
    %v5676 = vsub.s32 3, %v5675
    %v5677 = vrot.slane %v5660, %v5676
    %v5678 = vlaneseq
    %v5679 = vshrl.u32 %v5678, 7
    %v5680 = vsub.s32 4, %v5679
    %v5681 = vrot.slane %v5660, %v5680
    %v5687 = vmul.f32 %v5650, %v5665
    %v5688 = vmul.f32 %v5651, %v5669
    %v5689 = vmul.f32 %v5652, %v5673
    %v5690 = vmul.f32 %v5653, %v5677
    %v5691 = vmul.f32 %v5654, %v5681
    %v5692 = vmul.f32 %v5655, %v5665
    %v5693 = vmul.f32 %v5656, %v5669
    %v5694 = vmul.f32 %v5657, %v5673
    %v5695 = vmul.f32 %v5658, %v5677
    %v5696 = vmul.f32 %v5659, %v5681
    %5699 = vrot.lane.b32.xlu0 %v5687, 64
    %v5700 = vpop.permute.xlu0 %5699
    %5701 = vrot.lane.b32.xlu0 %v5692, 64
    %v5702 = vpop.permute.xlu0 %5701
    %v5705 = vadd.f32 %v5687, %v5700
    %v5706 = vadd.f32 %v5692, %v5702
    %5709 = vrot.lane.b32.xlu0 %v5688, 64
    %v5710 = vpop.permute.xlu0 %5709
    %5711 = vrot.lane.b32.xlu0 %v5693, 64
    %v5712 = vpop.permute.xlu0 %5711
    %v5715 = vadd.f32 %v5688, %v5710
    %v5716 = vadd.f32 %v5693, %v5712
    %5719 = vrot.lane.b32.xlu0 %v5689, 64
    %v5720 = vpop.permute.xlu0 %5719
    %5721 = vrot.lane.b32.xlu0 %v5694, 64
    %v5722 = vpop.permute.xlu0 %5721
    %v5725 = vadd.f32 %v5689, %v5720
    %v5726 = vadd.f32 %v5694, %v5722
    %5729 = vrot.lane.b32.xlu0 %v5690, 64
    %v5730 = vpop.permute.xlu0 %5729
    %5731 = vrot.lane.b32.xlu0 %v5695, 64
    %v5732 = vpop.permute.xlu0 %5731
    %v5735 = vadd.f32 %v5690, %v5730
    %v5736 = vadd.f32 %v5695, %v5732
    %5739 = vrot.lane.b32.xlu0 %v5691, 64
    %v5740 = vpop.permute.xlu0 %5739
    %5741 = vrot.lane.b32.xlu0 %v5696, 64
    %v5742 = vpop.permute.xlu0 %5741
    %v5745 = vadd.f32 %v5691, %v5740
    %v5746 = vadd.f32 %v5696, %v5742
    %v5747 = vadd.f32 %v5705, %v5715
    %v5748 = vadd.f32 %v5706, %v5716
    %v5749 = vadd.f32 %v5725, %v5735
    %v5750 = vadd.f32 %v5726, %v5736
    %v5751 = vadd.f32 %v5747, %v5749
    %v5752 = vadd.f32 %v5748, %v5750
    %v5753 = vadd.f32 %v5751, %v5745
    %v5754 = vadd.f32 %v5752, %v5746
    %v5755 = vld [vmem:[%s4] sm:$0x1]
    %v5757 = vlaneseq
    %v5758 = vshrl.u32 %v5757, 7
    %v5759 = vsub.s32 0, %v5758
    %v5760 = vrot.slane %v5755, %v5759
    %v5762 = vadd.f32 %v5753, %v5760
    %v5763 = vadd.f32 %v5754, %v5760
    %v5764 = vtanh.pop %v5762
    %v5765 = vtanh.pop %v5763
    %5768 = vrot.lane.b32.xlu0 %v5764, 64
    %v5769 = vpop.permute.xlu0 %5768
    %5770 = vrot.lane.b32.xlu0 %v5765, 64
    %v5771 = vpop.permute.xlu0 %5770
    %v5774 = vmul.f32 %v5396, %v5769
    %v5775 = vmul.f32 %v5397, %v5771
    %5778 = vrot.lane.b32.xlu0 %v5774, 64
    %v5779 = vpop.permute.xlu0 %5778
    %5780 = vrot.lane.b32.xlu0 %v5775, 64
    %v5781 = vpop.permute.xlu0 %5780
    %5784 = vst.msk [vmem:[#allocation3] sm:$0xff] %vm922, %v5779
    %5785 = vst.msk [vmem:[#allocation3 + $0x8] sm:$0xff] %vm922, %v5781
    %v5786 = vld [vmem:[#allocation3] sm:$0xff]
    %v5787 = vld [vmem:[#allocation3 + $0x8] sm:$0xff]
    %s5788 = smul.u32 12, 7
    %s5789 = smul.addr %s5788, 8
    %s5790 = scalar_lea.vmem [#allocation2], %s5789
    %v5791 = vld [vmem:[%s5790] sm:$0xff]
    %v5792 = vld [vmem:[%s5790 + $0x8] sm:$0xff]
    %v5793 = vld [vmem:[%s5790 + $0x10] sm:$0xff]
    %v5794 = vld [vmem:[%s5790 + $0x18] sm:$0xff]
    %v5795 = vld [vmem:[%s5790 + $0x20] sm:$0xff]
    %v5796 = vld [vmem:[%s5790 + $0x28] sm:$0xff]
    %v5797 = vld [vmem:[%s5790 + $0x30] sm:$0xff]
    %v5798 = vld [vmem:[%s5790 + $0x38] sm:$0xff]
    %v5799 = vld [vmem:[%s5790 + $0x40] sm:$0xff]
    %v5800 = vld [vmem:[%s5790 + $0x48] sm:$0xff]
    %v5801 = vld [vmem:[%s5790 + $0x50] sm:$0xff]
    %v5802 = vld [vmem:[%s5790 + $0x58] sm:$0xff]
    %v5803 = vld [vmem:[%s5790 + $0x60] sm:$0xff]
    %v5804 = vld [vmem:[%s5790 + $0x68] sm:$0xff]
    %v5805 = vld [vmem:[#allocation7] sm:$0xff]
    %v5806 = vld [vmem:[#allocation7 + $0x8] sm:$0xff]
    %v5807 = vld [vmem:[#allocation7 + $0x10] sm:$0xff]
    %v5808 = vld [vmem:[#allocation7 + $0x18] sm:$0xff]
    %v5809 = vld [vmem:[#allocation7 + $0x20] sm:$0xff]
    %v5810 = vld [vmem:[#allocation7 + $0x28] sm:$0xff]
    %v5811 = vld [vmem:[#allocation7 + $0x30] sm:$0xff]
    %v5812 = vld [vmem:[#allocation7 + $0x38] sm:$0xff]
    %v5813 = vld [vmem:[#allocation7 + $0x40] sm:$0xff]
    %v5814 = vld [vmem:[#allocation7 + $0x48] sm:$0xff]
    %v5815 = vld [vmem:[#allocation7 + $0x50] sm:$0xff]
    %v5816 = vld [vmem:[#allocation7 + $0x58] sm:$0xff]
    %v5817 = vld [vmem:[#allocation7 + $0x60] sm:$0xff]
    %v5818 = vld [vmem:[#allocation7 + $0x68] sm:$0xff]
    %v5819 = vld [vmem:[#allocation7 + $0x70] sm:$0xff]
    %v5820 = vld [vmem:[#allocation7 + $0x78] sm:$0xff]
    %v5821 = vld [vmem:[#allocation7 + $0x80] sm:$0xff]
    %v5822 = vld [vmem:[#allocation7 + $0x88] sm:$0xff]
    %v5823 = vld [vmem:[#allocation7 + $0x90] sm:$0xff]
    %v5824 = vld [vmem:[#allocation7 + $0x98] sm:$0xff]
    %v5825 = vld [vmem:[#allocation7 + $0xa0] sm:$0xff]
    %v5826 = vld [vmem:[#allocation7 + $0xa8] sm:$0xff]
    %v5827 = vld [vmem:[#allocation7 + $0xb0] sm:$0xff]
    %v5828 = vld [vmem:[#allocation7 + $0xb8] sm:$0xff]
    %v5829 = vld [vmem:[#allocation7 + $0xc0] sm:$0xff]
    %v5830 = vld [vmem:[#allocation7 + $0xc8] sm:$0xff]
    %v5831 = vld [vmem:[#allocation7 + $0xd0] sm:$0xff]
    %v5832 = vld [vmem:[#allocation7 + $0xd8] sm:$0xff]
    %v5833 = vld [vmem:[#allocation7 + $0xe0] sm:$0xff]
    %v5834 = vld [vmem:[#allocation7 + $0xe8] sm:$0xff]
    %v5835 = vld [vmem:[#allocation7 + $0xf0] sm:$0xff]
    %v5836 = vld [vmem:[#allocation7 + $0xf8] sm:$0xff]
    %v5837 = vld [vmem:[#allocation7 + $0x100] sm:$0xff]
    %v5838 = vld [vmem:[#allocation7 + $0x108] sm:$0xff]
    %v5839 = vld [vmem:[#allocation7 + $0x110] sm:$0xff]
    %v5840 = vld [vmem:[#allocation7 + $0x118] sm:$0xff]
    %v5841 = vld [vmem:[#allocation7 + $0x120] sm:$0xff]
    %v5842 = vld [vmem:[#allocation7 + $0x128] sm:$0xff]
    %v5843 = vld [vmem:[#allocation7 + $0x130] sm:$0xff]
    %v5844 = vld [vmem:[#allocation7 + $0x138] sm:$0xff]
    %v5845 = vld [vmem:[#allocation7 + $0x140] sm:$0xff]
    %v5846 = vld [vmem:[#allocation7 + $0x148] sm:$0xff]
    %v5847 = vld [vmem:[#allocation7 + $0x150] sm:$0xff]
    %v5848 = vld [vmem:[#allocation7 + $0x158] sm:$0xff]
    %v5849 = vld [vmem:[#allocation7 + $0x160] sm:$0xff]
    %v5850 = vld [vmem:[#allocation7 + $0x168] sm:$0xff]
    %v5851 = vld [vmem:[#allocation7 + $0x170] sm:$0xff]
    %v5852 = vld [vmem:[#allocation7 + $0x178] sm:$0xff]
    %v5853 = vld [vmem:[#allocation7 + $0x180] sm:$0xff]
    %v5854 = vld [vmem:[#allocation7 + $0x188] sm:$0xff]
    %v5855 = vld [vmem:[#allocation7 + $0x190] sm:$0xff]
    %v5856 = vld [vmem:[#allocation7 + $0x198] sm:$0xff]
    %v5857 = vld [vmem:[#allocation7 + $0x1a0] sm:$0xff]
    %v5858 = vld [vmem:[#allocation7 + $0x1a8] sm:$0xff]
    %v5859 = vld [vmem:[#allocation7 + $0x1b0] sm:$0xff]
    %v5860 = vld [vmem:[#allocation7 + $0x1b8] sm:$0xff]
    %v5862 = vsel %vm922, %v5786, 0
    %v5865 = vsel %vm922, %v5787, 0
    %5867 = vmatprep.subr.mxu0 0.0
    %5868 = vmatpush1.msra.mxu0 0.0
    %5869 = vmatprep.subr.mxu0 0.0
    %5870 = vmatpush1.msra.mxu0 0.0
    %5871 = vmatprep.subr.mxu0 0.0
    %5872 = vmatpush1.msra.mxu0 0.0
    %5873 = vmatprep.subr.mxu0 0.0
    %5874 = vmatpush1.msra.mxu0 0.0
    %5875 = vmatprep.subr.mxu0 0.0
    %5876 = vmatpush1.msra.mxu0 0.0
    %5877 = vmatprep.subr.mxu0 0.0
    %5878 = vmatpush1.msra.mxu0 0.0
    %5879 = vmatprep.subr.mxu0 0.0
    %5880 = vmatpush1.msra.mxu0 0.0
    %5881 = vmatprep.subr.mxu0 0.0
    %5882 = vmatpush1.msra.mxu0 0.0
    %5883 = vmatprep.subr.mxu0 %v5855
    %5884 = vmatpush1.msra.mxu0 %v5854
    %5885 = vmatprep.subr.mxu0 %v5848
    %5886 = vmatpush1.msra.mxu0 %v5847
    %5887 = vmatprep.subr.mxu0 %v5841
    %5888 = vmatpush1.msra.mxu0 %v5840
    %5889 = vmatprep.subr.mxu0 %v5834
    %5890 = vmatpush1.msra.mxu0 %v5833
    %5891 = vmatprep.subr.mxu0 %v5827
    %5892 = vmatpush1.msra.mxu0 %v5826
    %5893 = vmatprep.subr.mxu0 %v5820
    %5894 = vmatpush1.msra.mxu0 %v5819
    %5895 = vmatprep.subr.mxu0 %v5813
    %5896 = vmatpush1.msra.mxu0 %v5812
    %5897 = vmatprep.subr.mxu0 %v5806
    %5898 = vmatpush1.msra.mxu0 %v5805
    %5899 = vmatprep.subr.mxu0 0.0
    %5900 = vmatpush2.msra.mxu0 0.0
    %5901 = vmatprep.subr.mxu0 0.0
    %5902 = vmatpush2.msra.mxu0 0.0
    %5903 = vmatprep.subr.mxu0 0.0
    %5904 = vmatpush2.msra.mxu0 0.0
    %5905 = vmatprep.subr.mxu0 0.0
    %5906 = vmatpush2.msra.mxu0 0.0
    %5907 = vmatprep.subr.mxu0 0.0
    %5908 = vmatpush2.msra.mxu0 0.0
    %5909 = vmatprep.subr.mxu0 0.0
    %5910 = vmatpush2.msra.mxu0 0.0
    %5911 = vmatprep.subr.mxu0 0.0
    %5912 = vmatpush2.msra.mxu0 0.0
    %5913 = vmatprep.subr.mxu0 0.0
    %5914 = vmatpush2.msra.mxu0 0.0
    %5915 = vmatprep.subr.mxu0 0.0
    %5916 = vmatpush2.msra.mxu0 0.0
    %5917 = vmatprep.subr.mxu0 0.0
    %5918 = vmatpush2.msra.mxu0 0.0
    %5919 = vmatprep.subr.mxu0 0.0
    %5920 = vmatpush2.msra.mxu0 0.0
    %5921 = vmatprep.subr.mxu0 0.0
    %5922 = vmatpush2.msra.mxu0 0.0
    %5923 = vmatprep.subr.mxu0 0.0
    %5924 = vmatpush2.msra.mxu0 0.0
    %5925 = vmatprep.subr.mxu0 0.0
    %5926 = vmatpush2.msra.mxu0 0.0
    %5927 = vmatprep.subr.mxu0 0.0
    %5928 = vmatpush2.msra.mxu0 0.0
    %5929 = vmatprep.subr.mxu0 0.0
    %5930 = vmatpush2.msra.mxu0 0.0
    %5931 = vmatprep.mubr.f32.mxu0 0.0
    %5932 = vmatmul.mubr.f32.gmra.mxu0 %v5862
    %v5933 = vpop.f32.mrf.mxu0
    %v5934 = vadd.f32 0.0, %v5933
    %v5935 = vpop.f32.mrf.mxu0
    %v5936 = vadd.f32 0.0, %v5935
    %5937 = vmatprep.mubr.f32.mxu0 0.0
    %5938 = vmatmul.mubr.f32.gmra.mxu0 %v5865
    %v5939 = vpop.f32.mrf.mxu0
    %v5940 = vadd.f32 0.0, %v5939
    %v5941 = vpop.f32.mrf.mxu0
    %v5942 = vadd.f32 0.0, %v5941
    %5943 = vdwg.mxu0
    %5944 = vmatprep.subr.mxu0 0.0
    %5945 = vmatpush1.msra.mxu0 0.0
    %5946 = vmatprep.subr.mxu0 0.0
    %5947 = vmatpush1.msra.mxu0 0.0
    %5948 = vmatprep.subr.mxu0 0.0
    %5949 = vmatpush1.msra.mxu0 0.0
    %5950 = vmatprep.subr.mxu0 0.0
    %5951 = vmatpush1.msra.mxu0 0.0
    %5952 = vmatprep.subr.mxu0 0.0
    %5953 = vmatpush1.msra.mxu0 0.0
    %5954 = vmatprep.subr.mxu0 0.0
    %5955 = vmatpush1.msra.mxu0 0.0
    %5956 = vmatprep.subr.mxu0 0.0
    %5957 = vmatpush1.msra.mxu0 0.0
    %5958 = vmatprep.subr.mxu0 0.0
    %5959 = vmatpush1.msra.mxu0 0.0
    %5960 = vmatprep.subr.mxu0 %v5857
    %5961 = vmatpush1.msra.mxu0 %v5856
    %5962 = vmatprep.subr.mxu0 %v5850
    %5963 = vmatpush1.msra.mxu0 %v5849
    %5964 = vmatprep.subr.mxu0 %v5843
    %5965 = vmatpush1.msra.mxu0 %v5842
    %5966 = vmatprep.subr.mxu0 %v5836
    %5967 = vmatpush1.msra.mxu0 %v5835
    %5968 = vmatprep.subr.mxu0 %v5829
    %5969 = vmatpush1.msra.mxu0 %v5828
    %5970 = vmatprep.subr.mxu0 %v5822
    %5971 = vmatpush1.msra.mxu0 %v5821
    %5972 = vmatprep.subr.mxu0 %v5815
    %5973 = vmatpush1.msra.mxu0 %v5814
    %5974 = vmatprep.subr.mxu0 %v5808
    %5975 = vmatpush1.msra.mxu0 %v5807
    %5976 = vmatprep.subr.mxu0 0.0
    %5977 = vmatpush2.msra.mxu0 0.0
    %5978 = vmatprep.subr.mxu0 0.0
    %5979 = vmatpush2.msra.mxu0 0.0
    %5980 = vmatprep.subr.mxu0 0.0
    %5981 = vmatpush2.msra.mxu0 0.0
    %5982 = vmatprep.subr.mxu0 0.0
    %5983 = vmatpush2.msra.mxu0 0.0
    %5984 = vmatprep.subr.mxu0 0.0
    %5985 = vmatpush2.msra.mxu0 0.0
    %5986 = vmatprep.subr.mxu0 0.0
    %5987 = vmatpush2.msra.mxu0 0.0
    %5988 = vmatprep.subr.mxu0 0.0
    %5989 = vmatpush2.msra.mxu0 0.0
    %5990 = vmatprep.subr.mxu0 0.0
    %5991 = vmatpush2.msra.mxu0 0.0
    %5992 = vmatprep.subr.mxu0 0.0
    %5993 = vmatpush2.msra.mxu0 0.0
    %5994 = vmatprep.subr.mxu0 0.0
    %5995 = vmatpush2.msra.mxu0 0.0
    %5996 = vmatprep.subr.mxu0 0.0
    %5997 = vmatpush2.msra.mxu0 0.0
    %5998 = vmatprep.subr.mxu0 0.0
    %5999 = vmatpush2.msra.mxu0 0.0
    %6000 = vmatprep.subr.mxu0 0.0
    %6001 = vmatpush2.msra.mxu0 0.0
    %6002 = vmatprep.subr.mxu0 0.0
    %6003 = vmatpush2.msra.mxu0 0.0
    %6004 = vmatprep.subr.mxu0 0.0
    %6005 = vmatpush2.msra.mxu0 0.0
    %6006 = vmatprep.subr.mxu0 0.0
    %6007 = vmatpush2.msra.mxu0 0.0
    %6008 = vmatprep.mubr.f32.mxu0 0.0
    %6009 = vmatmul.mubr.f32.gmra.mxu0 %v5862
    %v6010 = vpop.f32.mrf.mxu0
    %v6011 = vadd.f32 0.0, %v6010
    %v6012 = vpop.f32.mrf.mxu0
    %v6013 = vadd.f32 0.0, %v6012
    %6014 = vmatprep.mubr.f32.mxu0 0.0
    %6015 = vmatmul.mubr.f32.gmra.mxu0 %v5865
    %v6016 = vpop.f32.mrf.mxu0
    %v6017 = vadd.f32 0.0, %v6016
    %v6018 = vpop.f32.mrf.mxu0
    %v6019 = vadd.f32 0.0, %v6018
    %6020 = vdwg.mxu0
    %6021 = vmatprep.subr.mxu0 0.0
    %6022 = vmatpush1.msra.mxu0 0.0
    %6023 = vmatprep.subr.mxu0 0.0
    %6024 = vmatpush1.msra.mxu0 0.0
    %6025 = vmatprep.subr.mxu0 0.0
    %6026 = vmatpush1.msra.mxu0 0.0
    %6027 = vmatprep.subr.mxu0 0.0
    %6028 = vmatpush1.msra.mxu0 0.0
    %6029 = vmatprep.subr.mxu0 0.0
    %6030 = vmatpush1.msra.mxu0 0.0
    %6031 = vmatprep.subr.mxu0 0.0
    %6032 = vmatpush1.msra.mxu0 0.0
    %6033 = vmatprep.subr.mxu0 0.0
    %6034 = vmatpush1.msra.mxu0 0.0
    %6035 = vmatprep.subr.mxu0 0.0
    %6036 = vmatpush1.msra.mxu0 0.0
    %6037 = vmatprep.subr.mxu0 %v5859
    %6038 = vmatpush1.msra.mxu0 %v5858
    %6039 = vmatprep.subr.mxu0 %v5852
    %6040 = vmatpush1.msra.mxu0 %v5851
    %6041 = vmatprep.subr.mxu0 %v5845
    %6042 = vmatpush1.msra.mxu0 %v5844
    %6043 = vmatprep.subr.mxu0 %v5838
    %6044 = vmatpush1.msra.mxu0 %v5837
    %6045 = vmatprep.subr.mxu0 %v5831
    %6046 = vmatpush1.msra.mxu0 %v5830
    %6047 = vmatprep.subr.mxu0 %v5824
    %6048 = vmatpush1.msra.mxu0 %v5823
    %6049 = vmatprep.subr.mxu0 %v5817
    %6050 = vmatpush1.msra.mxu0 %v5816
    %6051 = vmatprep.subr.mxu0 %v5810
    %6052 = vmatpush1.msra.mxu0 %v5809
    %6053 = vmatprep.subr.mxu0 0.0
    %6054 = vmatpush2.msra.mxu0 0.0
    %6055 = vmatprep.subr.mxu0 0.0
    %6056 = vmatpush2.msra.mxu0 0.0
    %6057 = vmatprep.subr.mxu0 0.0
    %6058 = vmatpush2.msra.mxu0 0.0
    %6059 = vmatprep.subr.mxu0 0.0
    %6060 = vmatpush2.msra.mxu0 0.0
    %6061 = vmatprep.subr.mxu0 0.0
    %6062 = vmatpush2.msra.mxu0 0.0
    %6063 = vmatprep.subr.mxu0 0.0
    %6064 = vmatpush2.msra.mxu0 0.0
    %6065 = vmatprep.subr.mxu0 0.0
    %6066 = vmatpush2.msra.mxu0 0.0
    %6067 = vmatprep.subr.mxu0 0.0
    %6068 = vmatpush2.msra.mxu0 0.0
    %6069 = vmatprep.subr.mxu0 0.0
    %6070 = vmatpush2.msra.mxu0 0.0
    %6071 = vmatprep.subr.mxu0 0.0
    %6072 = vmatpush2.msra.mxu0 0.0
    %6073 = vmatprep.subr.mxu0 0.0
    %6074 = vmatpush2.msra.mxu0 0.0
    %6075 = vmatprep.subr.mxu0 0.0
    %6076 = vmatpush2.msra.mxu0 0.0
    %6077 = vmatprep.subr.mxu0 0.0
    %6078 = vmatpush2.msra.mxu0 0.0
    %6079 = vmatprep.subr.mxu0 0.0
    %6080 = vmatpush2.msra.mxu0 0.0
    %6081 = vmatprep.subr.mxu0 0.0
    %6082 = vmatpush2.msra.mxu0 0.0
    %6083 = vmatprep.subr.mxu0 0.0
    %6084 = vmatpush2.msra.mxu0 0.0
    %6085 = vmatprep.mubr.f32.mxu0 0.0
    %6086 = vmatmul.mubr.f32.gmra.mxu0 %v5862
    %v6087 = vpop.f32.mrf.mxu0
    %v6088 = vadd.f32 0.0, %v6087
    %v6089 = vpop.f32.mrf.mxu0
    %v6090 = vadd.f32 0.0, %v6089
    %6091 = vmatprep.mubr.f32.mxu0 0.0
    %6092 = vmatmul.mubr.f32.gmra.mxu0 %v5865
    %v6093 = vpop.f32.mrf.mxu0
    %v6094 = vadd.f32 0.0, %v6093
    %v6095 = vpop.f32.mrf.mxu0
    %v6096 = vadd.f32 0.0, %v6095
    %6097 = vdwg.mxu0
    %6098 = vmatprep.subr.mxu0 0.0
    %6099 = vmatpush1.msra.mxu0 0.0
    %6100 = vmatprep.subr.mxu0 0.0
    %6101 = vmatpush1.msra.mxu0 0.0
    %6102 = vmatprep.subr.mxu0 0.0
    %6103 = vmatpush1.msra.mxu0 0.0
    %6104 = vmatprep.subr.mxu0 0.0
    %6105 = vmatpush1.msra.mxu0 0.0
    %6106 = vmatprep.subr.mxu0 0.0
    %6107 = vmatpush1.msra.mxu0 0.0
    %6108 = vmatprep.subr.mxu0 0.0
    %6109 = vmatpush1.msra.mxu0 0.0
    %6110 = vmatprep.subr.mxu0 0.0
    %6111 = vmatpush1.msra.mxu0 0.0
    %6112 = vmatprep.subr.mxu0 0.0
    %6113 = vmatpush1.msra.mxu0 0.0
    %6114 = vmatprep.subr.mxu0 0.0
    %6115 = vmatpush1.msra.mxu0 %v5860
    %6116 = vmatprep.subr.mxu0 0.0
    %6117 = vmatpush1.msra.mxu0 %v5853
    %6118 = vmatprep.subr.mxu0 0.0
    %6119 = vmatpush1.msra.mxu0 %v5846
    %6120 = vmatprep.subr.mxu0 0.0
    %6121 = vmatpush1.msra.mxu0 %v5839
    %6122 = vmatprep.subr.mxu0 0.0
    %6123 = vmatpush1.msra.mxu0 %v5832
    %6124 = vmatprep.subr.mxu0 0.0
    %6125 = vmatpush1.msra.mxu0 %v5825
    %6126 = vmatprep.subr.mxu0 0.0
    %6127 = vmatpush1.msra.mxu0 %v5818
    %6128 = vmatprep.subr.mxu0 0.0
    %6129 = vmatpush1.msra.mxu0 %v5811
    %6130 = vmatprep.subr.mxu0 0.0
    %6131 = vmatpush2.msra.mxu0 0.0
    %6132 = vmatprep.subr.mxu0 0.0
    %6133 = vmatpush2.msra.mxu0 0.0
    %6134 = vmatprep.subr.mxu0 0.0
    %6135 = vmatpush2.msra.mxu0 0.0
    %6136 = vmatprep.subr.mxu0 0.0
    %6137 = vmatpush2.msra.mxu0 0.0
    %6138 = vmatprep.subr.mxu0 0.0
    %6139 = vmatpush2.msra.mxu0 0.0
    %6140 = vmatprep.subr.mxu0 0.0
    %6141 = vmatpush2.msra.mxu0 0.0
    %6142 = vmatprep.subr.mxu0 0.0
    %6143 = vmatpush2.msra.mxu0 0.0
    %6144 = vmatprep.subr.mxu0 0.0
    %6145 = vmatpush2.msra.mxu0 0.0
    %6146 = vmatprep.subr.mxu0 0.0
    %6147 = vmatpush2.msra.mxu0 0.0
    %6148 = vmatprep.subr.mxu0 0.0
    %6149 = vmatpush2.msra.mxu0 0.0
    %6150 = vmatprep.subr.mxu0 0.0
    %6151 = vmatpush2.msra.mxu0 0.0
    %6152 = vmatprep.subr.mxu0 0.0
    %6153 = vmatpush2.msra.mxu0 0.0
    %6154 = vmatprep.subr.mxu0 0.0
    %6155 = vmatpush2.msra.mxu0 0.0
    %6156 = vmatprep.subr.mxu0 0.0
    %6157 = vmatpush2.msra.mxu0 0.0
    %6158 = vmatprep.subr.mxu0 0.0
    %6159 = vmatpush2.msra.mxu0 0.0
    %6160 = vmatprep.subr.mxu0 0.0
    %6161 = vmatpush2.msra.mxu0 0.0
    %6162 = vmatprep.mubr.f32.mxu0 0.0
    %6163 = vmatmul.mubr.f32.gmra.mxu0 %v5862
    %v6164 = vpop.f32.mrf.mxu0
    %v6165 = vadd.f32 0.0, %v6164
    %v6166 = vpop.f32.mrf.mxu0
    %6167 = vmatprep.mubr.f32.mxu0 0.0
    %6168 = vmatmul.mubr.f32.gmra.mxu0 %v5865
    %v6169 = vpop.f32.mrf.mxu0
    %v6170 = vadd.f32 0.0, %v6169
    %v6171 = vpop.f32.mrf.mxu0
    %6172 = vdwg.mxu0
    %v6173 = vadd.f32 %v5791, %v5934
    %v6174 = vadd.f32 %v5792, %v5936
    %v6175 = vadd.f32 %v5793, %v6011
    %v6176 = vadd.f32 %v5794, %v6013
    %v6177 = vadd.f32 %v5795, %v6088
    %v6178 = vadd.f32 %v5796, %v6090
    %v6179 = vadd.f32 %v5797, %v6165
    %v6180 = vadd.f32 %v5798, %v5940
    %v6181 = vadd.f32 %v5799, %v5942
    %v6182 = vadd.f32 %v5800, %v6017
    %v6183 = vadd.f32 %v5801, %v6019
    %v6184 = vadd.f32 %v5802, %v6094
    %v6185 = vadd.f32 %v5803, %v6096
    %v6186 = vadd.f32 %v5804, %v6170
    %v6187 = vmul.f32 %v6173, %v1346
    %v6188 = vmul.f32 %v6180, %v1346
    %v6189 = vadd.f32 %v6187, 0.5
    %v6190 = vadd.f32 %v6188, 0.5
    %v6191 = vmax.f32 %v6189, 0.0
    %v6192 = vmax.f32 %v6190, 0.0
    %v6193 = vmin.f32 %v6191, 1.0
    %v6194 = vmin.f32 %v6192, 1.0
    %v6195 = vtanh.pop %v6174
    %v6196 = vtanh.pop %v6181
    %v6197 = vmul.f32 %v6174, %v1346
    %v6198 = vmul.f32 %v6181, %v1346
    %v6199 = vadd.f32 %v6197, 0.5
    %v6200 = vadd.f32 %v6198, 0.5
    %v6201 = vmax.f32 %v6199, 0.0
    %v6202 = vmax.f32 %v6200, 0.0
    %v6203 = vmin.f32 %v6201, 1.0
    %v6204 = vmin.f32 %v6202, 1.0
    %v6205 = vmul.f32 %v6175, %v1346
    %v6206 = vmul.f32 %v6176, %v1346
    %v6207 = vmul.f32 %v6177, %v1346
    %v6208 = vmul.f32 %v6178, %v1346
    %v6209 = vmul.f32 %v6179, %v1346
    %v6210 = vmul.f32 %v6182, %v1346
    %v6211 = vmul.f32 %v6183, %v1346
    %v6212 = vmul.f32 %v6184, %v1346
    %v6213 = vmul.f32 %v6185, %v1346
    %v6214 = vmul.f32 %v6186, %v1346
    %v6215 = vadd.f32 %v6205, 0.5
    %v6216 = vadd.f32 %v6206, 0.5
    %v6217 = vadd.f32 %v6207, 0.5
    %v6218 = vadd.f32 %v6208, 0.5
    %v6219 = vadd.f32 %v6209, 0.5
    %v6220 = vadd.f32 %v6210, 0.5
    %v6221 = vadd.f32 %v6211, 0.5
    %v6222 = vadd.f32 %v6212, 0.5
    %v6223 = vadd.f32 %v6213, 0.5
    %v6224 = vadd.f32 %v6214, 0.5
    %v6225 = vmax.f32 %v6215, 0.0
    %v6226 = vmax.f32 %v6216, 0.0
    %v6227 = vmax.f32 %v6217, 0.0
    %v6228 = vmax.f32 %v6218, 0.0
    %v6229 = vmax.f32 %v6219, 0.0
    %v6230 = vmax.f32 %v6220, 0.0
    %v6231 = vmax.f32 %v6221, 0.0
    %v6232 = vmax.f32 %v6222, 0.0
    %v6233 = vmax.f32 %v6223, 0.0
    %v6234 = vmax.f32 %v6224, 0.0
    %v6235 = vmin.f32 %v6225, 1.0
    %v6236 = vmin.f32 %v6226, 1.0
    %v6237 = vmin.f32 %v6227, 1.0
    %v6238 = vmin.f32 %v6228, 1.0
    %v6239 = vmin.f32 %v6229, 1.0
    %v6240 = vmin.f32 %v6230, 1.0
    %v6241 = vmin.f32 %v6231, 1.0
    %v6242 = vmin.f32 %v6232, 1.0
    %v6243 = vmin.f32 %v6233, 1.0
    %v6244 = vmin.f32 %v6234, 1.0
    %v6245 = vmul.f32 %v6193, %v6195
    %v6246 = vmul.f32 %v6194, %v6196
    %6249 = vrot.lane.b32.xlu0 %v6193, 64
    %v6250 = vpop.permute.xlu0 %6249
    %6251 = vrot.lane.b32.xlu0 %v6194, 64
    %v6252 = vpop.permute.xlu0 %6251
    %v6255 = vsel %vm922, %v6250, %v6193
    %v6256 = vsel %vm922, %v6252, %v6194
    %6259 = vrot.lane.b32.xlu0 %v6245, 64
    %v6260 = vpop.permute.xlu0 %6259
    %6261 = vrot.lane.b32.xlu0 %v6246, 64
    %v6262 = vpop.permute.xlu0 %6261
    %v6265 = vsel %vm922, %v6245, %v6260
    %v6266 = vsel %vm922, %v6246, %v6262
    %v6267 = vmul.f32 %v6255, %v6235
    %v6268 = vmul.f32 %v6255, %v6236
    %v6269 = vmul.f32 %v6255, %v6237
    %v6270 = vmul.f32 %v6255, %v6238
    %v6271 = vmul.f32 %v6255, %v6239
    %v6272 = vmul.f32 %v6256, %v6240
    %v6273 = vmul.f32 %v6256, %v6241
    %v6274 = vmul.f32 %v6256, %v6242
    %v6275 = vmul.f32 %v6256, %v6243
    %v6276 = vmul.f32 %v6256, %v6244
    %s6277 = scalar_lea.vmem %s6, 6
    %v6278 = vld [vmem:[%s6277] ss:$8 sm:$0xf]
    %v6279 = vld [vmem:[%s6277] ss:$8 sm:$0x10]
    %v6280 = vor.u32 %v6278, %v6279
    %s6281 = scalar_lea.vmem %s7, 6
    %v6282 = vld [vmem:[%s6281] ss:$8 sm:$0xf]
    %v6283 = vld [vmem:[%s6281] ss:$8 sm:$0x10]
    %v6284 = vor.u32 %v6282, %v6283
    %v6285 = vld [vmem:[#allocation4] sm:$0xff]
    %v6286 = vld [vmem:[#allocation4 + $0x8] sm:$0xff]
    %v6287 = vld [vmem:[#allocation4 + $0x10] sm:$0xff]
    %v6288 = vld [vmem:[#allocation4 + $0x18] sm:$0xff]
    %v6289 = vld [vmem:[#allocation4 + $0x20] sm:$0xff]
    %v6290 = vld [vmem:[#allocation4 + $0x28] sm:$0xff]
    %v6291 = vld [vmem:[#allocation4 + $0x30] sm:$0xff]
    %v6292 = vld [vmem:[#allocation4 + $0x38] sm:$0xff]
    %v6293 = vld [vmem:[#allocation4 + $0x40] sm:$0xff]
    %v6294 = vld [vmem:[#allocation4 + $0x48] sm:$0xff]
    %v6295 = vmul.f32 %v6267, %v6285
    %v6296 = vmul.f32 %v6268, %v6286
    %v6297 = vmul.f32 %v6269, %v6287
    %v6298 = vmul.f32 %v6270, %v6288
    %v6299 = vmul.f32 %v6271, %v6289
    %v6300 = vmul.f32 %v6272, %v6290
    %v6301 = vmul.f32 %v6273, %v6291
    %v6302 = vmul.f32 %v6274, %v6292
    %v6303 = vmul.f32 %v6275, %v6293
    %v6304 = vmul.f32 %v6276, %v6294
    %v6306 = vlaneseq
    %v6307 = vshrl.u32 %v6306, 7
    %v6308 = vsub.s32 0, %v6307
    %v6309 = vrot.slane %v6280, %v6308
    %v6310 = vlaneseq
    %v6311 = vshrl.u32 %v6310, 7
    %v6312 = vsub.s32 1, %v6311
    %v6313 = vrot.slane %v6280, %v6312
    %v6314 = vlaneseq
    %v6315 = vshrl.u32 %v6314, 7
    %v6316 = vsub.s32 2, %v6315
    %v6317 = vrot.slane %v6280, %v6316
    %v6318 = vlaneseq
    %v6319 = vshrl.u32 %v6318, 7
    %v6320 = vsub.s32 3, %v6319
    %v6321 = vrot.slane %v6280, %v6320
    %v6322 = vlaneseq
    %v6323 = vshrl.u32 %v6322, 7
    %v6324 = vsub.s32 4, %v6323
    %v6325 = vrot.slane %v6280, %v6324
    %v6331 = vmul.f32 %v6265, %v6309
    %v6332 = vmul.f32 %v6265, %v6313
    %v6333 = vmul.f32 %v6265, %v6317
    %v6334 = vmul.f32 %v6265, %v6321
    %v6335 = vmul.f32 %v6265, %v6325
    %v6336 = vmul.f32 %v6266, %v6309
    %v6337 = vmul.f32 %v6266, %v6313
    %v6338 = vmul.f32 %v6266, %v6317
    %v6339 = vmul.f32 %v6266, %v6321
    %v6340 = vmul.f32 %v6266, %v6325
    %v6341 = vadd.f32 %v6295, %v6331
    %v6342 = vadd.f32 %v6296, %v6332
    %v6343 = vadd.f32 %v6297, %v6333
    %v6344 = vadd.f32 %v6298, %v6334
    %v6345 = vadd.f32 %v6299, %v6335
    %v6346 = vadd.f32 %v6300, %v6336
    %v6347 = vadd.f32 %v6301, %v6337
    %v6348 = vadd.f32 %v6302, %v6338
    %v6349 = vadd.f32 %v6303, %v6339
    %v6350 = vadd.f32 %v6304, %v6340
    %v6351 = vld [vmem:[#allocation5] sm:$0xff]
    %v6352 = vld [vmem:[#allocation5 + $0x8] sm:$0xff]
    %v6353 = vld [vmem:[#allocation5 + $0x10] sm:$0xff]
    %v6354 = vld [vmem:[#allocation5 + $0x18] sm:$0xff]
    %v6355 = vld [vmem:[#allocation5 + $0x20] sm:$0xff]
    %v6356 = vld [vmem:[#allocation5 + $0x28] sm:$0xff]
    %v6357 = vld [vmem:[#allocation5 + $0x30] sm:$0xff]
    %v6358 = vld [vmem:[#allocation5 + $0x38] sm:$0xff]
    %v6359 = vld [vmem:[#allocation5 + $0x40] sm:$0xff]
    %v6360 = vld [vmem:[#allocation5 + $0x48] sm:$0xff]
    %v6361 = vmul.f32 %v6267, %v6351
    %v6362 = vmul.f32 %v6268, %v6352
    %v6363 = vmul.f32 %v6269, %v6353
    %v6364 = vmul.f32 %v6270, %v6354
    %v6365 = vmul.f32 %v6271, %v6355
    %v6366 = vmul.f32 %v6272, %v6356
    %v6367 = vmul.f32 %v6273, %v6357
    %v6368 = vmul.f32 %v6274, %v6358
    %v6369 = vmul.f32 %v6275, %v6359
    %v6370 = vmul.f32 %v6276, %v6360
    %v6372 = vlaneseq
    %v6373 = vshrl.u32 %v6372, 7
    %v6374 = vsub.s32 0, %v6373
    %v6375 = vrot.slane %v6284, %v6374
    %v6376 = vlaneseq
    %v6377 = vshrl.u32 %v6376, 7
    %v6378 = vsub.s32 1, %v6377
    %v6379 = vrot.slane %v6284, %v6378
    %v6380 = vlaneseq
    %v6381 = vshrl.u32 %v6380, 7
    %v6382 = vsub.s32 2, %v6381
    %v6383 = vrot.slane %v6284, %v6382
    %v6384 = vlaneseq
    %v6385 = vshrl.u32 %v6384, 7
    %v6386 = vsub.s32 3, %v6385
    %v6387 = vrot.slane %v6284, %v6386
    %v6388 = vlaneseq
    %v6389 = vshrl.u32 %v6388, 7
    %v6390 = vsub.s32 4, %v6389
    %v6391 = vrot.slane %v6284, %v6390
    %v6397 = vmul.f32 %v6265, %v6375
    %v6398 = vmul.f32 %v6265, %v6379
    %v6399 = vmul.f32 %v6265, %v6383
    %v6400 = vmul.f32 %v6265, %v6387
    %v6401 = vmul.f32 %v6265, %v6391
    %v6402 = vmul.f32 %v6266, %v6375
    %v6403 = vmul.f32 %v6266, %v6379
    %v6404 = vmul.f32 %v6266, %v6383
    %v6405 = vmul.f32 %v6266, %v6387
    %v6406 = vmul.f32 %v6266, %v6391
    %v6407 = vadd.f32 %v6361, %v6397
    %v6408 = vadd.f32 %v6362, %v6398
    %v6409 = vadd.f32 %v6363, %v6399
    %v6410 = vadd.f32 %v6364, %v6400
    %v6411 = vadd.f32 %v6365, %v6401
    %v6412 = vadd.f32 %v6366, %v6402
    %v6413 = vadd.f32 %v6367, %v6403
    %v6414 = vadd.f32 %v6368, %v6404
    %v6415 = vadd.f32 %v6369, %v6405
    %v6416 = vadd.f32 %v6370, %v6406
    %6417 = vst [vmem:[#allocation4] sm:$0xff] %v6341
    %6418 = vst [vmem:[#allocation4 + $0x8] sm:$0xff] %v6342
    %6419 = vst [vmem:[#allocation4 + $0x10] sm:$0xff] %v6343
    %6420 = vst [vmem:[#allocation4 + $0x18] sm:$0xff] %v6344
    %6421 = vst [vmem:[#allocation4 + $0x20] sm:$0xff] %v6345
    %6422 = vst [vmem:[#allocation4 + $0x28] sm:$0xff] %v6346
    %6423 = vst [vmem:[#allocation4 + $0x30] sm:$0xff] %v6347
    %6424 = vst [vmem:[#allocation4 + $0x38] sm:$0xff] %v6348
    %6425 = vst [vmem:[#allocation4 + $0x40] sm:$0xff] %v6349
    %6426 = vst [vmem:[#allocation4 + $0x48] sm:$0xff] %v6350
    %6427 = vst [vmem:[#allocation5] sm:$0xff] %v6407
    %6428 = vst [vmem:[#allocation5 + $0x8] sm:$0xff] %v6408
    %6429 = vst [vmem:[#allocation5 + $0x10] sm:$0xff] %v6409
    %6430 = vst [vmem:[#allocation5 + $0x18] sm:$0xff] %v6410
    %6431 = vst [vmem:[#allocation5 + $0x20] sm:$0xff] %v6411
    %6432 = vst [vmem:[#allocation5 + $0x28] sm:$0xff] %v6412
    %6433 = vst [vmem:[#allocation5 + $0x30] sm:$0xff] %v6413
    %6434 = vst [vmem:[#allocation5 + $0x38] sm:$0xff] %v6414
    %6435 = vst [vmem:[#allocation5 + $0x40] sm:$0xff] %v6415
    %6436 = vst [vmem:[#allocation5 + $0x48] sm:$0xff] %v6416
    %v6437 = vmul.f32 %v6341, %v6341
    %v6438 = vmul.f32 %v6342, %v6342
    %v6439 = vmul.f32 %v6343, %v6343
    %v6440 = vmul.f32 %v6344, %v6344
    %v6441 = vmul.f32 %v6345, %v6345
    %v6442 = vmul.f32 %v6346, %v6346
    %v6443 = vmul.f32 %v6347, %v6347
    %v6444 = vmul.f32 %v6348, %v6348
    %v6445 = vmul.f32 %v6349, %v6349
    %v6446 = vmul.f32 %v6350, %v6350
    %v6447 = vmul.f32 %v6407, %v6407
    %v6448 = vmul.f32 %v6408, %v6408
    %v6449 = vmul.f32 %v6409, %v6409
    %v6450 = vmul.f32 %v6410, %v6410
    %v6451 = vmul.f32 %v6411, %v6411
    %v6452 = vmul.f32 %v6412, %v6412
    %v6453 = vmul.f32 %v6413, %v6413
    %v6454 = vmul.f32 %v6414, %v6414
    %v6455 = vmul.f32 %v6415, %v6415
    %v6456 = vmul.f32 %v6416, %v6416
    %v6457 = vadd.f32 %v6437, %v6447
    %v6458 = vadd.f32 %v6438, %v6448
    %v6459 = vadd.f32 %v6439, %v6449
    %v6460 = vadd.f32 %v6440, %v6450
    %v6461 = vadd.f32 %v6441, %v6451
    %v6462 = vadd.f32 %v6442, %v6452
    %v6463 = vadd.f32 %v6443, %v6453
    %v6464 = vadd.f32 %v6444, %v6454
    %v6465 = vadd.f32 %v6445, %v6455
    %v6466 = vadd.f32 %v6446, %v6456
    %v6467 = vld [vmem:[%s5] sm:$0x1f]
    %v6469 = vlaneseq
    %v6470 = vshrl.u32 %v6469, 7
    %v6471 = vsub.s32 0, %v6470
    %v6472 = vrot.slane %v6467, %v6471
    %v6473 = vlaneseq
    %v6474 = vshrl.u32 %v6473, 7
    %v6475 = vsub.s32 1, %v6474
    %v6476 = vrot.slane %v6467, %v6475
    %v6477 = vlaneseq
    %v6478 = vshrl.u32 %v6477, 7
    %v6479 = vsub.s32 2, %v6478
    %v6480 = vrot.slane %v6467, %v6479
    %v6481 = vlaneseq
    %v6482 = vshrl.u32 %v6481, 7
    %v6483 = vsub.s32 3, %v6482
    %v6484 = vrot.slane %v6467, %v6483
    %v6485 = vlaneseq
    %v6486 = vshrl.u32 %v6485, 7
    %v6487 = vsub.s32 4, %v6486
    %v6488 = vrot.slane %v6467, %v6487
    %v6494 = vmul.f32 %v6457, %v6472
    %v6495 = vmul.f32 %v6458, %v6476
    %v6496 = vmul.f32 %v6459, %v6480
    %v6497 = vmul.f32 %v6460, %v6484
    %v6498 = vmul.f32 %v6461, %v6488
    %v6499 = vmul.f32 %v6462, %v6472
    %v6500 = vmul.f32 %v6463, %v6476
    %v6501 = vmul.f32 %v6464, %v6480
    %v6502 = vmul.f32 %v6465, %v6484
    %v6503 = vmul.f32 %v6466, %v6488
    %6506 = vrot.lane.b32.xlu0 %v6494, 64
    %v6507 = vpop.permute.xlu0 %6506
    %6508 = vrot.lane.b32.xlu0 %v6499, 64
    %v6509 = vpop.permute.xlu0 %6508
    %v6512 = vadd.f32 %v6494, %v6507
    %v6513 = vadd.f32 %v6499, %v6509
    %6516 = vrot.lane.b32.xlu0 %v6495, 64
    %v6517 = vpop.permute.xlu0 %6516
    %6518 = vrot.lane.b32.xlu0 %v6500, 64
    %v6519 = vpop.permute.xlu0 %6518
    %v6522 = vadd.f32 %v6495, %v6517
    %v6523 = vadd.f32 %v6500, %v6519
    %6526 = vrot.lane.b32.xlu0 %v6496, 64
    %v6527 = vpop.permute.xlu0 %6526
    %6528 = vrot.lane.b32.xlu0 %v6501, 64
    %v6529 = vpop.permute.xlu0 %6528
    %v6532 = vadd.f32 %v6496, %v6527
    %v6533 = vadd.f32 %v6501, %v6529
    %6536 = vrot.lane.b32.xlu0 %v6497, 64
    %v6537 = vpop.permute.xlu0 %6536
    %6538 = vrot.lane.b32.xlu0 %v6502, 64
    %v6539 = vpop.permute.xlu0 %6538
    %v6542 = vadd.f32 %v6497, %v6537
    %v6543 = vadd.f32 %v6502, %v6539
    %6546 = vrot.lane.b32.xlu0 %v6498, 64
    %v6547 = vpop.permute.xlu0 %6546
    %6548 = vrot.lane.b32.xlu0 %v6503, 64
    %v6549 = vpop.permute.xlu0 %6548
    %v6552 = vadd.f32 %v6498, %v6547
    %v6553 = vadd.f32 %v6503, %v6549
    %v6554 = vadd.f32 %v6512, %v6522
    %v6555 = vadd.f32 %v6513, %v6523
    %v6556 = vadd.f32 %v6532, %v6542
    %v6557 = vadd.f32 %v6533, %v6543
    %v6558 = vadd.f32 %v6554, %v6556
    %v6559 = vadd.f32 %v6555, %v6557
    %v6560 = vadd.f32 %v6558, %v6552
    %v6561 = vadd.f32 %v6559, %v6553
    %v6562 = vld [vmem:[%s4] sm:$0x1]
    %v6564 = vlaneseq
    %v6565 = vshrl.u32 %v6564, 7
    %v6566 = vsub.s32 0, %v6565
    %v6567 = vrot.slane %v6562, %v6566
    %v6569 = vadd.f32 %v6560, %v6567
    %v6570 = vadd.f32 %v6561, %v6567
    %v6571 = vtanh.pop %v6569
    %v6572 = vtanh.pop %v6570
    %6575 = vrot.lane.b32.xlu0 %v6571, 64
    %v6576 = vpop.permute.xlu0 %6575
    %6577 = vrot.lane.b32.xlu0 %v6572, 64
    %v6578 = vpop.permute.xlu0 %6577
    %v6581 = vmul.f32 %v6203, %v6576
    %v6582 = vmul.f32 %v6204, %v6578
    %6585 = vrot.lane.b32.xlu0 %v6581, 64
    %v6586 = vpop.permute.xlu0 %6585
    %6587 = vrot.lane.b32.xlu0 %v6582, 64
    %v6588 = vpop.permute.xlu0 %6587
    %6591 = vst.msk [vmem:[#allocation3] sm:$0xff] %vm922, %v6586
    %6592 = vst.msk [vmem:[#allocation3 + $0x8] sm:$0xff] %vm922, %v6588
    %v6593 = vld [vmem:[#allocation3] sm:$0xff]
    %v6594 = vld [vmem:[#allocation3 + $0x8] sm:$0xff]
    %s6595 = smul.u32 14, 7
    %s6596 = smul.addr %s6595, 8
    %s6597 = scalar_lea.vmem [#allocation2], %s6596
    %v6598 = vld [vmem:[%s6597] sm:$0xff]
    %v6599 = vld [vmem:[%s6597 + $0x8] sm:$0xff]
    %v6600 = vld [vmem:[%s6597 + $0x10] sm:$0xff]
    %v6601 = vld [vmem:[%s6597 + $0x18] sm:$0xff]
    %v6602 = vld [vmem:[%s6597 + $0x20] sm:$0xff]
    %v6603 = vld [vmem:[%s6597 + $0x28] sm:$0xff]
    %v6604 = vld [vmem:[%s6597 + $0x30] sm:$0xff]
    %v6605 = vld [vmem:[%s6597 + $0x38] sm:$0xff]
    %v6606 = vld [vmem:[%s6597 + $0x40] sm:$0xff]
    %v6607 = vld [vmem:[%s6597 + $0x48] sm:$0xff]
    %v6608 = vld [vmem:[%s6597 + $0x50] sm:$0xff]
    %v6609 = vld [vmem:[%s6597 + $0x58] sm:$0xff]
    %v6610 = vld [vmem:[%s6597 + $0x60] sm:$0xff]
    %v6611 = vld [vmem:[%s6597 + $0x68] sm:$0xff]
    %v6612 = vld [vmem:[#allocation7] sm:$0xff]
    %v6613 = vld [vmem:[#allocation7 + $0x8] sm:$0xff]
    %v6614 = vld [vmem:[#allocation7 + $0x10] sm:$0xff]
    %v6615 = vld [vmem:[#allocation7 + $0x18] sm:$0xff]
    %v6616 = vld [vmem:[#allocation7 + $0x20] sm:$0xff]
    %v6617 = vld [vmem:[#allocation7 + $0x28] sm:$0xff]
    %v6618 = vld [vmem:[#allocation7 + $0x30] sm:$0xff]
    %v6619 = vld [vmem:[#allocation7 + $0x38] sm:$0xff]
    %v6620 = vld [vmem:[#allocation7 + $0x40] sm:$0xff]
    %v6621 = vld [vmem:[#allocation7 + $0x48] sm:$0xff]
    %v6622 = vld [vmem:[#allocation7 + $0x50] sm:$0xff]
    %v6623 = vld [vmem:[#allocation7 + $0x58] sm:$0xff]
    %v6624 = vld [vmem:[#allocation7 + $0x60] sm:$0xff]
    %v6625 = vld [vmem:[#allocation7 + $0x68] sm:$0xff]
    %v6626 = vld [vmem:[#allocation7 + $0x70] sm:$0xff]
    %v6627 = vld [vmem:[#allocation7 + $0x78] sm:$0xff]
    %v6628 = vld [vmem:[#allocation7 + $0x80] sm:$0xff]
    %v6629 = vld [vmem:[#allocation7 + $0x88] sm:$0xff]
    %v6630 = vld [vmem:[#allocation7 + $0x90] sm:$0xff]
    %v6631 = vld [vmem:[#allocation7 + $0x98] sm:$0xff]
    %v6632 = vld [vmem:[#allocation7 + $0xa0] sm:$0xff]
    %v6633 = vld [vmem:[#allocation7 + $0xa8] sm:$0xff]
    %v6634 = vld [vmem:[#allocation7 + $0xb0] sm:$0xff]
    %v6635 = vld [vmem:[#allocation7 + $0xb8] sm:$0xff]
    %v6636 = vld [vmem:[#allocation7 + $0xc0] sm:$0xff]
    %v6637 = vld [vmem:[#allocation7 + $0xc8] sm:$0xff]
    %v6638 = vld [vmem:[#allocation7 + $0xd0] sm:$0xff]
    %v6639 = vld [vmem:[#allocation7 + $0xd8] sm:$0xff]
    %v6640 = vld [vmem:[#allocation7 + $0xe0] sm:$0xff]
    %v6641 = vld [vmem:[#allocation7 + $0xe8] sm:$0xff]
    %v6642 = vld [vmem:[#allocation7 + $0xf0] sm:$0xff]
    %v6643 = vld [vmem:[#allocation7 + $0xf8] sm:$0xff]
    %v6644 = vld [vmem:[#allocation7 + $0x100] sm:$0xff]
    %v6645 = vld [vmem:[#allocation7 + $0x108] sm:$0xff]
    %v6646 = vld [vmem:[#allocation7 + $0x110] sm:$0xff]
    %v6647 = vld [vmem:[#allocation7 + $0x118] sm:$0xff]
    %v6648 = vld [vmem:[#allocation7 + $0x120] sm:$0xff]
    %v6649 = vld [vmem:[#allocation7 + $0x128] sm:$0xff]
    %v6650 = vld [vmem:[#allocation7 + $0x130] sm:$0xff]
    %v6651 = vld [vmem:[#allocation7 + $0x138] sm:$0xff]
    %v6652 = vld [vmem:[#allocation7 + $0x140] sm:$0xff]
    %v6653 = vld [vmem:[#allocation7 + $0x148] sm:$0xff]
    %v6654 = vld [vmem:[#allocation7 + $0x150] sm:$0xff]
    %v6655 = vld [vmem:[#allocation7 + $0x158] sm:$0xff]
    %v6656 = vld [vmem:[#allocation7 + $0x160] sm:$0xff]
    %v6657 = vld [vmem:[#allocation7 + $0x168] sm:$0xff]
    %v6658 = vld [vmem:[#allocation7 + $0x170] sm:$0xff]
    %v6659 = vld [vmem:[#allocation7 + $0x178] sm:$0xff]
    %v6660 = vld [vmem:[#allocation7 + $0x180] sm:$0xff]
    %v6661 = vld [vmem:[#allocation7 + $0x188] sm:$0xff]
    %v6662 = vld [vmem:[#allocation7 + $0x190] sm:$0xff]
    %v6663 = vld [vmem:[#allocation7 + $0x198] sm:$0xff]
    %v6664 = vld [vmem:[#allocation7 + $0x1a0] sm:$0xff]
    %v6665 = vld [vmem:[#allocation7 + $0x1a8] sm:$0xff]
    %v6666 = vld [vmem:[#allocation7 + $0x1b0] sm:$0xff]
    %v6667 = vld [vmem:[#allocation7 + $0x1b8] sm:$0xff]
    %v6669 = vsel %vm922, %v6593, 0
    %v6672 = vsel %vm922, %v6594, 0
    %6674 = vmatprep.subr.mxu0 0.0
    %6675 = vmatpush1.msra.mxu0 0.0
    %6676 = vmatprep.subr.mxu0 0.0
    %6677 = vmatpush1.msra.mxu0 0.0
    %6678 = vmatprep.subr.mxu0 0.0
    %6679 = vmatpush1.msra.mxu0 0.0
    %6680 = vmatprep.subr.mxu0 0.0
    %6681 = vmatpush1.msra.mxu0 0.0
    %6682 = vmatprep.subr.mxu0 0.0
    %6683 = vmatpush1.msra.mxu0 0.0
    %6684 = vmatprep.subr.mxu0 0.0
    %6685 = vmatpush1.msra.mxu0 0.0
    %6686 = vmatprep.subr.mxu0 0.0
    %6687 = vmatpush1.msra.mxu0 0.0
    %6688 = vmatprep.subr.mxu0 0.0
    %6689 = vmatpush1.msra.mxu0 0.0
    %6690 = vmatprep.subr.mxu0 %v6662
    %6691 = vmatpush1.msra.mxu0 %v6661
    %6692 = vmatprep.subr.mxu0 %v6655
    %6693 = vmatpush1.msra.mxu0 %v6654
    %6694 = vmatprep.subr.mxu0 %v6648
    %6695 = vmatpush1.msra.mxu0 %v6647
    %6696 = vmatprep.subr.mxu0 %v6641
    %6697 = vmatpush1.msra.mxu0 %v6640
    %6698 = vmatprep.subr.mxu0 %v6634
    %6699 = vmatpush1.msra.mxu0 %v6633
    %6700 = vmatprep.subr.mxu0 %v6627
    %6701 = vmatpush1.msra.mxu0 %v6626
    %6702 = vmatprep.subr.mxu0 %v6620
    %6703 = vmatpush1.msra.mxu0 %v6619
    %6704 = vmatprep.subr.mxu0 %v6613
    %6705 = vmatpush1.msra.mxu0 %v6612
    %6706 = vmatprep.subr.mxu0 0.0
    %6707 = vmatpush2.msra.mxu0 0.0
    %6708 = vmatprep.subr.mxu0 0.0
    %6709 = vmatpush2.msra.mxu0 0.0
    %6710 = vmatprep.subr.mxu0 0.0
    %6711 = vmatpush2.msra.mxu0 0.0
    %6712 = vmatprep.subr.mxu0 0.0
    %6713 = vmatpush2.msra.mxu0 0.0
    %6714 = vmatprep.subr.mxu0 0.0
    %6715 = vmatpush2.msra.mxu0 0.0
    %6716 = vmatprep.subr.mxu0 0.0
    %6717 = vmatpush2.msra.mxu0 0.0
    %6718 = vmatprep.subr.mxu0 0.0
    %6719 = vmatpush2.msra.mxu0 0.0
    %6720 = vmatprep.subr.mxu0 0.0
    %6721 = vmatpush2.msra.mxu0 0.0
    %6722 = vmatprep.subr.mxu0 0.0
    %6723 = vmatpush2.msra.mxu0 0.0
    %6724 = vmatprep.subr.mxu0 0.0
    %6725 = vmatpush2.msra.mxu0 0.0
    %6726 = vmatprep.subr.mxu0 0.0
    %6727 = vmatpush2.msra.mxu0 0.0
    %6728 = vmatprep.subr.mxu0 0.0
    %6729 = vmatpush2.msra.mxu0 0.0
    %6730 = vmatprep.subr.mxu0 0.0
    %6731 = vmatpush2.msra.mxu0 0.0
    %6732 = vmatprep.subr.mxu0 0.0
    %6733 = vmatpush2.msra.mxu0 0.0
    %6734 = vmatprep.subr.mxu0 0.0
    %6735 = vmatpush2.msra.mxu0 0.0
    %6736 = vmatprep.subr.mxu0 0.0
    %6737 = vmatpush2.msra.mxu0 0.0
    %6738 = vmatprep.mubr.f32.mxu0 0.0
    %6739 = vmatmul.mubr.f32.gmra.mxu0 %v6669
    %v6740 = vpop.f32.mrf.mxu0
    %v6741 = vadd.f32 0.0, %v6740
    %v6742 = vpop.f32.mrf.mxu0
    %v6743 = vadd.f32 0.0, %v6742
    %6744 = vmatprep.mubr.f32.mxu0 0.0
    %6745 = vmatmul.mubr.f32.gmra.mxu0 %v6672
    %v6746 = vpop.f32.mrf.mxu0
    %v6747 = vadd.f32 0.0, %v6746
    %v6748 = vpop.f32.mrf.mxu0
    %v6749 = vadd.f32 0.0, %v6748
    %6750 = vdwg.mxu0
    %6751 = vmatprep.subr.mxu0 0.0
    %6752 = vmatpush1.msra.mxu0 0.0
    %6753 = vmatprep.subr.mxu0 0.0
    %6754 = vmatpush1.msra.mxu0 0.0
    %6755 = vmatprep.subr.mxu0 0.0
    %6756 = vmatpush1.msra.mxu0 0.0
    %6757 = vmatprep.subr.mxu0 0.0
    %6758 = vmatpush1.msra.mxu0 0.0
    %6759 = vmatprep.subr.mxu0 0.0
    %6760 = vmatpush1.msra.mxu0 0.0
    %6761 = vmatprep.subr.mxu0 0.0
    %6762 = vmatpush1.msra.mxu0 0.0
    %6763 = vmatprep.subr.mxu0 0.0
    %6764 = vmatpush1.msra.mxu0 0.0
    %6765 = vmatprep.subr.mxu0 0.0
    %6766 = vmatpush1.msra.mxu0 0.0
    %6767 = vmatprep.subr.mxu0 %v6664
    %6768 = vmatpush1.msra.mxu0 %v6663
    %6769 = vmatprep.subr.mxu0 %v6657
    %6770 = vmatpush1.msra.mxu0 %v6656
    %6771 = vmatprep.subr.mxu0 %v6650
    %6772 = vmatpush1.msra.mxu0 %v6649
    %6773 = vmatprep.subr.mxu0 %v6643
    %6774 = vmatpush1.msra.mxu0 %v6642
    %6775 = vmatprep.subr.mxu0 %v6636
    %6776 = vmatpush1.msra.mxu0 %v6635
    %6777 = vmatprep.subr.mxu0 %v6629
    %6778 = vmatpush1.msra.mxu0 %v6628
    %6779 = vmatprep.subr.mxu0 %v6622
    %6780 = vmatpush1.msra.mxu0 %v6621
    %6781 = vmatprep.subr.mxu0 %v6615
    %6782 = vmatpush1.msra.mxu0 %v6614
    %6783 = vmatprep.subr.mxu0 0.0
    %6784 = vmatpush2.msra.mxu0 0.0
    %6785 = vmatprep.subr.mxu0 0.0
    %6786 = vmatpush2.msra.mxu0 0.0
    %6787 = vmatprep.subr.mxu0 0.0
    %6788 = vmatpush2.msra.mxu0 0.0
    %6789 = vmatprep.subr.mxu0 0.0
    %6790 = vmatpush2.msra.mxu0 0.0
    %6791 = vmatprep.subr.mxu0 0.0
    %6792 = vmatpush2.msra.mxu0 0.0
    %6793 = vmatprep.subr.mxu0 0.0
    %6794 = vmatpush2.msra.mxu0 0.0
    %6795 = vmatprep.subr.mxu0 0.0
    %6796 = vmatpush2.msra.mxu0 0.0
    %6797 = vmatprep.subr.mxu0 0.0
    %6798 = vmatpush2.msra.mxu0 0.0
    %6799 = vmatprep.subr.mxu0 0.0
    %6800 = vmatpush2.msra.mxu0 0.0
    %6801 = vmatprep.subr.mxu0 0.0
    %6802 = vmatpush2.msra.mxu0 0.0
    %6803 = vmatprep.subr.mxu0 0.0
    %6804 = vmatpush2.msra.mxu0 0.0
    %6805 = vmatprep.subr.mxu0 0.0
    %6806 = vmatpush2.msra.mxu0 0.0
    %6807 = vmatprep.subr.mxu0 0.0
    %6808 = vmatpush2.msra.mxu0 0.0
    %6809 = vmatprep.subr.mxu0 0.0
    %6810 = vmatpush2.msra.mxu0 0.0
    %6811 = vmatprep.subr.mxu0 0.0
    %6812 = vmatpush2.msra.mxu0 0.0
    %6813 = vmatprep.subr.mxu0 0.0
    %6814 = vmatpush2.msra.mxu0 0.0
    %6815 = vmatprep.mubr.f32.mxu0 0.0
    %6816 = vmatmul.mubr.f32.gmra.mxu0 %v6669
    %v6817 = vpop.f32.mrf.mxu0
    %v6818 = vadd.f32 0.0, %v6817
    %v6819 = vpop.f32.mrf.mxu0
    %v6820 = vadd.f32 0.0, %v6819
    %6821 = vmatprep.mubr.f32.mxu0 0.0
    %6822 = vmatmul.mubr.f32.gmra.mxu0 %v6672
    %v6823 = vpop.f32.mrf.mxu0
    %v6824 = vadd.f32 0.0, %v6823
    %v6825 = vpop.f32.mrf.mxu0
    %v6826 = vadd.f32 0.0, %v6825
    %6827 = vdwg.mxu0
    %6828 = vmatprep.subr.mxu0 0.0
    %6829 = vmatpush1.msra.mxu0 0.0
    %6830 = vmatprep.subr.mxu0 0.0
    %6831 = vmatpush1.msra.mxu0 0.0
    %6832 = vmatprep.subr.mxu0 0.0
    %6833 = vmatpush1.msra.mxu0 0.0
    %6834 = vmatprep.subr.mxu0 0.0
    %6835 = vmatpush1.msra.mxu0 0.0
    %6836 = vmatprep.subr.mxu0 0.0
    %6837 = vmatpush1.msra.mxu0 0.0
    %6838 = vmatprep.subr.mxu0 0.0
    %6839 = vmatpush1.msra.mxu0 0.0
    %6840 = vmatprep.subr.mxu0 0.0
    %6841 = vmatpush1.msra.mxu0 0.0
    %6842 = vmatprep.subr.mxu0 0.0
    %6843 = vmatpush1.msra.mxu0 0.0
    %6844 = vmatprep.subr.mxu0 %v6666
    %6845 = vmatpush1.msra.mxu0 %v6665
    %6846 = vmatprep.subr.mxu0 %v6659
    %6847 = vmatpush1.msra.mxu0 %v6658
    %6848 = vmatprep.subr.mxu0 %v6652
    %6849 = vmatpush1.msra.mxu0 %v6651
    %6850 = vmatprep.subr.mxu0 %v6645
    %6851 = vmatpush1.msra.mxu0 %v6644
    %6852 = vmatprep.subr.mxu0 %v6638
    %6853 = vmatpush1.msra.mxu0 %v6637
    %6854 = vmatprep.subr.mxu0 %v6631
    %6855 = vmatpush1.msra.mxu0 %v6630
    %6856 = vmatprep.subr.mxu0 %v6624
    %6857 = vmatpush1.msra.mxu0 %v6623
    %6858 = vmatprep.subr.mxu0 %v6617
    %6859 = vmatpush1.msra.mxu0 %v6616
    %6860 = vmatprep.subr.mxu0 0.0
    %6861 = vmatpush2.msra.mxu0 0.0
    %6862 = vmatprep.subr.mxu0 0.0
    %6863 = vmatpush2.msra.mxu0 0.0
    %6864 = vmatprep.subr.mxu0 0.0
    %6865 = vmatpush2.msra.mxu0 0.0
    %6866 = vmatprep.subr.mxu0 0.0
    %6867 = vmatpush2.msra.mxu0 0.0
    %6868 = vmatprep.subr.mxu0 0.0
    %6869 = vmatpush2.msra.mxu0 0.0
    %6870 = vmatprep.subr.mxu0 0.0
    %6871 = vmatpush2.msra.mxu0 0.0
    %6872 = vmatprep.subr.mxu0 0.0
    %6873 = vmatpush2.msra.mxu0 0.0
    %6874 = vmatprep.subr.mxu0 0.0
    %6875 = vmatpush2.msra.mxu0 0.0
    %6876 = vmatprep.subr.mxu0 0.0
    %6877 = vmatpush2.msra.mxu0 0.0
    %6878 = vmatprep.subr.mxu0 0.0
    %6879 = vmatpush2.msra.mxu0 0.0
    %6880 = vmatprep.subr.mxu0 0.0
    %6881 = vmatpush2.msra.mxu0 0.0
    %6882 = vmatprep.subr.mxu0 0.0
    %6883 = vmatpush2.msra.mxu0 0.0
    %6884 = vmatprep.subr.mxu0 0.0
    %6885 = vmatpush2.msra.mxu0 0.0
    %6886 = vmatprep.subr.mxu0 0.0
    %6887 = vmatpush2.msra.mxu0 0.0
    %6888 = vmatprep.subr.mxu0 0.0
    %6889 = vmatpush2.msra.mxu0 0.0
    %6890 = vmatprep.subr.mxu0 0.0
    %6891 = vmatpush2.msra.mxu0 0.0
    %6892 = vmatprep.mubr.f32.mxu0 0.0
    %6893 = vmatmul.mubr.f32.gmra.mxu0 %v6669
    %v6894 = vpop.f32.mrf.mxu0
    %v6895 = vadd.f32 0.0, %v6894
    %v6896 = vpop.f32.mrf.mxu0
    %v6897 = vadd.f32 0.0, %v6896
    %6898 = vmatprep.mubr.f32.mxu0 0.0
    %6899 = vmatmul.mubr.f32.gmra.mxu0 %v6672
    %v6900 = vpop.f32.mrf.mxu0
    %v6901 = vadd.f32 0.0, %v6900
    %v6902 = vpop.f32.mrf.mxu0
    %v6903 = vadd.f32 0.0, %v6902
    %6904 = vdwg.mxu0
    %6905 = vmatprep.subr.mxu0 0.0
    %6906 = vmatpush1.msra.mxu0 0.0
    %6907 = vmatprep.subr.mxu0 0.0
    %6908 = vmatpush1.msra.mxu0 0.0
    %6909 = vmatprep.subr.mxu0 0.0
    %6910 = vmatpush1.msra.mxu0 0.0
    %6911 = vmatprep.subr.mxu0 0.0
    %6912 = vmatpush1.msra.mxu0 0.0
    %6913 = vmatprep.subr.mxu0 0.0
    %6914 = vmatpush1.msra.mxu0 0.0
    %6915 = vmatprep.subr.mxu0 0.0
    %6916 = vmatpush1.msra.mxu0 0.0
    %6917 = vmatprep.subr.mxu0 0.0
    %6918 = vmatpush1.msra.mxu0 0.0
    %6919 = vmatprep.subr.mxu0 0.0
    %6920 = vmatpush1.msra.mxu0 0.0
    %6921 = vmatprep.subr.mxu0 0.0
    %6922 = vmatpush1.msra.mxu0 %v6667
    %6923 = vmatprep.subr.mxu0 0.0
    %6924 = vmatpush1.msra.mxu0 %v6660
    %6925 = vmatprep.subr.mxu0 0.0
    %6926 = vmatpush1.msra.mxu0 %v6653
    %6927 = vmatprep.subr.mxu0 0.0
    %6928 = vmatpush1.msra.mxu0 %v6646
    %6929 = vmatprep.subr.mxu0 0.0
    %6930 = vmatpush1.msra.mxu0 %v6639
    %6931 = vmatprep.subr.mxu0 0.0
    %6932 = vmatpush1.msra.mxu0 %v6632
    %6933 = vmatprep.subr.mxu0 0.0
    %6934 = vmatpush1.msra.mxu0 %v6625
    %6935 = vmatprep.subr.mxu0 0.0
    %6936 = vmatpush1.msra.mxu0 %v6618
    %6937 = vmatprep.subr.mxu0 0.0
    %6938 = vmatpush2.msra.mxu0 0.0
    %6939 = vmatprep.subr.mxu0 0.0
    %6940 = vmatpush2.msra.mxu0 0.0
    %6941 = vmatprep.subr.mxu0 0.0
    %6942 = vmatpush2.msra.mxu0 0.0
    %6943 = vmatprep.subr.mxu0 0.0
    %6944 = vmatpush2.msra.mxu0 0.0
    %6945 = vmatprep.subr.mxu0 0.0
    %6946 = vmatpush2.msra.mxu0 0.0
    %6947 = vmatprep.subr.mxu0 0.0
    %6948 = vmatpush2.msra.mxu0 0.0
    %6949 = vmatprep.subr.mxu0 0.0
    %6950 = vmatpush2.msra.mxu0 0.0
    %6951 = vmatprep.subr.mxu0 0.0
    %6952 = vmatpush2.msra.mxu0 0.0
    %6953 = vmatprep.subr.mxu0 0.0
    %6954 = vmatpush2.msra.mxu0 0.0
    %6955 = vmatprep.subr.mxu0 0.0
    %6956 = vmatpush2.msra.mxu0 0.0
    %6957 = vmatprep.subr.mxu0 0.0
    %6958 = vmatpush2.msra.mxu0 0.0
    %6959 = vmatprep.subr.mxu0 0.0
    %6960 = vmatpush2.msra.mxu0 0.0
    %6961 = vmatprep.subr.mxu0 0.0
    %6962 = vmatpush2.msra.mxu0 0.0
    %6963 = vmatprep.subr.mxu0 0.0
    %6964 = vmatpush2.msra.mxu0 0.0
    %6965 = vmatprep.subr.mxu0 0.0
    %6966 = vmatpush2.msra.mxu0 0.0
    %6967 = vmatprep.subr.mxu0 0.0
    %6968 = vmatpush2.msra.mxu0 0.0
    %6969 = vmatprep.mubr.f32.mxu0 0.0
    %6970 = vmatmul.mubr.f32.gmra.mxu0 %v6669
    %v6971 = vpop.f32.mrf.mxu0
    %v6972 = vadd.f32 0.0, %v6971
    %v6973 = vpop.f32.mrf.mxu0
    %6974 = vmatprep.mubr.f32.mxu0 0.0
    %6975 = vmatmul.mubr.f32.gmra.mxu0 %v6672
    %v6976 = vpop.f32.mrf.mxu0
    %v6977 = vadd.f32 0.0, %v6976
    %v6978 = vpop.f32.mrf.mxu0
    %6979 = vdwg.mxu0
    %v6980 = vadd.f32 %v6598, %v6741
    %v6981 = vadd.f32 %v6599, %v6743
    %v6982 = vadd.f32 %v6600, %v6818
    %v6983 = vadd.f32 %v6601, %v6820
    %v6984 = vadd.f32 %v6602, %v6895
    %v6985 = vadd.f32 %v6603, %v6897
    %v6986 = vadd.f32 %v6604, %v6972
    %v6987 = vadd.f32 %v6605, %v6747
    %v6988 = vadd.f32 %v6606, %v6749
    %v6989 = vadd.f32 %v6607, %v6824
    %v6990 = vadd.f32 %v6608, %v6826
    %v6991 = vadd.f32 %v6609, %v6901
    %v6992 = vadd.f32 %v6610, %v6903
    %v6993 = vadd.f32 %v6611, %v6977
    %v6994 = vmul.f32 %v6980, %v1346
    %v6995 = vmul.f32 %v6987, %v1346
    %v6996 = vadd.f32 %v6994, 0.5
    %v6997 = vadd.f32 %v6995, 0.5
    %v6998 = vmax.f32 %v6996, 0.0
    %v6999 = vmax.f32 %v6997, 0.0
    %v7000 = vmin.f32 %v6998, 1.0
    %v7001 = vmin.f32 %v6999, 1.0
    %v7002 = vtanh.pop %v6981
    %v7003 = vtanh.pop %v6988
    %v7004 = vmul.f32 %v6981, %v1346
    %v7005 = vmul.f32 %v6988, %v1346
    %v7006 = vadd.f32 %v7004, 0.5
    %v7007 = vadd.f32 %v7005, 0.5
    %v7008 = vmax.f32 %v7006, 0.0
    %v7009 = vmax.f32 %v7007, 0.0
    %v7010 = vmin.f32 %v7008, 1.0
    %v7011 = vmin.f32 %v7009, 1.0
    %v7012 = vmul.f32 %v6982, %v1346
    %v7013 = vmul.f32 %v6983, %v1346
    %v7014 = vmul.f32 %v6984, %v1346
    %v7015 = vmul.f32 %v6985, %v1346
    %v7016 = vmul.f32 %v6986, %v1346
    %v7017 = vmul.f32 %v6989, %v1346
    %v7018 = vmul.f32 %v6990, %v1346
    %v7019 = vmul.f32 %v6991, %v1346
    %v7020 = vmul.f32 %v6992, %v1346
    %v7021 = vmul.f32 %v6993, %v1346
    %v7022 = vadd.f32 %v7012, 0.5
    %v7023 = vadd.f32 %v7013, 0.5
    %v7024 = vadd.f32 %v7014, 0.5
    %v7025 = vadd.f32 %v7015, 0.5
    %v7026 = vadd.f32 %v7016, 0.5
    %v7027 = vadd.f32 %v7017, 0.5
    %v7028 = vadd.f32 %v7018, 0.5
    %v7029 = vadd.f32 %v7019, 0.5
    %v7030 = vadd.f32 %v7020, 0.5
    %v7031 = vadd.f32 %v7021, 0.5
    %v7032 = vmax.f32 %v7022, 0.0
    %v7033 = vmax.f32 %v7023, 0.0
    %v7034 = vmax.f32 %v7024, 0.0
    %v7035 = vmax.f32 %v7025, 0.0
    %v7036 = vmax.f32 %v7026, 0.0
    %v7037 = vmax.f32 %v7027, 0.0
    %v7038 = vmax.f32 %v7028, 0.0
    %v7039 = vmax.f32 %v7029, 0.0
    %v7040 = vmax.f32 %v7030, 0.0
    %v7041 = vmax.f32 %v7031, 0.0
    %v7042 = vmin.f32 %v7032, 1.0
    %v7043 = vmin.f32 %v7033, 1.0
    %v7044 = vmin.f32 %v7034, 1.0
    %v7045 = vmin.f32 %v7035, 1.0
    %v7046 = vmin.f32 %v7036, 1.0
    %v7047 = vmin.f32 %v7037, 1.0
    %v7048 = vmin.f32 %v7038, 1.0
    %v7049 = vmin.f32 %v7039, 1.0
    %v7050 = vmin.f32 %v7040, 1.0
    %v7051 = vmin.f32 %v7041, 1.0
    %v7052 = vmul.f32 %v7000, %v7002
    %v7053 = vmul.f32 %v7001, %v7003
    %7056 = vrot.lane.b32.xlu0 %v7000, 64
    %v7057 = vpop.permute.xlu0 %7056
    %7058 = vrot.lane.b32.xlu0 %v7001, 64
    %v7059 = vpop.permute.xlu0 %7058
    %v7062 = vsel %vm922, %v7057, %v7000
    %v7063 = vsel %vm922, %v7059, %v7001
    %7066 = vrot.lane.b32.xlu0 %v7052, 64
    %v7067 = vpop.permute.xlu0 %7066
    %7068 = vrot.lane.b32.xlu0 %v7053, 64
    %v7069 = vpop.permute.xlu0 %7068
    %v7072 = vsel %vm922, %v7052, %v7067
    %v7073 = vsel %vm922, %v7053, %v7069
    %v7074 = vmul.f32 %v7062, %v7042
    %v7075 = vmul.f32 %v7062, %v7043
    %v7076 = vmul.f32 %v7062, %v7044
    %v7077 = vmul.f32 %v7062, %v7045
    %v7078 = vmul.f32 %v7062, %v7046
    %v7079 = vmul.f32 %v7063, %v7047
    %v7080 = vmul.f32 %v7063, %v7048
    %v7081 = vmul.f32 %v7063, %v7049
    %v7082 = vmul.f32 %v7063, %v7050
    %v7083 = vmul.f32 %v7063, %v7051
    %s7084 = scalar_lea.vmem %s6, 7
    %v7085 = vld [vmem:[%s7084] ss:$8 sm:$0xf]
    %v7086 = vld [vmem:[%s7084] ss:$8 sm:$0x10]
    %v7087 = vor.u32 %v7085, %v7086
    %s7088 = scalar_lea.vmem %s7, 7
    %v7089 = vld [vmem:[%s7088] ss:$8 sm:$0xf]
    %v7090 = vld [vmem:[%s7088] ss:$8 sm:$0x10]
    %v7091 = vor.u32 %v7089, %v7090
    %v7092 = vld [vmem:[#allocation4] sm:$0xff]
    %v7093 = vld [vmem:[#allocation4 + $0x8] sm:$0xff]
    %v7094 = vld [vmem:[#allocation4 + $0x10] sm:$0xff]
    %v7095 = vld [vmem:[#allocation4 + $0x18] sm:$0xff]
    %v7096 = vld [vmem:[#allocation4 + $0x20] sm:$0xff]
    %v7097 = vld [vmem:[#allocation4 + $0x28] sm:$0xff]
    %v7098 = vld [vmem:[#allocation4 + $0x30] sm:$0xff]
    %v7099 = vld [vmem:[#allocation4 + $0x38] sm:$0xff]
    %v7100 = vld [vmem:[#allocation4 + $0x40] sm:$0xff]
    %v7101 = vld [vmem:[#allocation4 + $0x48] sm:$0xff]
    %v7102 = vmul.f32 %v7074, %v7092
    %v7103 = vmul.f32 %v7075, %v7093
    %v7104 = vmul.f32 %v7076, %v7094
    %v7105 = vmul.f32 %v7077, %v7095
    %v7106 = vmul.f32 %v7078, %v7096
    %v7107 = vmul.f32 %v7079, %v7097
    %v7108 = vmul.f32 %v7080, %v7098
    %v7109 = vmul.f32 %v7081, %v7099
    %v7110 = vmul.f32 %v7082, %v7100
    %v7111 = vmul.f32 %v7083, %v7101
    %v7113 = vlaneseq
    %v7114 = vshrl.u32 %v7113, 7
    %v7115 = vsub.s32 0, %v7114
    %v7116 = vrot.slane %v7087, %v7115
    %v7117 = vlaneseq
    %v7118 = vshrl.u32 %v7117, 7
    %v7119 = vsub.s32 1, %v7118
    %v7120 = vrot.slane %v7087, %v7119
    %v7121 = vlaneseq
    %v7122 = vshrl.u32 %v7121, 7
    %v7123 = vsub.s32 2, %v7122
    %v7124 = vrot.slane %v7087, %v7123
    %v7125 = vlaneseq
    %v7126 = vshrl.u32 %v7125, 7
    %v7127 = vsub.s32 3, %v7126
    %v7128 = vrot.slane %v7087, %v7127
    %v7129 = vlaneseq
    %v7130 = vshrl.u32 %v7129, 7
    %v7131 = vsub.s32 4, %v7130
    %v7132 = vrot.slane %v7087, %v7131
    %v7138 = vmul.f32 %v7072, %v7116
    %v7139 = vmul.f32 %v7072, %v7120
    %v7140 = vmul.f32 %v7072, %v7124
    %v7141 = vmul.f32 %v7072, %v7128
    %v7142 = vmul.f32 %v7072, %v7132
    %v7143 = vmul.f32 %v7073, %v7116
    %v7144 = vmul.f32 %v7073, %v7120
    %v7145 = vmul.f32 %v7073, %v7124
    %v7146 = vmul.f32 %v7073, %v7128
    %v7147 = vmul.f32 %v7073, %v7132
    %v7148 = vadd.f32 %v7102, %v7138
    %v7149 = vadd.f32 %v7103, %v7139
    %v7150 = vadd.f32 %v7104, %v7140
    %v7151 = vadd.f32 %v7105, %v7141
    %v7152 = vadd.f32 %v7106, %v7142
    %v7153 = vadd.f32 %v7107, %v7143
    %v7154 = vadd.f32 %v7108, %v7144
    %v7155 = vadd.f32 %v7109, %v7145
    %v7156 = vadd.f32 %v7110, %v7146
    %v7157 = vadd.f32 %v7111, %v7147
    %v7158 = vld [vmem:[#allocation5] sm:$0xff]
    %v7159 = vld [vmem:[#allocation5 + $0x8] sm:$0xff]
    %v7160 = vld [vmem:[#allocation5 + $0x10] sm:$0xff]
    %v7161 = vld [vmem:[#allocation5 + $0x18] sm:$0xff]
    %v7162 = vld [vmem:[#allocation5 + $0x20] sm:$0xff]
    %v7163 = vld [vmem:[#allocation5 + $0x28] sm:$0xff]
    %v7164 = vld [vmem:[#allocation5 + $0x30] sm:$0xff]
    %v7165 = vld [vmem:[#allocation5 + $0x38] sm:$0xff]
    %v7166 = vld [vmem:[#allocation5 + $0x40] sm:$0xff]
    %v7167 = vld [vmem:[#allocation5 + $0x48] sm:$0xff]
    %v7168 = vmul.f32 %v7074, %v7158
    %v7169 = vmul.f32 %v7075, %v7159
    %v7170 = vmul.f32 %v7076, %v7160
    %v7171 = vmul.f32 %v7077, %v7161
    %v7172 = vmul.f32 %v7078, %v7162
    %v7173 = vmul.f32 %v7079, %v7163
    %v7174 = vmul.f32 %v7080, %v7164
    %v7175 = vmul.f32 %v7081, %v7165
    %v7176 = vmul.f32 %v7082, %v7166
    %v7177 = vmul.f32 %v7083, %v7167
    %v7179 = vlaneseq
    %v7180 = vshrl.u32 %v7179, 7
    %v7181 = vsub.s32 0, %v7180
    %v7182 = vrot.slane %v7091, %v7181
    %v7183 = vlaneseq
    %v7184 = vshrl.u32 %v7183, 7
    %v7185 = vsub.s32 1, %v7184
    %v7186 = vrot.slane %v7091, %v7185
    %v7187 = vlaneseq
    %v7188 = vshrl.u32 %v7187, 7
    %v7189 = vsub.s32 2, %v7188
    %v7190 = vrot.slane %v7091, %v7189
    %v7191 = vlaneseq
    %v7192 = vshrl.u32 %v7191, 7
    %v7193 = vsub.s32 3, %v7192
    %v7194 = vrot.slane %v7091, %v7193
    %v7195 = vlaneseq
    %v7196 = vshrl.u32 %v7195, 7
    %v7197 = vsub.s32 4, %v7196
    %v7198 = vrot.slane %v7091, %v7197
    %v7204 = vmul.f32 %v7072, %v7182
    %v7205 = vmul.f32 %v7072, %v7186
    %v7206 = vmul.f32 %v7072, %v7190
    %v7207 = vmul.f32 %v7072, %v7194
    %v7208 = vmul.f32 %v7072, %v7198
    %v7209 = vmul.f32 %v7073, %v7182
    %v7210 = vmul.f32 %v7073, %v7186
    %v7211 = vmul.f32 %v7073, %v7190
    %v7212 = vmul.f32 %v7073, %v7194
    %v7213 = vmul.f32 %v7073, %v7198
    %v7214 = vadd.f32 %v7168, %v7204
    %v7215 = vadd.f32 %v7169, %v7205
    %v7216 = vadd.f32 %v7170, %v7206
    %v7217 = vadd.f32 %v7171, %v7207
    %v7218 = vadd.f32 %v7172, %v7208
    %v7219 = vadd.f32 %v7173, %v7209
    %v7220 = vadd.f32 %v7174, %v7210
    %v7221 = vadd.f32 %v7175, %v7211
    %v7222 = vadd.f32 %v7176, %v7212
    %v7223 = vadd.f32 %v7177, %v7213
    %7224 = vst [vmem:[#allocation4] sm:$0xff] %v7148
    %7225 = vst [vmem:[#allocation4 + $0x8] sm:$0xff] %v7149
    %7226 = vst [vmem:[#allocation4 + $0x10] sm:$0xff] %v7150
    %7227 = vst [vmem:[#allocation4 + $0x18] sm:$0xff] %v7151
    %7228 = vst [vmem:[#allocation4 + $0x20] sm:$0xff] %v7152
    %7229 = vst [vmem:[#allocation4 + $0x28] sm:$0xff] %v7153
    %7230 = vst [vmem:[#allocation4 + $0x30] sm:$0xff] %v7154
    %7231 = vst [vmem:[#allocation4 + $0x38] sm:$0xff] %v7155
    %7232 = vst [vmem:[#allocation4 + $0x40] sm:$0xff] %v7156
    %7233 = vst [vmem:[#allocation4 + $0x48] sm:$0xff] %v7157
    %7234 = vst [vmem:[#allocation5] sm:$0xff] %v7214
    %7235 = vst [vmem:[#allocation5 + $0x8] sm:$0xff] %v7215
    %7236 = vst [vmem:[#allocation5 + $0x10] sm:$0xff] %v7216
    %7237 = vst [vmem:[#allocation5 + $0x18] sm:$0xff] %v7217
    %7238 = vst [vmem:[#allocation5 + $0x20] sm:$0xff] %v7218
    %7239 = vst [vmem:[#allocation5 + $0x28] sm:$0xff] %v7219
    %7240 = vst [vmem:[#allocation5 + $0x30] sm:$0xff] %v7220
    %7241 = vst [vmem:[#allocation5 + $0x38] sm:$0xff] %v7221
    %7242 = vst [vmem:[#allocation5 + $0x40] sm:$0xff] %v7222
    %7243 = vst [vmem:[#allocation5 + $0x48] sm:$0xff] %v7223
    %v7244 = vmul.f32 %v7148, %v7148
    %v7245 = vmul.f32 %v7149, %v7149
    %v7246 = vmul.f32 %v7150, %v7150
    %v7247 = vmul.f32 %v7151, %v7151
    %v7248 = vmul.f32 %v7152, %v7152
    %v7249 = vmul.f32 %v7153, %v7153
    %v7250 = vmul.f32 %v7154, %v7154
    %v7251 = vmul.f32 %v7155, %v7155
    %v7252 = vmul.f32 %v7156, %v7156
    %v7253 = vmul.f32 %v7157, %v7157
    %v7254 = vmul.f32 %v7214, %v7214
    %v7255 = vmul.f32 %v7215, %v7215
    %v7256 = vmul.f32 %v7216, %v7216
    %v7257 = vmul.f32 %v7217, %v7217
    %v7258 = vmul.f32 %v7218, %v7218
    %v7259 = vmul.f32 %v7219, %v7219
    %v7260 = vmul.f32 %v7220, %v7220
    %v7261 = vmul.f32 %v7221, %v7221
    %v7262 = vmul.f32 %v7222, %v7222
    %v7263 = vmul.f32 %v7223, %v7223
    %v7264 = vadd.f32 %v7244, %v7254
    %v7265 = vadd.f32 %v7245, %v7255
    %v7266 = vadd.f32 %v7246, %v7256
    %v7267 = vadd.f32 %v7247, %v7257
    %v7268 = vadd.f32 %v7248, %v7258
    %v7269 = vadd.f32 %v7249, %v7259
    %v7270 = vadd.f32 %v7250, %v7260
    %v7271 = vadd.f32 %v7251, %v7261
    %v7272 = vadd.f32 %v7252, %v7262
    %v7273 = vadd.f32 %v7253, %v7263
    %v7274 = vld [vmem:[%s5] sm:$0x1f]
    %v7276 = vlaneseq
    %v7277 = vshrl.u32 %v7276, 7
    %v7278 = vsub.s32 0, %v7277
    %v7279 = vrot.slane %v7274, %v7278
    %v7280 = vlaneseq
    %v7281 = vshrl.u32 %v7280, 7
    %v7282 = vsub.s32 1, %v7281
    %v7283 = vrot.slane %v7274, %v7282
    %v7284 = vlaneseq
    %v7285 = vshrl.u32 %v7284, 7
    %v7286 = vsub.s32 2, %v7285
    %v7287 = vrot.slane %v7274, %v7286
    %v7288 = vlaneseq
    %v7289 = vshrl.u32 %v7288, 7
    %v7290 = vsub.s32 3, %v7289
    %v7291 = vrot.slane %v7274, %v7290
    %v7292 = vlaneseq
    %v7293 = vshrl.u32 %v7292, 7
    %v7294 = vsub.s32 4, %v7293
    %v7295 = vrot.slane %v7274, %v7294
    %v7301 = vmul.f32 %v7264, %v7279
    %v7302 = vmul.f32 %v7265, %v7283
    %v7303 = vmul.f32 %v7266, %v7287
    %v7304 = vmul.f32 %v7267, %v7291
    %v7305 = vmul.f32 %v7268, %v7295
    %v7306 = vmul.f32 %v7269, %v7279
    %v7307 = vmul.f32 %v7270, %v7283
    %v7308 = vmul.f32 %v7271, %v7287
    %v7309 = vmul.f32 %v7272, %v7291
    %v7310 = vmul.f32 %v7273, %v7295
    %7313 = vrot.lane.b32.xlu0 %v7301, 64
    %v7314 = vpop.permute.xlu0 %7313
    %7315 = vrot.lane.b32.xlu0 %v7306, 64
    %v7316 = vpop.permute.xlu0 %7315
    %v7319 = vadd.f32 %v7301, %v7314
    %v7320 = vadd.f32 %v7306, %v7316
    %7323 = vrot.lane.b32.xlu0 %v7302, 64
    %v7324 = vpop.permute.xlu0 %7323
    %7325 = vrot.lane.b32.xlu0 %v7307, 64
    %v7326 = vpop.permute.xlu0 %7325
    %v7329 = vadd.f32 %v7302, %v7324
    %v7330 = vadd.f32 %v7307, %v7326
    %7333 = vrot.lane.b32.xlu0 %v7303, 64
    %v7334 = vpop.permute.xlu0 %7333
    %7335 = vrot.lane.b32.xlu0 %v7308, 64
    %v7336 = vpop.permute.xlu0 %7335
    %v7339 = vadd.f32 %v7303, %v7334
    %v7340 = vadd.f32 %v7308, %v7336
    %7343 = vrot.lane.b32.xlu0 %v7304, 64
    %v7344 = vpop.permute.xlu0 %7343
    %7345 = vrot.lane.b32.xlu0 %v7309, 64
    %v7346 = vpop.permute.xlu0 %7345
    %v7349 = vadd.f32 %v7304, %v7344
    %v7350 = vadd.f32 %v7309, %v7346
    %7353 = vrot.lane.b32.xlu0 %v7305, 64
    %v7354 = vpop.permute.xlu0 %7353
    %7355 = vrot.lane.b32.xlu0 %v7310, 64
    %v7356 = vpop.permute.xlu0 %7355
    %v7359 = vadd.f32 %v7305, %v7354
    %v7360 = vadd.f32 %v7310, %v7356
    %v7361 = vadd.f32 %v7319, %v7329
    %v7362 = vadd.f32 %v7320, %v7330
    %v7363 = vadd.f32 %v7339, %v7349
    %v7364 = vadd.f32 %v7340, %v7350
    %v7365 = vadd.f32 %v7361, %v7363
    %v7366 = vadd.f32 %v7362, %v7364
    %v7367 = vadd.f32 %v7365, %v7359
    %v7368 = vadd.f32 %v7366, %v7360
    %v7369 = vld [vmem:[%s4] sm:$0x1]
    %v7371 = vlaneseq
    %v7372 = vshrl.u32 %v7371, 7
    %v7373 = vsub.s32 0, %v7372
    %v7374 = vrot.slane %v7369, %v7373
    %v7376 = vadd.f32 %v7367, %v7374
    %v7377 = vadd.f32 %v7368, %v7374
    %v7378 = vtanh.pop %v7376
    %v7379 = vtanh.pop %v7377
    %7382 = vrot.lane.b32.xlu0 %v7378, 64
    %v7383 = vpop.permute.xlu0 %7382
    %7384 = vrot.lane.b32.xlu0 %v7379, 64
    %v7385 = vpop.permute.xlu0 %7384
    %v7388 = vmul.f32 %v7010, %v7383
    %v7389 = vmul.f32 %v7011, %v7385
    %7392 = vrot.lane.b32.xlu0 %v7388, 64
    %v7393 = vpop.permute.xlu0 %7392
    %7394 = vrot.lane.b32.xlu0 %v7389, 64
    %v7395 = vpop.permute.xlu0 %7394
    %7398 = vst.msk [vmem:[#allocation3] sm:$0xff] %vm922, %v7393
    %7399 = vst.msk [vmem:[#allocation3 + $0x8] sm:$0xff] %vm922, %v7395
    %v7400 = vld [vmem:[#allocation3] sm:$0xff]
    %v7401 = vld [vmem:[#allocation3 + $0x8] sm:$0xff]
    %v7402 = vld [vmem:[%s8] sm:$0xff]
    %v7403 = vld [vmem:[%s8 + $0x8] sm:$0xff]
    %v7404 = vld [vmem:[%s8 + $0x10] sm:$0xff]
    %v7405 = vld [vmem:[%s8 + $0x18] sm:$0xff]
    %v7406 = vld [vmem:[%s8 + $0x20] sm:$0xff]
    %v7407 = vld [vmem:[%s8 + $0x28] sm:$0xff]
    %v7408 = vld [vmem:[%s8 + $0x30] sm:$0xff]
    %v7409 = vld [vmem:[%s8 + $0x38] sm:$0xff]
    %v7410 = vld [vmem:[#allocation6] sm:$0x1]
    %v7412 = vlaneseq
    %v7413 = vshrl.u32 %v7412, 7
    %v7414 = vsub.s32 0, %v7413
    %v7415 = vrot.slane %v7410, %v7414
    %v7418 = vsel %vm922, %v7400, 0
    %v7421 = vsel %vm922, %v7401, 0
    %7423 = vmatprep.subr.mxu0 0.0
    %7424 = vmatpush1.msra.mxu0 0.0
    %7425 = vmatprep.subr.mxu0 0.0
    %7426 = vmatpush1.msra.mxu0 0.0
    %7427 = vmatprep.subr.mxu0 0.0
    %7428 = vmatpush1.msra.mxu0 0.0
    %7429 = vmatprep.subr.mxu0 0.0
    %7430 = vmatpush1.msra.mxu0 0.0
    %7431 = vmatprep.subr.mxu0 0.0
    %7432 = vmatpush1.msra.mxu0 0.0
    %7433 = vmatprep.subr.mxu0 0.0
    %7434 = vmatpush1.msra.mxu0 0.0
    %7435 = vmatprep.subr.mxu0 0.0
    %7436 = vmatpush1.msra.mxu0 0.0
    %7437 = vmatprep.subr.mxu0 0.0
    %7438 = vmatpush1.msra.mxu0 0.0
    %7439 = vmatprep.subr.mxu0 0.0
    %7440 = vmatpush1.msra.mxu0 %v7409
    %7441 = vmatprep.subr.mxu0 0.0
    %7442 = vmatpush1.msra.mxu0 %v7408
    %7443 = vmatprep.subr.mxu0 0.0
    %7444 = vmatpush1.msra.mxu0 %v7407
    %7445 = vmatprep.subr.mxu0 0.0
    %7446 = vmatpush1.msra.mxu0 %v7406
    %7447 = vmatprep.subr.mxu0 0.0
    %7448 = vmatpush1.msra.mxu0 %v7405
    %7449 = vmatprep.subr.mxu0 0.0
    %7450 = vmatpush1.msra.mxu0 %v7404
    %7451 = vmatprep.subr.mxu0 0.0
    %7452 = vmatpush1.msra.mxu0 %v7403
    %7453 = vmatprep.subr.mxu0 0.0
    %7454 = vmatpush1.msra.mxu0 %v7402
    %7455 = vmatprep.subr.mxu0 0.0
    %7456 = vmatpush2.msra.mxu0 0.0
    %7457 = vmatprep.subr.mxu0 0.0
    %7458 = vmatpush2.msra.mxu0 0.0
    %7459 = vmatprep.subr.mxu0 0.0
    %7460 = vmatpush2.msra.mxu0 0.0
    %7461 = vmatprep.subr.mxu0 0.0
    %7462 = vmatpush2.msra.mxu0 0.0
    %7463 = vmatprep.subr.mxu0 0.0
    %7464 = vmatpush2.msra.mxu0 0.0
    %7465 = vmatprep.subr.mxu0 0.0
    %7466 = vmatpush2.msra.mxu0 0.0
    %7467 = vmatprep.subr.mxu0 0.0
    %7468 = vmatpush2.msra.mxu0 0.0
    %7469 = vmatprep.subr.mxu0 0.0
    %7470 = vmatpush2.msra.mxu0 0.0
    %7471 = vmatprep.subr.mxu0 0.0
    %7472 = vmatpush2.msra.mxu0 0.0
    %7473 = vmatprep.subr.mxu0 0.0
    %7474 = vmatpush2.msra.mxu0 0.0
    %7475 = vmatprep.subr.mxu0 0.0
    %7476 = vmatpush2.msra.mxu0 0.0
    %7477 = vmatprep.subr.mxu0 0.0
    %7478 = vmatpush2.msra.mxu0 0.0
    %7479 = vmatprep.subr.mxu0 0.0
    %7480 = vmatpush2.msra.mxu0 0.0
    %7481 = vmatprep.subr.mxu0 0.0
    %7482 = vmatpush2.msra.mxu0 0.0
    %7483 = vmatprep.subr.mxu0 0.0
    %7484 = vmatpush2.msra.mxu0 0.0
    %7485 = vmatprep.subr.mxu0 0.0
    %7486 = vmatpush2.msra.mxu0 0.0
    %7487 = vmatprep.mubr.f32.mxu0 0.0
    %7488 = vmatmul.mubr.f32.gmra.mxu0 %v7418
    %v7489 = vpop.f32.mrf.mxu0
    %v7490 = vadd.f32 %v7415, %v7489
    %v7491 = vpop.f32.mrf.mxu0
    %7492 = vmatprep.mubr.f32.mxu0 0.0
    %7493 = vmatmul.mubr.f32.gmra.mxu0 %v7421
    %v7494 = vpop.f32.mrf.mxu0
    %v7495 = vadd.f32 %v7415, %v7494
    %v7496 = vpop.f32.mrf.mxu0
    %7497 = vdwg.mxu0
    %vm7498 = vcmask 7168
    %7499 = vst.msk [vmem:[%s10] sm:$0xff] %vm7498, %v7490
    %7500 = vst.msk [vmem:[%s10 + $0x8] sm:$0xff] %vm7498, %v7495
    // Predicated region
    $region46: #{tpu_custom_call.1} parent=1 // pred_check
      _
    $region47: #{tpu_custom_call.1} parent=1 // pred_check_branch
      %7502 = sbr.rel (0) target = $region49
    $region48: #{tpu_custom_call.1} parent=1 // pred_region
      _
    $region49: #{tpu_custom_call.1} parent=1 // pred_fallthru
      _
    // Predicated region
    $region50: #{tpu_custom_call.1} parent=1 // pred_check
      _
    $region51: #{tpu_custom_call.1} parent=1 // pred_check_branch
      %7504 = sbr.rel (0) target = $region53
    $region52: #{tpu_custom_call.1} parent=1 // pred_region
      _
    $region53: #{tpu_custom_call.1} parent=1 // pred_fallthru
      _
    %7505 = vsyncpa [#allocation8], 1

</llo_original>
